<compile_context>
chip_gen: v6e
topology: v6e:2x2x1
jax: 0.10.0
libtpu: 0.0.40
codegen_flags: <defaults>
</compile_context>

<pallas_src>
import functools

import jax
import jax.numpy as jnp
from jax import lax
from jax.experimental import pallas as pl
from jax.experimental.pallas import tpu as pltpu

EPS = 1e-5
NEG_SLOPE = 0.01          # torch.nn.LeakyReLU() default negative_slope
HIGH = lax.Precision.HIGHEST


def _round_up(v, m):
    return (v + m - 1) // m * m


def _leaky(y):
    return jnp.where(y >= 0, y, NEG_SLOPE * y)


def _fold_bn(gamma, beta, mean, var):
    scale = gamma / jnp.sqrt(var + EPS)
    shift = beta - mean * scale
    return scale, shift


def _interior_mask(shape, off_r, off_c, stride, lo, hi_r, hi_c):
    # shape = (rows, cols, C) of a phase plane; plane element (u, v) maps to
    # spatial position (stride*u + off_r, stride*v + off_c).  True where that
    # position is interior (i.e. NOT part of the zero-padding ring).
    r = off_r + stride * lax.broadcasted_iota(jnp.int32, shape, 0)
    c = off_c + stride * lax.broadcasted_iota(jnp.int32, shape, 1)
    return (r >= lo) & (r < hi_r) & (c >= lo) & (c < hi_c)


# ----------------------------------------------------------------------------
# Fused kernel: one grid step == one batch element.
#
# The wrapper zero-pads x by 2 (total receptive field padding of the two 3x3
# convs) and splits it into stride*stride "phase" planes
#     XP[a][b][u, v] = x_padded[stride*u + a, stride*v + b]
# so that every strided access below becomes a unit-stride static slice.
# ----------------------------------------------------------------------------
def _wide_basic_kernel(xph_ref, s1_ref, t1_ref, w1_ref, b1_ref,
                       s2_ref, t2_ref, w2_ref, b2_ref, *rest,
                       stride, H, W, cin, cmid, cout, has_sc):
    if has_sc:
        wsc_ref, bsc_ref, o_ref, col1_ref, col2_ref = rest
    else:
        wsc_ref = bsc_ref = None
        o_ref, col1_ref, col2_ref = rest

    s = stride
    Ho, Wo, _ = o_ref.shape
    U1, V1, _ = col1_ref.shape                 # (H+2)//s rows, width padded to 8k

    sc1 = s1_ref[...]                          # (1, 1, cin)  folded BN1 scale
    sh1 = t1_ref[...]                          # (1, 1, cin)  folded BN1 shift
    sc2 = s2_ref[...]                          # (1, 1, cmid)
    sh2 = t2_ref[...]
    w1 = w1_ref[...]                           # (9*cin, cmid)  bf16
    b1 = b1_ref[...]                           # (1, cmid)      f32
    w2 = w2_ref[...]                           # (9*cmid, cout) bf16
    b2 = b2_ref[...]                           # (1, cout)      f32

    # ---- stage 1: BN1 + LeakyReLU on every input phase plane ---------------
    # The conv zero-padding ring must stay exactly zero after bn+act (padding
    # is applied AFTER bn/act in the reference), hence the interior mask.
    a1 = []
    for c in range(s):
        row = []
        for d in range(s):
            xp = xph_ref[c * s + d]                        # (Upp, Vpp, cin) f32
            y = _leaky(xp * sc1 + sh1)
            ok = _interior_mask(xp.shape, c, d, s, 2, H + 2, W + 2)
            row.append(jnp.where(ok, y, 0.0))
        a1.append(row)

    # ---- stage 2: conv1 (3x3 / stride 1 / pad 1) + bias, then BN2 + act ----
    # One im2col matmul (K = 9*cin) per output phase, patch built in VMEM.
    a2 = []
    for a in range(s):
        row = []
        for b in range(s):
            for ky in range(3):
                for kx in range(3):
                    c, d = (a + ky) % s, (b + kx) % s
                    du, dv = (a + ky) // s, (b + kx) // s
                    t = ky * 3 + kx
                    col1_ref[:, :, t * cin:(t + 1) * cin] = (
                        a1[c][d][du:du + U1, dv:dv + V1, :])
            patch = col1_ref[...].reshape(U1 * V1, 9 * cin)
            o1 = jnp.dot(patch.astype(jnp.bfloat16), w1,
                         preferred_element_type=jnp.float32) + b1
            y = _leaky(o1.reshape(U1, V1, cmid) * sc2 + sh2)
            ok = _interior_mask((U1, V1, cmid), a, b, s, 1, H + 1, W + 1)
            row.append(jnp.where(ok, y, 0.0))
        a2.append(row)

    # ---- stage 3: strided conv2 (only kept outputs) + shortcut + add -------
    for ky in range(3):
        for kx in range(3):
            c, d = ky % s, kx % s
            du, dv = ky // s, kx // s
            t = ky * 3 + kx
            col2_ref[:, :, t * cmid:(t + 1) * cmid] = (
                a2[c][d][du:du + Ho, dv:dv + Wo, :])
    patch2 = col2_ref[...].reshape(Ho * Wo, 9 * cmid)
    o2 = jnp.dot(patch2.astype(jnp.bfloat16), w2,
                 preferred_element_type=jnp.float32) + b2       # (Ho*Wo, cout)

    # shortcut input x[s*i, s*j] == padded-x phase (2 % s, 2 % s) at offset 2//s
    pc, off = 2 % s, 2 // s
    xs = xph_ref[pc * s + pc][off:off + Ho, off:off + Wo, :]    # (Ho, Wo, cin)
    xs2 = xs.reshape(Ho * Wo, cin)
    if has_sc:
        sc = jnp.dot(xs2.astype(jnp.bfloat16), wsc_ref[...],
                     preferred_element_type=jnp.float32) + bsc_ref[...]
    else:
        sc = xs2                                                # cin == cout

    o_ref[...] = (o2 + sc).reshape(Ho, Wo, cout).astype(o_ref.dtype)


# ----------------------------------------------------------------------------
# Wrapper
# ----------------------------------------------------------------------------
def wide_basic_forward(x_nchw, p, stride):
    """wide_basic forward (eval mode).  NCHW in -> NCHW out."""
    x = jnp.transpose(x_nchw, (0, 2, 3, 1)).astype(jnp.float32)    # -> NHWC
    N, H, W, cin = x.shape
    s = int(stride)
    cmid = p["conv1_w"].shape[-1]
    cout = p["conv2_w"].shape[-1]
    has_sc = "sc_w" in p
    assert H % s == 0 and W % s == 0 and (H + 2) % s == 0 and (W + 2) % s == 0
    if not has_sc:
        assert cin == cout

    Ho, Wo = H // s, W // s
    U1 = (H + 2) // s                      # rows of each conv1-output phase
    V1 = _round_up((W + 2) // s, 8)        # width padded to a sublane multiple
    max_dv = (s + 1) // s                  # 2 when s == 1, else 1
    Upp = (H + 4) // s
    Vpp = V1 + max_dv

    # Only wrapper-side data op: double zero-pad x, pad extra zero columns so
    # the phase planes are sublane-friendly, deinterleave into s*s planes.
    xpp = jnp.pad(x, ((0, 0), (2, 2), (2, 2), (0, 0)))
    extra = s * Vpp - (W + 4)
    if extra:
        xpp = jnp.pad(xpp, ((0, 0), (0, 0), (0, extra), (0, 0)))
    phase_planes = [xpp[:, a::s, b::s, :] for a in range(s) for b in range(s)]
    xph = jnp.stack(phase_planes, axis=1).reshape(N * s * s, Upp, Vpp, cin)

    sc1, sh1 = _fold_bn(p["bn1_gamma"], p["bn1_beta"], p["bn1_mean"], p["bn1_var"])
    sc2, sh2 = _fold_bn(p["bn2_gamma"], p["bn2_beta"], p["bn2_mean"], p["bn2_var"])
    w1m = p["conv1_w"].reshape(9 * cin, cmid).astype(jnp.bfloat16)
    w2m = p["conv2_w"].reshape(9 * cmid, cout).astype(jnp.bfloat16)

    args = [xph,
            sc1.reshape(1, 1, cin), sh1.reshape(1, 1, cin),
            w1m, p["conv1_b"].reshape(1, cmid),
            sc2.reshape(1, 1, cmid), sh2.reshape(1, 1, cmid),
            w2m, p["conv2_b"].reshape(1, cout)]
    in_specs = [
        pl.BlockSpec((s * s, Upp, Vpp, cin), lambda n: (n, 0, 0, 0)),
        pl.BlockSpec((1, 1, cin), lambda n: (0, 0, 0)),
        pl.BlockSpec((1, 1, cin), lambda n: (0, 0, 0)),
        pl.BlockSpec((9 * cin, cmid), lambda n: (0, 0)),
        pl.BlockSpec((1, cmid), lambda n: (0, 0)),
        pl.BlockSpec((1, 1, cmid), lambda n: (0, 0, 0)),
        pl.BlockSpec((1, 1, cmid), lambda n: (0, 0, 0)),
        pl.BlockSpec((9 * cmid, cout), lambda n: (0, 0)),
        pl.BlockSpec((1, cout), lambda n: (0, 0)),
    ]
    if has_sc:
        args += [p["sc_w"].astype(jnp.bfloat16), p["sc_b"].reshape(1, cout)]
        in_specs += [pl.BlockSpec((cin, cout), lambda n: (0, 0)),
                     pl.BlockSpec((1, cout), lambda n: (0, 0))]

    kernel = functools.partial(
        _wide_basic_kernel, stride=s, H=H, W=W,
        cin=cin, cmid=cmid, cout=cout, has_sc=has_sc)

    out = pl.pallas_call(
        kernel,
        out_shape=jax.ShapeDtypeStruct((N, Ho, Wo, cout), jnp.float32),
        grid_spec=pltpu.PrefetchScalarGridSpec(
            num_scalar_prefetch=0,
            grid=(N,),
            in_specs=in_specs,
            out_specs=pl.BlockSpec((None, Ho, Wo, cout),
                                   lambda n: (n, 0, 0, 0)),
            scratch_shapes=[pltpu.VMEM((U1, V1, 9 * cin), jnp.float32),
                            pltpu.VMEM((Ho, Wo, 9 * cmid), jnp.float32)]),
        compiler_params=pltpu.CompilerParams(
            dimension_semantics=("parallel",)),
    )(*args)
    # TODO(synk): at production Wide-ResNet sizes (large N, C >= 160) tile the
    # spatial/batch dims with blocked BlockSpecs + vmem_limit_bytes (re-derive
    # the tile budget for v7x's 64 MiB VMEM); channels then also become
    # naturally lane-dense (>=128).
    # TODO(synk): training-mode dropout (random mask, 1/(1-p) scaling) and
    # training-mode BatchNorm batch statistics are not reproduced here.
    return jnp.transpose(out, (0, 3, 1, 2))                        # -> NCHW


# ----------------------------------------------------------------------------
# Deterministic parameter construction (shapes from the module's __init__)
# ----------------------------------------------------------------------------
def init_wide_basic_params(key, in_planes, planes, stride):
    ks = jax.random.split(key, 14)
    f32 = jnp.float32
    p = {
        "bn1_gamma": 1.0 + 0.1 * jax.random.normal(ks[0], (in_planes,), f32),
        "bn1_beta": 0.1 * jax.random.normal(ks[1], (in_planes,), f32),
        "bn1_mean": 0.1 * jax.random.normal(ks[2], (in_planes,), f32),
        "bn1_var": jax.random.uniform(ks[3], (in_planes,), f32, 0.5, 1.5),
        "conv1_w": 0.1 * jax.random.normal(ks[4], (3, 3, in_planes, planes), f32),
        "conv1_b": 0.1 * jax.random.normal(ks[5], (planes,), f32),
        "bn2_gamma": 1.0 + 0.1 * jax.random.normal(ks[6], (planes,), f32),
        "bn2_beta": 0.1 * jax.random.normal(ks[7], (planes,), f32),
        "bn2_mean": 0.1 * jax.random.normal(ks[8], (planes,), f32),
        "bn2_var": jax.random.uniform(ks[9], (planes,), f32, 0.5, 1.5),
        "conv2_w": 0.1 * jax.random.normal(ks[10], (3, 3, planes, planes), f32),
        "conv2_b": 0.1 * jax.random.normal(ks[11], (planes,), f32),
    }
    if stride != 1 or in_planes != planes:      # conv shortcut
        p["sc_w"] = 0.1 * jax.random.normal(ks[12], (in_planes, planes), f32)
        p["sc_b"] = 0.1 * jax.random.normal(ks[13], (planes,), f32)
    return p


# ----------------------------------------------------------------------------
# Pure-JAX references for verification.
#   matmul_dtype = float32  -> exact eval-mode PyTorch math
#   matmul_dtype = bfloat16 -> mirrors the kernel's bf16-operand / f32-accum
# ----------------------------------------------------------------------------
def ref_forward(x_nchw, p, stride, matmul_dtype):
    x = jnp.transpose(x_nchw, (0, 2, 3, 1)).astype(jnp.float32)
    prec = HIGH if matmul_dtype == jnp.float32 else None

    def conv(a, w, s):
        return lax.conv_general_dilated(
            a.astype(matmul_dtype), w.astype(matmul_dtype),
            (s, s), ((1, 1), (1, 1)),
            dimension_numbers=("NHWC", "HWIO", "NHWC"),
            precision=prec, preferred_element_type=jnp.float32)

    sc1, sh1 = _fold_bn(p["bn1_gamma"], p["bn1_beta"], p["bn1_mean"], p["bn1_var"])
    sc2, sh2 = _fold_bn(p["bn2_gamma"], p["bn2_beta"], p["bn2_mean"], p["bn2_var"])
    a1 = _leaky(x * sc1 + sh1)
    o1 = conv(a1, p["conv1_w"], 1) + p["conv1_b"]
    a2 = _leaky(o1 * sc2 + sh2)
    o2 = conv(a2, p["conv2_w"], stride) + p["conv2_b"]
    xs = x[:, ::stride, ::stride, :]
    if "sc_w" in p:
        sc = jnp.einsum("nhwc,co->nhwo",
                        xs.astype(matmul_dtype), p["sc_w"].astype(matmul_dtype),
                        precision=prec,
                        preferred_element_type=jnp.float32) + p["sc_b"]
    else:
        sc = xs
    return jnp.transpose(o2 + sc, (0, 3, 1, 2))


# ----------------------------------------------------------------------------
if __name__ == "__main__":
    key = jax.random.PRNGKey(0)
    kx, kp1, kp2 = jax.random.split(key, 3)

    # PyTorch-style NCHW input
    x = jax.random.normal(kx, (2, 4, 16, 16), dtype=jnp.float32)

    configs = [
        (dict(in_planes=4, planes=4, stride=1), kp1),   # identity shortcut
        (dict(in_planes=4, planes=8, stride=2), kp2),   # 1x1-conv shortcut, stride 2
    ]

    for cfg, kp in configs:
        params = init_wide_basic_params(kp, **cfg)
        out = jax.block_until_ready(wide_basic_forward(x, params, cfg["stride"]))

        ref_b = ref_forward(x, params, cfg["stride"], jnp.bfloat16)  # matched numerics
        ref_f = ref_forward(x, params, cfg["stride"], jnp.float32)   # full-f32 semantics
        assert out.shape == ref_f.shape, (out.shape, ref_f.shape)
        err_b = float(jnp.max(jnp.abs(out - ref_b)))
        err_f = float(jnp.max(jnp.abs(out - ref_f)))
        assert jnp.allclose(out, ref_b, rtol=5e-3, atol=5e-3), err_b
        assert jnp.allclose(out, ref_f, rtol=5e-2, atol=5e-2), err_f

    print("KERNEL_OK")
</pallas_src>

<mosaic_0001>
module attributes {stable_mosaic.version = 11 : i64} {
  func.func @_wide_basic_kernel(%arg0: i32, %arg1: memref<1x20x26x4xf32, #tpu.memory_space<vmem>>, %arg2: memref<1x1x4xf32, #tpu.memory_space<vmem>>, %arg3: memref<1x1x4xf32, #tpu.memory_space<vmem>>, %arg4: memref<36x4xbf16, #tpu.memory_space<vmem>>, %arg5: memref<1x4xf32, #tpu.memory_space<vmem>>, %arg6: memref<1x1x4xf32, #tpu.memory_space<vmem>>, %arg7: memref<1x1x4xf32, #tpu.memory_space<vmem>>, %arg8: memref<36x4xbf16, #tpu.memory_space<vmem>>, %arg9: memref<1x4xf32, #tpu.memory_space<vmem>>, %arg10: memref<1x16x16x4xf32, #tpu.memory_space<vmem>>, %arg11: memref<18x24x36xf32, #tpu.memory_space<vmem>>, %arg12: memref<16x16x36xf32, #tpu.memory_space<vmem>>) attributes {dimension_semantics = [#tpu.dimension_semantics<parallel>], iteration_bounds = array<i64: 2>, scalar_prefetch = 0 : i64, scratch_operands = 2 : i64, tpu.core_type = #tpu.core_type<tc>, window_params = [{transform_indices = @transform_0, window_bounds = array<i64: 1, 20, 26, 4>}, {pipeline_mode = #tpu.pipeline_mode<synchronous>, transform_indices = @transform_1, window_bounds = array<i64: 1, 1, 4>}, {pipeline_mode = #tpu.pipeline_mode<synchronous>, transform_indices = @transform_2, window_bounds = array<i64: 1, 1, 4>}, {pipeline_mode = #tpu.pipeline_mode<synchronous>, transform_indices = @transform_3, window_bounds = array<i64: 36, 4>}, {pipeline_mode = #tpu.pipeline_mode<synchronous>, transform_indices = @transform_4, window_bounds = array<i64: 1, 4>}, {pipeline_mode = #tpu.pipeline_mode<synchronous>, transform_indices = @transform_5, window_bounds = array<i64: 1, 1, 4>}, {pipeline_mode = #tpu.pipeline_mode<synchronous>, transform_indices = @transform_6, window_bounds = array<i64: 1, 1, 4>}, {pipeline_mode = #tpu.pipeline_mode<synchronous>, transform_indices = @transform_7, window_bounds = array<i64: 36, 4>}, {pipeline_mode = #tpu.pipeline_mode<synchronous>, transform_indices = @transform_8, window_bounds = array<i64: 1, 4>}, {transform_indices = @transform_9, window_bounds = array<i64: 1, 16, 16, 4>}]} {
    %c0 = arith.constant 0 : index
    %c0_0 = arith.constant 0 : index
    %c0_1 = arith.constant 0 : index
    %0 = vector.load %arg2[%c0, %c0_0, %c0_1] : memref<1x1x4xf32, #tpu.memory_space<vmem>>, vector<1x1x4xf32>
    %c0_2 = arith.constant 0 : index
    %c0_3 = arith.constant 0 : index
    %c0_4 = arith.constant 0 : index
    %1 = vector.load %arg3[%c0_2, %c0_3, %c0_4] : memref<1x1x4xf32, #tpu.memory_space<vmem>>, vector<1x1x4xf32>
    %c0_5 = arith.constant 0 : index
    %c0_6 = arith.constant 0 : index
    %c0_7 = arith.constant 0 : index
    %2 = vector.load %arg6[%c0_5, %c0_6, %c0_7] : memref<1x1x4xf32, #tpu.memory_space<vmem>>, vector<1x1x4xf32>
    %c0_8 = arith.constant 0 : index
    %c0_9 = arith.constant 0 : index
    %c0_10 = arith.constant 0 : index
    %3 = vector.load %arg7[%c0_8, %c0_9, %c0_10] : memref<1x1x4xf32, #tpu.memory_space<vmem>>, vector<1x1x4xf32>
    %c0_11 = arith.constant 0 : index
    %c0_12 = arith.constant 0 : index
    %4 = vector.load %arg4[%c0_11, %c0_12] : memref<36x4xbf16, #tpu.memory_space<vmem>>, vector<36x4xbf16>
    %c0_13 = arith.constant 0 : index
    %c0_14 = arith.constant 0 : index
    %5 = vector.load %arg5[%c0_13, %c0_14] : memref<1x4xf32, #tpu.memory_space<vmem>>, vector<1x4xf32>
    %c0_15 = arith.constant 0 : index
    %c0_16 = arith.constant 0 : index
    %6 = vector.load %arg8[%c0_15, %c0_16] : memref<36x4xbf16, #tpu.memory_space<vmem>>, vector<36x4xbf16>
    %c0_17 = arith.constant 0 : index
    %c0_18 = arith.constant 0 : index
    %7 = vector.load %arg9[%c0_17, %c0_18] : memref<1x4xf32, #tpu.memory_space<vmem>>, vector<1x4xf32>
    %c0_19 = arith.constant 0 : index
    %c0_20 = arith.constant 0 : index
    %c0_21 = arith.constant 0 : index
    %c0_22 = arith.constant 0 : index
    %8 = vector.load %arg1[%c0_19, %c0_20, %c0_21, %c0_22] : memref<1x20x26x4xf32, #tpu.memory_space<vmem>>, vector<1x20x26x4xf32>
    %9 = vector.shape_cast %8 : vector<1x20x26x4xf32> to vector<20x26x4xf32>
    %10 = vector.broadcast %0 : vector<1x1x4xf32> to vector<20x26x4xf32>
    %11 = arith.mulf %9, %10 : vector<20x26x4xf32>
    %12 = vector.broadcast %1 : vector<1x1x4xf32> to vector<20x26x4xf32>
    %13 = arith.addf %11, %12 : vector<20x26x4xf32>
    %cst = arith.constant 0.000000e+00 : f32
    %14 = vector.broadcast %cst : f32 to vector<20x26x4xf32>
    %15 = arith.cmpf oge, %13, %14 : vector<20x26x4xf32>
    %cst_23 = arith.constant 0.00999999977 : f32
    %16 = vector.broadcast %cst_23 : f32 to vector<20x26x4xf32>
    %17 = arith.mulf %16, %13 : vector<20x26x4xf32>
    %18 = arith.select %15, %13, %17 : vector<20x26x4xi1>, vector<20x26x4xf32>
    %19 = tpu.iota {dimensions = array<i32: 0>} : vector<20x26x4xi32>
    %c1_i32 = arith.constant 1 : i32
    %20 = vector.broadcast %c1_i32 : i32 to vector<20x26x4xi32>
    %21 = arith.muli %20, %19 : vector<20x26x4xi32>
    %c0_i32 = arith.constant 0 : i32
    %22 = vector.broadcast %c0_i32 : i32 to vector<20x26x4xi32>
    %23 = arith.addi %22, %21 : vector<20x26x4xi32>
    %24 = tpu.iota {dimensions = array<i32: 1>} : vector<20x26x4xi32>
    %c1_i32_24 = arith.constant 1 : i32
    %25 = vector.broadcast %c1_i32_24 : i32 to vector<20x26x4xi32>
    %26 = arith.muli %25, %24 : vector<20x26x4xi32>
    %c0_i32_25 = arith.constant 0 : i32
    %27 = vector.broadcast %c0_i32_25 : i32 to vector<20x26x4xi32>
    %28 = arith.addi %27, %26 : vector<20x26x4xi32>
    %c2_i32 = arith.constant 2 : i32
    %29 = vector.broadcast %c2_i32 : i32 to vector<20x26x4xi32>
    %30 = arith.cmpi sge, %23, %29 : vector<20x26x4xi32>
    %c18_i32 = arith.constant 18 : i32
    %31 = vector.broadcast %c18_i32 : i32 to vector<20x26x4xi32>
    %32 = arith.cmpi slt, %23, %31 : vector<20x26x4xi32>
    %33 = arith.andi %30, %32 : vector<20x26x4xi1>
    %c2_i32_26 = arith.constant 2 : i32
    %34 = vector.broadcast %c2_i32_26 : i32 to vector<20x26x4xi32>
    %35 = arith.cmpi sge, %28, %34 : vector<20x26x4xi32>
    %36 = arith.andi %33, %35 : vector<20x26x4xi1>
    %c18_i32_27 = arith.constant 18 : i32
    %37 = vector.broadcast %c18_i32_27 : i32 to vector<20x26x4xi32>
    %38 = arith.cmpi slt, %28, %37 : vector<20x26x4xi32>
    %39 = arith.andi %36, %38 : vector<20x26x4xi1>
    %cst_28 = arith.constant 0.000000e+00 : f32
    %40 = vector.broadcast %cst_28 : f32 to vector<20x26x4xf32>
    %41 = arith.select %39, %18, %40 : vector<20x26x4xi1>, vector<20x26x4xf32>
    %42 = vector.extract_strided_slice %41 {offsets = [0, 0, 0], sizes = [18, 24, 4], strides = [1, 1, 1]} : vector<20x26x4xf32> to vector<18x24x4xf32>
    %c0_29 = arith.constant 0 : index
    %c0_30 = arith.constant 0 : index
    %c0_31 = arith.constant 0 : index
    %43 = vector.load %arg11[%c0_29, %c0_30, %c0_31] : memref<18x24x36xf32, #tpu.memory_space<vmem>>, vector<18x24x4xf32>
    tpu.vector_store %arg11[%c0_29, %c0_30, %c0_31], %42 {strides = array<i32>} : memref<18x24x36xf32, #tpu.memory_space<vmem>>, vector<18x24x4xf32>,
    %44 = vector.extract_strided_slice %41 {offsets = [0, 1, 0], sizes = [18, 24, 4], strides = [1, 1, 1]} : vector<20x26x4xf32> to vector<18x24x4xf32>
    %c0_32 = arith.constant 0 : index
    %c0_33 = arith.constant 0 : index
    %c4 = arith.constant 4 : index
    %45 = vector.load %arg11[%c0_32, %c0_33, %c4] : memref<18x24x36xf32, #tpu.memory_space<vmem>>, vector<18x24x4xf32>
    tpu.vector_store %arg11[%c0_32, %c0_33, %c4], %44 {strides = array<i32>} : memref<18x24x36xf32, #tpu.memory_space<vmem>>, vector<18x24x4xf32>,
    %46 = vector.extract_strided_slice %41 {offsets = [0, 2, 0], sizes = [18, 24, 4], strides = [1, 1, 1]} : vector<20x26x4xf32> to vector<18x24x4xf32>
    %c0_34 = arith.constant 0 : index
    %c0_35 = arith.constant 0 : index
    %c8 = arith.constant 8 : index
    %47 = vector.load %arg11[%c0_34, %c0_35, %c8] : memref<18x24x36xf32, #tpu.memory_space<vmem>>, vector<18x24x4xf32>
    tpu.vector_store %arg11[%c0_34, %c0_35, %c8], %46 {strides = array<i32>} : memref<18x24x36xf32, #tpu.memory_space<vmem>>, vector<18x24x4xf32>,
    %48 = vector.extract_strided_slice %41 {offsets = [1, 0, 0], sizes = [18, 24, 4], strides = [1, 1, 1]} : vector<20x26x4xf32> to vector<18x24x4xf32>
    %c0_36 = arith.constant 0 : index
    %c0_37 = arith.constant 0 : index
    %c12 = arith.constant 12 : index
    %49 = vector.load %arg11[%c0_36, %c0_37, %c12] : memref<18x24x36xf32, #tpu.memory_space<vmem>>, vector<18x24x4xf32>
    tpu.vector_store %arg11[%c0_36, %c0_37, %c12], %48 {strides = array<i32>} : memref<18x24x36xf32, #tpu.memory_space<vmem>>, vector<18x24x4xf32>,
    %50 = vector.extract_strided_slice %41 {offsets = [1, 1, 0], sizes = [18, 24, 4], strides = [1, 1, 1]} : vector<20x26x4xf32> to vector<18x24x4xf32>
    %c0_38 = arith.constant 0 : index
    %c0_39 = arith.constant 0 : index
    %c16 = arith.constant 16 : index
    %51 = vector.load %arg11[%c0_38, %c0_39, %c16] : memref<18x24x36xf32, #tpu.memory_space<vmem>>, vector<18x24x4xf32>
    tpu.vector_store %arg11[%c0_38, %c0_39, %c16], %50 {strides = array<i32>} : memref<18x24x36xf32, #tpu.memory_space<vmem>>, vector<18x24x4xf32>,
    %52 = vector.extract_strided_slice %41 {offsets = [1, 2, 0], sizes = [18, 24, 4], strides = [1, 1, 1]} : vector<20x26x4xf32> to vector<18x24x4xf32>
    %c0_40 = arith.constant 0 : index
    %c0_41 = arith.constant 0 : index
    %c20 = arith.constant 20 : index
    %53 = vector.load %arg11[%c0_40, %c0_41, %c20] : memref<18x24x36xf32, #tpu.memory_space<vmem>>, vector<18x24x4xf32>
    tpu.vector_store %arg11[%c0_40, %c0_41, %c20], %52 {strides = array<i32>} : memref<18x24x36xf32, #tpu.memory_space<vmem>>, vector<18x24x4xf32>,
    %54 = vector.extract_strided_slice %41 {offsets = [2, 0, 0], sizes = [18, 24, 4], strides = [1, 1, 1]} : vector<20x26x4xf32> to vector<18x24x4xf32>
    %c0_42 = arith.constant 0 : index
    %c0_43 = arith.constant 0 : index
    %c24 = arith.constant 24 : index
    %55 = vector.load %arg11[%c0_42, %c0_43, %c24] : memref<18x24x36xf32, #tpu.memory_space<vmem>>, vector<18x24x4xf32>
    tpu.vector_store %arg11[%c0_42, %c0_43, %c24], %54 {strides = array<i32>} : memref<18x24x36xf32, #tpu.memory_space<vmem>>, vector<18x24x4xf32>,
    %56 = vector.extract_strided_slice %41 {offsets = [2, 1, 0], sizes = [18, 24, 4], strides = [1, 1, 1]} : vector<20x26x4xf32> to vector<18x24x4xf32>
    %c0_44 = arith.constant 0 : index
    %c0_45 = arith.constant 0 : index
    %c28 = arith.constant 28 : index
    %57 = vector.load %arg11[%c0_44, %c0_45, %c28] : memref<18x24x36xf32, #tpu.memory_space<vmem>>, vector<18x24x4xf32>
    tpu.vector_store %arg11[%c0_44, %c0_45, %c28], %56 {strides = array<i32>} : memref<18x24x36xf32, #tpu.memory_space<vmem>>, vector<18x24x4xf32>,
    %58 = vector.extract_strided_slice %41 {offsets = [2, 2, 0], sizes = [18, 24, 4], strides = [1, 1, 1]} : vector<20x26x4xf32> to vector<18x24x4xf32>
    %c0_46 = arith.constant 0 : index
    %c0_47 = arith.constant 0 : index
    %c32 = arith.constant 32 : index
    %59 = vector.load %arg11[%c0_46, %c0_47, %c32] : memref<18x24x36xf32, #tpu.memory_space<vmem>>, vector<18x24x4xf32>
    tpu.vector_store %arg11[%c0_46, %c0_47, %c32], %58 {strides = array<i32>} : memref<18x24x36xf32, #tpu.memory_space<vmem>>, vector<18x24x4xf32>,
    %c0_48 = arith.constant 0 : index
    %c0_49 = arith.constant 0 : index
    %c0_50 = arith.constant 0 : index
    %60 = vector.load %arg11[%c0_48, %c0_49, %c0_50] : memref<18x24x36xf32, #tpu.memory_space<vmem>>, vector<18x24x36xf32>
    %61 = vector.shape_cast %60 : vector<18x24x36xf32> to vector<432x36xf32>
    %62 = arith.truncf %61 : vector<432x36xf32> to vector<432x36xbf16>
    %cst_51 = arith.constant dense<0.000000e+00> : vector<432x4xf32>
    %63 = tpu.matmul %62, %4, %cst_51 {dimension_numbers = #tpu.dot_dimension_numbers<[1], [0], [0], [1], [0, 0, 1, 1], [], []>} : vector<432x36xbf16>, vector<36x4xbf16>, vector<432x4xf32> -> vector<432x4xf32>
    %64 = vector.broadcast %5 : vector<1x4xf32> to vector<432x4xf32>
    %65 = arith.addf %63, %64 : vector<432x4xf32>
    %66 = vector.shape_cast %65 : vector<432x4xf32> to vector<18x24x4xf32>
    %67 = vector.broadcast %2 : vector<1x1x4xf32> to vector<18x24x4xf32>
    %68 = arith.mulf %66, %67 : vector<18x24x4xf32>
    %69 = vector.broadcast %3 : vector<1x1x4xf32> to vector<18x24x4xf32>
    %70 = arith.addf %68, %69 : vector<18x24x4xf32>
    %cst_52 = arith.constant 0.000000e+00 : f32
    %71 = vector.broadcast %cst_52 : f32 to vector<18x24x4xf32>
    %72 = arith.cmpf oge, %70, %71 : vector<18x24x4xf32>
    %cst_53 = arith.constant 0.00999999977 : f32
    %73 = vector.broadcast %cst_53 : f32 to vector<18x24x4xf32>
    %74 = arith.mulf %73, %70 : vector<18x24x4xf32>
    %75 = arith.select %72, %70, %74 : vector<18x24x4xi1>, vector<18x24x4xf32>
    %76 = tpu.iota {dimensions = array<i32: 0>} : vector<18x24x4xi32>
    %c1_i32_54 = arith.constant 1 : i32
    %77 = vector.broadcast %c1_i32_54 : i32 to vector<18x24x4xi32>
    %78 = arith.muli %77, %76 : vector<18x24x4xi32>
    %c0_i32_55 = arith.constant 0 : i32
    %79 = vector.broadcast %c0_i32_55 : i32 to vector<18x24x4xi32>
    %80 = arith.addi %79, %78 : vector<18x24x4xi32>
    %81 = tpu.iota {dimensions = array<i32: 1>} : vector<18x24x4xi32>
    %c1_i32_56 = arith.constant 1 : i32
    %82 = vector.broadcast %c1_i32_56 : i32 to vector<18x24x4xi32>
    %83 = arith.muli %82, %81 : vector<18x24x4xi32>
    %c0_i32_57 = arith.constant 0 : i32
    %84 = vector.broadcast %c0_i32_57 : i32 to vector<18x24x4xi32>
    %85 = arith.addi %84, %83 : vector<18x24x4xi32>
    %c1_i32_58 = arith.constant 1 : i32
    %86 = vector.broadcast %c1_i32_58 : i32 to vector<18x24x4xi32>
    %87 = arith.cmpi sge, %80, %86 : vector<18x24x4xi32>
    %c17_i32 = arith.constant 17 : i32
    %88 = vector.broadcast %c17_i32 : i32 to vector<18x24x4xi32>
    %89 = arith.cmpi slt, %80, %88 : vector<18x24x4xi32>
    %90 = arith.andi %87, %89 : vector<18x24x4xi1>
    %c1_i32_59 = arith.constant 1 : i32
    %91 = vector.broadcast %c1_i32_59 : i32 to vector<18x24x4xi32>
    %92 = arith.cmpi sge, %85, %91 : vector<18x24x4xi32>
    %93 = arith.andi %90, %92 : vector<18x24x4xi1>
    %c17_i32_60 = arith.constant 17 : i32
    %94 = vector.broadcast %c17_i32_60 : i32 to vector<18x24x4xi32>
    %95 = arith.cmpi slt, %85, %94 : vector<18x24x4xi32>
    %96 = arith.andi %93, %95 : vector<18x24x4xi1>
    %cst_61 = arith.constant 0.000000e+00 : f32
    %97 = vector.broadcast %cst_61 : f32 to vector<18x24x4xf32>
    %98 = arith.select %96, %75, %97 : vector<18x24x4xi1>, vector<18x24x4xf32>
    %99 = vector.extract_strided_slice %98 {offsets = [0, 0, 0], sizes = [16, 16, 4], strides = [1, 1, 1]} : vector<18x24x4xf32> to vector<16x16x4xf32>
    %c0_62 = arith.constant 0 : index
    %c0_63 = arith.constant 0 : index
    %c0_64 = arith.constant 0 : index
    %100 = vector.load %arg12[%c0_62, %c0_63, %c0_64] : memref<16x16x36xf32, #tpu.memory_space<vmem>>, vector<16x16x4xf32>
    tpu.vector_store %arg12[%c0_62, %c0_63, %c0_64], %99 {strides = array<i32>} : memref<16x16x36xf32, #tpu.memory_space<vmem>>, vector<16x16x4xf32>,
    %101 = vector.extract_strided_slice %98 {offsets = [0, 1, 0], sizes = [16, 16, 4], strides = [1, 1, 1]} : vector<18x24x4xf32> to vector<16x16x4xf32>
    %c0_65 = arith.constant 0 : index
    %c0_66 = arith.constant 0 : index
    %c4_67 = arith.constant 4 : index
    %102 = vector.load %arg12[%c0_65, %c0_66, %c4_67] : memref<16x16x36xf32, #tpu.memory_space<vmem>>, vector<16x16x4xf32>
    tpu.vector_store %arg12[%c0_65, %c0_66, %c4_67], %101 {strides = array<i32>} : memref<16x16x36xf32, #tpu.memory_space<vmem>>, vector<16x16x4xf32>,
    %103 = vector.extract_strided_slice %98 {offsets = [0, 2, 0], sizes = [16, 16, 4], strides = [1, 1, 1]} : vector<18x24x4xf32> to vector<16x16x4xf32>
    %c0_68 = arith.constant 0 : index
    %c0_69 = arith.constant 0 : index
    %c8_70 = arith.constant 8 : index
    %104 = vector.load %arg12[%c0_68, %c0_69, %c8_70] : memref<16x16x36xf32, #tpu.memory_space<vmem>>, vector<16x16x4xf32>
    tpu.vector_store %arg12[%c0_68, %c0_69, %c8_70], %103 {strides = array<i32>} : memref<16x16x36xf32, #tpu.memory_space<vmem>>, vector<16x16x4xf32>,
    %105 = vector.extract_strided_slice %98 {offsets = [1, 0, 0], sizes = [16, 16, 4], strides = [1, 1, 1]} : vector<18x24x4xf32> to vector<16x16x4xf32>
    %c0_71 = arith.constant 0 : index
    %c0_72 = arith.constant 0 : index
    %c12_73 = arith.constant 12 : index
    %106 = vector.load %arg12[%c0_71, %c0_72, %c12_73] : memref<16x16x36xf32, #tpu.memory_space<vmem>>, vector<16x16x4xf32>
    tpu.vector_store %arg12[%c0_71, %c0_72, %c12_73], %105 {strides = array<i32>} : memref<16x16x36xf32, #tpu.memory_space<vmem>>, vector<16x16x4xf32>,
    %107 = vector.extract_strided_slice %98 {offsets = [1, 1, 0], sizes = [16, 16, 4], strides = [1, 1, 1]} : vector<18x24x4xf32> to vector<16x16x4xf32>
    %c0_74 = arith.constant 0 : index
    %c0_75 = arith.constant 0 : index
    %c16_76 = arith.constant 16 : index
    %108 = vector.load %arg12[%c0_74, %c0_75, %c16_76] : memref<16x16x36xf32, #tpu.memory_space<vmem>>, vector<16x16x4xf32>
    tpu.vector_store %arg12[%c0_74, %c0_75, %c16_76], %107 {strides = array<i32>} : memref<16x16x36xf32, #tpu.memory_space<vmem>>, vector<16x16x4xf32>,
    %109 = vector.extract_strided_slice %98 {offsets = [1, 2, 0], sizes = [16, 16, 4], strides = [1, 1, 1]} : vector<18x24x4xf32> to vector<16x16x4xf32>
    %c0_77 = arith.constant 0 : index
    %c0_78 = arith.constant 0 : index
    %c20_79 = arith.constant 20 : index
    %110 = vector.load %arg12[%c0_77, %c0_78, %c20_79] : memref<16x16x36xf32, #tpu.memory_space<vmem>>, vector<16x16x4xf32>
    tpu.vector_store %arg12[%c0_77, %c0_78, %c20_79], %109 {strides = array<i32>} : memref<16x16x36xf32, #tpu.memory_space<vmem>>, vector<16x16x4xf32>,
    %111 = vector.extract_strided_slice %98 {offsets = [2, 0, 0], sizes = [16, 16, 4], strides = [1, 1, 1]} : vector<18x24x4xf32> to vector<16x16x4xf32>
    %c0_80 = arith.constant 0 : index
    %c0_81 = arith.constant 0 : index
    %c24_82 = arith.constant 24 : index
    %112 = vector.load %arg12[%c0_80, %c0_81, %c24_82] : memref<16x16x36xf32, #tpu.memory_space<vmem>>, vector<16x16x4xf32>
    tpu.vector_store %arg12[%c0_80, %c0_81, %c24_82], %111 {strides = array<i32>} : memref<16x16x36xf32, #tpu.memory_space<vmem>>, vector<16x16x4xf32>,
    %113 = vector.extract_strided_slice %98 {offsets = [2, 1, 0], sizes = [16, 16, 4], strides = [1, 1, 1]} : vector<18x24x4xf32> to vector<16x16x4xf32>
    %c0_83 = arith.constant 0 : index
    %c0_84 = arith.constant 0 : index
    %c28_85 = arith.constant 28 : index
    %114 = vector.load %arg12[%c0_83, %c0_84, %c28_85] : memref<16x16x36xf32, #tpu.memory_space<vmem>>, vector<16x16x4xf32>
    tpu.vector_store %arg12[%c0_83, %c0_84, %c28_85], %113 {strides = array<i32>} : memref<16x16x36xf32, #tpu.memory_space<vmem>>, vector<16x16x4xf32>,
    %115 = vector.extract_strided_slice %98 {offsets = [2, 2, 0], sizes = [16, 16, 4], strides = [1, 1, 1]} : vector<18x24x4xf32> to vector<16x16x4xf32>
    %c0_86 = arith.constant 0 : index
    %c0_87 = arith.constant 0 : index
    %c32_88 = arith.constant 32 : index
    %116 = vector.load %arg12[%c0_86, %c0_87, %c32_88] : memref<16x16x36xf32, #tpu.memory_space<vmem>>, vector<16x16x4xf32>
    tpu.vector_store %arg12[%c0_86, %c0_87, %c32_88], %115 {strides = array<i32>} : memref<16x16x36xf32, #tpu.memory_space<vmem>>, vector<16x16x4xf32>,
    %c0_89 = arith.constant 0 : index
    %c0_90 = arith.constant 0 : index
    %c0_91 = arith.constant 0 : index
    %117 = vector.load %arg12[%c0_89, %c0_90, %c0_91] : memref<16x16x36xf32, #tpu.memory_space<vmem>>, vector<16x16x36xf32>
    %118 = vector.shape_cast %117 : vector<16x16x36xf32> to vector<256x36xf32>
    %119 = arith.truncf %118 : vector<256x36xf32> to vector<256x36xbf16>
    %cst_92 = arith.constant dense<0.000000e+00> : vector<256x4xf32>
    %120 = tpu.matmul %119, %6, %cst_92 {dimension_numbers = #tpu.dot_dimension_numbers<[1], [0], [0], [1], [0, 0, 1, 1], [], []>} : vector<256x36xbf16>, vector<36x4xbf16>, vector<256x4xf32> -> vector<256x4xf32>
    %121 = vector.broadcast %7 : vector<1x4xf32> to vector<256x4xf32>
    %122 = arith.addf %120, %121 : vector<256x4xf32>
    %c0_93 = arith.constant 0 : index
    %c0_94 = arith.constant 0 : index
    %c0_95 = arith.constant 0 : index
    %c0_96 = arith.constant 0 : index
    %123 = vector.load %arg1[%c0_93, %c0_94, %c0_95, %c0_96] : memref<1x20x26x4xf32, #tpu.memory_space<vmem>>, vector<1x20x26x4xf32>
    %124 = vector.shape_cast %123 : vector<1x20x26x4xf32> to vector<20x26x4xf32>
    %125 = vector.extract_strided_slice %124 {offsets = [2, 2, 0], sizes = [16, 16, 4], strides = [1, 1, 1]} : vector<20x26x4xf32> to vector<16x16x4xf32>
    %126 = vector.shape_cast %125 : vector<16x16x4xf32> to vector<256x4xf32>
    %127 = arith.addf %122, %126 : vector<256x4xf32>
    %128 = vector.shape_cast %127 : vector<256x4xf32> to vector<16x16x4xf32>
    %c0_97 = arith.constant 0 : index
    %c0_98 = arith.constant 0 : index
    %c0_99 = arith.constant 0 : index
    %c0_100 = arith.constant 0 : index
    %129 = vector.load %arg10[%c0_97, %c0_98, %c0_99, %c0_100] : memref<1x16x16x4xf32, #tpu.memory_space<vmem>>, vector<1x16x16x4xf32>
    %130 = vector.shape_cast %129 : vector<1x16x16x4xf32> to vector<16x16x4xf32>
    %131 = vector.shape_cast %128 : vector<16x16x4xf32> to vector<1x16x16x4xf32>
    tpu.vector_store %arg10[%c0_97, %c0_98, %c0_99, %c0_100], %131 {strides = array<i32>} : memref<1x16x16x4xf32, #tpu.memory_space<vmem>>, vector<1x16x16x4xf32>,
    return
  }
  func.func @transform_0(%arg0: i32) -> (i32, i32, i32, i32) {
    %c0_i32 = arith.constant 0 : i32
    %c0_i32_0 = arith.constant 0 : i32
    %c0_i32_1 = arith.constant 0 : i32
    %c0_i32_2 = arith.constant 0 : i32
    return %arg0, %c0_i32, %c0_i32_0, %c0_i32_1 : i32, i32, i32, i32
  }
  func.func @transform_1(%arg0: i32) -> (i32, i32, i32) {
    %c0_i32 = arith.constant 0 : i32
    %c0_i32_0 = arith.constant 0 : i32
    %c0_i32_1 = arith.constant 0 : i32
    %c0_i32_2 = arith.constant 0 : i32
    return %c0_i32, %c0_i32_0, %c0_i32_1 : i32, i32, i32
  }
  func.func @transform_2(%arg0: i32) -> (i32, i32, i32) {
    %c0_i32 = arith.constant 0 : i32
    %c0_i32_0 = arith.constant 0 : i32
    %c0_i32_1 = arith.constant 0 : i32
    %c0_i32_2 = arith.constant 0 : i32
    return %c0_i32, %c0_i32_0, %c0_i32_1 : i32, i32, i32
  }
  func.func @transform_3(%arg0: i32) -> (i32, i32) {
    %c0_i32 = arith.constant 0 : i32
    %c0_i32_0 = arith.constant 0 : i32
    %c0_i32_1 = arith.constant 0 : i32
    return %c0_i32, %c0_i32_0 : i32, i32
  }
  func.func @transform_4(%arg0: i32) -> (i32, i32) {
    %c0_i32 = arith.constant 0 : i32
    %c0_i32_0 = arith.constant 0 : i32
    %c0_i32_1 = arith.constant 0 : i32
    return %c0_i32, %c0_i32_0 : i32, i32
  }
  func.func @transform_5(%arg0: i32) -> (i32, i32, i32) {
    %c0_i32 = arith.constant 0 : i32
    %c0_i32_0 = arith.constant 0 : i32
    %c0_i32_1 = arith.constant 0 : i32
    %c0_i32_2 = arith.constant 0 : i32
    return %c0_i32, %c0_i32_0, %c0_i32_1 : i32, i32, i32
  }
  func.func @transform_6(%arg0: i32) -> (i32, i32, i32) {
    %c0_i32 = arith.constant 0 : i32
    %c0_i32_0 = arith.constant 0 : i32
    %c0_i32_1 = arith.constant 0 : i32
    %c0_i32_2 = arith.constant 0 : i32
    return %c0_i32, %c0_i32_0, %c0_i32_1 : i32, i32, i32
  }
  func.func @transform_7(%arg0: i32) -> (i32, i32) {
    %c0_i32 = arith.constant 0 : i32
    %c0_i32_0 = arith.constant 0 : i32
    %c0_i32_1 = arith.constant 0 : i32
    return %c0_i32, %c0_i32_0 : i32, i32
  }
  func.func @transform_8(%arg0: i32) -> (i32, i32) {
    %c0_i32 = arith.constant 0 : i32
    %c0_i32_0 = arith.constant 0 : i32
    %c0_i32_1 = arith.constant 0 : i32
    return %c0_i32, %c0_i32_0 : i32, i32
  }
  func.func @transform_9(%arg0: i32) -> (i32, i32, i32, i32) {
    %c0_i32 = arith.constant 0 : i32
    %c0_i32_0 = arith.constant 0 : i32
    %c0_i32_1 = arith.constant 0 : i32
    %c0_i32_2 = arith.constant 0 : i32
    return %arg0, %c0_i32, %c0_i32_0, %c0_i32_1 : i32, i32, i32, i32
  }
}

</mosaic_0001>

<llo_original>
// kernel: tpu_custom_call.1
$region0: #{tpu_custom_call.1}
  #allocation0 [shape = 'u32[]', space=smem, size = 0x4, offset = 0x4, fixed_abs, tag = 'smem constant byte address 0x4 - core index']
  #allocation1 [shape = 'u32[144,128]{1,0:T(1,128)}', space=vmem, size = 0x12000, scoped, tag = 'internal scratch']
  #allocation2 [shape = 'f32[18,24,36]{2,1,0:T(8,128)}', space=vmem, size = 0x36000, scoped, tag = 'scratch operand']
  #allocation3 [shape = 'f32[16,16,36]{2,1,0:T(8,128)}', space=vmem, size = 0x20000, scoped, tag = 'scratch operand']
  %s0 = inlined_call_operand.vmem [shape: f32[2,20,26,4], index: 0, kind: input, shape index: {}]
  %s1 = inlined_call_operand.vmem [shape: f32[1,1,4], index: 1, kind: input, shape index: {}]
  %s2 = inlined_call_operand.vmem [shape: f32[1,1,4], index: 2, kind: input, shape index: {}]
  %s3 = inlined_call_operand.vmem [shape: bf16[36,4], index: 3, kind: input, shape index: {}]
  %s4 = inlined_call_operand.vmem [shape: f32[1,4], index: 4, kind: input, shape index: {}]
  %s5 = inlined_call_operand.vmem [shape: f32[1,1,4], index: 5, kind: input, shape index: {}]
  %s6 = inlined_call_operand.vmem [shape: f32[1,1,4], index: 6, kind: input, shape index: {}]
  %s7 = inlined_call_operand.vmem [shape: bf16[36,4], index: 7, kind: input, shape index: {}]
  %s8 = inlined_call_operand.vmem [shape: f32[1,4], index: 8, kind: input, shape index: {}]
  %s9 = inlined_call_operand.vmem [shape: f32[2,16,16,4], index: 9, kind: output, shape index: {}]
  %s10 = sld [smem:[#allocation0]]
  $region69: #{tpu_custom_call.1} parent=0
    _
  %s12 = ssub.s32 1, %s10
  %s13 = scalar_select 0, %s12, %s10
  loop: start=0, step=1, limit=4
  $region2: #{tpu_custom_call.1} parent=0 // loop_pre_header
    _
  $region3: #{tpu_custom_call.1} parent=0 // loop_header
    %s15 = sphi 0, %s19
    %p16 = scmp.ge.s32.totalorder %s15, 4
    %s25 = sphi 0, %s27
    %s28 = sphi 0, %s25
    %s29 = sphi 0, %s28
    %s45 = sphi 0, %s29
    %s49 = sphi 0, %s49
    %s51 = sphi 0, %s49
    %s52 = sphi 0, %s51
    %s66 = sphi 0, %s52
    %s70 = sphi 0, %s70
    %s72 = sphi 0, %s70
    %s73 = sphi 0, %s72
    %s87 = sphi 0, %s73
    %s91 = sphi 0, %s91
    %s93 = sphi 0, %s91
    %s94 = sphi 0, %s93
    %s108 = sphi 0, %s94
    %s112 = sphi 0, %s112
    %s114 = sphi 0, %s112
    %s115 = sphi 0, %s114
    %s129 = sphi 0, %s115
    %s133 = sphi 0, %s133
    %s135 = sphi 0, %s133
    %s136 = sphi 0, %s135
    %s150 = sphi 0, %s136
    %s154 = sphi 0, %s154
    %s156 = sphi 0, %s154
    %s157 = sphi 0, %s156
    %s171 = sphi 0, %s157
    %s175 = sphi 0, %s175
    %s177 = sphi 0, %s175
    %s178 = sphi 0, %s177
    %s192 = sphi 0, %s178
    %s196 = sphi 0, %s196
    %s198 = sphi 0, %s196
    %s199 = sphi 0, %s198
    %s213 = sphi 0, %s199
    %s219 = sphi 0, %s221
    %s222 = sphi 0, %s219
    %s223 = sphi 0, %s222
    %s239 = sphi 0, %s223
  $region4: #{tpu_custom_call.1} parent=0 // loop_header_branch
    %18 = sbr.rel (%p16) target = $region8
  $region5: #{tpu_custom_call.1} parent=0 // loop_body
    %s20 = ssub.s32 %s15, 1
    %s21 = ssub.s32 %s15, 2
    %s22 = sadd.s32 %s15, 1
    %s23 = ssub.s32 %s15, %s22
    %p24 = scmp.eq.s32.totalorder %s23, 0
    %s26 = sadd.s32 %s25, 1
    %s27 = scalar_select %p24, %s25, %s26
    %p30 = pneg %p24
    %p31 = scmp.eq.s32.totalorder %s15, 1
    %p32 = por %p30, %p31
    %p33 = scmp.ne.s32.totalorder %s25, %s28
    %p34 = scmp.eq.s32.totalorder %s15, 0
    %p35 = por %p33, %p34
    %p36 = scmp.ne.s32.totalorder %s25, %s28
    %p37 = scmp.eq.s32.totalorder %s20, 1
    %p38 = por %p36, %p37
    %p39 = scmp.ne.s32.totalorder %s28, %s29
    %p40 = scmp.eq.s32.totalorder %s20, 0
    %p41 = por %p39, %p40
    %p42 = scmp.ne.s32.totalorder %s28, %s29
    %p43 = scmp.eq.s32.totalorder %s21, 1
    %p44 = por %p42, %p43
    %p46 = scmp.ne.s32.totalorder %s29, %s45
    %p47 = scmp.eq.s32.totalorder %s21, 0
    %p48 = por %p46, %p47
    %s50 = sadd.s32 %s49, 1
    %p53 = scmp.eq.s32.totalorder %s15, 1
    %p54 = scmp.ne.s32.totalorder %s49, %s51
    %p55 = scmp.eq.s32.totalorder %s15, 0
    %p56 = por %p54, %p55
    %p57 = scmp.ne.s32.totalorder %s49, %s51
    %p58 = scmp.eq.s32.totalorder %s20, 1
    %p59 = por %p57, %p58
    %p60 = scmp.ne.s32.totalorder %s51, %s52
    %p61 = scmp.eq.s32.totalorder %s20, 0
    %p62 = por %p60, %p61
    %p63 = scmp.ne.s32.totalorder %s51, %s52
    %p64 = scmp.eq.s32.totalorder %s21, 1
    %p65 = por %p63, %p64
    %p67 = scmp.ne.s32.totalorder %s52, %s66
    %p68 = scmp.eq.s32.totalorder %s21, 0
    %p69 = por %p67, %p68
    %s71 = sadd.s32 %s70, 1
    %p74 = scmp.eq.s32.totalorder %s15, 1
    %p75 = scmp.ne.s32.totalorder %s70, %s72
    %p76 = scmp.eq.s32.totalorder %s15, 0
    %p77 = por %p75, %p76
    %p78 = scmp.ne.s32.totalorder %s70, %s72
    %p79 = scmp.eq.s32.totalorder %s20, 1
    %p80 = por %p78, %p79
    %p81 = scmp.ne.s32.totalorder %s72, %s73
    %p82 = scmp.eq.s32.totalorder %s20, 0
    %p83 = por %p81, %p82
    %p84 = scmp.ne.s32.totalorder %s72, %s73
    %p85 = scmp.eq.s32.totalorder %s21, 1
    %p86 = por %p84, %p85
    %p88 = scmp.ne.s32.totalorder %s73, %s87
    %p89 = scmp.eq.s32.totalorder %s21, 0
    %p90 = por %p88, %p89
    %s92 = sadd.s32 %s91, 1
    %p95 = scmp.eq.s32.totalorder %s15, 1
    %p96 = scmp.ne.s32.totalorder %s91, %s93
    %p97 = scmp.eq.s32.totalorder %s15, 0
    %p98 = por %p96, %p97
    %p99 = scmp.ne.s32.totalorder %s91, %s93
    %p100 = scmp.eq.s32.totalorder %s20, 1
    %p101 = por %p99, %p100
    %p102 = scmp.ne.s32.totalorder %s93, %s94
    %p103 = scmp.eq.s32.totalorder %s20, 0
    %p104 = por %p102, %p103
    %p105 = scmp.ne.s32.totalorder %s93, %s94
    %p106 = scmp.eq.s32.totalorder %s21, 1
    %p107 = por %p105, %p106
    %p109 = scmp.ne.s32.totalorder %s94, %s108
    %p110 = scmp.eq.s32.totalorder %s21, 0
    %p111 = por %p109, %p110
    %s113 = sadd.s32 %s112, 1
    %p116 = scmp.eq.s32.totalorder %s15, 1
    %p117 = scmp.ne.s32.totalorder %s112, %s114
    %p118 = scmp.eq.s32.totalorder %s15, 0
    %p119 = por %p117, %p118
    %p120 = scmp.ne.s32.totalorder %s112, %s114
    %p121 = scmp.eq.s32.totalorder %s20, 1
    %p122 = por %p120, %p121
    %p123 = scmp.ne.s32.totalorder %s114, %s115
    %p124 = scmp.eq.s32.totalorder %s20, 0
    %p125 = por %p123, %p124
    %p126 = scmp.ne.s32.totalorder %s114, %s115
    %p127 = scmp.eq.s32.totalorder %s21, 1
    %p128 = por %p126, %p127
    %p130 = scmp.ne.s32.totalorder %s115, %s129
    %p131 = scmp.eq.s32.totalorder %s21, 0
    %p132 = por %p130, %p131
    %s134 = sadd.s32 %s133, 1
    %p137 = scmp.eq.s32.totalorder %s15, 1
    %p138 = scmp.ne.s32.totalorder %s133, %s135
    %p139 = scmp.eq.s32.totalorder %s15, 0
    %p140 = por %p138, %p139
    %p141 = scmp.ne.s32.totalorder %s133, %s135
    %p142 = scmp.eq.s32.totalorder %s20, 1
    %p143 = por %p141, %p142
    %p144 = scmp.ne.s32.totalorder %s135, %s136
    %p145 = scmp.eq.s32.totalorder %s20, 0
    %p146 = por %p144, %p145
    %p147 = scmp.ne.s32.totalorder %s135, %s136
    %p148 = scmp.eq.s32.totalorder %s21, 1
    %p149 = por %p147, %p148
    %p151 = scmp.ne.s32.totalorder %s136, %s150
    %p152 = scmp.eq.s32.totalorder %s21, 0
    %p153 = por %p151, %p152
    %s155 = sadd.s32 %s154, 1
    %p158 = scmp.eq.s32.totalorder %s15, 1
    %p159 = scmp.ne.s32.totalorder %s154, %s156
    %p160 = scmp.eq.s32.totalorder %s15, 0
    %p161 = por %p159, %p160
    %p162 = scmp.ne.s32.totalorder %s154, %s156
    %p163 = scmp.eq.s32.totalorder %s20, 1
    %p164 = por %p162, %p163
    %p165 = scmp.ne.s32.totalorder %s156, %s157
    %p166 = scmp.eq.s32.totalorder %s20, 0
    %p167 = por %p165, %p166
    %p168 = scmp.ne.s32.totalorder %s156, %s157
    %p169 = scmp.eq.s32.totalorder %s21, 1
    %p170 = por %p168, %p169
    %p172 = scmp.ne.s32.totalorder %s157, %s171
    %p173 = scmp.eq.s32.totalorder %s21, 0
    %p174 = por %p172, %p173
    %s176 = sadd.s32 %s175, 1
    %p179 = scmp.eq.s32.totalorder %s15, 1
    %p180 = scmp.ne.s32.totalorder %s175, %s177
    %p181 = scmp.eq.s32.totalorder %s15, 0
    %p182 = por %p180, %p181
    %p183 = scmp.ne.s32.totalorder %s175, %s177
    %p184 = scmp.eq.s32.totalorder %s20, 1
    %p185 = por %p183, %p184
    %p186 = scmp.ne.s32.totalorder %s177, %s178
    %p187 = scmp.eq.s32.totalorder %s20, 0
    %p188 = por %p186, %p187
    %p189 = scmp.ne.s32.totalorder %s177, %s178
    %p190 = scmp.eq.s32.totalorder %s21, 1
    %p191 = por %p189, %p190
    %p193 = scmp.ne.s32.totalorder %s178, %s192
    %p194 = scmp.eq.s32.totalorder %s21, 0
    %p195 = por %p193, %p194
    %s197 = sadd.s32 %s196, 1
    %p200 = scmp.eq.s32.totalorder %s15, 1
    %p201 = scmp.ne.s32.totalorder %s196, %s198
    %p202 = scmp.eq.s32.totalorder %s15, 0
    %p203 = por %p201, %p202
    %p204 = scmp.ne.s32.totalorder %s196, %s198
    %p205 = scmp.eq.s32.totalorder %s20, 1
    %p206 = por %p204, %p205
    %p207 = scmp.ne.s32.totalorder %s198, %s199
    %p208 = scmp.eq.s32.totalorder %s20, 0
    %p209 = por %p207, %p208
    %p210 = scmp.ne.s32.totalorder %s198, %s199
    %p211 = scmp.eq.s32.totalorder %s21, 1
    %p212 = por %p210, %p211
    %p214 = scmp.ne.s32.totalorder %s199, %s213
    %p215 = scmp.eq.s32.totalorder %s21, 0
    %p216 = por %p214, %p215
    %s217 = ssub.s32 %s15, %s22
    %p218 = scmp.eq.s32.totalorder %s217, 0
    %s220 = sadd.s32 %s219, 1
    %s221 = scalar_select %p218, %s219, %s220
    %p224 = pneg %p218
    %p225 = scmp.eq.s32.totalorder %s15, 1
    %p226 = por %p224, %p225
    %p227 = scmp.ne.s32.totalorder %s219, %s222
    %p228 = scmp.eq.s32.totalorder %s15, 0
    %p229 = por %p227, %p228
    %p230 = scmp.ne.s32.totalorder %s219, %s222
    %p231 = scmp.eq.s32.totalorder %s20, 1
    %p232 = por %p230, %p231
    %p233 = scmp.ne.s32.totalorder %s222, %s223
    %p234 = scmp.eq.s32.totalorder %s20, 0
    %p235 = por %p233, %p234
    %p236 = scmp.ne.s32.totalorder %s222, %s223
    %p237 = scmp.eq.s32.totalorder %s21, 1
    %p238 = por %p236, %p237
    %p240 = scmp.ne.s32.totalorder %s223, %s239
    %p241 = scmp.eq.s32.totalorder %s21, 0
    %p242 = por %p240, %p241
    %p243 = scmp.le.s32.totalorder 1, %s15
    %p244 = scmp.lt.s32.totalorder %s15, 3
    %p245 = pnand %p243, %p244
    %p246 = pneg %p245
    // Predicated region
    $region9: #{tpu_custom_call.1} parent=5 // pred_check
      _
    $region10: #{tpu_custom_call.1} parent=5 // pred_check_branch
      %248 = sbr.rel (%p245) target = $region12
    $region11: #{tpu_custom_call.1} parent=5 // pred_region
      %s249 = ssub.s32 %s15, 1
      // Predicated region
      $region13: #{tpu_custom_call.1} parent=11 // pred_check
        %p250 = pneg %p62
      $region14: #{tpu_custom_call.1} parent=11 // pred_check_branch
        %252 = sbr.rel (%p250) target = $region16
      $region15: #{tpu_custom_call.1} parent=11 // pred_region
        _
      $region16: #{tpu_custom_call.1} parent=11 // pred_fallthru
        _
      // Predicated region
      $region17: #{tpu_custom_call.1} parent=11 // pred_check
        %p253 = pneg %p83
      $region18: #{tpu_custom_call.1} parent=11 // pred_check_branch
        %255 = sbr.rel (%p253) target = $region20
      $region19: #{tpu_custom_call.1} parent=11 // pred_region
        _
      $region20: #{tpu_custom_call.1} parent=11 // pred_fallthru
        _
      // Predicated region
      $region21: #{tpu_custom_call.1} parent=11 // pred_check
        %p256 = pneg %p104
      $region22: #{tpu_custom_call.1} parent=11 // pred_check_branch
        %258 = sbr.rel (%p256) target = $region24
      $region23: #{tpu_custom_call.1} parent=11 // pred_region
        _
      $region24: #{tpu_custom_call.1} parent=11 // pred_fallthru
        _
      // Predicated region
      $region25: #{tpu_custom_call.1} parent=11 // pred_check
        %p259 = pneg %p125
      $region26: #{tpu_custom_call.1} parent=11 // pred_check_branch
        %261 = sbr.rel (%p259) target = $region28
      $region27: #{tpu_custom_call.1} parent=11 // pred_region
        _
      $region28: #{tpu_custom_call.1} parent=11 // pred_fallthru
        _
      // Predicated region
      $region29: #{tpu_custom_call.1} parent=11 // pred_check
        %p262 = pneg %p146
      $region30: #{tpu_custom_call.1} parent=11 // pred_check_branch
        %264 = sbr.rel (%p262) target = $region32
      $region31: #{tpu_custom_call.1} parent=11 // pred_region
        _
      $region32: #{tpu_custom_call.1} parent=11 // pred_fallthru
        _
      // Predicated region
      $region33: #{tpu_custom_call.1} parent=11 // pred_check
        %p265 = pneg %p167
      $region34: #{tpu_custom_call.1} parent=11 // pred_check_branch
        %267 = sbr.rel (%p265) target = $region36
      $region35: #{tpu_custom_call.1} parent=11 // pred_region
        _
      $region36: #{tpu_custom_call.1} parent=11 // pred_fallthru
        _
      // Predicated region
      $region37: #{tpu_custom_call.1} parent=11 // pred_check
        %p268 = pneg %p188
      $region38: #{tpu_custom_call.1} parent=11 // pred_check_branch
        %270 = sbr.rel (%p268) target = $region40
      $region39: #{tpu_custom_call.1} parent=11 // pred_region
        _
      $region40: #{tpu_custom_call.1} parent=11 // pred_fallthru
        _
      // Predicated region
      $region41: #{tpu_custom_call.1} parent=11 // pred_check
        %p271 = pneg %p209
      $region42: #{tpu_custom_call.1} parent=11 // pred_check_branch
        %273 = sbr.rel (%p271) target = $region44
      $region43: #{tpu_custom_call.1} parent=11 // pred_region
        _
      $region44: #{tpu_custom_call.1} parent=11 // pred_fallthru
        _
    $region12: #{tpu_custom_call.1} parent=5 // pred_fallthru
      _
    %p274 = scmp.lt.s32.totalorder %s15, 2
    // Predicated region
    $region45: #{tpu_custom_call.1} parent=5 // pred_check
      %p275 = pneg %p274
    $region46: #{tpu_custom_call.1} parent=5 // pred_check_branch
      %277 = sbr.rel (%p275) target = $region48
    $region47: #{tpu_custom_call.1} parent=5 // pred_region
      // Predicated region
      $region49: #{tpu_custom_call.1} parent=47 // pred_check
        %p278 = pneg %p35
      $region50: #{tpu_custom_call.1} parent=47 // pred_check_branch
        %280 = sbr.rel (%p278) target = $region52
      $region51: #{tpu_custom_call.1} parent=47 // pred_region
        %p281 = scmp.lt.s32.totalorder %s15, 1
        %s282 = scalar_select %p281, %s15, 1
        %s283 = smul.addr %s282, 80
        %s284 = smul.addr %s283, 8
        %s285 = scalar_lea.vmem %s0, %s284
      $region52: #{tpu_custom_call.1} parent=47 // pred_fallthru
        _
    $region48: #{tpu_custom_call.1} parent=5 // pred_fallthru
      _
    %p286 = scmp.le.s32.totalorder 1, %s15
    %p287 = scmp.lt.s32.totalorder %s15, 3
    %p288 = pnand %p286, %p287
    %p289 = pneg %p288
    // Predicated region
    $region53: #{tpu_custom_call.1} parent=5 // pred_check
      _
    $region54: #{tpu_custom_call.1} parent=5 // pred_check_branch
      %291 = sbr.rel (%p288) target = $region56
    $region55: #{tpu_custom_call.1} parent=5 // pred_region
      %s292 = ssub.s32 %s15, 1
      %p293 = scmp.lt.s32.totalorder %s20, 1
      %s294 = scalar_select %p293, %s20, 1
      %s295 = smul.addr %s294, 80
      %s296 = smul.addr %s295, 8
      %s297 = scalar_lea.vmem %s0, %s296
      %p298 = pneg %p41
      %p299 = pneg %p38
      %p300 = pneg %p62
      %p301 = pneg %p59
      %p302 = pneg %p83
      %p303 = pneg %p80
      %p304 = pneg %p104
      %p305 = pneg %p101
      %p306 = pneg %p125
      %p307 = pneg %p122
      %p308 = pneg %p146
      %p309 = pneg %p143
      %p310 = pneg %p167
      %p311 = pneg %p164
      %p312 = pneg %p188
      %p313 = pneg %p185
      %p314 = pneg %p209
      %p315 = pneg %p206
      %p316 = pneg %p235
      %p317 = pneg %p232
      %p318 = scmp.lt.s32.totalorder %s20, 1
      %s319 = scalar_select %p318, %s20, 1
      %s320 = smul.addr %s319, 32
      %s321 = smul.addr %s320, 8
      %s322 = scalar_lea.vmem %s9, %s321
      %p323 = scmp.lt.s32.totalorder %s20, 1
      %s324 = scalar_select %p323, %s20, 1
      %s325 = smul.addr %s324, 80
      %s326 = smul.addr %s325, 8
      %s327 = scalar_lea.vmem %s0, %s326
      %p328 = scmp.lt.s32.totalorder %s20, 1
      %s329 = scalar_select %p328, %s20, 1
      %s330 = smul.addr %s329, 32
      %s331 = smul.addr %s330, 8
      %s332 = scalar_lea.vmem %s9, %s331
      %v334 = vld [vmem:[%s1] sm:$0x1]
      %v335 = vld [vmem:[%s2] sm:$0x1]
      %v336 = vld [vmem:[%s5] sm:$0x1]
      %v337 = vld [vmem:[%s6] sm:$0x1]
      %v338 = vld [vmem:[%s3] sm:$0xf]
      %v339 = vld [vmem:[%s3 + $0x4] sm:$0xf]
      %v340 = vld [vmem:[%s3 + $0x8] sm:$0xf]
      %v341 = vld [vmem:[%s3 + $0xc] sm:$0xf]
      %v342 = vld [vmem:[%s3 + $0x10] sm:$0x3]
      %v343 = vld [vmem:[%s4] sm:$0x1]
      %v344 = vld [vmem:[%s7] sm:$0xf]
      %v345 = vld [vmem:[%s7 + $0x4] sm:$0xf]
      %v346 = vld [vmem:[%s7 + $0x8] sm:$0xf]
      %v347 = vld [vmem:[%s7 + $0xc] sm:$0xf]
      %v348 = vld [vmem:[%s7 + $0x10] sm:$0x3]
      %v349 = vld [vmem:[%s8] sm:$0x1]
      %v350 = vld [vmem:[%s327] sm:$0xff]
      %v351 = vld [vmem:[%s327 + $0x8] sm:$0xff]
      %v352 = vld [vmem:[%s327 + $0x10] sm:$0xff]
      %v353 = vld [vmem:[%s327 + $0x18] sm:$0x3]
      %v354 = vld [vmem:[%s327 + $0x20] sm:$0xff]
      %v355 = vld [vmem:[%s327 + $0x28] sm:$0xff]
      %v356 = vld [vmem:[%s327 + $0x30] sm:$0xff]
      %v357 = vld [vmem:[%s327 + $0x38] sm:$0x3]
      %v358 = vld [vmem:[%s327 + $0x40] sm:$0xff]
      %v359 = vld [vmem:[%s327 + $0x48] sm:$0xff]
      %v360 = vld [vmem:[%s327 + $0x50] sm:$0xff]
      %v361 = vld [vmem:[%s327 + $0x58] sm:$0x3]
      %v362 = vld [vmem:[%s327 + $0x60] sm:$0xff]
      %v363 = vld [vmem:[%s327 + $0x68] sm:$0xff]
      %v364 = vld [vmem:[%s327 + $0x70] sm:$0xff]
      %v365 = vld [vmem:[%s327 + $0x78] sm:$0x3]
      %v366 = vld [vmem:[%s327 + $0x80] sm:$0xff]
      %v367 = vld [vmem:[%s327 + $0x88] sm:$0xff]
      %v368 = vld [vmem:[%s327 + $0x90] sm:$0xff]
      %v369 = vld [vmem:[%s327 + $0x98] sm:$0x3]
      %v370 = vld [vmem:[%s327 + $0xa0] sm:$0xff]
      %v371 = vld [vmem:[%s327 + $0xa8] sm:$0xff]
      %v372 = vld [vmem:[%s327 + $0xb0] sm:$0xff]
      %v373 = vld [vmem:[%s327 + $0xb8] sm:$0x3]
      %v374 = vld [vmem:[%s327 + $0xc0] sm:$0xff]
      %v375 = vld [vmem:[%s327 + $0xc8] sm:$0xff]
      %v376 = vld [vmem:[%s327 + $0xd0] sm:$0xff]
      %v377 = vld [vmem:[%s327 + $0xd8] sm:$0x3]
      %v378 = vld [vmem:[%s327 + $0xe0] sm:$0xff]
      %v379 = vld [vmem:[%s327 + $0xe8] sm:$0xff]
      %v380 = vld [vmem:[%s327 + $0xf0] sm:$0xff]
      %v381 = vld [vmem:[%s327 + $0xf8] sm:$0x3]
      %v382 = vld [vmem:[%s327 + $0x100] sm:$0xff]
      %v383 = vld [vmem:[%s327 + $0x108] sm:$0xff]
      %v384 = vld [vmem:[%s327 + $0x110] sm:$0xff]
      %v385 = vld [vmem:[%s327 + $0x118] sm:$0x3]
      %v386 = vld [vmem:[%s327 + $0x120] sm:$0xff]
      %v387 = vld [vmem:[%s327 + $0x128] sm:$0xff]
      %v388 = vld [vmem:[%s327 + $0x130] sm:$0xff]
      %v389 = vld [vmem:[%s327 + $0x138] sm:$0x3]
      %v390 = vld [vmem:[%s327 + $0x140] sm:$0xff]
      %v391 = vld [vmem:[%s327 + $0x148] sm:$0xff]
      %v392 = vld [vmem:[%s327 + $0x150] sm:$0xff]
      %v393 = vld [vmem:[%s327 + $0x158] sm:$0x3]
      %v394 = vld [vmem:[%s327 + $0x160] sm:$0xff]
      %v395 = vld [vmem:[%s327 + $0x168] sm:$0xff]
      %v396 = vld [vmem:[%s327 + $0x170] sm:$0xff]
      %v397 = vld [vmem:[%s327 + $0x178] sm:$0x3]
      %v398 = vld [vmem:[%s327 + $0x180] sm:$0xff]
      %v399 = vld [vmem:[%s327 + $0x188] sm:$0xff]
      %v400 = vld [vmem:[%s327 + $0x190] sm:$0xff]
      %v401 = vld [vmem:[%s327 + $0x198] sm:$0x3]
      %v402 = vld [vmem:[%s327 + $0x1a0] sm:$0xff]
      %v403 = vld [vmem:[%s327 + $0x1a8] sm:$0xff]
      %v404 = vld [vmem:[%s327 + $0x1b0] sm:$0xff]
      %v405 = vld [vmem:[%s327 + $0x1b8] sm:$0x3]
      %v406 = vld [vmem:[%s327 + $0x1c0] sm:$0xff]
      %v407 = vld [vmem:[%s327 + $0x1c8] sm:$0xff]
      %v408 = vld [vmem:[%s327 + $0x1d0] sm:$0xff]
      %v409 = vld [vmem:[%s327 + $0x1d8] sm:$0x3]
      %v410 = vld [vmem:[%s327 + $0x1e0] sm:$0xff]
      %v411 = vld [vmem:[%s327 + $0x1e8] sm:$0xff]
      %v412 = vld [vmem:[%s327 + $0x1f0] sm:$0xff]
      %v413 = vld [vmem:[%s327 + $0x1f8] sm:$0x3]
      %v414 = vld [vmem:[%s327 + $0x200] sm:$0xff]
      %v415 = vld [vmem:[%s327 + $0x208] sm:$0xff]
      %v416 = vld [vmem:[%s327 + $0x210] sm:$0xff]
      %v417 = vld [vmem:[%s327 + $0x218] sm:$0x3]
      %v418 = vld [vmem:[%s327 + $0x220] sm:$0xff]
      %v419 = vld [vmem:[%s327 + $0x228] sm:$0xff]
      %v420 = vld [vmem:[%s327 + $0x230] sm:$0xff]
      %v421 = vld [vmem:[%s327 + $0x238] sm:$0x3]
      %v422 = vld [vmem:[%s327 + $0x240] sm:$0xff]
      %v423 = vld [vmem:[%s327 + $0x248] sm:$0xff]
      %v424 = vld [vmem:[%s327 + $0x250] sm:$0xff]
      %v425 = vld [vmem:[%s327 + $0x258] sm:$0x3]
      %v426 = vld [vmem:[%s327 + $0x260] sm:$0xff]
      %v427 = vld [vmem:[%s327 + $0x268] sm:$0xff]
      %v428 = vld [vmem:[%s327 + $0x270] sm:$0xff]
      %v429 = vld [vmem:[%s327 + $0x278] sm:$0x3]
      %v431 = vlaneseq
      %v432 = vshrl.u32 %v431, 7
      %v433 = vsub.s32 0, %v432
      %v434 = vrot.slane %v334, %v433
      %v436 = vmul.f32 %v350, %v434
      %v437 = vmul.f32 %v351, %v434
      %v438 = vmul.f32 %v352, %v434
      %v439 = vmul.f32 %v353, %v434
      %v440 = vmul.f32 %v354, %v434
      %v441 = vmul.f32 %v355, %v434
      %v442 = vmul.f32 %v356, %v434
      %v443 = vmul.f32 %v357, %v434
      %v444 = vmul.f32 %v358, %v434
      %v445 = vmul.f32 %v359, %v434
      %v446 = vmul.f32 %v360, %v434
      %v447 = vmul.f32 %v361, %v434
      %v448 = vmul.f32 %v362, %v434
      %v449 = vmul.f32 %v363, %v434
      %v450 = vmul.f32 %v364, %v434
      %v451 = vmul.f32 %v365, %v434
      %v452 = vmul.f32 %v366, %v434
      %v453 = vmul.f32 %v367, %v434
      %v454 = vmul.f32 %v368, %v434
      %v455 = vmul.f32 %v369, %v434
      %v456 = vmul.f32 %v370, %v434
      %v457 = vmul.f32 %v371, %v434
      %v458 = vmul.f32 %v372, %v434
      %v459 = vmul.f32 %v373, %v434
      %v460 = vmul.f32 %v374, %v434
      %v461 = vmul.f32 %v375, %v434
      %v462 = vmul.f32 %v376, %v434
      %v463 = vmul.f32 %v377, %v434
      %v464 = vmul.f32 %v378, %v434
      %v465 = vmul.f32 %v379, %v434
      %v466 = vmul.f32 %v380, %v434
      %v467 = vmul.f32 %v381, %v434
      %v468 = vmul.f32 %v382, %v434
      %v469 = vmul.f32 %v383, %v434
      %v470 = vmul.f32 %v384, %v434
      %v471 = vmul.f32 %v385, %v434
      %v472 = vmul.f32 %v386, %v434
      %v473 = vmul.f32 %v387, %v434
      %v474 = vmul.f32 %v388, %v434
      %v475 = vmul.f32 %v389, %v434
      %v476 = vmul.f32 %v390, %v434
      %v477 = vmul.f32 %v391, %v434
      %v478 = vmul.f32 %v392, %v434
      %v479 = vmul.f32 %v393, %v434
      %v480 = vmul.f32 %v394, %v434
      %v481 = vmul.f32 %v395, %v434
      %v482 = vmul.f32 %v396, %v434
      %v483 = vmul.f32 %v397, %v434
      %v484 = vmul.f32 %v398, %v434
      %v485 = vmul.f32 %v399, %v434
      %v486 = vmul.f32 %v400, %v434
      %v487 = vmul.f32 %v401, %v434
      %v488 = vmul.f32 %v402, %v434
      %v489 = vmul.f32 %v403, %v434
      %v490 = vmul.f32 %v404, %v434
      %v491 = vmul.f32 %v405, %v434
      %v492 = vmul.f32 %v406, %v434
      %v493 = vmul.f32 %v407, %v434
      %v494 = vmul.f32 %v408, %v434
      %v495 = vmul.f32 %v409, %v434
      %v496 = vmul.f32 %v410, %v434
      %v497 = vmul.f32 %v411, %v434
      %v498 = vmul.f32 %v412, %v434
      %v499 = vmul.f32 %v413, %v434
      %v500 = vmul.f32 %v414, %v434
      %v501 = vmul.f32 %v415, %v434
      %v502 = vmul.f32 %v416, %v434
      %v503 = vmul.f32 %v417, %v434
      %v504 = vmul.f32 %v418, %v434
      %v505 = vmul.f32 %v419, %v434
      %v506 = vmul.f32 %v420, %v434
      %v507 = vmul.f32 %v421, %v434
      %v508 = vmul.f32 %v422, %v434
      %v509 = vmul.f32 %v423, %v434
      %v510 = vmul.f32 %v424, %v434
      %v511 = vmul.f32 %v425, %v434
      %v512 = vmul.f32 %v426, %v434
      %v513 = vmul.f32 %v427, %v434
      %v514 = vmul.f32 %v428, %v434
      %v515 = vmul.f32 %v429, %v434
      %v517 = vlaneseq
      %v518 = vshrl.u32 %v517, 7
      %v519 = vsub.s32 0, %v518
      %v520 = vrot.slane %v335, %v519
      %v522 = vadd.f32 %v436, %v520
      %v523 = vadd.f32 %v437, %v520
      %v524 = vadd.f32 %v438, %v520
      %v525 = vadd.f32 %v439, %v520
      %v526 = vadd.f32 %v440, %v520
      %v527 = vadd.f32 %v441, %v520
      %v528 = vadd.f32 %v442, %v520
      %v529 = vadd.f32 %v443, %v520
      %v530 = vadd.f32 %v444, %v520
      %v531 = vadd.f32 %v445, %v520
      %v532 = vadd.f32 %v446, %v520
      %v533 = vadd.f32 %v447, %v520
      %v534 = vadd.f32 %v448, %v520
      %v535 = vadd.f32 %v449, %v520
      %v536 = vadd.f32 %v450, %v520
      %v537 = vadd.f32 %v451, %v520
      %v538 = vadd.f32 %v452, %v520
      %v539 = vadd.f32 %v453, %v520
      %v540 = vadd.f32 %v454, %v520
      %v541 = vadd.f32 %v455, %v520
      %v542 = vadd.f32 %v456, %v520
      %v543 = vadd.f32 %v457, %v520
      %v544 = vadd.f32 %v458, %v520
      %v545 = vadd.f32 %v459, %v520
      %v546 = vadd.f32 %v460, %v520
      %v547 = vadd.f32 %v461, %v520
      %v548 = vadd.f32 %v462, %v520
      %v549 = vadd.f32 %v463, %v520
      %v550 = vadd.f32 %v464, %v520
      %v551 = vadd.f32 %v465, %v520
      %v552 = vadd.f32 %v466, %v520
      %v553 = vadd.f32 %v467, %v520
      %v554 = vadd.f32 %v468, %v520
      %v555 = vadd.f32 %v469, %v520
      %v556 = vadd.f32 %v470, %v520
      %v557 = vadd.f32 %v471, %v520
      %v558 = vadd.f32 %v472, %v520
      %v559 = vadd.f32 %v473, %v520
      %v560 = vadd.f32 %v474, %v520
      %v561 = vadd.f32 %v475, %v520
      %v562 = vadd.f32 %v476, %v520
      %v563 = vadd.f32 %v477, %v520
      %v564 = vadd.f32 %v478, %v520
      %v565 = vadd.f32 %v479, %v520
      %v566 = vadd.f32 %v480, %v520
      %v567 = vadd.f32 %v481, %v520
      %v568 = vadd.f32 %v482, %v520
      %v569 = vadd.f32 %v483, %v520
      %v570 = vadd.f32 %v484, %v520
      %v571 = vadd.f32 %v485, %v520
      %v572 = vadd.f32 %v486, %v520
      %v573 = vadd.f32 %v487, %v520
      %v574 = vadd.f32 %v488, %v520
      %v575 = vadd.f32 %v489, %v520
      %v576 = vadd.f32 %v490, %v520
      %v577 = vadd.f32 %v491, %v520
      %v578 = vadd.f32 %v492, %v520
      %v579 = vadd.f32 %v493, %v520
      %v580 = vadd.f32 %v494, %v520
      %v581 = vadd.f32 %v495, %v520
      %v582 = vadd.f32 %v496, %v520
      %v583 = vadd.f32 %v497, %v520
      %v584 = vadd.f32 %v498, %v520
      %v585 = vadd.f32 %v499, %v520
      %v586 = vadd.f32 %v500, %v520
      %v587 = vadd.f32 %v501, %v520
      %v588 = vadd.f32 %v502, %v520
      %v589 = vadd.f32 %v503, %v520
      %v590 = vadd.f32 %v504, %v520
      %v591 = vadd.f32 %v505, %v520
      %v592 = vadd.f32 %v506, %v520
      %v593 = vadd.f32 %v507, %v520
      %v594 = vadd.f32 %v508, %v520
      %v595 = vadd.f32 %v509, %v520
      %v596 = vadd.f32 %v510, %v520
      %v597 = vadd.f32 %v511, %v520
      %v598 = vadd.f32 %v512, %v520
      %v599 = vadd.f32 %v513, %v520
      %v600 = vadd.f32 %v514, %v520
      %v601 = vadd.f32 %v515, %v520
      %vm602 = vcmp.ge.f32.partialorder %v522, 0.0
      %vm603 = vcmp.ge.f32.partialorder %v523, 0.0
      %vm604 = vcmp.ge.f32.partialorder %v524, 0.0
      %vm605 = vcmp.ge.f32.partialorder %v525, 0.0
      %vm606 = vcmp.ge.f32.partialorder %v526, 0.0
      %vm607 = vcmp.ge.f32.partialorder %v527, 0.0
      %vm608 = vcmp.ge.f32.partialorder %v528, 0.0
      %vm609 = vcmp.ge.f32.partialorder %v529, 0.0
      %vm610 = vcmp.ge.f32.partialorder %v530, 0.0
      %vm611 = vcmp.ge.f32.partialorder %v531, 0.0
      %vm612 = vcmp.ge.f32.partialorder %v532, 0.0
      %vm613 = vcmp.ge.f32.partialorder %v533, 0.0
      %vm614 = vcmp.ge.f32.partialorder %v534, 0.0
      %vm615 = vcmp.ge.f32.partialorder %v535, 0.0
      %vm616 = vcmp.ge.f32.partialorder %v536, 0.0
      %vm617 = vcmp.ge.f32.partialorder %v537, 0.0
      %vm618 = vcmp.ge.f32.partialorder %v538, 0.0
      %vm619 = vcmp.ge.f32.partialorder %v539, 0.0
      %vm620 = vcmp.ge.f32.partialorder %v540, 0.0
      %vm621 = vcmp.ge.f32.partialorder %v541, 0.0
      %vm622 = vcmp.ge.f32.partialorder %v542, 0.0
      %vm623 = vcmp.ge.f32.partialorder %v543, 0.0
      %vm624 = vcmp.ge.f32.partialorder %v544, 0.0
      %vm625 = vcmp.ge.f32.partialorder %v545, 0.0
      %vm626 = vcmp.ge.f32.partialorder %v546, 0.0
      %vm627 = vcmp.ge.f32.partialorder %v547, 0.0
      %vm628 = vcmp.ge.f32.partialorder %v548, 0.0
      %vm629 = vcmp.ge.f32.partialorder %v549, 0.0
      %vm630 = vcmp.ge.f32.partialorder %v550, 0.0
      %vm631 = vcmp.ge.f32.partialorder %v551, 0.0
      %vm632 = vcmp.ge.f32.partialorder %v552, 0.0
      %vm633 = vcmp.ge.f32.partialorder %v553, 0.0
      %vm634 = vcmp.ge.f32.partialorder %v554, 0.0
      %vm635 = vcmp.ge.f32.partialorder %v555, 0.0
      %vm636 = vcmp.ge.f32.partialorder %v556, 0.0
      %vm637 = vcmp.ge.f32.partialorder %v557, 0.0
      %vm638 = vcmp.ge.f32.partialorder %v558, 0.0
      %vm639 = vcmp.ge.f32.partialorder %v559, 0.0
      %vm640 = vcmp.ge.f32.partialorder %v560, 0.0
      %vm641 = vcmp.ge.f32.partialorder %v561, 0.0
      %vm642 = vcmp.ge.f32.partialorder %v562, 0.0
      %vm643 = vcmp.ge.f32.partialorder %v563, 0.0
      %vm644 = vcmp.ge.f32.partialorder %v564, 0.0
      %vm645 = vcmp.ge.f32.partialorder %v565, 0.0
      %vm646 = vcmp.ge.f32.partialorder %v566, 0.0
      %vm647 = vcmp.ge.f32.partialorder %v567, 0.0
      %vm648 = vcmp.ge.f32.partialorder %v568, 0.0
      %vm649 = vcmp.ge.f32.partialorder %v569, 0.0
      %vm650 = vcmp.ge.f32.partialorder %v570, 0.0
      %vm651 = vcmp.ge.f32.partialorder %v571, 0.0
      %vm652 = vcmp.ge.f32.partialorder %v572, 0.0
      %vm653 = vcmp.ge.f32.partialorder %v573, 0.0
      %vm654 = vcmp.ge.f32.partialorder %v574, 0.0
      %vm655 = vcmp.ge.f32.partialorder %v575, 0.0
      %vm656 = vcmp.ge.f32.partialorder %v576, 0.0
      %vm657 = vcmp.ge.f32.partialorder %v577, 0.0
      %vm658 = vcmp.ge.f32.partialorder %v578, 0.0
      %vm659 = vcmp.ge.f32.partialorder %v579, 0.0
      %vm660 = vcmp.ge.f32.partialorder %v580, 0.0
      %vm661 = vcmp.ge.f32.partialorder %v581, 0.0
      %vm662 = vcmp.ge.f32.partialorder %v582, 0.0
      %vm663 = vcmp.ge.f32.partialorder %v583, 0.0
      %vm664 = vcmp.ge.f32.partialorder %v584, 0.0
      %vm665 = vcmp.ge.f32.partialorder %v585, 0.0
      %vm666 = vcmp.ge.f32.partialorder %v586, 0.0
      %vm667 = vcmp.ge.f32.partialorder %v587, 0.0
      %vm668 = vcmp.ge.f32.partialorder %v588, 0.0
      %vm669 = vcmp.ge.f32.partialorder %v589, 0.0
      %vm670 = vcmp.ge.f32.partialorder %v590, 0.0
      %vm671 = vcmp.ge.f32.partialorder %v591, 0.0
      %vm672 = vcmp.ge.f32.partialorder %v592, 0.0
      %vm673 = vcmp.ge.f32.partialorder %v593, 0.0
      %vm674 = vcmp.ge.f32.partialorder %v594, 0.0
      %vm675 = vcmp.ge.f32.partialorder %v595, 0.0
      %vm676 = vcmp.ge.f32.partialorder %v596, 0.0
      %vm677 = vcmp.ge.f32.partialorder %v597, 0.0
      %vm678 = vcmp.ge.f32.partialorder %v598, 0.0
      %vm679 = vcmp.ge.f32.partialorder %v599, 0.0
      %vm680 = vcmp.ge.f32.partialorder %v600, 0.0
      %vm681 = vcmp.ge.f32.partialorder %v601, 0.0
      %v682 = vmul.f32 %v522, 0.01
      %v683 = vmul.f32 %v523, 0.01
      %v684 = vmul.f32 %v524, 0.01
      %v685 = vmul.f32 %v525, 0.01
      %v686 = vmul.f32 %v526, 0.01
      %v687 = vmul.f32 %v527, 0.01
      %v688 = vmul.f32 %v528, 0.01
      %v689 = vmul.f32 %v529, 0.01
      %v690 = vmul.f32 %v530, 0.01
      %v691 = vmul.f32 %v531, 0.01
      %v692 = vmul.f32 %v532, 0.01
      %v693 = vmul.f32 %v533, 0.01
      %v694 = vmul.f32 %v534, 0.01
      %v695 = vmul.f32 %v535, 0.01
      %v696 = vmul.f32 %v536, 0.01
      %v697 = vmul.f32 %v537, 0.01
      %v698 = vmul.f32 %v538, 0.01
      %v699 = vmul.f32 %v539, 0.01
      %v700 = vmul.f32 %v540, 0.01
      %v701 = vmul.f32 %v541, 0.01
      %v702 = vmul.f32 %v542, 0.01
      %v703 = vmul.f32 %v543, 0.01
      %v704 = vmul.f32 %v544, 0.01
      %v705 = vmul.f32 %v545, 0.01
      %v706 = vmul.f32 %v546, 0.01
      %v707 = vmul.f32 %v547, 0.01
      %v708 = vmul.f32 %v548, 0.01
      %v709 = vmul.f32 %v549, 0.01
      %v710 = vmul.f32 %v550, 0.01
      %v711 = vmul.f32 %v551, 0.01
      %v712 = vmul.f32 %v552, 0.01
      %v713 = vmul.f32 %v553, 0.01
      %v714 = vmul.f32 %v554, 0.01
      %v715 = vmul.f32 %v555, 0.01
      %v716 = vmul.f32 %v556, 0.01
      %v717 = vmul.f32 %v557, 0.01
      %v718 = vmul.f32 %v558, 0.01
      %v719 = vmul.f32 %v559, 0.01
      %v720 = vmul.f32 %v560, 0.01
      %v721 = vmul.f32 %v561, 0.01
      %v722 = vmul.f32 %v562, 0.01
      %v723 = vmul.f32 %v563, 0.01
      %v724 = vmul.f32 %v564, 0.01
      %v725 = vmul.f32 %v565, 0.01
      %v726 = vmul.f32 %v566, 0.01
      %v727 = vmul.f32 %v567, 0.01
      %v728 = vmul.f32 %v568, 0.01
      %v729 = vmul.f32 %v569, 0.01
      %v730 = vmul.f32 %v570, 0.01
      %v731 = vmul.f32 %v571, 0.01
      %v732 = vmul.f32 %v572, 0.01
      %v733 = vmul.f32 %v573, 0.01
      %v734 = vmul.f32 %v574, 0.01
      %v735 = vmul.f32 %v575, 0.01
      %v736 = vmul.f32 %v576, 0.01
      %v737 = vmul.f32 %v577, 0.01
      %v738 = vmul.f32 %v578, 0.01
      %v739 = vmul.f32 %v579, 0.01
      %v740 = vmul.f32 %v580, 0.01
      %v741 = vmul.f32 %v581, 0.01
      %v742 = vmul.f32 %v582, 0.01
      %v743 = vmul.f32 %v583, 0.01
      %v744 = vmul.f32 %v584, 0.01
      %v745 = vmul.f32 %v585, 0.01
      %v746 = vmul.f32 %v586, 0.01
      %v747 = vmul.f32 %v587, 0.01
      %v748 = vmul.f32 %v588, 0.01
      %v749 = vmul.f32 %v589, 0.01
      %v750 = vmul.f32 %v590, 0.01
      %v751 = vmul.f32 %v591, 0.01
      %v752 = vmul.f32 %v592, 0.01
      %v753 = vmul.f32 %v593, 0.01
      %v754 = vmul.f32 %v594, 0.01
      %v755 = vmul.f32 %v595, 0.01
      %v756 = vmul.f32 %v596, 0.01
      %v757 = vmul.f32 %v597, 0.01
      %v758 = vmul.f32 %v598, 0.01
      %v759 = vmul.f32 %v599, 0.01
      %v760 = vmul.f32 %v600, 0.01
      %v761 = vmul.f32 %v601, 0.01
      %v762 = vsel %vm602, %v522, %v682
      %v763 = vsel %vm603, %v523, %v683
      %v764 = vsel %vm604, %v524, %v684
      %v765 = vsel %vm605, %v525, %v685
      %v766 = vsel %vm606, %v526, %v686
      %v767 = vsel %vm607, %v527, %v687
      %v768 = vsel %vm608, %v528, %v688
      %v769 = vsel %vm609, %v529, %v689
      %v770 = vsel %vm610, %v530, %v690
      %v771 = vsel %vm611, %v531, %v691
      %v772 = vsel %vm612, %v532, %v692
      %v773 = vsel %vm613, %v533, %v693
      %v774 = vsel %vm614, %v534, %v694
      %v775 = vsel %vm615, %v535, %v695
      %v776 = vsel %vm616, %v536, %v696
      %v777 = vsel %vm617, %v537, %v697
      %v778 = vsel %vm618, %v538, %v698
      %v779 = vsel %vm619, %v539, %v699
      %v780 = vsel %vm620, %v540, %v700
      %v781 = vsel %vm621, %v541, %v701
      %v782 = vsel %vm622, %v542, %v702
      %v783 = vsel %vm623, %v543, %v703
      %v784 = vsel %vm624, %v544, %v704
      %v785 = vsel %vm625, %v545, %v705
      %v786 = vsel %vm626, %v546, %v706
      %v787 = vsel %vm627, %v547, %v707
      %v788 = vsel %vm628, %v548, %v708
      %v789 = vsel %vm629, %v549, %v709
      %v790 = vsel %vm630, %v550, %v710
      %v791 = vsel %vm631, %v551, %v711
      %v792 = vsel %vm632, %v552, %v712
      %v793 = vsel %vm633, %v553, %v713
      %v794 = vsel %vm634, %v554, %v714
      %v795 = vsel %vm635, %v555, %v715
      %v796 = vsel %vm636, %v556, %v716
      %v797 = vsel %vm637, %v557, %v717
      %v798 = vsel %vm638, %v558, %v718
      %v799 = vsel %vm639, %v559, %v719
      %v800 = vsel %vm640, %v560, %v720
      %v801 = vsel %vm641, %v561, %v721
      %v802 = vsel %vm642, %v562, %v722
      %v803 = vsel %vm643, %v563, %v723
      %v804 = vsel %vm644, %v564, %v724
      %v805 = vsel %vm645, %v565, %v725
      %v806 = vsel %vm646, %v566, %v726
      %v807 = vsel %vm647, %v567, %v727
      %v808 = vsel %vm648, %v568, %v728
      %v809 = vsel %vm649, %v569, %v729
      %v810 = vsel %vm650, %v570, %v730
      %v811 = vsel %vm651, %v571, %v731
      %v812 = vsel %vm652, %v572, %v732
      %v813 = vsel %vm653, %v573, %v733
      %v814 = vsel %vm654, %v574, %v734
      %v815 = vsel %vm655, %v575, %v735
      %v816 = vsel %vm656, %v576, %v736
      %v817 = vsel %vm657, %v577, %v737
      %v818 = vsel %vm658, %v578, %v738
      %v819 = vsel %vm659, %v579, %v739
      %v820 = vsel %vm660, %v580, %v740
      %v821 = vsel %vm661, %v581, %v741
      %v822 = vsel %vm662, %v582, %v742
      %v823 = vsel %vm663, %v583, %v743
      %v824 = vsel %vm664, %v584, %v744
      %v825 = vsel %vm665, %v585, %v745
      %v826 = vsel %vm666, %v586, %v746
      %v827 = vsel %vm667, %v587, %v747
      %v828 = vsel %vm668, %v588, %v748
      %v829 = vsel %vm669, %v589, %v749
      %v830 = vsel %vm670, %v590, %v750
      %v831 = vsel %vm671, %v591, %v751
      %v832 = vsel %vm672, %v592, %v752
      %v833 = vsel %vm673, %v593, %v753
      %v834 = vsel %vm674, %v594, %v754
      %v835 = vsel %vm675, %v595, %v755
      %v836 = vsel %vm676, %v596, %v756
      %v837 = vsel %vm677, %v597, %v757
      %v838 = vsel %vm678, %v598, %v758
      %v839 = vsel %vm679, %v599, %v759
      %v840 = vsel %vm680, %v600, %v760
      %v841 = vsel %vm681, %v601, %v761
      %v842 = vlaneseq
      %v843 = vshrl.u32 %v842, 7
      %v844 = vadd.s32 %v843, 8
      %v845 = vadd.s32 %v843, 16
      %v846 = vadd.s32 %v843, 24
      %vm847 = vcmp.ge.s32.totalorder %v843, 2
      %vm848 = vcmp.ge.s32.totalorder %v844, 2
      %vm849 = vcmp.ge.s32.totalorder %v845, 2
      %vm850 = vcmp.ge.s32.totalorder %v846, 2
      %vm851 = vmand 0, %vm847
      %vm852 = vmand 0, %vm848
      %vm853 = vmand 0, %vm849
      %vm854 = vmand 0, %vm850
      %vm855 = vmand 1, %vm847
      %vm856 = vmand 1, %vm848
      %vm857 = vmand 1, %vm849
      %vm858 = vmand 1, %vm850
      %vm859 = vcmp.lt.s32.totalorder %v843, 18
      %vm860 = vcmp.lt.s32.totalorder %v844, 18
      %vm861 = vcmp.lt.s32.totalorder %v845, 18
      %vm862 = vcmp.lt.s32.totalorder %v846, 18
      %vm863 = vmand %vm851, %vm859
      %vm864 = vmand %vm852, %vm860
      %vm865 = vmand %vm853, %vm861
      %vm866 = vmand %vm854, %vm862
      %vm867 = vmand %vm855, %vm859
      %vm868 = vmand %vm856, %vm860
      %vm869 = vmand %vm857, %vm861
      %vm870 = vmand %vm858, %vm862
      %v871 = vsel %vm863, %v762, 0.0
      %v872 = vsel %vm864, %v763, 0.0
      %v873 = vsel %vm865, %v764, 0.0
      %v874 = vsel %vm866, %v765, 0.0
      %v875 = vsel %vm863, %v766, 0.0
      %v876 = vsel %vm864, %v767, 0.0
      %v877 = vsel %vm865, %v768, 0.0
      %v878 = vsel %vm866, %v769, 0.0
      %v879 = vsel %vm867, %v770, 0.0
      %v880 = vsel %vm868, %v771, 0.0
      %v881 = vsel %vm869, %v772, 0.0
      %v882 = vsel %vm870, %v773, 0.0
      %v883 = vsel %vm867, %v774, 0.0
      %v884 = vsel %vm868, %v775, 0.0
      %v885 = vsel %vm869, %v776, 0.0
      %v886 = vsel %vm870, %v777, 0.0
      %v887 = vsel %vm867, %v778, 0.0
      %v888 = vsel %vm868, %v779, 0.0
      %v889 = vsel %vm869, %v780, 0.0
      %v890 = vsel %vm870, %v781, 0.0
      %v891 = vsel %vm867, %v782, 0.0
      %v892 = vsel %vm868, %v783, 0.0
      %v893 = vsel %vm869, %v784, 0.0
      %v894 = vsel %vm870, %v785, 0.0
      %v895 = vsel %vm867, %v786, 0.0
      %v896 = vsel %vm868, %v787, 0.0
      %v897 = vsel %vm869, %v788, 0.0
      %v898 = vsel %vm870, %v789, 0.0
      %v899 = vsel %vm867, %v790, 0.0
      %v900 = vsel %vm868, %v791, 0.0
      %v901 = vsel %vm869, %v792, 0.0
      %v902 = vsel %vm870, %v793, 0.0
      %v903 = vsel %vm867, %v794, 0.0
      %v904 = vsel %vm868, %v795, 0.0
      %v905 = vsel %vm869, %v796, 0.0
      %v906 = vsel %vm870, %v797, 0.0
      %v907 = vsel %vm867, %v798, 0.0
      %v908 = vsel %vm868, %v799, 0.0
      %v909 = vsel %vm869, %v800, 0.0
      %v910 = vsel %vm870, %v801, 0.0
      %v911 = vsel %vm867, %v802, 0.0
      %v912 = vsel %vm868, %v803, 0.0
      %v913 = vsel %vm869, %v804, 0.0
      %v914 = vsel %vm870, %v805, 0.0
      %v915 = vsel %vm867, %v806, 0.0
      %v916 = vsel %vm868, %v807, 0.0
      %v917 = vsel %vm869, %v808, 0.0
      %v918 = vsel %vm870, %v809, 0.0
      %v919 = vsel %vm867, %v810, 0.0
      %v920 = vsel %vm868, %v811, 0.0
      %v921 = vsel %vm869, %v812, 0.0
      %v922 = vsel %vm870, %v813, 0.0
      %v923 = vsel %vm867, %v814, 0.0
      %v924 = vsel %vm868, %v815, 0.0
      %v925 = vsel %vm869, %v816, 0.0
      %v926 = vsel %vm870, %v817, 0.0
      %v927 = vsel %vm867, %v818, 0.0
      %v928 = vsel %vm868, %v819, 0.0
      %v929 = vsel %vm869, %v820, 0.0
      %v930 = vsel %vm870, %v821, 0.0
      %v931 = vsel %vm867, %v822, 0.0
      %v932 = vsel %vm868, %v823, 0.0
      %v933 = vsel %vm869, %v824, 0.0
      %v934 = vsel %vm870, %v825, 0.0
      %v935 = vsel %vm867, %v826, 0.0
      %v936 = vsel %vm868, %v827, 0.0
      %v937 = vsel %vm869, %v828, 0.0
      %v938 = vsel %vm870, %v829, 0.0
      %v939 = vsel %vm867, %v830, 0.0
      %v940 = vsel %vm868, %v831, 0.0
      %v941 = vsel %vm869, %v832, 0.0
      %v942 = vsel %vm870, %v833, 0.0
      %v943 = vsel %vm863, %v834, 0.0
      %v944 = vsel %vm864, %v835, 0.0
      %v945 = vsel %vm865, %v836, 0.0
      %v946 = vsel %vm866, %v837, 0.0
      %v947 = vsel %vm863, %v838, 0.0
      %v948 = vsel %vm864, %v839, 0.0
      %v949 = vsel %vm865, %v840, 0.0
      %v950 = vsel %vm866, %v841, 0.0
      %vm951 = vcmask 31744
      %952 = vst.msk [vmem:[#allocation2] sm:$0xff] %vm951, %v871
      %953 = vst.msk [vmem:[#allocation2 + $0x8] sm:$0xff] %vm951, %v872
      %954 = vst.msk [vmem:[#allocation2 + $0x10] sm:$0xff] %vm951, %v873
      %955 = vst.msk [vmem:[#allocation2 + $0x18] sm:$0xff] %vm951, %v875
      %956 = vst.msk [vmem:[#allocation2 + $0x20] sm:$0xff] %vm951, %v876
      %957 = vst.msk [vmem:[#allocation2 + $0x28] sm:$0xff] %vm951, %v877
      %958 = vst.msk [vmem:[#allocation2 + $0x30] sm:$0xff] %vm951, %v879
      %959 = vst.msk [vmem:[#allocation2 + $0x38] sm:$0xff] %vm951, %v880
      %960 = vst.msk [vmem:[#allocation2 + $0x40] sm:$0xff] %vm951, %v881
      %961 = vst.msk [vmem:[#allocation2 + $0x48] sm:$0xff] %vm951, %v883
      %962 = vst.msk [vmem:[#allocation2 + $0x50] sm:$0xff] %vm951, %v884
      %963 = vst.msk [vmem:[#allocation2 + $0x58] sm:$0xff] %vm951, %v885
      %964 = vst.msk [vmem:[#allocation2 + $0x60] sm:$0xff] %vm951, %v887
      %965 = vst.msk [vmem:[#allocation2 + $0x68] sm:$0xff] %vm951, %v888
      %966 = vst.msk [vmem:[#allocation2 + $0x70] sm:$0xff] %vm951, %v889
      %967 = vst.msk [vmem:[#allocation2 + $0x78] sm:$0xff] %vm951, %v891
      %968 = vst.msk [vmem:[#allocation2 + $0x80] sm:$0xff] %vm951, %v892
      %969 = vst.msk [vmem:[#allocation2 + $0x88] sm:$0xff] %vm951, %v893
      %970 = vst.msk [vmem:[#allocation2 + $0x90] sm:$0xff] %vm951, %v895
      %971 = vst.msk [vmem:[#allocation2 + $0x98] sm:$0xff] %vm951, %v896
      %972 = vst.msk [vmem:[#allocation2 + $0xa0] sm:$0xff] %vm951, %v897
      %973 = vst.msk [vmem:[#allocation2 + $0xa8] sm:$0xff] %vm951, %v899
      %974 = vst.msk [vmem:[#allocation2 + $0xb0] sm:$0xff] %vm951, %v900
      %975 = vst.msk [vmem:[#allocation2 + $0xb8] sm:$0xff] %vm951, %v901
      %976 = vst.msk [vmem:[#allocation2 + $0xc0] sm:$0xff] %vm951, %v903
      %977 = vst.msk [vmem:[#allocation2 + $0xc8] sm:$0xff] %vm951, %v904
      %978 = vst.msk [vmem:[#allocation2 + $0xd0] sm:$0xff] %vm951, %v905
      %979 = vst.msk [vmem:[#allocation2 + $0xd8] sm:$0xff] %vm951, %v907
      %980 = vst.msk [vmem:[#allocation2 + $0xe0] sm:$0xff] %vm951, %v908
      %981 = vst.msk [vmem:[#allocation2 + $0xe8] sm:$0xff] %vm951, %v909
      %982 = vst.msk [vmem:[#allocation2 + $0xf0] sm:$0xff] %vm951, %v911
      %983 = vst.msk [vmem:[#allocation2 + $0xf8] sm:$0xff] %vm951, %v912
      %984 = vst.msk [vmem:[#allocation2 + $0x100] sm:$0xff] %vm951, %v913
      %985 = vst.msk [vmem:[#allocation2 + $0x108] sm:$0xff] %vm951, %v915
      %986 = vst.msk [vmem:[#allocation2 + $0x110] sm:$0xff] %vm951, %v916
      %987 = vst.msk [vmem:[#allocation2 + $0x118] sm:$0xff] %vm951, %v917
      %988 = vst.msk [vmem:[#allocation2 + $0x120] sm:$0xff] %vm951, %v919
      %989 = vst.msk [vmem:[#allocation2 + $0x128] sm:$0xff] %vm951, %v920
      %990 = vst.msk [vmem:[#allocation2 + $0x130] sm:$0xff] %vm951, %v921
      %991 = vst.msk [vmem:[#allocation2 + $0x138] sm:$0xff] %vm951, %v923
      %992 = vst.msk [vmem:[#allocation2 + $0x140] sm:$0xff] %vm951, %v924
      %993 = vst.msk [vmem:[#allocation2 + $0x148] sm:$0xff] %vm951, %v925
      %994 = vst.msk [vmem:[#allocation2 + $0x150] sm:$0xff] %vm951, %v927
      %995 = vst.msk [vmem:[#allocation2 + $0x158] sm:$0xff] %vm951, %v928
      %996 = vst.msk [vmem:[#allocation2 + $0x160] sm:$0xff] %vm951, %v929
      %997 = vst.msk [vmem:[#allocation2 + $0x168] sm:$0xff] %vm951, %v931
      %998 = vst.msk [vmem:[#allocation2 + $0x170] sm:$0xff] %vm951, %v932
      %999 = vst.msk [vmem:[#allocation2 + $0x178] sm:$0xff] %vm951, %v933
      %1000 = vst.msk [vmem:[#allocation2 + $0x180] sm:$0xff] %vm951, %v935
      %1001 = vst.msk [vmem:[#allocation2 + $0x188] sm:$0xff] %vm951, %v936
      %1002 = vst.msk [vmem:[#allocation2 + $0x190] sm:$0xff] %vm951, %v937
      %1003 = vst.msk [vmem:[#allocation2 + $0x198] sm:$0xff] %vm951, %v939
      %1004 = vst.msk [vmem:[#allocation2 + $0x1a0] sm:$0xff] %vm951, %v940
      %1005 = vst.msk [vmem:[#allocation2 + $0x1a8] sm:$0xff] %vm951, %v941
      %1078 = vrot.lane.b32.xlu0 %v871, 4
      %v1079 = vpop.permute.xlu0 %1078
      %1080 = vrot.lane.b32.xlu0 %v872, 4
      %v1081 = vpop.permute.xlu0 %1080
      %1082 = vrot.lane.b32.xlu0 %v873, 4
      %v1083 = vpop.permute.xlu0 %1082
      %1084 = vrot.lane.b32.xlu0 %v874, 4
      %v1085 = vpop.permute.xlu0 %1084
      %1086 = vrot.lane.b32.xlu0 %v875, 4
      %v1087 = vpop.permute.xlu0 %1086
      %1088 = vrot.lane.b32.xlu0 %v876, 4
      %v1089 = vpop.permute.xlu0 %1088
      %1090 = vrot.lane.b32.xlu0 %v877, 4
      %v1091 = vpop.permute.xlu0 %1090
      %1092 = vrot.lane.b32.xlu0 %v878, 4
      %v1093 = vpop.permute.xlu0 %1092
      %1094 = vrot.lane.b32.xlu0 %v879, 4
      %v1095 = vpop.permute.xlu0 %1094
      %1096 = vrot.lane.b32.xlu0 %v880, 4
      %v1097 = vpop.permute.xlu0 %1096
      %1098 = vrot.lane.b32.xlu0 %v881, 4
      %v1099 = vpop.permute.xlu0 %1098
      %1100 = vrot.lane.b32.xlu0 %v882, 4
      %v1101 = vpop.permute.xlu0 %1100
      %1102 = vrot.lane.b32.xlu0 %v883, 4
      %v1103 = vpop.permute.xlu0 %1102
      %1104 = vrot.lane.b32.xlu0 %v884, 4
      %v1105 = vpop.permute.xlu0 %1104
      %1106 = vrot.lane.b32.xlu0 %v885, 4
      %v1107 = vpop.permute.xlu0 %1106
      %1108 = vrot.lane.b32.xlu0 %v886, 4
      %v1109 = vpop.permute.xlu0 %1108
      %1110 = vrot.lane.b32.xlu0 %v887, 4
      %v1111 = vpop.permute.xlu0 %1110
      %1112 = vrot.lane.b32.xlu0 %v888, 4
      %v1113 = vpop.permute.xlu0 %1112
      %1114 = vrot.lane.b32.xlu0 %v889, 4
      %v1115 = vpop.permute.xlu0 %1114
      %1116 = vrot.lane.b32.xlu0 %v890, 4
      %v1117 = vpop.permute.xlu0 %1116
      %1118 = vrot.lane.b32.xlu0 %v891, 4
      %v1119 = vpop.permute.xlu0 %1118
      %1120 = vrot.lane.b32.xlu0 %v892, 4
      %v1121 = vpop.permute.xlu0 %1120
      %1122 = vrot.lane.b32.xlu0 %v893, 4
      %v1123 = vpop.permute.xlu0 %1122
      %1124 = vrot.lane.b32.xlu0 %v894, 4
      %v1125 = vpop.permute.xlu0 %1124
      %1126 = vrot.lane.b32.xlu0 %v895, 4
      %v1127 = vpop.permute.xlu0 %1126
      %1128 = vrot.lane.b32.xlu0 %v896, 4
      %v1129 = vpop.permute.xlu0 %1128
      %1130 = vrot.lane.b32.xlu0 %v897, 4
      %v1131 = vpop.permute.xlu0 %1130
      %1132 = vrot.lane.b32.xlu0 %v898, 4
      %v1133 = vpop.permute.xlu0 %1132
      %1134 = vrot.lane.b32.xlu0 %v899, 4
      %v1135 = vpop.permute.xlu0 %1134
      %1136 = vrot.lane.b32.xlu0 %v900, 4
      %v1137 = vpop.permute.xlu0 %1136
      %1138 = vrot.lane.b32.xlu0 %v901, 4
      %v1139 = vpop.permute.xlu0 %1138
      %1140 = vrot.lane.b32.xlu0 %v902, 4
      %v1141 = vpop.permute.xlu0 %1140
      %1142 = vrot.lane.b32.xlu0 %v903, 4
      %v1143 = vpop.permute.xlu0 %1142
      %1144 = vrot.lane.b32.xlu0 %v904, 4
      %v1145 = vpop.permute.xlu0 %1144
      %1146 = vrot.lane.b32.xlu0 %v905, 4
      %v1147 = vpop.permute.xlu0 %1146
      %1148 = vrot.lane.b32.xlu0 %v906, 4
      %v1149 = vpop.permute.xlu0 %1148
      %1150 = vrot.lane.b32.xlu0 %v907, 4
      %v1151 = vpop.permute.xlu0 %1150
      %1152 = vrot.lane.b32.xlu0 %v908, 4
      %v1153 = vpop.permute.xlu0 %1152
      %1154 = vrot.lane.b32.xlu0 %v909, 4
      %v1155 = vpop.permute.xlu0 %1154
      %1156 = vrot.lane.b32.xlu0 %v910, 4
      %v1157 = vpop.permute.xlu0 %1156
      %1158 = vrot.lane.b32.xlu0 %v911, 4
      %v1159 = vpop.permute.xlu0 %1158
      %1160 = vrot.lane.b32.xlu0 %v912, 4
      %v1161 = vpop.permute.xlu0 %1160
      %1162 = vrot.lane.b32.xlu0 %v913, 4
      %v1163 = vpop.permute.xlu0 %1162
      %1164 = vrot.lane.b32.xlu0 %v914, 4
      %v1165 = vpop.permute.xlu0 %1164
      %1166 = vrot.lane.b32.xlu0 %v915, 4
      %v1167 = vpop.permute.xlu0 %1166
      %1168 = vrot.lane.b32.xlu0 %v916, 4
      %v1169 = vpop.permute.xlu0 %1168
      %1170 = vrot.lane.b32.xlu0 %v917, 4
      %v1171 = vpop.permute.xlu0 %1170
      %1172 = vrot.lane.b32.xlu0 %v918, 4
      %v1173 = vpop.permute.xlu0 %1172
      %1174 = vrot.lane.b32.xlu0 %v919, 4
      %v1175 = vpop.permute.xlu0 %1174
      %1176 = vrot.lane.b32.xlu0 %v920, 4
      %v1177 = vpop.permute.xlu0 %1176
      %1178 = vrot.lane.b32.xlu0 %v921, 4
      %v1179 = vpop.permute.xlu0 %1178
      %1180 = vrot.lane.b32.xlu0 %v922, 4
      %v1181 = vpop.permute.xlu0 %1180
      %1182 = vrot.lane.b32.xlu0 %v923, 4
      %v1183 = vpop.permute.xlu0 %1182
      %1184 = vrot.lane.b32.xlu0 %v924, 4
      %v1185 = vpop.permute.xlu0 %1184
      %1186 = vrot.lane.b32.xlu0 %v925, 4
      %v1187 = vpop.permute.xlu0 %1186
      %1188 = vrot.lane.b32.xlu0 %v926, 4
      %v1189 = vpop.permute.xlu0 %1188
      %1190 = vrot.lane.b32.xlu0 %v927, 4
      %v1191 = vpop.permute.xlu0 %1190
      %1192 = vrot.lane.b32.xlu0 %v928, 4
      %v1193 = vpop.permute.xlu0 %1192
      %1194 = vrot.lane.b32.xlu0 %v929, 4
      %v1195 = vpop.permute.xlu0 %1194
      %1196 = vrot.lane.b32.xlu0 %v930, 4
      %v1197 = vpop.permute.xlu0 %1196
      %1198 = vrot.lane.b32.xlu0 %v931, 4
      %v1199 = vpop.permute.xlu0 %1198
      %1200 = vrot.lane.b32.xlu0 %v932, 4
      %v1201 = vpop.permute.xlu0 %1200
      %1202 = vrot.lane.b32.xlu0 %v933, 4
      %v1203 = vpop.permute.xlu0 %1202
      %1204 = vrot.lane.b32.xlu0 %v934, 4
      %v1205 = vpop.permute.xlu0 %1204
      %1206 = vrot.lane.b32.xlu0 %v935, 4
      %v1207 = vpop.permute.xlu0 %1206
      %1208 = vrot.lane.b32.xlu0 %v936, 4
      %v1209 = vpop.permute.xlu0 %1208
      %1210 = vrot.lane.b32.xlu0 %v937, 4
      %v1211 = vpop.permute.xlu0 %1210
      %1212 = vrot.lane.b32.xlu0 %v938, 4
      %v1213 = vpop.permute.xlu0 %1212
      %1214 = vrot.lane.b32.xlu0 %v939, 4
      %v1215 = vpop.permute.xlu0 %1214
      %1216 = vrot.lane.b32.xlu0 %v940, 4
      %v1217 = vpop.permute.xlu0 %1216
      %1218 = vrot.lane.b32.xlu0 %v941, 4
      %v1219 = vpop.permute.xlu0 %1218
      %1220 = vrot.lane.b32.xlu0 %v942, 4
      %v1221 = vpop.permute.xlu0 %1220
      %vm1294 = vcmask 64545
      %1295 = vst.msk [vmem:[#allocation2 - $0x1] sm:$0xfe] %vm1294, %v1079
      %vm1296 = vcmask 64544
      %1297 = vst.msk [vmem:[#allocation2 + $0x7] sm:$0xff] %vm1296, %v1081
      %1298 = vst.msk [vmem:[#allocation2 + $0xf] sm:$0xff] %vm1296, %v1083
      %vm1299 = vcmask 57376
      %1300 = vst.msk [vmem:[#allocation2 + $0x17] sm:$0x1] %vm1299, %v1085
      %1301 = vst.msk [vmem:[#allocation2 + $0x17] sm:$0xfe] %vm1294, %v1087
      %1302 = vst.msk [vmem:[#allocation2 + $0x1f] sm:$0xff] %vm1296, %v1089
      %1303 = vst.msk [vmem:[#allocation2 + $0x27] sm:$0xff] %vm1296, %v1091
      %1304 = vst.msk [vmem:[#allocation2 + $0x2f] sm:$0x1] %vm1299, %v1093
      %1305 = vst.msk [vmem:[#allocation2 + $0x2f] sm:$0xfe] %vm1294, %v1095
      %1306 = vst.msk [vmem:[#allocation2 + $0x37] sm:$0xff] %vm1296, %v1097
      %1307 = vst.msk [vmem:[#allocation2 + $0x3f] sm:$0xff] %vm1296, %v1099
      %1308 = vst.msk [vmem:[#allocation2 + $0x47] sm:$0x1] %vm1299, %v1101
      %1309 = vst.msk [vmem:[#allocation2 + $0x47] sm:$0xfe] %vm1294, %v1103
      %1310 = vst.msk [vmem:[#allocation2 + $0x4f] sm:$0xff] %vm1296, %v1105
      %1311 = vst.msk [vmem:[#allocation2 + $0x57] sm:$0xff] %vm1296, %v1107
      %1312 = vst.msk [vmem:[#allocation2 + $0x5f] sm:$0x1] %vm1299, %v1109
      %1313 = vst.msk [vmem:[#allocation2 + $0x5f] sm:$0xfe] %vm1294, %v1111
      %1314 = vst.msk [vmem:[#allocation2 + $0x67] sm:$0xff] %vm1296, %v1113
      %1315 = vst.msk [vmem:[#allocation2 + $0x6f] sm:$0xff] %vm1296, %v1115
      %1316 = vst.msk [vmem:[#allocation2 + $0x77] sm:$0x1] %vm1299, %v1117
      %1317 = vst.msk [vmem:[#allocation2 + $0x77] sm:$0xfe] %vm1294, %v1119
      %1318 = vst.msk [vmem:[#allocation2 + $0x7f] sm:$0xff] %vm1296, %v1121
      %1319 = vst.msk [vmem:[#allocation2 + $0x87] sm:$0xff] %vm1296, %v1123
      %1320 = vst.msk [vmem:[#allocation2 + $0x8f] sm:$0x1] %vm1299, %v1125
      %1321 = vst.msk [vmem:[#allocation2 + $0x8f] sm:$0xfe] %vm1294, %v1127
      %1322 = vst.msk [vmem:[#allocation2 + $0x97] sm:$0xff] %vm1296, %v1129
      %1323 = vst.msk [vmem:[#allocation2 + $0x9f] sm:$0xff] %vm1296, %v1131
      %1324 = vst.msk [vmem:[#allocation2 + $0xa7] sm:$0x1] %vm1299, %v1133
      %1325 = vst.msk [vmem:[#allocation2 + $0xa7] sm:$0xfe] %vm1294, %v1135
      %1326 = vst.msk [vmem:[#allocation2 + $0xaf] sm:$0xff] %vm1296, %v1137
      %1327 = vst.msk [vmem:[#allocation2 + $0xb7] sm:$0xff] %vm1296, %v1139
      %1328 = vst.msk [vmem:[#allocation2 + $0xbf] sm:$0x1] %vm1299, %v1141
      %1329 = vst.msk [vmem:[#allocation2 + $0xbf] sm:$0xfe] %vm1294, %v1143
      %1330 = vst.msk [vmem:[#allocation2 + $0xc7] sm:$0xff] %vm1296, %v1145
      %1331 = vst.msk [vmem:[#allocation2 + $0xcf] sm:$0xff] %vm1296, %v1147
      %1332 = vst.msk [vmem:[#allocation2 + $0xd7] sm:$0x1] %vm1299, %v1149
      %1333 = vst.msk [vmem:[#allocation2 + $0xd7] sm:$0xfe] %vm1294, %v1151
      %1334 = vst.msk [vmem:[#allocation2 + $0xdf] sm:$0xff] %vm1296, %v1153
      %1335 = vst.msk [vmem:[#allocation2 + $0xe7] sm:$0xff] %vm1296, %v1155
      %1336 = vst.msk [vmem:[#allocation2 + $0xef] sm:$0x1] %vm1299, %v1157
      %1337 = vst.msk [vmem:[#allocation2 + $0xef] sm:$0xfe] %vm1294, %v1159
      %1338 = vst.msk [vmem:[#allocation2 + $0xf7] sm:$0xff] %vm1296, %v1161
      %1339 = vst.msk [vmem:[#allocation2 + $0xff] sm:$0xff] %vm1296, %v1163
      %1340 = vst.msk [vmem:[#allocation2 + $0x107] sm:$0x1] %vm1299, %v1165
      %1341 = vst.msk [vmem:[#allocation2 + $0x107] sm:$0xfe] %vm1294, %v1167
      %1342 = vst.msk [vmem:[#allocation2 + $0x10f] sm:$0xff] %vm1296, %v1169
      %1343 = vst.msk [vmem:[#allocation2 + $0x117] sm:$0xff] %vm1296, %v1171
      %1344 = vst.msk [vmem:[#allocation2 + $0x11f] sm:$0x1] %vm1299, %v1173
      %1345 = vst.msk [vmem:[#allocation2 + $0x11f] sm:$0xfe] %vm1294, %v1175
      %1346 = vst.msk [vmem:[#allocation2 + $0x127] sm:$0xff] %vm1296, %v1177
      %1347 = vst.msk [vmem:[#allocation2 + $0x12f] sm:$0xff] %vm1296, %v1179
      %1348 = vst.msk [vmem:[#allocation2 + $0x137] sm:$0x1] %vm1299, %v1181
      %1349 = vst.msk [vmem:[#allocation2 + $0x137] sm:$0xfe] %vm1294, %v1183
      %1350 = vst.msk [vmem:[#allocation2 + $0x13f] sm:$0xff] %vm1296, %v1185
      %1351 = vst.msk [vmem:[#allocation2 + $0x147] sm:$0xff] %vm1296, %v1187
      %1352 = vst.msk [vmem:[#allocation2 + $0x14f] sm:$0x1] %vm1299, %v1189
      %1353 = vst.msk [vmem:[#allocation2 + $0x14f] sm:$0xfe] %vm1294, %v1191
      %1354 = vst.msk [vmem:[#allocation2 + $0x157] sm:$0xff] %vm1296, %v1193
      %1355 = vst.msk [vmem:[#allocation2 + $0x15f] sm:$0xff] %vm1296, %v1195
      %1356 = vst.msk [vmem:[#allocation2 + $0x167] sm:$0x1] %vm1299, %v1197
      %1357 = vst.msk [vmem:[#allocation2 + $0x167] sm:$0xfe] %vm1294, %v1199
      %1358 = vst.msk [vmem:[#allocation2 + $0x16f] sm:$0xff] %vm1296, %v1201
      %1359 = vst.msk [vmem:[#allocation2 + $0x177] sm:$0xff] %vm1296, %v1203
      %1360 = vst.msk [vmem:[#allocation2 + $0x17f] sm:$0x1] %vm1299, %v1205
      %1361 = vst.msk [vmem:[#allocation2 + $0x17f] sm:$0xfe] %vm1294, %v1207
      %1362 = vst.msk [vmem:[#allocation2 + $0x187] sm:$0xff] %vm1296, %v1209
      %1363 = vst.msk [vmem:[#allocation2 + $0x18f] sm:$0xff] %vm1296, %v1211
      %1364 = vst.msk [vmem:[#allocation2 + $0x197] sm:$0x1] %vm1299, %v1213
      %1365 = vst.msk [vmem:[#allocation2 + $0x197] sm:$0xfe] %vm1294, %v1215
      %1366 = vst.msk [vmem:[#allocation2 + $0x19f] sm:$0xff] %vm1296, %v1217
      %1367 = vst.msk [vmem:[#allocation2 + $0x1a7] sm:$0xff] %vm1296, %v1219
      %1368 = vst.msk [vmem:[#allocation2 + $0x1af] sm:$0x1] %vm1299, %v1221
      %1369 = vrot.lane.b32.xlu0 %v871, 8
      %v1370 = vpop.permute.xlu0 %1369
      %1371 = vrot.lane.b32.xlu0 %v872, 8
      %v1372 = vpop.permute.xlu0 %1371
      %1373 = vrot.lane.b32.xlu0 %v873, 8
      %v1374 = vpop.permute.xlu0 %1373
      %1375 = vrot.lane.b32.xlu0 %v874, 8
      %v1376 = vpop.permute.xlu0 %1375
      %1377 = vrot.lane.b32.xlu0 %v875, 8
      %v1378 = vpop.permute.xlu0 %1377
      %1379 = vrot.lane.b32.xlu0 %v876, 8
      %v1380 = vpop.permute.xlu0 %1379
      %1381 = vrot.lane.b32.xlu0 %v877, 8
      %v1382 = vpop.permute.xlu0 %1381
      %1383 = vrot.lane.b32.xlu0 %v878, 8
      %v1384 = vpop.permute.xlu0 %1383
      %1385 = vrot.lane.b32.xlu0 %v879, 8
      %v1386 = vpop.permute.xlu0 %1385
      %1387 = vrot.lane.b32.xlu0 %v880, 8
      %v1388 = vpop.permute.xlu0 %1387
      %1389 = vrot.lane.b32.xlu0 %v881, 8
      %v1390 = vpop.permute.xlu0 %1389
      %1391 = vrot.lane.b32.xlu0 %v882, 8
      %v1392 = vpop.permute.xlu0 %1391
      %1393 = vrot.lane.b32.xlu0 %v883, 8
      %v1394 = vpop.permute.xlu0 %1393
      %1395 = vrot.lane.b32.xlu0 %v884, 8
      %v1396 = vpop.permute.xlu0 %1395
      %1397 = vrot.lane.b32.xlu0 %v885, 8
      %v1398 = vpop.permute.xlu0 %1397
      %1399 = vrot.lane.b32.xlu0 %v886, 8
      %v1400 = vpop.permute.xlu0 %1399
      %1401 = vrot.lane.b32.xlu0 %v887, 8
      %v1402 = vpop.permute.xlu0 %1401
      %1403 = vrot.lane.b32.xlu0 %v888, 8
      %v1404 = vpop.permute.xlu0 %1403
      %1405 = vrot.lane.b32.xlu0 %v889, 8
      %v1406 = vpop.permute.xlu0 %1405
      %1407 = vrot.lane.b32.xlu0 %v890, 8
      %v1408 = vpop.permute.xlu0 %1407
      %1409 = vrot.lane.b32.xlu0 %v891, 8
      %v1410 = vpop.permute.xlu0 %1409
      %1411 = vrot.lane.b32.xlu0 %v892, 8
      %v1412 = vpop.permute.xlu0 %1411
      %1413 = vrot.lane.b32.xlu0 %v893, 8
      %v1414 = vpop.permute.xlu0 %1413
      %1415 = vrot.lane.b32.xlu0 %v894, 8
      %v1416 = vpop.permute.xlu0 %1415
      %1417 = vrot.lane.b32.xlu0 %v895, 8
      %v1418 = vpop.permute.xlu0 %1417
      %1419 = vrot.lane.b32.xlu0 %v896, 8
      %v1420 = vpop.permute.xlu0 %1419
      %1421 = vrot.lane.b32.xlu0 %v897, 8
      %v1422 = vpop.permute.xlu0 %1421
      %1423 = vrot.lane.b32.xlu0 %v898, 8
      %v1424 = vpop.permute.xlu0 %1423
      %1425 = vrot.lane.b32.xlu0 %v899, 8
      %v1426 = vpop.permute.xlu0 %1425
      %1427 = vrot.lane.b32.xlu0 %v900, 8
      %v1428 = vpop.permute.xlu0 %1427
      %1429 = vrot.lane.b32.xlu0 %v901, 8
      %v1430 = vpop.permute.xlu0 %1429
      %1431 = vrot.lane.b32.xlu0 %v902, 8
      %v1432 = vpop.permute.xlu0 %1431
      %1433 = vrot.lane.b32.xlu0 %v903, 8
      %v1434 = vpop.permute.xlu0 %1433
      %1435 = vrot.lane.b32.xlu0 %v904, 8
      %v1436 = vpop.permute.xlu0 %1435
      %1437 = vrot.lane.b32.xlu0 %v905, 8
      %v1438 = vpop.permute.xlu0 %1437
      %1439 = vrot.lane.b32.xlu0 %v906, 8
      %v1440 = vpop.permute.xlu0 %1439
      %1441 = vrot.lane.b32.xlu0 %v907, 8
      %v1442 = vpop.permute.xlu0 %1441
      %1443 = vrot.lane.b32.xlu0 %v908, 8
      %v1444 = vpop.permute.xlu0 %1443
      %1445 = vrot.lane.b32.xlu0 %v909, 8
      %v1446 = vpop.permute.xlu0 %1445
      %1447 = vrot.lane.b32.xlu0 %v910, 8
      %v1448 = vpop.permute.xlu0 %1447
      %1449 = vrot.lane.b32.xlu0 %v911, 8
      %v1450 = vpop.permute.xlu0 %1449
      %1451 = vrot.lane.b32.xlu0 %v912, 8
      %v1452 = vpop.permute.xlu0 %1451
      %1453 = vrot.lane.b32.xlu0 %v913, 8
      %v1454 = vpop.permute.xlu0 %1453
      %1455 = vrot.lane.b32.xlu0 %v914, 8
      %v1456 = vpop.permute.xlu0 %1455
      %1457 = vrot.lane.b32.xlu0 %v915, 8
      %v1458 = vpop.permute.xlu0 %1457
      %1459 = vrot.lane.b32.xlu0 %v916, 8
      %v1460 = vpop.permute.xlu0 %1459
      %1461 = vrot.lane.b32.xlu0 %v917, 8
      %v1462 = vpop.permute.xlu0 %1461
      %1463 = vrot.lane.b32.xlu0 %v918, 8
      %v1464 = vpop.permute.xlu0 %1463
      %1465 = vrot.lane.b32.xlu0 %v919, 8
      %v1466 = vpop.permute.xlu0 %1465
      %1467 = vrot.lane.b32.xlu0 %v920, 8
      %v1468 = vpop.permute.xlu0 %1467
      %1469 = vrot.lane.b32.xlu0 %v921, 8
      %v1470 = vpop.permute.xlu0 %1469
      %1471 = vrot.lane.b32.xlu0 %v922, 8
      %v1472 = vpop.permute.xlu0 %1471
      %1473 = vrot.lane.b32.xlu0 %v923, 8
      %v1474 = vpop.permute.xlu0 %1473
      %1475 = vrot.lane.b32.xlu0 %v924, 8
      %v1476 = vpop.permute.xlu0 %1475
      %1477 = vrot.lane.b32.xlu0 %v925, 8
      %v1478 = vpop.permute.xlu0 %1477
      %1479 = vrot.lane.b32.xlu0 %v926, 8
      %v1480 = vpop.permute.xlu0 %1479
      %1481 = vrot.lane.b32.xlu0 %v927, 8
      %v1482 = vpop.permute.xlu0 %1481
      %1483 = vrot.lane.b32.xlu0 %v928, 8
      %v1484 = vpop.permute.xlu0 %1483
      %1485 = vrot.lane.b32.xlu0 %v929, 8
      %v1486 = vpop.permute.xlu0 %1485
      %1487 = vrot.lane.b32.xlu0 %v930, 8
      %v1488 = vpop.permute.xlu0 %1487
      %1489 = vrot.lane.b32.xlu0 %v931, 8
      %v1490 = vpop.permute.xlu0 %1489
      %1491 = vrot.lane.b32.xlu0 %v932, 8
      %v1492 = vpop.permute.xlu0 %1491
      %1493 = vrot.lane.b32.xlu0 %v933, 8
      %v1494 = vpop.permute.xlu0 %1493
      %1495 = vrot.lane.b32.xlu0 %v934, 8
      %v1496 = vpop.permute.xlu0 %1495
      %1497 = vrot.lane.b32.xlu0 %v935, 8
      %v1498 = vpop.permute.xlu0 %1497
      %1499 = vrot.lane.b32.xlu0 %v936, 8
      %v1500 = vpop.permute.xlu0 %1499
      %1501 = vrot.lane.b32.xlu0 %v937, 8
      %v1502 = vpop.permute.xlu0 %1501
      %1503 = vrot.lane.b32.xlu0 %v938, 8
      %v1504 = vpop.permute.xlu0 %1503
      %1505 = vrot.lane.b32.xlu0 %v939, 8
      %v1506 = vpop.permute.xlu0 %1505
      %1507 = vrot.lane.b32.xlu0 %v940, 8
      %v1508 = vpop.permute.xlu0 %1507
      %1509 = vrot.lane.b32.xlu0 %v941, 8
      %v1510 = vpop.permute.xlu0 %1509
      %1511 = vrot.lane.b32.xlu0 %v942, 8
      %v1512 = vpop.permute.xlu0 %1511
      %vm1585 = vcmask 97346
      %1586 = vst.msk [vmem:[#allocation2 - $0x2] sm:$0xfc] %vm1585, %v1370
      %vm1587 = vcmask 97344
      %1588 = vst.msk [vmem:[#allocation2 + $0x6] sm:$0xff] %vm1587, %v1372
      %1589 = vst.msk [vmem:[#allocation2 + $0xe] sm:$0xff] %vm1587, %v1374
      %vm1590 = vcmask 91200
      %1591 = vst.msk [vmem:[#allocation2 + $0x16] sm:$0x3] %vm1590, %v1376
      %1592 = vst.msk [vmem:[#allocation2 + $0x16] sm:$0xfc] %vm1585, %v1378
      %1593 = vst.msk [vmem:[#allocation2 + $0x1e] sm:$0xff] %vm1587, %v1380
      %1594 = vst.msk [vmem:[#allocation2 + $0x26] sm:$0xff] %vm1587, %v1382
      %1595 = vst.msk [vmem:[#allocation2 + $0x2e] sm:$0x3] %vm1590, %v1384
      %1596 = vst.msk [vmem:[#allocation2 + $0x2e] sm:$0xfc] %vm1585, %v1386
      %1597 = vst.msk [vmem:[#allocation2 + $0x36] sm:$0xff] %vm1587, %v1388
      %1598 = vst.msk [vmem:[#allocation2 + $0x3e] sm:$0xff] %vm1587, %v1390
      %1599 = vst.msk [vmem:[#allocation2 + $0x46] sm:$0x3] %vm1590, %v1392
      %1600 = vst.msk [vmem:[#allocation2 + $0x46] sm:$0xfc] %vm1585, %v1394
      %1601 = vst.msk [vmem:[#allocation2 + $0x4e] sm:$0xff] %vm1587, %v1396
      %1602 = vst.msk [vmem:[#allocation2 + $0x56] sm:$0xff] %vm1587, %v1398
      %1603 = vst.msk [vmem:[#allocation2 + $0x5e] sm:$0x3] %vm1590, %v1400
      %1604 = vst.msk [vmem:[#allocation2 + $0x5e] sm:$0xfc] %vm1585, %v1402
      %1605 = vst.msk [vmem:[#allocation2 + $0x66] sm:$0xff] %vm1587, %v1404
      %1606 = vst.msk [vmem:[#allocation2 + $0x6e] sm:$0xff] %vm1587, %v1406
      %1607 = vst.msk [vmem:[#allocation2 + $0x76] sm:$0x3] %vm1590, %v1408
      %1608 = vst.msk [vmem:[#allocation2 + $0x76] sm:$0xfc] %vm1585, %v1410
      %1609 = vst.msk [vmem:[#allocation2 + $0x7e] sm:$0xff] %vm1587, %v1412
      %1610 = vst.msk [vmem:[#allocation2 + $0x86] sm:$0xff] %vm1587, %v1414
      %1611 = vst.msk [vmem:[#allocation2 + $0x8e] sm:$0x3] %vm1590, %v1416
      %1612 = vst.msk [vmem:[#allocation2 + $0x8e] sm:$0xfc] %vm1585, %v1418
      %1613 = vst.msk [vmem:[#allocation2 + $0x96] sm:$0xff] %vm1587, %v1420
      %1614 = vst.msk [vmem:[#allocation2 + $0x9e] sm:$0xff] %vm1587, %v1422
      %1615 = vst.msk [vmem:[#allocation2 + $0xa6] sm:$0x3] %vm1590, %v1424
      %1616 = vst.msk [vmem:[#allocation2 + $0xa6] sm:$0xfc] %vm1585, %v1426
      %1617 = vst.msk [vmem:[#allocation2 + $0xae] sm:$0xff] %vm1587, %v1428
      %1618 = vst.msk [vmem:[#allocation2 + $0xb6] sm:$0xff] %vm1587, %v1430
      %1619 = vst.msk [vmem:[#allocation2 + $0xbe] sm:$0x3] %vm1590, %v1432
      %1620 = vst.msk [vmem:[#allocation2 + $0xbe] sm:$0xfc] %vm1585, %v1434
      %1621 = vst.msk [vmem:[#allocation2 + $0xc6] sm:$0xff] %vm1587, %v1436
      %1622 = vst.msk [vmem:[#allocation2 + $0xce] sm:$0xff] %vm1587, %v1438
      %1623 = vst.msk [vmem:[#allocation2 + $0xd6] sm:$0x3] %vm1590, %v1440
      %1624 = vst.msk [vmem:[#allocation2 + $0xd6] sm:$0xfc] %vm1585, %v1442
      %1625 = vst.msk [vmem:[#allocation2 + $0xde] sm:$0xff] %vm1587, %v1444
      %1626 = vst.msk [vmem:[#allocation2 + $0xe6] sm:$0xff] %vm1587, %v1446
      %1627 = vst.msk [vmem:[#allocation2 + $0xee] sm:$0x3] %vm1590, %v1448
      %1628 = vst.msk [vmem:[#allocation2 + $0xee] sm:$0xfc] %vm1585, %v1450
      %1629 = vst.msk [vmem:[#allocation2 + $0xf6] sm:$0xff] %vm1587, %v1452
      %1630 = vst.msk [vmem:[#allocation2 + $0xfe] sm:$0xff] %vm1587, %v1454
      %1631 = vst.msk [vmem:[#allocation2 + $0x106] sm:$0x3] %vm1590, %v1456
      %1632 = vst.msk [vmem:[#allocation2 + $0x106] sm:$0xfc] %vm1585, %v1458
      %1633 = vst.msk [vmem:[#allocation2 + $0x10e] sm:$0xff] %vm1587, %v1460
      %1634 = vst.msk [vmem:[#allocation2 + $0x116] sm:$0xff] %vm1587, %v1462
      %1635 = vst.msk [vmem:[#allocation2 + $0x11e] sm:$0x3] %vm1590, %v1464
      %1636 = vst.msk [vmem:[#allocation2 + $0x11e] sm:$0xfc] %vm1585, %v1466
      %1637 = vst.msk [vmem:[#allocation2 + $0x126] sm:$0xff] %vm1587, %v1468
      %1638 = vst.msk [vmem:[#allocation2 + $0x12e] sm:$0xff] %vm1587, %v1470
      %1639 = vst.msk [vmem:[#allocation2 + $0x136] sm:$0x3] %vm1590, %v1472
      %1640 = vst.msk [vmem:[#allocation2 + $0x136] sm:$0xfc] %vm1585, %v1474
      %1641 = vst.msk [vmem:[#allocation2 + $0x13e] sm:$0xff] %vm1587, %v1476
      %1642 = vst.msk [vmem:[#allocation2 + $0x146] sm:$0xff] %vm1587, %v1478
      %1643 = vst.msk [vmem:[#allocation2 + $0x14e] sm:$0x3] %vm1590, %v1480
      %1644 = vst.msk [vmem:[#allocation2 + $0x14e] sm:$0xfc] %vm1585, %v1482
      %1645 = vst.msk [vmem:[#allocation2 + $0x156] sm:$0xff] %vm1587, %v1484
      %1646 = vst.msk [vmem:[#allocation2 + $0x15e] sm:$0xff] %vm1587, %v1486
      %1647 = vst.msk [vmem:[#allocation2 + $0x166] sm:$0x3] %vm1590, %v1488
      %1648 = vst.msk [vmem:[#allocation2 + $0x166] sm:$0xfc] %vm1585, %v1490
      %1649 = vst.msk [vmem:[#allocation2 + $0x16e] sm:$0xff] %vm1587, %v1492
      %1650 = vst.msk [vmem:[#allocation2 + $0x176] sm:$0xff] %vm1587, %v1494
      %1651 = vst.msk [vmem:[#allocation2 + $0x17e] sm:$0x3] %vm1590, %v1496
      %1652 = vst.msk [vmem:[#allocation2 + $0x17e] sm:$0xfc] %vm1585, %v1498
      %1653 = vst.msk [vmem:[#allocation2 + $0x186] sm:$0xff] %vm1587, %v1500
      %1654 = vst.msk [vmem:[#allocation2 + $0x18e] sm:$0xff] %vm1587, %v1502
      %1655 = vst.msk [vmem:[#allocation2 + $0x196] sm:$0x3] %vm1590, %v1504
      %1656 = vst.msk [vmem:[#allocation2 + $0x196] sm:$0xfc] %vm1585, %v1506
      %1657 = vst.msk [vmem:[#allocation2 + $0x19e] sm:$0xff] %vm1587, %v1508
      %1658 = vst.msk [vmem:[#allocation2 + $0x1a6] sm:$0xff] %vm1587, %v1510
      %1659 = vst.msk [vmem:[#allocation2 + $0x1ae] sm:$0x3] %vm1590, %v1512
      %1663 = vrot.lane.b32.xlu0 %v875, 12
      %v1664 = vpop.permute.xlu0 %1663
      %1665 = vrot.lane.b32.xlu0 %v876, 12
      %v1666 = vpop.permute.xlu0 %1665
      %1667 = vrot.lane.b32.xlu0 %v877, 12
      %v1668 = vpop.permute.xlu0 %1667
      %1669 = vrot.lane.b32.xlu0 %v879, 12
      %v1670 = vpop.permute.xlu0 %1669
      %1671 = vrot.lane.b32.xlu0 %v880, 12
      %v1672 = vpop.permute.xlu0 %1671
      %1673 = vrot.lane.b32.xlu0 %v881, 12
      %v1674 = vpop.permute.xlu0 %1673
      %1675 = vrot.lane.b32.xlu0 %v883, 12
      %v1676 = vpop.permute.xlu0 %1675
      %1677 = vrot.lane.b32.xlu0 %v884, 12
      %v1678 = vpop.permute.xlu0 %1677
      %1679 = vrot.lane.b32.xlu0 %v885, 12
      %v1680 = vpop.permute.xlu0 %1679
      %1681 = vrot.lane.b32.xlu0 %v887, 12
      %v1682 = vpop.permute.xlu0 %1681
      %1683 = vrot.lane.b32.xlu0 %v888, 12
      %v1684 = vpop.permute.xlu0 %1683
      %1685 = vrot.lane.b32.xlu0 %v889, 12
      %v1686 = vpop.permute.xlu0 %1685
      %1687 = vrot.lane.b32.xlu0 %v891, 12
      %v1688 = vpop.permute.xlu0 %1687
      %1689 = vrot.lane.b32.xlu0 %v892, 12
      %v1690 = vpop.permute.xlu0 %1689
      %1691 = vrot.lane.b32.xlu0 %v893, 12
      %v1692 = vpop.permute.xlu0 %1691
      %1693 = vrot.lane.b32.xlu0 %v895, 12
      %v1694 = vpop.permute.xlu0 %1693
      %1695 = vrot.lane.b32.xlu0 %v896, 12
      %v1696 = vpop.permute.xlu0 %1695
      %1697 = vrot.lane.b32.xlu0 %v897, 12
      %v1698 = vpop.permute.xlu0 %1697
      %1699 = vrot.lane.b32.xlu0 %v899, 12
      %v1700 = vpop.permute.xlu0 %1699
      %1701 = vrot.lane.b32.xlu0 %v900, 12
      %v1702 = vpop.permute.xlu0 %1701
      %1703 = vrot.lane.b32.xlu0 %v901, 12
      %v1704 = vpop.permute.xlu0 %1703
      %1705 = vrot.lane.b32.xlu0 %v903, 12
      %v1706 = vpop.permute.xlu0 %1705
      %1707 = vrot.lane.b32.xlu0 %v904, 12
      %v1708 = vpop.permute.xlu0 %1707
      %1709 = vrot.lane.b32.xlu0 %v905, 12
      %v1710 = vpop.permute.xlu0 %1709
      %1711 = vrot.lane.b32.xlu0 %v907, 12
      %v1712 = vpop.permute.xlu0 %1711
      %1713 = vrot.lane.b32.xlu0 %v908, 12
      %v1714 = vpop.permute.xlu0 %1713
      %1715 = vrot.lane.b32.xlu0 %v909, 12
      %v1716 = vpop.permute.xlu0 %1715
      %1717 = vrot.lane.b32.xlu0 %v911, 12
      %v1718 = vpop.permute.xlu0 %1717
      %1719 = vrot.lane.b32.xlu0 %v912, 12
      %v1720 = vpop.permute.xlu0 %1719
      %1721 = vrot.lane.b32.xlu0 %v913, 12
      %v1722 = vpop.permute.xlu0 %1721
      %1723 = vrot.lane.b32.xlu0 %v915, 12
      %v1724 = vpop.permute.xlu0 %1723
      %1725 = vrot.lane.b32.xlu0 %v916, 12
      %v1726 = vpop.permute.xlu0 %1725
      %1727 = vrot.lane.b32.xlu0 %v917, 12
      %v1728 = vpop.permute.xlu0 %1727
      %1729 = vrot.lane.b32.xlu0 %v919, 12
      %v1730 = vpop.permute.xlu0 %1729
      %1731 = vrot.lane.b32.xlu0 %v920, 12
      %v1732 = vpop.permute.xlu0 %1731
      %1733 = vrot.lane.b32.xlu0 %v921, 12
      %v1734 = vpop.permute.xlu0 %1733
      %1735 = vrot.lane.b32.xlu0 %v923, 12
      %v1736 = vpop.permute.xlu0 %1735
      %1737 = vrot.lane.b32.xlu0 %v924, 12
      %v1738 = vpop.permute.xlu0 %1737
      %1739 = vrot.lane.b32.xlu0 %v925, 12
      %v1740 = vpop.permute.xlu0 %1739
      %1741 = vrot.lane.b32.xlu0 %v927, 12
      %v1742 = vpop.permute.xlu0 %1741
      %1743 = vrot.lane.b32.xlu0 %v928, 12
      %v1744 = vpop.permute.xlu0 %1743
      %1745 = vrot.lane.b32.xlu0 %v929, 12
      %v1746 = vpop.permute.xlu0 %1745
      %1747 = vrot.lane.b32.xlu0 %v931, 12
      %v1748 = vpop.permute.xlu0 %1747
      %1749 = vrot.lane.b32.xlu0 %v932, 12
      %v1750 = vpop.permute.xlu0 %1749
      %1751 = vrot.lane.b32.xlu0 %v933, 12
      %v1752 = vpop.permute.xlu0 %1751
      %1753 = vrot.lane.b32.xlu0 %v935, 12
      %v1754 = vpop.permute.xlu0 %1753
      %1755 = vrot.lane.b32.xlu0 %v936, 12
      %v1756 = vpop.permute.xlu0 %1755
      %1757 = vrot.lane.b32.xlu0 %v937, 12
      %v1758 = vpop.permute.xlu0 %1757
      %1759 = vrot.lane.b32.xlu0 %v939, 12
      %v1760 = vpop.permute.xlu0 %1759
      %1761 = vrot.lane.b32.xlu0 %v940, 12
      %v1762 = vpop.permute.xlu0 %1761
      %1763 = vrot.lane.b32.xlu0 %v941, 12
      %v1764 = vpop.permute.xlu0 %1763
      %1765 = vrot.lane.b32.xlu0 %v943, 12
      %v1766 = vpop.permute.xlu0 %1765
      %1767 = vrot.lane.b32.xlu0 %v944, 12
      %v1768 = vpop.permute.xlu0 %1767
      %1769 = vrot.lane.b32.xlu0 %v945, 12
      %v1770 = vpop.permute.xlu0 %1769
      %vm1825 = vcmask 130144
      %1826 = vst.msk [vmem:[#allocation2] sm:$0xff] %vm1825, %v1664
      %1827 = vst.msk [vmem:[#allocation2 + $0x8] sm:$0xff] %vm1825, %v1666
      %1828 = vst.msk [vmem:[#allocation2 + $0x10] sm:$0xff] %vm1825, %v1668
      %1829 = vst.msk [vmem:[#allocation2 + $0x18] sm:$0xff] %vm1825, %v1670
      %1830 = vst.msk [vmem:[#allocation2 + $0x20] sm:$0xff] %vm1825, %v1672
      %1831 = vst.msk [vmem:[#allocation2 + $0x28] sm:$0xff] %vm1825, %v1674
      %1832 = vst.msk [vmem:[#allocation2 + $0x30] sm:$0xff] %vm1825, %v1676
      %1833 = vst.msk [vmem:[#allocation2 + $0x38] sm:$0xff] %vm1825, %v1678
      %1834 = vst.msk [vmem:[#allocation2 + $0x40] sm:$0xff] %vm1825, %v1680
      %1835 = vst.msk [vmem:[#allocation2 + $0x48] sm:$0xff] %vm1825, %v1682
      %1836 = vst.msk [vmem:[#allocation2 + $0x50] sm:$0xff] %vm1825, %v1684
      %1837 = vst.msk [vmem:[#allocation2 + $0x58] sm:$0xff] %vm1825, %v1686
      %1838 = vst.msk [vmem:[#allocation2 + $0x60] sm:$0xff] %vm1825, %v1688
      %1839 = vst.msk [vmem:[#allocation2 + $0x68] sm:$0xff] %vm1825, %v1690
      %1840 = vst.msk [vmem:[#allocation2 + $0x70] sm:$0xff] %vm1825, %v1692
      %1841 = vst.msk [vmem:[#allocation2 + $0x78] sm:$0xff] %vm1825, %v1694
      %1842 = vst.msk [vmem:[#allocation2 + $0x80] sm:$0xff] %vm1825, %v1696
      %1843 = vst.msk [vmem:[#allocation2 + $0x88] sm:$0xff] %vm1825, %v1698
      %1844 = vst.msk [vmem:[#allocation2 + $0x90] sm:$0xff] %vm1825, %v1700
      %1845 = vst.msk [vmem:[#allocation2 + $0x98] sm:$0xff] %vm1825, %v1702
      %1846 = vst.msk [vmem:[#allocation2 + $0xa0] sm:$0xff] %vm1825, %v1704
      %1847 = vst.msk [vmem:[#allocation2 + $0xa8] sm:$0xff] %vm1825, %v1706
      %1848 = vst.msk [vmem:[#allocation2 + $0xb0] sm:$0xff] %vm1825, %v1708
      %1849 = vst.msk [vmem:[#allocation2 + $0xb8] sm:$0xff] %vm1825, %v1710
      %1850 = vst.msk [vmem:[#allocation2 + $0xc0] sm:$0xff] %vm1825, %v1712
      %1851 = vst.msk [vmem:[#allocation2 + $0xc8] sm:$0xff] %vm1825, %v1714
      %1852 = vst.msk [vmem:[#allocation2 + $0xd0] sm:$0xff] %vm1825, %v1716
      %1853 = vst.msk [vmem:[#allocation2 + $0xd8] sm:$0xff] %vm1825, %v1718
      %1854 = vst.msk [vmem:[#allocation2 + $0xe0] sm:$0xff] %vm1825, %v1720
      %1855 = vst.msk [vmem:[#allocation2 + $0xe8] sm:$0xff] %vm1825, %v1722
      %1856 = vst.msk [vmem:[#allocation2 + $0xf0] sm:$0xff] %vm1825, %v1724
      %1857 = vst.msk [vmem:[#allocation2 + $0xf8] sm:$0xff] %vm1825, %v1726
      %1858 = vst.msk [vmem:[#allocation2 + $0x100] sm:$0xff] %vm1825, %v1728
      %1859 = vst.msk [vmem:[#allocation2 + $0x108] sm:$0xff] %vm1825, %v1730
      %1860 = vst.msk [vmem:[#allocation2 + $0x110] sm:$0xff] %vm1825, %v1732
      %1861 = vst.msk [vmem:[#allocation2 + $0x118] sm:$0xff] %vm1825, %v1734
      %1862 = vst.msk [vmem:[#allocation2 + $0x120] sm:$0xff] %vm1825, %v1736
      %1863 = vst.msk [vmem:[#allocation2 + $0x128] sm:$0xff] %vm1825, %v1738
      %1864 = vst.msk [vmem:[#allocation2 + $0x130] sm:$0xff] %vm1825, %v1740
      %1865 = vst.msk [vmem:[#allocation2 + $0x138] sm:$0xff] %vm1825, %v1742
      %1866 = vst.msk [vmem:[#allocation2 + $0x140] sm:$0xff] %vm1825, %v1744
      %1867 = vst.msk [vmem:[#allocation2 + $0x148] sm:$0xff] %vm1825, %v1746
      %1868 = vst.msk [vmem:[#allocation2 + $0x150] sm:$0xff] %vm1825, %v1748
      %1869 = vst.msk [vmem:[#allocation2 + $0x158] sm:$0xff] %vm1825, %v1750
      %1870 = vst.msk [vmem:[#allocation2 + $0x160] sm:$0xff] %vm1825, %v1752
      %1871 = vst.msk [vmem:[#allocation2 + $0x168] sm:$0xff] %vm1825, %v1754
      %1872 = vst.msk [vmem:[#allocation2 + $0x170] sm:$0xff] %vm1825, %v1756
      %1873 = vst.msk [vmem:[#allocation2 + $0x178] sm:$0xff] %vm1825, %v1758
      %1874 = vst.msk [vmem:[#allocation2 + $0x180] sm:$0xff] %vm1825, %v1760
      %1875 = vst.msk [vmem:[#allocation2 + $0x188] sm:$0xff] %vm1825, %v1762
      %1876 = vst.msk [vmem:[#allocation2 + $0x190] sm:$0xff] %vm1825, %v1764
      %1877 = vst.msk [vmem:[#allocation2 + $0x198] sm:$0xff] %vm1825, %v1766
      %1878 = vst.msk [vmem:[#allocation2 + $0x1a0] sm:$0xff] %vm1825, %v1768
      %1879 = vst.msk [vmem:[#allocation2 + $0x1a8] sm:$0xff] %vm1825, %v1770
      %1881 = vrot.lane.b32.xlu0 %v875, 16
      %v1882 = vpop.permute.xlu0 %1881
      %1883 = vrot.lane.b32.xlu0 %v876, 16
      %v1884 = vpop.permute.xlu0 %1883
      %1885 = vrot.lane.b32.xlu0 %v877, 16
      %v1886 = vpop.permute.xlu0 %1885
      %1887 = vrot.lane.b32.xlu0 %v878, 16
      %v1888 = vpop.permute.xlu0 %1887
      %1889 = vrot.lane.b32.xlu0 %v879, 16
      %v1890 = vpop.permute.xlu0 %1889
      %1891 = vrot.lane.b32.xlu0 %v880, 16
      %v1892 = vpop.permute.xlu0 %1891
      %1893 = vrot.lane.b32.xlu0 %v881, 16
      %v1894 = vpop.permute.xlu0 %1893
      %1895 = vrot.lane.b32.xlu0 %v882, 16
      %v1896 = vpop.permute.xlu0 %1895
      %1897 = vrot.lane.b32.xlu0 %v883, 16
      %v1898 = vpop.permute.xlu0 %1897
      %1899 = vrot.lane.b32.xlu0 %v884, 16
      %v1900 = vpop.permute.xlu0 %1899
      %1901 = vrot.lane.b32.xlu0 %v885, 16
      %v1902 = vpop.permute.xlu0 %1901
      %1903 = vrot.lane.b32.xlu0 %v886, 16
      %v1904 = vpop.permute.xlu0 %1903
      %1905 = vrot.lane.b32.xlu0 %v887, 16
      %v1906 = vpop.permute.xlu0 %1905
      %1907 = vrot.lane.b32.xlu0 %v888, 16
      %v1908 = vpop.permute.xlu0 %1907
      %1909 = vrot.lane.b32.xlu0 %v889, 16
      %v1910 = vpop.permute.xlu0 %1909
      %1911 = vrot.lane.b32.xlu0 %v890, 16
      %v1912 = vpop.permute.xlu0 %1911
      %1913 = vrot.lane.b32.xlu0 %v891, 16
      %v1914 = vpop.permute.xlu0 %1913
      %1915 = vrot.lane.b32.xlu0 %v892, 16
      %v1916 = vpop.permute.xlu0 %1915
      %1917 = vrot.lane.b32.xlu0 %v893, 16
      %v1918 = vpop.permute.xlu0 %1917
      %1919 = vrot.lane.b32.xlu0 %v894, 16
      %v1920 = vpop.permute.xlu0 %1919
      %1921 = vrot.lane.b32.xlu0 %v895, 16
      %v1922 = vpop.permute.xlu0 %1921
      %1923 = vrot.lane.b32.xlu0 %v896, 16
      %v1924 = vpop.permute.xlu0 %1923
      %1925 = vrot.lane.b32.xlu0 %v897, 16
      %v1926 = vpop.permute.xlu0 %1925
      %1927 = vrot.lane.b32.xlu0 %v898, 16
      %v1928 = vpop.permute.xlu0 %1927
      %1929 = vrot.lane.b32.xlu0 %v899, 16
      %v1930 = vpop.permute.xlu0 %1929
      %1931 = vrot.lane.b32.xlu0 %v900, 16
      %v1932 = vpop.permute.xlu0 %1931
      %1933 = vrot.lane.b32.xlu0 %v901, 16
      %v1934 = vpop.permute.xlu0 %1933
      %1935 = vrot.lane.b32.xlu0 %v902, 16
      %v1936 = vpop.permute.xlu0 %1935
      %1937 = vrot.lane.b32.xlu0 %v903, 16
      %v1938 = vpop.permute.xlu0 %1937
      %1939 = vrot.lane.b32.xlu0 %v904, 16
      %v1940 = vpop.permute.xlu0 %1939
      %1941 = vrot.lane.b32.xlu0 %v905, 16
      %v1942 = vpop.permute.xlu0 %1941
      %1943 = vrot.lane.b32.xlu0 %v906, 16
      %v1944 = vpop.permute.xlu0 %1943
      %1945 = vrot.lane.b32.xlu0 %v907, 16
      %v1946 = vpop.permute.xlu0 %1945
      %1947 = vrot.lane.b32.xlu0 %v908, 16
      %v1948 = vpop.permute.xlu0 %1947
      %1949 = vrot.lane.b32.xlu0 %v909, 16
      %v1950 = vpop.permute.xlu0 %1949
      %1951 = vrot.lane.b32.xlu0 %v910, 16
      %v1952 = vpop.permute.xlu0 %1951
      %1953 = vrot.lane.b32.xlu0 %v911, 16
      %v1954 = vpop.permute.xlu0 %1953
      %1955 = vrot.lane.b32.xlu0 %v912, 16
      %v1956 = vpop.permute.xlu0 %1955
      %1957 = vrot.lane.b32.xlu0 %v913, 16
      %v1958 = vpop.permute.xlu0 %1957
      %1959 = vrot.lane.b32.xlu0 %v914, 16
      %v1960 = vpop.permute.xlu0 %1959
      %1961 = vrot.lane.b32.xlu0 %v915, 16
      %v1962 = vpop.permute.xlu0 %1961
      %1963 = vrot.lane.b32.xlu0 %v916, 16
      %v1964 = vpop.permute.xlu0 %1963
      %1965 = vrot.lane.b32.xlu0 %v917, 16
      %v1966 = vpop.permute.xlu0 %1965
      %1967 = vrot.lane.b32.xlu0 %v918, 16
      %v1968 = vpop.permute.xlu0 %1967
      %1969 = vrot.lane.b32.xlu0 %v919, 16
      %v1970 = vpop.permute.xlu0 %1969
      %1971 = vrot.lane.b32.xlu0 %v920, 16
      %v1972 = vpop.permute.xlu0 %1971
      %1973 = vrot.lane.b32.xlu0 %v921, 16
      %v1974 = vpop.permute.xlu0 %1973
      %1975 = vrot.lane.b32.xlu0 %v922, 16
      %v1976 = vpop.permute.xlu0 %1975
      %1977 = vrot.lane.b32.xlu0 %v923, 16
      %v1978 = vpop.permute.xlu0 %1977
      %1979 = vrot.lane.b32.xlu0 %v924, 16
      %v1980 = vpop.permute.xlu0 %1979
      %1981 = vrot.lane.b32.xlu0 %v925, 16
      %v1982 = vpop.permute.xlu0 %1981
      %1983 = vrot.lane.b32.xlu0 %v926, 16
      %v1984 = vpop.permute.xlu0 %1983
      %1985 = vrot.lane.b32.xlu0 %v927, 16
      %v1986 = vpop.permute.xlu0 %1985
      %1987 = vrot.lane.b32.xlu0 %v928, 16
      %v1988 = vpop.permute.xlu0 %1987
      %1989 = vrot.lane.b32.xlu0 %v929, 16
      %v1990 = vpop.permute.xlu0 %1989
      %1991 = vrot.lane.b32.xlu0 %v930, 16
      %v1992 = vpop.permute.xlu0 %1991
      %1993 = vrot.lane.b32.xlu0 %v931, 16
      %v1994 = vpop.permute.xlu0 %1993
      %1995 = vrot.lane.b32.xlu0 %v932, 16
      %v1996 = vpop.permute.xlu0 %1995
      %1997 = vrot.lane.b32.xlu0 %v933, 16
      %v1998 = vpop.permute.xlu0 %1997
      %1999 = vrot.lane.b32.xlu0 %v934, 16
      %v2000 = vpop.permute.xlu0 %1999
      %2001 = vrot.lane.b32.xlu0 %v935, 16
      %v2002 = vpop.permute.xlu0 %2001
      %2003 = vrot.lane.b32.xlu0 %v936, 16
      %v2004 = vpop.permute.xlu0 %2003
      %2005 = vrot.lane.b32.xlu0 %v937, 16
      %v2006 = vpop.permute.xlu0 %2005
      %2007 = vrot.lane.b32.xlu0 %v938, 16
      %v2008 = vpop.permute.xlu0 %2007
      %2009 = vrot.lane.b32.xlu0 %v939, 16
      %v2010 = vpop.permute.xlu0 %2009
      %2011 = vrot.lane.b32.xlu0 %v940, 16
      %v2012 = vpop.permute.xlu0 %2011
      %2013 = vrot.lane.b32.xlu0 %v941, 16
      %v2014 = vpop.permute.xlu0 %2013
      %2015 = vrot.lane.b32.xlu0 %v942, 16
      %v2016 = vpop.permute.xlu0 %2015
      %2017 = vrot.lane.b32.xlu0 %v943, 16
      %v2018 = vpop.permute.xlu0 %2017
      %2019 = vrot.lane.b32.xlu0 %v944, 16
      %v2020 = vpop.permute.xlu0 %2019
      %2021 = vrot.lane.b32.xlu0 %v945, 16
      %v2022 = vpop.permute.xlu0 %2021
      %2023 = vrot.lane.b32.xlu0 %v946, 16
      %v2024 = vpop.permute.xlu0 %2023
      %vm2097 = vcmask 162945
      %2098 = vst.msk [vmem:[#allocation2 - $0x1] sm:$0xfe] %vm2097, %v1882
      %vm2099 = vcmask 162944
      %2100 = vst.msk [vmem:[#allocation2 + $0x7] sm:$0xff] %vm2099, %v1884
      %2101 = vst.msk [vmem:[#allocation2 + $0xf] sm:$0xff] %vm2099, %v1886
      %vm2102 = vcmask 155776
      %2103 = vst.msk [vmem:[#allocation2 + $0x17] sm:$0x1] %vm2102, %v1888
      %2104 = vst.msk [vmem:[#allocation2 + $0x17] sm:$0xfe] %vm2097, %v1890
      %2105 = vst.msk [vmem:[#allocation2 + $0x1f] sm:$0xff] %vm2099, %v1892
      %2106 = vst.msk [vmem:[#allocation2 + $0x27] sm:$0xff] %vm2099, %v1894
      %2107 = vst.msk [vmem:[#allocation2 + $0x2f] sm:$0x1] %vm2102, %v1896
      %2108 = vst.msk [vmem:[#allocation2 + $0x2f] sm:$0xfe] %vm2097, %v1898
      %2109 = vst.msk [vmem:[#allocation2 + $0x37] sm:$0xff] %vm2099, %v1900
      %2110 = vst.msk [vmem:[#allocation2 + $0x3f] sm:$0xff] %vm2099, %v1902
      %2111 = vst.msk [vmem:[#allocation2 + $0x47] sm:$0x1] %vm2102, %v1904
      %2112 = vst.msk [vmem:[#allocation2 + $0x47] sm:$0xfe] %vm2097, %v1906
      %2113 = vst.msk [vmem:[#allocation2 + $0x4f] sm:$0xff] %vm2099, %v1908
      %2114 = vst.msk [vmem:[#allocation2 + $0x57] sm:$0xff] %vm2099, %v1910
      %2115 = vst.msk [vmem:[#allocation2 + $0x5f] sm:$0x1] %vm2102, %v1912
      %2116 = vst.msk [vmem:[#allocation2 + $0x5f] sm:$0xfe] %vm2097, %v1914
      %2117 = vst.msk [vmem:[#allocation2 + $0x67] sm:$0xff] %vm2099, %v1916
      %2118 = vst.msk [vmem:[#allocation2 + $0x6f] sm:$0xff] %vm2099, %v1918
      %2119 = vst.msk [vmem:[#allocation2 + $0x77] sm:$0x1] %vm2102, %v1920
      %2120 = vst.msk [vmem:[#allocation2 + $0x77] sm:$0xfe] %vm2097, %v1922
      %2121 = vst.msk [vmem:[#allocation2 + $0x7f] sm:$0xff] %vm2099, %v1924
      %2122 = vst.msk [vmem:[#allocation2 + $0x87] sm:$0xff] %vm2099, %v1926
      %2123 = vst.msk [vmem:[#allocation2 + $0x8f] sm:$0x1] %vm2102, %v1928
      %2124 = vst.msk [vmem:[#allocation2 + $0x8f] sm:$0xfe] %vm2097, %v1930
      %2125 = vst.msk [vmem:[#allocation2 + $0x97] sm:$0xff] %vm2099, %v1932
      %2126 = vst.msk [vmem:[#allocation2 + $0x9f] sm:$0xff] %vm2099, %v1934
      %2127 = vst.msk [vmem:[#allocation2 + $0xa7] sm:$0x1] %vm2102, %v1936
      %2128 = vst.msk [vmem:[#allocation2 + $0xa7] sm:$0xfe] %vm2097, %v1938
      %2129 = vst.msk [vmem:[#allocation2 + $0xaf] sm:$0xff] %vm2099, %v1940
      %2130 = vst.msk [vmem:[#allocation2 + $0xb7] sm:$0xff] %vm2099, %v1942
      %2131 = vst.msk [vmem:[#allocation2 + $0xbf] sm:$0x1] %vm2102, %v1944
      %2132 = vst.msk [vmem:[#allocation2 + $0xbf] sm:$0xfe] %vm2097, %v1946
      %2133 = vst.msk [vmem:[#allocation2 + $0xc7] sm:$0xff] %vm2099, %v1948
      %2134 = vst.msk [vmem:[#allocation2 + $0xcf] sm:$0xff] %vm2099, %v1950
      %2135 = vst.msk [vmem:[#allocation2 + $0xd7] sm:$0x1] %vm2102, %v1952
      %2136 = vst.msk [vmem:[#allocation2 + $0xd7] sm:$0xfe] %vm2097, %v1954
      %2137 = vst.msk [vmem:[#allocation2 + $0xdf] sm:$0xff] %vm2099, %v1956
      %2138 = vst.msk [vmem:[#allocation2 + $0xe7] sm:$0xff] %vm2099, %v1958
      %2139 = vst.msk [vmem:[#allocation2 + $0xef] sm:$0x1] %vm2102, %v1960
      %2140 = vst.msk [vmem:[#allocation2 + $0xef] sm:$0xfe] %vm2097, %v1962
      %2141 = vst.msk [vmem:[#allocation2 + $0xf7] sm:$0xff] %vm2099, %v1964
      %2142 = vst.msk [vmem:[#allocation2 + $0xff] sm:$0xff] %vm2099, %v1966
      %2143 = vst.msk [vmem:[#allocation2 + $0x107] sm:$0x1] %vm2102, %v1968
      %2144 = vst.msk [vmem:[#allocation2 + $0x107] sm:$0xfe] %vm2097, %v1970
      %2145 = vst.msk [vmem:[#allocation2 + $0x10f] sm:$0xff] %vm2099, %v1972
      %2146 = vst.msk [vmem:[#allocation2 + $0x117] sm:$0xff] %vm2099, %v1974
      %2147 = vst.msk [vmem:[#allocation2 + $0x11f] sm:$0x1] %vm2102, %v1976
      %2148 = vst.msk [vmem:[#allocation2 + $0x11f] sm:$0xfe] %vm2097, %v1978
      %2149 = vst.msk [vmem:[#allocation2 + $0x127] sm:$0xff] %vm2099, %v1980
      %2150 = vst.msk [vmem:[#allocation2 + $0x12f] sm:$0xff] %vm2099, %v1982
      %2151 = vst.msk [vmem:[#allocation2 + $0x137] sm:$0x1] %vm2102, %v1984
      %2152 = vst.msk [vmem:[#allocation2 + $0x137] sm:$0xfe] %vm2097, %v1986
      %2153 = vst.msk [vmem:[#allocation2 + $0x13f] sm:$0xff] %vm2099, %v1988
      %2154 = vst.msk [vmem:[#allocation2 + $0x147] sm:$0xff] %vm2099, %v1990
      %2155 = vst.msk [vmem:[#allocation2 + $0x14f] sm:$0x1] %vm2102, %v1992
      %2156 = vst.msk [vmem:[#allocation2 + $0x14f] sm:$0xfe] %vm2097, %v1994
      %2157 = vst.msk [vmem:[#allocation2 + $0x157] sm:$0xff] %vm2099, %v1996
      %2158 = vst.msk [vmem:[#allocation2 + $0x15f] sm:$0xff] %vm2099, %v1998
      %2159 = vst.msk [vmem:[#allocation2 + $0x167] sm:$0x1] %vm2102, %v2000
      %2160 = vst.msk [vmem:[#allocation2 + $0x167] sm:$0xfe] %vm2097, %v2002
      %2161 = vst.msk [vmem:[#allocation2 + $0x16f] sm:$0xff] %vm2099, %v2004
      %2162 = vst.msk [vmem:[#allocation2 + $0x177] sm:$0xff] %vm2099, %v2006
      %2163 = vst.msk [vmem:[#allocation2 + $0x17f] sm:$0x1] %vm2102, %v2008
      %2164 = vst.msk [vmem:[#allocation2 + $0x17f] sm:$0xfe] %vm2097, %v2010
      %2165 = vst.msk [vmem:[#allocation2 + $0x187] sm:$0xff] %vm2099, %v2012
      %2166 = vst.msk [vmem:[#allocation2 + $0x18f] sm:$0xff] %vm2099, %v2014
      %2167 = vst.msk [vmem:[#allocation2 + $0x197] sm:$0x1] %vm2102, %v2016
      %2168 = vst.msk [vmem:[#allocation2 + $0x197] sm:$0xfe] %vm2097, %v2018
      %2169 = vst.msk [vmem:[#allocation2 + $0x19f] sm:$0xff] %vm2099, %v2020
      %2170 = vst.msk [vmem:[#allocation2 + $0x1a7] sm:$0xff] %vm2099, %v2022
      %2171 = vst.msk [vmem:[#allocation2 + $0x1af] sm:$0x1] %vm2102, %v2024
      %2172 = vrot.lane.b32.xlu0 %v875, 20
      %v2173 = vpop.permute.xlu0 %2172
      %2174 = vrot.lane.b32.xlu0 %v876, 20
      %v2175 = vpop.permute.xlu0 %2174
      %2176 = vrot.lane.b32.xlu0 %v877, 20
      %v2177 = vpop.permute.xlu0 %2176
      %2178 = vrot.lane.b32.xlu0 %v878, 20
      %v2179 = vpop.permute.xlu0 %2178
      %2180 = vrot.lane.b32.xlu0 %v879, 20
      %v2181 = vpop.permute.xlu0 %2180
      %2182 = vrot.lane.b32.xlu0 %v880, 20
      %v2183 = vpop.permute.xlu0 %2182
      %2184 = vrot.lane.b32.xlu0 %v881, 20
      %v2185 = vpop.permute.xlu0 %2184
      %2186 = vrot.lane.b32.xlu0 %v882, 20
      %v2187 = vpop.permute.xlu0 %2186
      %2188 = vrot.lane.b32.xlu0 %v883, 20
      %v2189 = vpop.permute.xlu0 %2188
      %2190 = vrot.lane.b32.xlu0 %v884, 20
      %v2191 = vpop.permute.xlu0 %2190
      %2192 = vrot.lane.b32.xlu0 %v885, 20
      %v2193 = vpop.permute.xlu0 %2192
      %2194 = vrot.lane.b32.xlu0 %v886, 20
      %v2195 = vpop.permute.xlu0 %2194
      %2196 = vrot.lane.b32.xlu0 %v887, 20
      %v2197 = vpop.permute.xlu0 %2196
      %2198 = vrot.lane.b32.xlu0 %v888, 20
      %v2199 = vpop.permute.xlu0 %2198
      %2200 = vrot.lane.b32.xlu0 %v889, 20
      %v2201 = vpop.permute.xlu0 %2200
      %2202 = vrot.lane.b32.xlu0 %v890, 20
      %v2203 = vpop.permute.xlu0 %2202
      %2204 = vrot.lane.b32.xlu0 %v891, 20
      %v2205 = vpop.permute.xlu0 %2204
      %2206 = vrot.lane.b32.xlu0 %v892, 20
      %v2207 = vpop.permute.xlu0 %2206
      %2208 = vrot.lane.b32.xlu0 %v893, 20
      %v2209 = vpop.permute.xlu0 %2208
      %2210 = vrot.lane.b32.xlu0 %v894, 20
      %v2211 = vpop.permute.xlu0 %2210
      %2212 = vrot.lane.b32.xlu0 %v895, 20
      %v2213 = vpop.permute.xlu0 %2212
      %2214 = vrot.lane.b32.xlu0 %v896, 20
      %v2215 = vpop.permute.xlu0 %2214
      %2216 = vrot.lane.b32.xlu0 %v897, 20
      %v2217 = vpop.permute.xlu0 %2216
      %2218 = vrot.lane.b32.xlu0 %v898, 20
      %v2219 = vpop.permute.xlu0 %2218
      %2220 = vrot.lane.b32.xlu0 %v899, 20
      %v2221 = vpop.permute.xlu0 %2220
      %2222 = vrot.lane.b32.xlu0 %v900, 20
      %v2223 = vpop.permute.xlu0 %2222
      %2224 = vrot.lane.b32.xlu0 %v901, 20
      %v2225 = vpop.permute.xlu0 %2224
      %2226 = vrot.lane.b32.xlu0 %v902, 20
      %v2227 = vpop.permute.xlu0 %2226
      %2228 = vrot.lane.b32.xlu0 %v903, 20
      %v2229 = vpop.permute.xlu0 %2228
      %2230 = vrot.lane.b32.xlu0 %v904, 20
      %v2231 = vpop.permute.xlu0 %2230
      %2232 = vrot.lane.b32.xlu0 %v905, 20
      %v2233 = vpop.permute.xlu0 %2232
      %2234 = vrot.lane.b32.xlu0 %v906, 20
      %v2235 = vpop.permute.xlu0 %2234
      %2236 = vrot.lane.b32.xlu0 %v907, 20
      %v2237 = vpop.permute.xlu0 %2236
      %2238 = vrot.lane.b32.xlu0 %v908, 20
      %v2239 = vpop.permute.xlu0 %2238
      %2240 = vrot.lane.b32.xlu0 %v909, 20
      %v2241 = vpop.permute.xlu0 %2240
      %2242 = vrot.lane.b32.xlu0 %v910, 20
      %v2243 = vpop.permute.xlu0 %2242
      %2244 = vrot.lane.b32.xlu0 %v911, 20
      %v2245 = vpop.permute.xlu0 %2244
      %2246 = vrot.lane.b32.xlu0 %v912, 20
      %v2247 = vpop.permute.xlu0 %2246
      %2248 = vrot.lane.b32.xlu0 %v913, 20
      %v2249 = vpop.permute.xlu0 %2248
      %2250 = vrot.lane.b32.xlu0 %v914, 20
      %v2251 = vpop.permute.xlu0 %2250
      %2252 = vrot.lane.b32.xlu0 %v915, 20
      %v2253 = vpop.permute.xlu0 %2252
      %2254 = vrot.lane.b32.xlu0 %v916, 20
      %v2255 = vpop.permute.xlu0 %2254
      %2256 = vrot.lane.b32.xlu0 %v917, 20
      %v2257 = vpop.permute.xlu0 %2256
      %2258 = vrot.lane.b32.xlu0 %v918, 20
      %v2259 = vpop.permute.xlu0 %2258
      %2260 = vrot.lane.b32.xlu0 %v919, 20
      %v2261 = vpop.permute.xlu0 %2260
      %2262 = vrot.lane.b32.xlu0 %v920, 20
      %v2263 = vpop.permute.xlu0 %2262
      %2264 = vrot.lane.b32.xlu0 %v921, 20
      %v2265 = vpop.permute.xlu0 %2264
      %2266 = vrot.lane.b32.xlu0 %v922, 20
      %v2267 = vpop.permute.xlu0 %2266
      %2268 = vrot.lane.b32.xlu0 %v923, 20
      %v2269 = vpop.permute.xlu0 %2268
      %2270 = vrot.lane.b32.xlu0 %v924, 20
      %v2271 = vpop.permute.xlu0 %2270
      %2272 = vrot.lane.b32.xlu0 %v925, 20
      %v2273 = vpop.permute.xlu0 %2272
      %2274 = vrot.lane.b32.xlu0 %v926, 20
      %v2275 = vpop.permute.xlu0 %2274
      %2276 = vrot.lane.b32.xlu0 %v927, 20
      %v2277 = vpop.permute.xlu0 %2276
      %2278 = vrot.lane.b32.xlu0 %v928, 20
      %v2279 = vpop.permute.xlu0 %2278
      %2280 = vrot.lane.b32.xlu0 %v929, 20
      %v2281 = vpop.permute.xlu0 %2280
      %2282 = vrot.lane.b32.xlu0 %v930, 20
      %v2283 = vpop.permute.xlu0 %2282
      %2284 = vrot.lane.b32.xlu0 %v931, 20
      %v2285 = vpop.permute.xlu0 %2284
      %2286 = vrot.lane.b32.xlu0 %v932, 20
      %v2287 = vpop.permute.xlu0 %2286
      %2288 = vrot.lane.b32.xlu0 %v933, 20
      %v2289 = vpop.permute.xlu0 %2288
      %2290 = vrot.lane.b32.xlu0 %v934, 20
      %v2291 = vpop.permute.xlu0 %2290
      %2292 = vrot.lane.b32.xlu0 %v935, 20
      %v2293 = vpop.permute.xlu0 %2292
      %2294 = vrot.lane.b32.xlu0 %v936, 20
      %v2295 = vpop.permute.xlu0 %2294
      %2296 = vrot.lane.b32.xlu0 %v937, 20
      %v2297 = vpop.permute.xlu0 %2296
      %2298 = vrot.lane.b32.xlu0 %v938, 20
      %v2299 = vpop.permute.xlu0 %2298
      %2300 = vrot.lane.b32.xlu0 %v939, 20
      %v2301 = vpop.permute.xlu0 %2300
      %2302 = vrot.lane.b32.xlu0 %v940, 20
      %v2303 = vpop.permute.xlu0 %2302
      %2304 = vrot.lane.b32.xlu0 %v941, 20
      %v2305 = vpop.permute.xlu0 %2304
      %2306 = vrot.lane.b32.xlu0 %v942, 20
      %v2307 = vpop.permute.xlu0 %2306
      %2308 = vrot.lane.b32.xlu0 %v943, 20
      %v2309 = vpop.permute.xlu0 %2308
      %2310 = vrot.lane.b32.xlu0 %v944, 20
      %v2311 = vpop.permute.xlu0 %2310
      %2312 = vrot.lane.b32.xlu0 %v945, 20
      %v2313 = vpop.permute.xlu0 %2312
      %2314 = vrot.lane.b32.xlu0 %v946, 20
      %v2315 = vpop.permute.xlu0 %2314
      %vm2388 = vcmask 195746
      %2389 = vst.msk [vmem:[#allocation2 - $0x2] sm:$0xfc] %vm2388, %v2173
      %vm2390 = vcmask 195744
      %2391 = vst.msk [vmem:[#allocation2 + $0x6] sm:$0xff] %vm2390, %v2175
      %2392 = vst.msk [vmem:[#allocation2 + $0xe] sm:$0xff] %vm2390, %v2177
      %vm2393 = vcmask 189600
      %2394 = vst.msk [vmem:[#allocation2 + $0x16] sm:$0x3] %vm2393, %v2179
      %2395 = vst.msk [vmem:[#allocation2 + $0x16] sm:$0xfc] %vm2388, %v2181
      %2396 = vst.msk [vmem:[#allocation2 + $0x1e] sm:$0xff] %vm2390, %v2183
      %2397 = vst.msk [vmem:[#allocation2 + $0x26] sm:$0xff] %vm2390, %v2185
      %2398 = vst.msk [vmem:[#allocation2 + $0x2e] sm:$0x3] %vm2393, %v2187
      %2399 = vst.msk [vmem:[#allocation2 + $0x2e] sm:$0xfc] %vm2388, %v2189
      %2400 = vst.msk [vmem:[#allocation2 + $0x36] sm:$0xff] %vm2390, %v2191
      %2401 = vst.msk [vmem:[#allocation2 + $0x3e] sm:$0xff] %vm2390, %v2193
      %2402 = vst.msk [vmem:[#allocation2 + $0x46] sm:$0x3] %vm2393, %v2195
      %2403 = vst.msk [vmem:[#allocation2 + $0x46] sm:$0xfc] %vm2388, %v2197
      %2404 = vst.msk [vmem:[#allocation2 + $0x4e] sm:$0xff] %vm2390, %v2199
      %2405 = vst.msk [vmem:[#allocation2 + $0x56] sm:$0xff] %vm2390, %v2201
      %2406 = vst.msk [vmem:[#allocation2 + $0x5e] sm:$0x3] %vm2393, %v2203
      %2407 = vst.msk [vmem:[#allocation2 + $0x5e] sm:$0xfc] %vm2388, %v2205
      %2408 = vst.msk [vmem:[#allocation2 + $0x66] sm:$0xff] %vm2390, %v2207
      %2409 = vst.msk [vmem:[#allocation2 + $0x6e] sm:$0xff] %vm2390, %v2209
      %2410 = vst.msk [vmem:[#allocation2 + $0x76] sm:$0x3] %vm2393, %v2211
      %2411 = vst.msk [vmem:[#allocation2 + $0x76] sm:$0xfc] %vm2388, %v2213
      %2412 = vst.msk [vmem:[#allocation2 + $0x7e] sm:$0xff] %vm2390, %v2215
      %2413 = vst.msk [vmem:[#allocation2 + $0x86] sm:$0xff] %vm2390, %v2217
      %2414 = vst.msk [vmem:[#allocation2 + $0x8e] sm:$0x3] %vm2393, %v2219
      %2415 = vst.msk [vmem:[#allocation2 + $0x8e] sm:$0xfc] %vm2388, %v2221
      %2416 = vst.msk [vmem:[#allocation2 + $0x96] sm:$0xff] %vm2390, %v2223
      %2417 = vst.msk [vmem:[#allocation2 + $0x9e] sm:$0xff] %vm2390, %v2225
      %2418 = vst.msk [vmem:[#allocation2 + $0xa6] sm:$0x3] %vm2393, %v2227
      %2419 = vst.msk [vmem:[#allocation2 + $0xa6] sm:$0xfc] %vm2388, %v2229
      %2420 = vst.msk [vmem:[#allocation2 + $0xae] sm:$0xff] %vm2390, %v2231
      %2421 = vst.msk [vmem:[#allocation2 + $0xb6] sm:$0xff] %vm2390, %v2233
      %2422 = vst.msk [vmem:[#allocation2 + $0xbe] sm:$0x3] %vm2393, %v2235
      %2423 = vst.msk [vmem:[#allocation2 + $0xbe] sm:$0xfc] %vm2388, %v2237
      %2424 = vst.msk [vmem:[#allocation2 + $0xc6] sm:$0xff] %vm2390, %v2239
      %2425 = vst.msk [vmem:[#allocation2 + $0xce] sm:$0xff] %vm2390, %v2241
      %2426 = vst.msk [vmem:[#allocation2 + $0xd6] sm:$0x3] %vm2393, %v2243
      %2427 = vst.msk [vmem:[#allocation2 + $0xd6] sm:$0xfc] %vm2388, %v2245
      %2428 = vst.msk [vmem:[#allocation2 + $0xde] sm:$0xff] %vm2390, %v2247
      %2429 = vst.msk [vmem:[#allocation2 + $0xe6] sm:$0xff] %vm2390, %v2249
      %2430 = vst.msk [vmem:[#allocation2 + $0xee] sm:$0x3] %vm2393, %v2251
      %2431 = vst.msk [vmem:[#allocation2 + $0xee] sm:$0xfc] %vm2388, %v2253
      %2432 = vst.msk [vmem:[#allocation2 + $0xf6] sm:$0xff] %vm2390, %v2255
      %2433 = vst.msk [vmem:[#allocation2 + $0xfe] sm:$0xff] %vm2390, %v2257
      %2434 = vst.msk [vmem:[#allocation2 + $0x106] sm:$0x3] %vm2393, %v2259
      %2435 = vst.msk [vmem:[#allocation2 + $0x106] sm:$0xfc] %vm2388, %v2261
      %2436 = vst.msk [vmem:[#allocation2 + $0x10e] sm:$0xff] %vm2390, %v2263
      %2437 = vst.msk [vmem:[#allocation2 + $0x116] sm:$0xff] %vm2390, %v2265
      %2438 = vst.msk [vmem:[#allocation2 + $0x11e] sm:$0x3] %vm2393, %v2267
      %2439 = vst.msk [vmem:[#allocation2 + $0x11e] sm:$0xfc] %vm2388, %v2269
      %2440 = vst.msk [vmem:[#allocation2 + $0x126] sm:$0xff] %vm2390, %v2271
      %2441 = vst.msk [vmem:[#allocation2 + $0x12e] sm:$0xff] %vm2390, %v2273
      %2442 = vst.msk [vmem:[#allocation2 + $0x136] sm:$0x3] %vm2393, %v2275
      %2443 = vst.msk [vmem:[#allocation2 + $0x136] sm:$0xfc] %vm2388, %v2277
      %2444 = vst.msk [vmem:[#allocation2 + $0x13e] sm:$0xff] %vm2390, %v2279
      %2445 = vst.msk [vmem:[#allocation2 + $0x146] sm:$0xff] %vm2390, %v2281
      %2446 = vst.msk [vmem:[#allocation2 + $0x14e] sm:$0x3] %vm2393, %v2283
      %2447 = vst.msk [vmem:[#allocation2 + $0x14e] sm:$0xfc] %vm2388, %v2285
      %2448 = vst.msk [vmem:[#allocation2 + $0x156] sm:$0xff] %vm2390, %v2287
      %2449 = vst.msk [vmem:[#allocation2 + $0x15e] sm:$0xff] %vm2390, %v2289
      %2450 = vst.msk [vmem:[#allocation2 + $0x166] sm:$0x3] %vm2393, %v2291
      %2451 = vst.msk [vmem:[#allocation2 + $0x166] sm:$0xfc] %vm2388, %v2293
      %2452 = vst.msk [vmem:[#allocation2 + $0x16e] sm:$0xff] %vm2390, %v2295
      %2453 = vst.msk [vmem:[#allocation2 + $0x176] sm:$0xff] %vm2390, %v2297
      %2454 = vst.msk [vmem:[#allocation2 + $0x17e] sm:$0x3] %vm2393, %v2299
      %2455 = vst.msk [vmem:[#allocation2 + $0x17e] sm:$0xfc] %vm2388, %v2301
      %2456 = vst.msk [vmem:[#allocation2 + $0x186] sm:$0xff] %vm2390, %v2303
      %2457 = vst.msk [vmem:[#allocation2 + $0x18e] sm:$0xff] %vm2390, %v2305
      %2458 = vst.msk [vmem:[#allocation2 + $0x196] sm:$0x3] %vm2393, %v2307
      %2459 = vst.msk [vmem:[#allocation2 + $0x196] sm:$0xfc] %vm2388, %v2309
      %2460 = vst.msk [vmem:[#allocation2 + $0x19e] sm:$0xff] %vm2390, %v2311
      %2461 = vst.msk [vmem:[#allocation2 + $0x1a6] sm:$0xff] %vm2390, %v2313
      %2462 = vst.msk [vmem:[#allocation2 + $0x1ae] sm:$0x3] %vm2393, %v2315
      %2466 = vrot.lane.b32.xlu0 %v879, 24
      %v2467 = vpop.permute.xlu0 %2466
      %2468 = vrot.lane.b32.xlu0 %v880, 24
      %v2469 = vpop.permute.xlu0 %2468
      %2470 = vrot.lane.b32.xlu0 %v881, 24
      %v2471 = vpop.permute.xlu0 %2470
      %2472 = vrot.lane.b32.xlu0 %v883, 24
      %v2473 = vpop.permute.xlu0 %2472
      %2474 = vrot.lane.b32.xlu0 %v884, 24
      %v2475 = vpop.permute.xlu0 %2474
      %2476 = vrot.lane.b32.xlu0 %v885, 24
      %v2477 = vpop.permute.xlu0 %2476
      %2478 = vrot.lane.b32.xlu0 %v887, 24
      %v2479 = vpop.permute.xlu0 %2478
      %2480 = vrot.lane.b32.xlu0 %v888, 24
      %v2481 = vpop.permute.xlu0 %2480
      %2482 = vrot.lane.b32.xlu0 %v889, 24
      %v2483 = vpop.permute.xlu0 %2482
      %2484 = vrot.lane.b32.xlu0 %v891, 24
      %v2485 = vpop.permute.xlu0 %2484
      %2486 = vrot.lane.b32.xlu0 %v892, 24
      %v2487 = vpop.permute.xlu0 %2486
      %2488 = vrot.lane.b32.xlu0 %v893, 24
      %v2489 = vpop.permute.xlu0 %2488
      %2490 = vrot.lane.b32.xlu0 %v895, 24
      %v2491 = vpop.permute.xlu0 %2490
      %2492 = vrot.lane.b32.xlu0 %v896, 24
      %v2493 = vpop.permute.xlu0 %2492
      %2494 = vrot.lane.b32.xlu0 %v897, 24
      %v2495 = vpop.permute.xlu0 %2494
      %2496 = vrot.lane.b32.xlu0 %v899, 24
      %v2497 = vpop.permute.xlu0 %2496
      %2498 = vrot.lane.b32.xlu0 %v900, 24
      %v2499 = vpop.permute.xlu0 %2498
      %2500 = vrot.lane.b32.xlu0 %v901, 24
      %v2501 = vpop.permute.xlu0 %2500
      %2502 = vrot.lane.b32.xlu0 %v903, 24
      %v2503 = vpop.permute.xlu0 %2502
      %2504 = vrot.lane.b32.xlu0 %v904, 24
      %v2505 = vpop.permute.xlu0 %2504
      %2506 = vrot.lane.b32.xlu0 %v905, 24
      %v2507 = vpop.permute.xlu0 %2506
      %2508 = vrot.lane.b32.xlu0 %v907, 24
      %v2509 = vpop.permute.xlu0 %2508
      %2510 = vrot.lane.b32.xlu0 %v908, 24
      %v2511 = vpop.permute.xlu0 %2510
      %2512 = vrot.lane.b32.xlu0 %v909, 24
      %v2513 = vpop.permute.xlu0 %2512
      %2514 = vrot.lane.b32.xlu0 %v911, 24
      %v2515 = vpop.permute.xlu0 %2514
      %2516 = vrot.lane.b32.xlu0 %v912, 24
      %v2517 = vpop.permute.xlu0 %2516
      %2518 = vrot.lane.b32.xlu0 %v913, 24
      %v2519 = vpop.permute.xlu0 %2518
      %2520 = vrot.lane.b32.xlu0 %v915, 24
      %v2521 = vpop.permute.xlu0 %2520
      %2522 = vrot.lane.b32.xlu0 %v916, 24
      %v2523 = vpop.permute.xlu0 %2522
      %2524 = vrot.lane.b32.xlu0 %v917, 24
      %v2525 = vpop.permute.xlu0 %2524
      %2526 = vrot.lane.b32.xlu0 %v919, 24
      %v2527 = vpop.permute.xlu0 %2526
      %2528 = vrot.lane.b32.xlu0 %v920, 24
      %v2529 = vpop.permute.xlu0 %2528
      %2530 = vrot.lane.b32.xlu0 %v921, 24
      %v2531 = vpop.permute.xlu0 %2530
      %2532 = vrot.lane.b32.xlu0 %v923, 24
      %v2533 = vpop.permute.xlu0 %2532
      %2534 = vrot.lane.b32.xlu0 %v924, 24
      %v2535 = vpop.permute.xlu0 %2534
      %2536 = vrot.lane.b32.xlu0 %v925, 24
      %v2537 = vpop.permute.xlu0 %2536
      %2538 = vrot.lane.b32.xlu0 %v927, 24
      %v2539 = vpop.permute.xlu0 %2538
      %2540 = vrot.lane.b32.xlu0 %v928, 24
      %v2541 = vpop.permute.xlu0 %2540
      %2542 = vrot.lane.b32.xlu0 %v929, 24
      %v2543 = vpop.permute.xlu0 %2542
      %2544 = vrot.lane.b32.xlu0 %v931, 24
      %v2545 = vpop.permute.xlu0 %2544
      %2546 = vrot.lane.b32.xlu0 %v932, 24
      %v2547 = vpop.permute.xlu0 %2546
      %2548 = vrot.lane.b32.xlu0 %v933, 24
      %v2549 = vpop.permute.xlu0 %2548
      %2550 = vrot.lane.b32.xlu0 %v935, 24
      %v2551 = vpop.permute.xlu0 %2550
      %2552 = vrot.lane.b32.xlu0 %v936, 24
      %v2553 = vpop.permute.xlu0 %2552
      %2554 = vrot.lane.b32.xlu0 %v937, 24
      %v2555 = vpop.permute.xlu0 %2554
      %2556 = vrot.lane.b32.xlu0 %v939, 24
      %v2557 = vpop.permute.xlu0 %2556
      %2558 = vrot.lane.b32.xlu0 %v940, 24
      %v2559 = vpop.permute.xlu0 %2558
      %2560 = vrot.lane.b32.xlu0 %v941, 24
      %v2561 = vpop.permute.xlu0 %2560
      %2562 = vrot.lane.b32.xlu0 %v943, 24
      %v2563 = vpop.permute.xlu0 %2562
      %2564 = vrot.lane.b32.xlu0 %v944, 24
      %v2565 = vpop.permute.xlu0 %2564
      %2566 = vrot.lane.b32.xlu0 %v945, 24
      %v2567 = vpop.permute.xlu0 %2566
      %2568 = vrot.lane.b32.xlu0 %v947, 24
      %v2569 = vpop.permute.xlu0 %2568
      %2570 = vrot.lane.b32.xlu0 %v948, 24
      %v2571 = vpop.permute.xlu0 %2570
      %2572 = vrot.lane.b32.xlu0 %v949, 24
      %v2573 = vpop.permute.xlu0 %2572
      %vm2628 = vcmask 228544
      %2629 = vst.msk [vmem:[#allocation2] sm:$0xff] %vm2628, %v2467
      %2630 = vst.msk [vmem:[#allocation2 + $0x8] sm:$0xff] %vm2628, %v2469
      %2631 = vst.msk [vmem:[#allocation2 + $0x10] sm:$0xff] %vm2628, %v2471
      %2632 = vst.msk [vmem:[#allocation2 + $0x18] sm:$0xff] %vm2628, %v2473
      %2633 = vst.msk [vmem:[#allocation2 + $0x20] sm:$0xff] %vm2628, %v2475
      %2634 = vst.msk [vmem:[#allocation2 + $0x28] sm:$0xff] %vm2628, %v2477
      %2635 = vst.msk [vmem:[#allocation2 + $0x30] sm:$0xff] %vm2628, %v2479
      %2636 = vst.msk [vmem:[#allocation2 + $0x38] sm:$0xff] %vm2628, %v2481
      %2637 = vst.msk [vmem:[#allocation2 + $0x40] sm:$0xff] %vm2628, %v2483
      %2638 = vst.msk [vmem:[#allocation2 + $0x48] sm:$0xff] %vm2628, %v2485
      %2639 = vst.msk [vmem:[#allocation2 + $0x50] sm:$0xff] %vm2628, %v2487
      %2640 = vst.msk [vmem:[#allocation2 + $0x58] sm:$0xff] %vm2628, %v2489
      %2641 = vst.msk [vmem:[#allocation2 + $0x60] sm:$0xff] %vm2628, %v2491
      %2642 = vst.msk [vmem:[#allocation2 + $0x68] sm:$0xff] %vm2628, %v2493
      %2643 = vst.msk [vmem:[#allocation2 + $0x70] sm:$0xff] %vm2628, %v2495
      %2644 = vst.msk [vmem:[#allocation2 + $0x78] sm:$0xff] %vm2628, %v2497
      %2645 = vst.msk [vmem:[#allocation2 + $0x80] sm:$0xff] %vm2628, %v2499
      %2646 = vst.msk [vmem:[#allocation2 + $0x88] sm:$0xff] %vm2628, %v2501
      %2647 = vst.msk [vmem:[#allocation2 + $0x90] sm:$0xff] %vm2628, %v2503
      %2648 = vst.msk [vmem:[#allocation2 + $0x98] sm:$0xff] %vm2628, %v2505
      %2649 = vst.msk [vmem:[#allocation2 + $0xa0] sm:$0xff] %vm2628, %v2507
      %2650 = vst.msk [vmem:[#allocation2 + $0xa8] sm:$0xff] %vm2628, %v2509
      %2651 = vst.msk [vmem:[#allocation2 + $0xb0] sm:$0xff] %vm2628, %v2511
      %2652 = vst.msk [vmem:[#allocation2 + $0xb8] sm:$0xff] %vm2628, %v2513
      %2653 = vst.msk [vmem:[#allocation2 + $0xc0] sm:$0xff] %vm2628, %v2515
      %2654 = vst.msk [vmem:[#allocation2 + $0xc8] sm:$0xff] %vm2628, %v2517
      %2655 = vst.msk [vmem:[#allocation2 + $0xd0] sm:$0xff] %vm2628, %v2519
      %2656 = vst.msk [vmem:[#allocation2 + $0xd8] sm:$0xff] %vm2628, %v2521
      %2657 = vst.msk [vmem:[#allocation2 + $0xe0] sm:$0xff] %vm2628, %v2523
      %2658 = vst.msk [vmem:[#allocation2 + $0xe8] sm:$0xff] %vm2628, %v2525
      %2659 = vst.msk [vmem:[#allocation2 + $0xf0] sm:$0xff] %vm2628, %v2527
      %2660 = vst.msk [vmem:[#allocation2 + $0xf8] sm:$0xff] %vm2628, %v2529
      %2661 = vst.msk [vmem:[#allocation2 + $0x100] sm:$0xff] %vm2628, %v2531
      %2662 = vst.msk [vmem:[#allocation2 + $0x108] sm:$0xff] %vm2628, %v2533
      %2663 = vst.msk [vmem:[#allocation2 + $0x110] sm:$0xff] %vm2628, %v2535
      %2664 = vst.msk [vmem:[#allocation2 + $0x118] sm:$0xff] %vm2628, %v2537
      %2665 = vst.msk [vmem:[#allocation2 + $0x120] sm:$0xff] %vm2628, %v2539
      %2666 = vst.msk [vmem:[#allocation2 + $0x128] sm:$0xff] %vm2628, %v2541
      %2667 = vst.msk [vmem:[#allocation2 + $0x130] sm:$0xff] %vm2628, %v2543
      %2668 = vst.msk [vmem:[#allocation2 + $0x138] sm:$0xff] %vm2628, %v2545
      %2669 = vst.msk [vmem:[#allocation2 + $0x140] sm:$0xff] %vm2628, %v2547
      %2670 = vst.msk [vmem:[#allocation2 + $0x148] sm:$0xff] %vm2628, %v2549
      %2671 = vst.msk [vmem:[#allocation2 + $0x150] sm:$0xff] %vm2628, %v2551
      %2672 = vst.msk [vmem:[#allocation2 + $0x158] sm:$0xff] %vm2628, %v2553
      %2673 = vst.msk [vmem:[#allocation2 + $0x160] sm:$0xff] %vm2628, %v2555
      %2674 = vst.msk [vmem:[#allocation2 + $0x168] sm:$0xff] %vm2628, %v2557
      %2675 = vst.msk [vmem:[#allocation2 + $0x170] sm:$0xff] %vm2628, %v2559
      %2676 = vst.msk [vmem:[#allocation2 + $0x178] sm:$0xff] %vm2628, %v2561
      %2677 = vst.msk [vmem:[#allocation2 + $0x180] sm:$0xff] %vm2628, %v2563
      %2678 = vst.msk [vmem:[#allocation2 + $0x188] sm:$0xff] %vm2628, %v2565
      %2679 = vst.msk [vmem:[#allocation2 + $0x190] sm:$0xff] %vm2628, %v2567
      %2680 = vst.msk [vmem:[#allocation2 + $0x198] sm:$0xff] %vm2628, %v2569
      %2681 = vst.msk [vmem:[#allocation2 + $0x1a0] sm:$0xff] %vm2628, %v2571
      %2682 = vst.msk [vmem:[#allocation2 + $0x1a8] sm:$0xff] %vm2628, %v2573
      %2684 = vrot.lane.b32.xlu0 %v879, 28
      %v2685 = vpop.permute.xlu0 %2684
      %2686 = vrot.lane.b32.xlu0 %v880, 28
      %v2687 = vpop.permute.xlu0 %2686
      %2688 = vrot.lane.b32.xlu0 %v881, 28
      %v2689 = vpop.permute.xlu0 %2688
      %2690 = vrot.lane.b32.xlu0 %v882, 28
      %v2691 = vpop.permute.xlu0 %2690
      %2692 = vrot.lane.b32.xlu0 %v883, 28
      %v2693 = vpop.permute.xlu0 %2692
      %2694 = vrot.lane.b32.xlu0 %v884, 28
      %v2695 = vpop.permute.xlu0 %2694
      %2696 = vrot.lane.b32.xlu0 %v885, 28
      %v2697 = vpop.permute.xlu0 %2696
      %2698 = vrot.lane.b32.xlu0 %v886, 28
      %v2699 = vpop.permute.xlu0 %2698
      %2700 = vrot.lane.b32.xlu0 %v887, 28
      %v2701 = vpop.permute.xlu0 %2700
      %2702 = vrot.lane.b32.xlu0 %v888, 28
      %v2703 = vpop.permute.xlu0 %2702
      %2704 = vrot.lane.b32.xlu0 %v889, 28
      %v2705 = vpop.permute.xlu0 %2704
      %2706 = vrot.lane.b32.xlu0 %v890, 28
      %v2707 = vpop.permute.xlu0 %2706
      %2708 = vrot.lane.b32.xlu0 %v891, 28
      %v2709 = vpop.permute.xlu0 %2708
      %2710 = vrot.lane.b32.xlu0 %v892, 28
      %v2711 = vpop.permute.xlu0 %2710
      %2712 = vrot.lane.b32.xlu0 %v893, 28
      %v2713 = vpop.permute.xlu0 %2712
      %2714 = vrot.lane.b32.xlu0 %v894, 28
      %v2715 = vpop.permute.xlu0 %2714
      %2716 = vrot.lane.b32.xlu0 %v895, 28
      %v2717 = vpop.permute.xlu0 %2716
      %2718 = vrot.lane.b32.xlu0 %v896, 28
      %v2719 = vpop.permute.xlu0 %2718
      %2720 = vrot.lane.b32.xlu0 %v897, 28
      %v2721 = vpop.permute.xlu0 %2720
      %2722 = vrot.lane.b32.xlu0 %v898, 28
      %v2723 = vpop.permute.xlu0 %2722
      %2724 = vrot.lane.b32.xlu0 %v899, 28
      %v2725 = vpop.permute.xlu0 %2724
      %2726 = vrot.lane.b32.xlu0 %v900, 28
      %v2727 = vpop.permute.xlu0 %2726
      %2728 = vrot.lane.b32.xlu0 %v901, 28
      %v2729 = vpop.permute.xlu0 %2728
      %2730 = vrot.lane.b32.xlu0 %v902, 28
      %v2731 = vpop.permute.xlu0 %2730
      %2732 = vrot.lane.b32.xlu0 %v903, 28
      %v2733 = vpop.permute.xlu0 %2732
      %2734 = vrot.lane.b32.xlu0 %v904, 28
      %v2735 = vpop.permute.xlu0 %2734
      %2736 = vrot.lane.b32.xlu0 %v905, 28
      %v2737 = vpop.permute.xlu0 %2736
      %2738 = vrot.lane.b32.xlu0 %v906, 28
      %v2739 = vpop.permute.xlu0 %2738
      %2740 = vrot.lane.b32.xlu0 %v907, 28
      %v2741 = vpop.permute.xlu0 %2740
      %2742 = vrot.lane.b32.xlu0 %v908, 28
      %v2743 = vpop.permute.xlu0 %2742
      %2744 = vrot.lane.b32.xlu0 %v909, 28
      %v2745 = vpop.permute.xlu0 %2744
      %2746 = vrot.lane.b32.xlu0 %v910, 28
      %v2747 = vpop.permute.xlu0 %2746
      %2748 = vrot.lane.b32.xlu0 %v911, 28
      %v2749 = vpop.permute.xlu0 %2748
      %2750 = vrot.lane.b32.xlu0 %v912, 28
      %v2751 = vpop.permute.xlu0 %2750
      %2752 = vrot.lane.b32.xlu0 %v913, 28
      %v2753 = vpop.permute.xlu0 %2752
      %2754 = vrot.lane.b32.xlu0 %v914, 28
      %v2755 = vpop.permute.xlu0 %2754
      %2756 = vrot.lane.b32.xlu0 %v915, 28
      %v2757 = vpop.permute.xlu0 %2756
      %2758 = vrot.lane.b32.xlu0 %v916, 28
      %v2759 = vpop.permute.xlu0 %2758
      %2760 = vrot.lane.b32.xlu0 %v917, 28
      %v2761 = vpop.permute.xlu0 %2760
      %2762 = vrot.lane.b32.xlu0 %v918, 28
      %v2763 = vpop.permute.xlu0 %2762
      %2764 = vrot.lane.b32.xlu0 %v919, 28
      %v2765 = vpop.permute.xlu0 %2764
      %2766 = vrot.lane.b32.xlu0 %v920, 28
      %v2767 = vpop.permute.xlu0 %2766
      %2768 = vrot.lane.b32.xlu0 %v921, 28
      %v2769 = vpop.permute.xlu0 %2768
      %2770 = vrot.lane.b32.xlu0 %v922, 28
      %v2771 = vpop.permute.xlu0 %2770
      %2772 = vrot.lane.b32.xlu0 %v923, 28
      %v2773 = vpop.permute.xlu0 %2772
      %2774 = vrot.lane.b32.xlu0 %v924, 28
      %v2775 = vpop.permute.xlu0 %2774
      %2776 = vrot.lane.b32.xlu0 %v925, 28
      %v2777 = vpop.permute.xlu0 %2776
      %2778 = vrot.lane.b32.xlu0 %v926, 28
      %v2779 = vpop.permute.xlu0 %2778
      %2780 = vrot.lane.b32.xlu0 %v927, 28
      %v2781 = vpop.permute.xlu0 %2780
      %2782 = vrot.lane.b32.xlu0 %v928, 28
      %v2783 = vpop.permute.xlu0 %2782
      %2784 = vrot.lane.b32.xlu0 %v929, 28
      %v2785 = vpop.permute.xlu0 %2784
      %2786 = vrot.lane.b32.xlu0 %v930, 28
      %v2787 = vpop.permute.xlu0 %2786
      %2788 = vrot.lane.b32.xlu0 %v931, 28
      %v2789 = vpop.permute.xlu0 %2788
      %2790 = vrot.lane.b32.xlu0 %v932, 28
      %v2791 = vpop.permute.xlu0 %2790
      %2792 = vrot.lane.b32.xlu0 %v933, 28
      %v2793 = vpop.permute.xlu0 %2792
      %2794 = vrot.lane.b32.xlu0 %v934, 28
      %v2795 = vpop.permute.xlu0 %2794
      %2796 = vrot.lane.b32.xlu0 %v935, 28
      %v2797 = vpop.permute.xlu0 %2796
      %2798 = vrot.lane.b32.xlu0 %v936, 28
      %v2799 = vpop.permute.xlu0 %2798
      %2800 = vrot.lane.b32.xlu0 %v937, 28
      %v2801 = vpop.permute.xlu0 %2800
      %2802 = vrot.lane.b32.xlu0 %v938, 28
      %v2803 = vpop.permute.xlu0 %2802
      %2804 = vrot.lane.b32.xlu0 %v939, 28
      %v2805 = vpop.permute.xlu0 %2804
      %2806 = vrot.lane.b32.xlu0 %v940, 28
      %v2807 = vpop.permute.xlu0 %2806
      %2808 = vrot.lane.b32.xlu0 %v941, 28
      %v2809 = vpop.permute.xlu0 %2808
      %2810 = vrot.lane.b32.xlu0 %v942, 28
      %v2811 = vpop.permute.xlu0 %2810
      %2812 = vrot.lane.b32.xlu0 %v943, 28
      %v2813 = vpop.permute.xlu0 %2812
      %2814 = vrot.lane.b32.xlu0 %v944, 28
      %v2815 = vpop.permute.xlu0 %2814
      %2816 = vrot.lane.b32.xlu0 %v945, 28
      %v2817 = vpop.permute.xlu0 %2816
      %2818 = vrot.lane.b32.xlu0 %v946, 28
      %v2819 = vpop.permute.xlu0 %2818
      %2820 = vrot.lane.b32.xlu0 %v947, 28
      %v2821 = vpop.permute.xlu0 %2820
      %2822 = vrot.lane.b32.xlu0 %v948, 28
      %v2823 = vpop.permute.xlu0 %2822
      %2824 = vrot.lane.b32.xlu0 %v949, 28
      %v2825 = vpop.permute.xlu0 %2824
      %2826 = vrot.lane.b32.xlu0 %v950, 28
      %v2827 = vpop.permute.xlu0 %2826
      %vm2900 = vcmask 261345
      %2901 = vst.msk [vmem:[#allocation2 - $0x1] sm:$0xfe] %vm2900, %v2685
      %vm2902 = vcmask 261344
      %2903 = vst.msk [vmem:[#allocation2 + $0x7] sm:$0xff] %vm2902, %v2687
      %2904 = vst.msk [vmem:[#allocation2 + $0xf] sm:$0xff] %vm2902, %v2689
      %vm2905 = vcmask 254176
      %2906 = vst.msk [vmem:[#allocation2 + $0x17] sm:$0x1] %vm2905, %v2691
      %2907 = vst.msk [vmem:[#allocation2 + $0x17] sm:$0xfe] %vm2900, %v2693
      %2908 = vst.msk [vmem:[#allocation2 + $0x1f] sm:$0xff] %vm2902, %v2695
      %2909 = vst.msk [vmem:[#allocation2 + $0x27] sm:$0xff] %vm2902, %v2697
      %2910 = vst.msk [vmem:[#allocation2 + $0x2f] sm:$0x1] %vm2905, %v2699
      %2911 = vst.msk [vmem:[#allocation2 + $0x2f] sm:$0xfe] %vm2900, %v2701
      %2912 = vst.msk [vmem:[#allocation2 + $0x37] sm:$0xff] %vm2902, %v2703
      %2913 = vst.msk [vmem:[#allocation2 + $0x3f] sm:$0xff] %vm2902, %v2705
      %2914 = vst.msk [vmem:[#allocation2 + $0x47] sm:$0x1] %vm2905, %v2707
      %2915 = vst.msk [vmem:[#allocation2 + $0x47] sm:$0xfe] %vm2900, %v2709
      %2916 = vst.msk [vmem:[#allocation2 + $0x4f] sm:$0xff] %vm2902, %v2711
      %2917 = vst.msk [vmem:[#allocation2 + $0x57] sm:$0xff] %vm2902, %v2713
      %2918 = vst.msk [vmem:[#allocation2 + $0x5f] sm:$0x1] %vm2905, %v2715
      %2919 = vst.msk [vmem:[#allocation2 + $0x5f] sm:$0xfe] %vm2900, %v2717
      %2920 = vst.msk [vmem:[#allocation2 + $0x67] sm:$0xff] %vm2902, %v2719
      %2921 = vst.msk [vmem:[#allocation2 + $0x6f] sm:$0xff] %vm2902, %v2721
      %2922 = vst.msk [vmem:[#allocation2 + $0x77] sm:$0x1] %vm2905, %v2723
      %2923 = vst.msk [vmem:[#allocation2 + $0x77] sm:$0xfe] %vm2900, %v2725
      %2924 = vst.msk [vmem:[#allocation2 + $0x7f] sm:$0xff] %vm2902, %v2727
      %2925 = vst.msk [vmem:[#allocation2 + $0x87] sm:$0xff] %vm2902, %v2729
      %2926 = vst.msk [vmem:[#allocation2 + $0x8f] sm:$0x1] %vm2905, %v2731
      %2927 = vst.msk [vmem:[#allocation2 + $0x8f] sm:$0xfe] %vm2900, %v2733
      %2928 = vst.msk [vmem:[#allocation2 + $0x97] sm:$0xff] %vm2902, %v2735
      %2929 = vst.msk [vmem:[#allocation2 + $0x9f] sm:$0xff] %vm2902, %v2737
      %2930 = vst.msk [vmem:[#allocation2 + $0xa7] sm:$0x1] %vm2905, %v2739
      %2931 = vst.msk [vmem:[#allocation2 + $0xa7] sm:$0xfe] %vm2900, %v2741
      %2932 = vst.msk [vmem:[#allocation2 + $0xaf] sm:$0xff] %vm2902, %v2743
      %2933 = vst.msk [vmem:[#allocation2 + $0xb7] sm:$0xff] %vm2902, %v2745
      %2934 = vst.msk [vmem:[#allocation2 + $0xbf] sm:$0x1] %vm2905, %v2747
      %2935 = vst.msk [vmem:[#allocation2 + $0xbf] sm:$0xfe] %vm2900, %v2749
      %2936 = vst.msk [vmem:[#allocation2 + $0xc7] sm:$0xff] %vm2902, %v2751
      %2937 = vst.msk [vmem:[#allocation2 + $0xcf] sm:$0xff] %vm2902, %v2753
      %2938 = vst.msk [vmem:[#allocation2 + $0xd7] sm:$0x1] %vm2905, %v2755
      %2939 = vst.msk [vmem:[#allocation2 + $0xd7] sm:$0xfe] %vm2900, %v2757
      %2940 = vst.msk [vmem:[#allocation2 + $0xdf] sm:$0xff] %vm2902, %v2759
      %2941 = vst.msk [vmem:[#allocation2 + $0xe7] sm:$0xff] %vm2902, %v2761
      %2942 = vst.msk [vmem:[#allocation2 + $0xef] sm:$0x1] %vm2905, %v2763
      %2943 = vst.msk [vmem:[#allocation2 + $0xef] sm:$0xfe] %vm2900, %v2765
      %2944 = vst.msk [vmem:[#allocation2 + $0xf7] sm:$0xff] %vm2902, %v2767
      %2945 = vst.msk [vmem:[#allocation2 + $0xff] sm:$0xff] %vm2902, %v2769
      %2946 = vst.msk [vmem:[#allocation2 + $0x107] sm:$0x1] %vm2905, %v2771
      %2947 = vst.msk [vmem:[#allocation2 + $0x107] sm:$0xfe] %vm2900, %v2773
      %2948 = vst.msk [vmem:[#allocation2 + $0x10f] sm:$0xff] %vm2902, %v2775
      %2949 = vst.msk [vmem:[#allocation2 + $0x117] sm:$0xff] %vm2902, %v2777
      %2950 = vst.msk [vmem:[#allocation2 + $0x11f] sm:$0x1] %vm2905, %v2779
      %2951 = vst.msk [vmem:[#allocation2 + $0x11f] sm:$0xfe] %vm2900, %v2781
      %2952 = vst.msk [vmem:[#allocation2 + $0x127] sm:$0xff] %vm2902, %v2783
      %2953 = vst.msk [vmem:[#allocation2 + $0x12f] sm:$0xff] %vm2902, %v2785
      %2954 = vst.msk [vmem:[#allocation2 + $0x137] sm:$0x1] %vm2905, %v2787
      %2955 = vst.msk [vmem:[#allocation2 + $0x137] sm:$0xfe] %vm2900, %v2789
      %2956 = vst.msk [vmem:[#allocation2 + $0x13f] sm:$0xff] %vm2902, %v2791
      %2957 = vst.msk [vmem:[#allocation2 + $0x147] sm:$0xff] %vm2902, %v2793
      %2958 = vst.msk [vmem:[#allocation2 + $0x14f] sm:$0x1] %vm2905, %v2795
      %2959 = vst.msk [vmem:[#allocation2 + $0x14f] sm:$0xfe] %vm2900, %v2797
      %2960 = vst.msk [vmem:[#allocation2 + $0x157] sm:$0xff] %vm2902, %v2799
      %2961 = vst.msk [vmem:[#allocation2 + $0x15f] sm:$0xff] %vm2902, %v2801
      %2962 = vst.msk [vmem:[#allocation2 + $0x167] sm:$0x1] %vm2905, %v2803
      %2963 = vst.msk [vmem:[#allocation2 + $0x167] sm:$0xfe] %vm2900, %v2805
      %2964 = vst.msk [vmem:[#allocation2 + $0x16f] sm:$0xff] %vm2902, %v2807
      %2965 = vst.msk [vmem:[#allocation2 + $0x177] sm:$0xff] %vm2902, %v2809
      %2966 = vst.msk [vmem:[#allocation2 + $0x17f] sm:$0x1] %vm2905, %v2811
      %2967 = vst.msk [vmem:[#allocation2 + $0x17f] sm:$0xfe] %vm2900, %v2813
      %2968 = vst.msk [vmem:[#allocation2 + $0x187] sm:$0xff] %vm2902, %v2815
      %2969 = vst.msk [vmem:[#allocation2 + $0x18f] sm:$0xff] %vm2902, %v2817
      %2970 = vst.msk [vmem:[#allocation2 + $0x197] sm:$0x1] %vm2905, %v2819
      %2971 = vst.msk [vmem:[#allocation2 + $0x197] sm:$0xfe] %vm2900, %v2821
      %2972 = vst.msk [vmem:[#allocation2 + $0x19f] sm:$0xff] %vm2902, %v2823
      %2973 = vst.msk [vmem:[#allocation2 + $0x1a7] sm:$0xff] %vm2902, %v2825
      %2974 = vst.msk [vmem:[#allocation2 + $0x1af] sm:$0x1] %vm2905, %v2827
      %2975 = vrot.lane.b32.xlu0 %v879, 32
      %v2976 = vpop.permute.xlu0 %2975
      %2977 = vrot.lane.b32.xlu0 %v880, 32
      %v2978 = vpop.permute.xlu0 %2977
      %2979 = vrot.lane.b32.xlu0 %v881, 32
      %v2980 = vpop.permute.xlu0 %2979
      %2981 = vrot.lane.b32.xlu0 %v882, 32
      %v2982 = vpop.permute.xlu0 %2981
      %2983 = vrot.lane.b32.xlu0 %v883, 32
      %v2984 = vpop.permute.xlu0 %2983
      %2985 = vrot.lane.b32.xlu0 %v884, 32
      %v2986 = vpop.permute.xlu0 %2985
      %2987 = vrot.lane.b32.xlu0 %v885, 32
      %v2988 = vpop.permute.xlu0 %2987
      %2989 = vrot.lane.b32.xlu0 %v886, 32
      %v2990 = vpop.permute.xlu0 %2989
      %2991 = vrot.lane.b32.xlu0 %v887, 32
      %v2992 = vpop.permute.xlu0 %2991
      %2993 = vrot.lane.b32.xlu0 %v888, 32
      %v2994 = vpop.permute.xlu0 %2993
      %2995 = vrot.lane.b32.xlu0 %v889, 32
      %v2996 = vpop.permute.xlu0 %2995
      %2997 = vrot.lane.b32.xlu0 %v890, 32
      %v2998 = vpop.permute.xlu0 %2997
      %2999 = vrot.lane.b32.xlu0 %v891, 32
      %v3000 = vpop.permute.xlu0 %2999
      %3001 = vrot.lane.b32.xlu0 %v892, 32
      %v3002 = vpop.permute.xlu0 %3001
      %3003 = vrot.lane.b32.xlu0 %v893, 32
      %v3004 = vpop.permute.xlu0 %3003
      %3005 = vrot.lane.b32.xlu0 %v894, 32
      %v3006 = vpop.permute.xlu0 %3005
      %3007 = vrot.lane.b32.xlu0 %v895, 32
      %v3008 = vpop.permute.xlu0 %3007
      %3009 = vrot.lane.b32.xlu0 %v896, 32
      %v3010 = vpop.permute.xlu0 %3009
      %3011 = vrot.lane.b32.xlu0 %v897, 32
      %v3012 = vpop.permute.xlu0 %3011
      %3013 = vrot.lane.b32.xlu0 %v898, 32
      %v3014 = vpop.permute.xlu0 %3013
      %3015 = vrot.lane.b32.xlu0 %v899, 32
      %v3016 = vpop.permute.xlu0 %3015
      %3017 = vrot.lane.b32.xlu0 %v900, 32
      %v3018 = vpop.permute.xlu0 %3017
      %3019 = vrot.lane.b32.xlu0 %v901, 32
      %v3020 = vpop.permute.xlu0 %3019
      %3021 = vrot.lane.b32.xlu0 %v902, 32
      %v3022 = vpop.permute.xlu0 %3021
      %3023 = vrot.lane.b32.xlu0 %v903, 32
      %v3024 = vpop.permute.xlu0 %3023
      %3025 = vrot.lane.b32.xlu0 %v904, 32
      %v3026 = vpop.permute.xlu0 %3025
      %3027 = vrot.lane.b32.xlu0 %v905, 32
      %v3028 = vpop.permute.xlu0 %3027
      %3029 = vrot.lane.b32.xlu0 %v906, 32
      %v3030 = vpop.permute.xlu0 %3029
      %3031 = vrot.lane.b32.xlu0 %v907, 32
      %v3032 = vpop.permute.xlu0 %3031
      %3033 = vrot.lane.b32.xlu0 %v908, 32
      %v3034 = vpop.permute.xlu0 %3033
      %3035 = vrot.lane.b32.xlu0 %v909, 32
      %v3036 = vpop.permute.xlu0 %3035
      %3037 = vrot.lane.b32.xlu0 %v910, 32
      %v3038 = vpop.permute.xlu0 %3037
      %3039 = vrot.lane.b32.xlu0 %v911, 32
      %v3040 = vpop.permute.xlu0 %3039
      %3041 = vrot.lane.b32.xlu0 %v912, 32
      %v3042 = vpop.permute.xlu0 %3041
      %3043 = vrot.lane.b32.xlu0 %v913, 32
      %v3044 = vpop.permute.xlu0 %3043
      %3045 = vrot.lane.b32.xlu0 %v914, 32
      %v3046 = vpop.permute.xlu0 %3045
      %3047 = vrot.lane.b32.xlu0 %v915, 32
      %v3048 = vpop.permute.xlu0 %3047
      %3049 = vrot.lane.b32.xlu0 %v916, 32
      %v3050 = vpop.permute.xlu0 %3049
      %3051 = vrot.lane.b32.xlu0 %v917, 32
      %v3052 = vpop.permute.xlu0 %3051
      %3053 = vrot.lane.b32.xlu0 %v918, 32
      %v3054 = vpop.permute.xlu0 %3053
      %3055 = vrot.lane.b32.xlu0 %v919, 32
      %v3056 = vpop.permute.xlu0 %3055
      %3057 = vrot.lane.b32.xlu0 %v920, 32
      %v3058 = vpop.permute.xlu0 %3057
      %3059 = vrot.lane.b32.xlu0 %v921, 32
      %v3060 = vpop.permute.xlu0 %3059
      %3061 = vrot.lane.b32.xlu0 %v922, 32
      %v3062 = vpop.permute.xlu0 %3061
      %3063 = vrot.lane.b32.xlu0 %v923, 32
      %v3064 = vpop.permute.xlu0 %3063
      %3065 = vrot.lane.b32.xlu0 %v924, 32
      %v3066 = vpop.permute.xlu0 %3065
      %3067 = vrot.lane.b32.xlu0 %v925, 32
      %v3068 = vpop.permute.xlu0 %3067
      %3069 = vrot.lane.b32.xlu0 %v926, 32
      %v3070 = vpop.permute.xlu0 %3069
      %3071 = vrot.lane.b32.xlu0 %v927, 32
      %v3072 = vpop.permute.xlu0 %3071
      %3073 = vrot.lane.b32.xlu0 %v928, 32
      %v3074 = vpop.permute.xlu0 %3073
      %3075 = vrot.lane.b32.xlu0 %v929, 32
      %v3076 = vpop.permute.xlu0 %3075
      %3077 = vrot.lane.b32.xlu0 %v930, 32
      %v3078 = vpop.permute.xlu0 %3077
      %3079 = vrot.lane.b32.xlu0 %v931, 32
      %v3080 = vpop.permute.xlu0 %3079
      %3081 = vrot.lane.b32.xlu0 %v932, 32
      %v3082 = vpop.permute.xlu0 %3081
      %3083 = vrot.lane.b32.xlu0 %v933, 32
      %v3084 = vpop.permute.xlu0 %3083
      %3085 = vrot.lane.b32.xlu0 %v934, 32
      %v3086 = vpop.permute.xlu0 %3085
      %3087 = vrot.lane.b32.xlu0 %v935, 32
      %v3088 = vpop.permute.xlu0 %3087
      %3089 = vrot.lane.b32.xlu0 %v936, 32
      %v3090 = vpop.permute.xlu0 %3089
      %3091 = vrot.lane.b32.xlu0 %v937, 32
      %v3092 = vpop.permute.xlu0 %3091
      %3093 = vrot.lane.b32.xlu0 %v938, 32
      %v3094 = vpop.permute.xlu0 %3093
      %3095 = vrot.lane.b32.xlu0 %v939, 32
      %v3096 = vpop.permute.xlu0 %3095
      %3097 = vrot.lane.b32.xlu0 %v940, 32
      %v3098 = vpop.permute.xlu0 %3097
      %3099 = vrot.lane.b32.xlu0 %v941, 32
      %v3100 = vpop.permute.xlu0 %3099
      %3101 = vrot.lane.b32.xlu0 %v942, 32
      %v3102 = vpop.permute.xlu0 %3101
      %3103 = vrot.lane.b32.xlu0 %v943, 32
      %v3104 = vpop.permute.xlu0 %3103
      %3105 = vrot.lane.b32.xlu0 %v944, 32
      %v3106 = vpop.permute.xlu0 %3105
      %3107 = vrot.lane.b32.xlu0 %v945, 32
      %v3108 = vpop.permute.xlu0 %3107
      %3109 = vrot.lane.b32.xlu0 %v946, 32
      %v3110 = vpop.permute.xlu0 %3109
      %3111 = vrot.lane.b32.xlu0 %v947, 32
      %v3112 = vpop.permute.xlu0 %3111
      %3113 = vrot.lane.b32.xlu0 %v948, 32
      %v3114 = vpop.permute.xlu0 %3113
      %3115 = vrot.lane.b32.xlu0 %v949, 32
      %v3116 = vpop.permute.xlu0 %3115
      %3117 = vrot.lane.b32.xlu0 %v950, 32
      %v3118 = vpop.permute.xlu0 %3117
      %vm3191 = vcmask 294146
      %3192 = vst.msk [vmem:[#allocation2 - $0x2] sm:$0xfc] %vm3191, %v2976
      %vm3193 = vcmask 294144
      %3194 = vst.msk [vmem:[#allocation2 + $0x6] sm:$0xff] %vm3193, %v2978
      %3195 = vst.msk [vmem:[#allocation2 + $0xe] sm:$0xff] %vm3193, %v2980
      %vm3196 = vcmask 288000
      %3197 = vst.msk [vmem:[#allocation2 + $0x16] sm:$0x3] %vm3196, %v2982
      %3198 = vst.msk [vmem:[#allocation2 + $0x16] sm:$0xfc] %vm3191, %v2984
      %3199 = vst.msk [vmem:[#allocation2 + $0x1e] sm:$0xff] %vm3193, %v2986
      %3200 = vst.msk [vmem:[#allocation2 + $0x26] sm:$0xff] %vm3193, %v2988
      %3201 = vst.msk [vmem:[#allocation2 + $0x2e] sm:$0x3] %vm3196, %v2990
      %3202 = vst.msk [vmem:[#allocation2 + $0x2e] sm:$0xfc] %vm3191, %v2992
      %3203 = vst.msk [vmem:[#allocation2 + $0x36] sm:$0xff] %vm3193, %v2994
      %3204 = vst.msk [vmem:[#allocation2 + $0x3e] sm:$0xff] %vm3193, %v2996
      %3205 = vst.msk [vmem:[#allocation2 + $0x46] sm:$0x3] %vm3196, %v2998
      %3206 = vst.msk [vmem:[#allocation2 + $0x46] sm:$0xfc] %vm3191, %v3000
      %3207 = vst.msk [vmem:[#allocation2 + $0x4e] sm:$0xff] %vm3193, %v3002
      %3208 = vst.msk [vmem:[#allocation2 + $0x56] sm:$0xff] %vm3193, %v3004
      %3209 = vst.msk [vmem:[#allocation2 + $0x5e] sm:$0x3] %vm3196, %v3006
      %3210 = vst.msk [vmem:[#allocation2 + $0x5e] sm:$0xfc] %vm3191, %v3008
      %3211 = vst.msk [vmem:[#allocation2 + $0x66] sm:$0xff] %vm3193, %v3010
      %3212 = vst.msk [vmem:[#allocation2 + $0x6e] sm:$0xff] %vm3193, %v3012
      %3213 = vst.msk [vmem:[#allocation2 + $0x76] sm:$0x3] %vm3196, %v3014
      %3214 = vst.msk [vmem:[#allocation2 + $0x76] sm:$0xfc] %vm3191, %v3016
      %3215 = vst.msk [vmem:[#allocation2 + $0x7e] sm:$0xff] %vm3193, %v3018
      %3216 = vst.msk [vmem:[#allocation2 + $0x86] sm:$0xff] %vm3193, %v3020
      %3217 = vst.msk [vmem:[#allocation2 + $0x8e] sm:$0x3] %vm3196, %v3022
      %3218 = vst.msk [vmem:[#allocation2 + $0x8e] sm:$0xfc] %vm3191, %v3024
      %3219 = vst.msk [vmem:[#allocation2 + $0x96] sm:$0xff] %vm3193, %v3026
      %3220 = vst.msk [vmem:[#allocation2 + $0x9e] sm:$0xff] %vm3193, %v3028
      %3221 = vst.msk [vmem:[#allocation2 + $0xa6] sm:$0x3] %vm3196, %v3030
      %3222 = vst.msk [vmem:[#allocation2 + $0xa6] sm:$0xfc] %vm3191, %v3032
      %3223 = vst.msk [vmem:[#allocation2 + $0xae] sm:$0xff] %vm3193, %v3034
      %3224 = vst.msk [vmem:[#allocation2 + $0xb6] sm:$0xff] %vm3193, %v3036
      %3225 = vst.msk [vmem:[#allocation2 + $0xbe] sm:$0x3] %vm3196, %v3038
      %3226 = vst.msk [vmem:[#allocation2 + $0xbe] sm:$0xfc] %vm3191, %v3040
      %3227 = vst.msk [vmem:[#allocation2 + $0xc6] sm:$0xff] %vm3193, %v3042
      %3228 = vst.msk [vmem:[#allocation2 + $0xce] sm:$0xff] %vm3193, %v3044
      %3229 = vst.msk [vmem:[#allocation2 + $0xd6] sm:$0x3] %vm3196, %v3046
      %3230 = vst.msk [vmem:[#allocation2 + $0xd6] sm:$0xfc] %vm3191, %v3048
      %3231 = vst.msk [vmem:[#allocation2 + $0xde] sm:$0xff] %vm3193, %v3050
      %3232 = vst.msk [vmem:[#allocation2 + $0xe6] sm:$0xff] %vm3193, %v3052
      %3233 = vst.msk [vmem:[#allocation2 + $0xee] sm:$0x3] %vm3196, %v3054
      %3234 = vst.msk [vmem:[#allocation2 + $0xee] sm:$0xfc] %vm3191, %v3056
      %3235 = vst.msk [vmem:[#allocation2 + $0xf6] sm:$0xff] %vm3193, %v3058
      %3236 = vst.msk [vmem:[#allocation2 + $0xfe] sm:$0xff] %vm3193, %v3060
      %3237 = vst.msk [vmem:[#allocation2 + $0x106] sm:$0x3] %vm3196, %v3062
      %3238 = vst.msk [vmem:[#allocation2 + $0x106] sm:$0xfc] %vm3191, %v3064
      %3239 = vst.msk [vmem:[#allocation2 + $0x10e] sm:$0xff] %vm3193, %v3066
      %3240 = vst.msk [vmem:[#allocation2 + $0x116] sm:$0xff] %vm3193, %v3068
      %3241 = vst.msk [vmem:[#allocation2 + $0x11e] sm:$0x3] %vm3196, %v3070
      %3242 = vst.msk [vmem:[#allocation2 + $0x11e] sm:$0xfc] %vm3191, %v3072
      %3243 = vst.msk [vmem:[#allocation2 + $0x126] sm:$0xff] %vm3193, %v3074
      %3244 = vst.msk [vmem:[#allocation2 + $0x12e] sm:$0xff] %vm3193, %v3076
      %3245 = vst.msk [vmem:[#allocation2 + $0x136] sm:$0x3] %vm3196, %v3078
      %3246 = vst.msk [vmem:[#allocation2 + $0x136] sm:$0xfc] %vm3191, %v3080
      %3247 = vst.msk [vmem:[#allocation2 + $0x13e] sm:$0xff] %vm3193, %v3082
      %3248 = vst.msk [vmem:[#allocation2 + $0x146] sm:$0xff] %vm3193, %v3084
      %3249 = vst.msk [vmem:[#allocation2 + $0x14e] sm:$0x3] %vm3196, %v3086
      %3250 = vst.msk [vmem:[#allocation2 + $0x14e] sm:$0xfc] %vm3191, %v3088
      %3251 = vst.msk [vmem:[#allocation2 + $0x156] sm:$0xff] %vm3193, %v3090
      %3252 = vst.msk [vmem:[#allocation2 + $0x15e] sm:$0xff] %vm3193, %v3092
      %3253 = vst.msk [vmem:[#allocation2 + $0x166] sm:$0x3] %vm3196, %v3094
      %3254 = vst.msk [vmem:[#allocation2 + $0x166] sm:$0xfc] %vm3191, %v3096
      %3255 = vst.msk [vmem:[#allocation2 + $0x16e] sm:$0xff] %vm3193, %v3098
      %3256 = vst.msk [vmem:[#allocation2 + $0x176] sm:$0xff] %vm3193, %v3100
      %3257 = vst.msk [vmem:[#allocation2 + $0x17e] sm:$0x3] %vm3196, %v3102
      %3258 = vst.msk [vmem:[#allocation2 + $0x17e] sm:$0xfc] %vm3191, %v3104
      %3259 = vst.msk [vmem:[#allocation2 + $0x186] sm:$0xff] %vm3193, %v3106
      %3260 = vst.msk [vmem:[#allocation2 + $0x18e] sm:$0xff] %vm3193, %v3108
      %3261 = vst.msk [vmem:[#allocation2 + $0x196] sm:$0x3] %vm3196, %v3110
      %3262 = vst.msk [vmem:[#allocation2 + $0x196] sm:$0xfc] %vm3191, %v3112
      %3263 = vst.msk [vmem:[#allocation2 + $0x19e] sm:$0xff] %vm3193, %v3114
      %3264 = vst.msk [vmem:[#allocation2 + $0x1a6] sm:$0xff] %vm3193, %v3116
      %3265 = vst.msk [vmem:[#allocation2 + $0x1ae] sm:$0x3] %vm3196, %v3118
      %v3266 = vld [vmem:[#allocation2] sm:$0xff]
      %v3267 = vld [vmem:[#allocation2 + $0x8] sm:$0xff]
      %v3268 = vld [vmem:[#allocation2 + $0x10] sm:$0xff]
      %v3269 = vld [vmem:[#allocation2 + $0x18] sm:$0xff]
      %v3270 = vld [vmem:[#allocation2 + $0x20] sm:$0xff]
      %v3271 = vld [vmem:[#allocation2 + $0x28] sm:$0xff]
      %v3272 = vld [vmem:[#allocation2 + $0x30] sm:$0xff]
      %v3273 = vld [vmem:[#allocation2 + $0x38] sm:$0xff]
      %v3274 = vld [vmem:[#allocation2 + $0x40] sm:$0xff]
      %v3275 = vld [vmem:[#allocation2 + $0x48] sm:$0xff]
      %v3276 = vld [vmem:[#allocation2 + $0x50] sm:$0xff]
      %v3277 = vld [vmem:[#allocation2 + $0x58] sm:$0xff]
      %v3278 = vld [vmem:[#allocation2 + $0x60] sm:$0xff]
      %v3279 = vld [vmem:[#allocation2 + $0x68] sm:$0xff]
      %v3280 = vld [vmem:[#allocation2 + $0x70] sm:$0xff]
      %v3281 = vld [vmem:[#allocation2 + $0x78] sm:$0xff]
      %v3282 = vld [vmem:[#allocation2 + $0x80] sm:$0xff]
      %v3283 = vld [vmem:[#allocation2 + $0x88] sm:$0xff]
      %v3284 = vld [vmem:[#allocation2 + $0x90] sm:$0xff]
      %v3285 = vld [vmem:[#allocation2 + $0x98] sm:$0xff]
      %v3286 = vld [vmem:[#allocation2 + $0xa0] sm:$0xff]
      %v3287 = vld [vmem:[#allocation2 + $0xa8] sm:$0xff]
      %v3288 = vld [vmem:[#allocation2 + $0xb0] sm:$0xff]
      %v3289 = vld [vmem:[#allocation2 + $0xb8] sm:$0xff]
      %v3290 = vld [vmem:[#allocation2 + $0xc0] sm:$0xff]
      %v3291 = vld [vmem:[#allocation2 + $0xc8] sm:$0xff]
      %v3292 = vld [vmem:[#allocation2 + $0xd0] sm:$0xff]
      %v3293 = vld [vmem:[#allocation2 + $0xd8] sm:$0xff]
      %v3294 = vld [vmem:[#allocation2 + $0xe0] sm:$0xff]
      %v3295 = vld [vmem:[#allocation2 + $0xe8] sm:$0xff]
      %v3296 = vld [vmem:[#allocation2 + $0xf0] sm:$0xff]
      %v3297 = vld [vmem:[#allocation2 + $0xf8] sm:$0xff]
      %v3298 = vld [vmem:[#allocation2 + $0x100] sm:$0xff]
      %v3299 = vld [vmem:[#allocation2 + $0x108] sm:$0xff]
      %v3300 = vld [vmem:[#allocation2 + $0x110] sm:$0xff]
      %v3301 = vld [vmem:[#allocation2 + $0x118] sm:$0xff]
      %v3302 = vld [vmem:[#allocation2 + $0x120] sm:$0xff]
      %v3303 = vld [vmem:[#allocation2 + $0x128] sm:$0xff]
      %v3304 = vld [vmem:[#allocation2 + $0x130] sm:$0xff]
      %v3305 = vld [vmem:[#allocation2 + $0x138] sm:$0xff]
      %v3306 = vld [vmem:[#allocation2 + $0x140] sm:$0xff]
      %v3307 = vld [vmem:[#allocation2 + $0x148] sm:$0xff]
      %v3308 = vld [vmem:[#allocation2 + $0x150] sm:$0xff]
      %v3309 = vld [vmem:[#allocation2 + $0x158] sm:$0xff]
      %v3310 = vld [vmem:[#allocation2 + $0x160] sm:$0xff]
      %v3311 = vld [vmem:[#allocation2 + $0x168] sm:$0xff]
      %v3312 = vld [vmem:[#allocation2 + $0x170] sm:$0xff]
      %v3313 = vld [vmem:[#allocation2 + $0x178] sm:$0xff]
      %v3314 = vld [vmem:[#allocation2 + $0x180] sm:$0xff]
      %v3315 = vld [vmem:[#allocation2 + $0x188] sm:$0xff]
      %v3316 = vld [vmem:[#allocation2 + $0x190] sm:$0xff]
      %v3317 = vld [vmem:[#allocation2 + $0x198] sm:$0xff]
      %v3318 = vld [vmem:[#allocation2 + $0x1a0] sm:$0xff]
      %v3319 = vld [vmem:[#allocation2 + $0x1a8] sm:$0xff]
      %v3320 = vpack.c.bf16 %v3267, %v3266
      %v3321 = vpack.c.bf16 %v3269, %v3268
      %v3322 = vpack.c.bf16 %v3271, %v3270
      %v3323 = vpack.c.bf16 %v3273, %v3272
      %v3324 = vpack.c.bf16 %v3275, %v3274
      %v3325 = vpack.c.bf16 %v3277, %v3276
      %v3326 = vpack.c.bf16 %v3279, %v3278
      %v3327 = vpack.c.bf16 %v3281, %v3280
      %v3328 = vpack.c.bf16 %v3283, %v3282
      %v3329 = vpack.c.bf16 %v3285, %v3284
      %v3330 = vpack.c.bf16 %v3287, %v3286
      %v3331 = vpack.c.bf16 %v3289, %v3288
      %v3332 = vpack.c.bf16 %v3291, %v3290
      %v3333 = vpack.c.bf16 %v3293, %v3292
      %v3334 = vpack.c.bf16 %v3295, %v3294
      %v3335 = vpack.c.bf16 %v3297, %v3296
      %v3336 = vpack.c.bf16 %v3299, %v3298
      %v3337 = vpack.c.bf16 %v3301, %v3300
      %v3338 = vpack.c.bf16 %v3303, %v3302
      %v3339 = vpack.c.bf16 %v3305, %v3304
      %v3340 = vpack.c.bf16 %v3307, %v3306
      %v3341 = vpack.c.bf16 %v3309, %v3308
      %v3342 = vpack.c.bf16 %v3311, %v3310
      %v3343 = vpack.c.bf16 %v3313, %v3312
      %v3344 = vpack.c.bf16 %v3315, %v3314
      %v3345 = vpack.c.bf16 %v3317, %v3316
      %v3346 = vpack.c.bf16 %v3319, %v3318
      %v3348 = vlaneseq
      %v3349 = vshrl.u32 %v3348, 7
      %v3350 = vsub.s32 0, %v3349
      %v3351 = vrot.slane %v343, %v3350
      %v3358 = vunpack.c.l.b16 %v338
      %v3359 = vunpack.c.l.b16 %v339
      %v3360 = vunpack.c.l.b16 %v340
      %v3361 = vunpack.c.l.b16 %v341
      %v3362 = vunpack.c.l.b16 %v342
      %v3363 = vpack.c.b16 %v3359, %v3358
      %v3364 = vpack.c.b16 %v3361, %v3360
      %v3365 = vpack.c.b16 %v3362, %v3362
      %vm3368 = vcmask 293888
      %v3370 = vsel %vm3368, %v3320, 0
      %v3373 = vsel %vm3368, %v3321, 0
      %v3376 = vsel %vm3368, %v3322, 0
      %v3379 = vsel %vm3368, %v3323, 0
      %v3382 = vsel %vm3368, %v3324, 0
      %v3385 = vsel %vm3368, %v3325, 0
      %v3388 = vsel %vm3368, %v3326, 0
      %v3391 = vsel %vm3368, %v3327, 0
      %v3394 = vsel %vm3368, %v3328, 0
      %v3397 = vsel %vm3368, %v3329, 0
      %v3400 = vsel %vm3368, %v3330, 0
      %v3403 = vsel %vm3368, %v3331, 0
      %v3406 = vsel %vm3368, %v3332, 0
      %v3409 = vsel %vm3368, %v3333, 0
      %v3412 = vsel %vm3368, %v3334, 0
      %v3415 = vsel %vm3368, %v3335, 0
      %v3418 = vsel %vm3368, %v3336, 0
      %v3421 = vsel %vm3368, %v3337, 0
      %v3424 = vsel %vm3368, %v3338, 0
      %v3427 = vsel %vm3368, %v3339, 0
      %v3430 = vsel %vm3368, %v3340, 0
      %v3433 = vsel %vm3368, %v3341, 0
      %v3436 = vsel %vm3368, %v3342, 0
      %v3439 = vsel %vm3368, %v3343, 0
      %v3442 = vsel %vm3368, %v3344, 0
      %v3445 = vsel %vm3368, %v3345, 0
      %v3448 = vsel %vm3368, %v3346, 0
      %vm3450 = vcmask 1041408
      %v3452 = vsel %vm3450, %v3365, 0
      %3454 = vmatprep.subr.bf16.mxu0 0
      %3455 = vmatpush1.bf16.msra.mxu0 0
      %3456 = vmatprep.subr.bf16.mxu0 0
      %3457 = vmatpush1.bf16.msra.mxu0 0
      %3458 = vmatprep.subr.bf16.mxu0 0
      %3459 = vmatpush1.bf16.msra.mxu0 0
      %3460 = vmatprep.subr.bf16.mxu0 0
      %3461 = vmatpush1.bf16.msra.mxu0 0
      %3462 = vmatprep.subr.bf16.mxu0 0
      %3463 = vmatpush1.bf16.msra.mxu0 0
      %3464 = vmatprep.subr.bf16.mxu0 0
      %3465 = vmatpush1.bf16.msra.mxu0 %v3452
      %3466 = vmatprep.subr.bf16.mxu0 0
      %3467 = vmatpush1.bf16.msra.mxu0 %v3364
      %3468 = vmatprep.subr.bf16.mxu0 0
      %3469 = vmatpush1.bf16.msra.mxu0 %v3363
      %3470 = vmatprep.subr.bf16.mxu0 0
      %3471 = vmatpush2.bf16.msra.mxu0 0
      %3472 = vmatprep.subr.bf16.mxu0 0
      %3473 = vmatpush2.bf16.msra.mxu0 0
      %3474 = vmatprep.subr.bf16.mxu0 0
      %3475 = vmatpush2.bf16.msra.mxu0 0
      %3476 = vmatprep.subr.bf16.mxu0 0
      %3477 = vmatpush2.bf16.msra.mxu0 0
      %3478 = vmatprep.subr.bf16.mxu0 0
      %3479 = vmatpush2.bf16.msra.mxu0 0
      %3480 = vmatprep.subr.bf16.mxu0 0
      %3481 = vmatpush2.bf16.msra.mxu0 0
      %3482 = vmatprep.subr.bf16.mxu0 0
      %3483 = vmatpush2.bf16.msra.mxu0 0
      %3484 = vmatprep.subr.bf16.mxu0 0
      %3485 = vmatpush2.bf16.msra.mxu0 0
      %3486 = vmatprep.mubr.bf16.mxu0 0
      %3487 = vmatmul.mubr.bf16.gmra.mxu0 %v3370
      %v3488 = vpop.f32.mrf.mxu0
      %v3489 = vadd.f32 %v3351, %v3488
      %v3490 = vpop.f32.mrf.mxu0
      %v3491 = vpop.f32.mrf.mxu0
      %v3492 = vadd.f32 %v3351, %v3491
      %v3493 = vpop.f32.mrf.mxu0
      %3494 = vmatprep.mubr.bf16.mxu0 0
      %3495 = vmatmul.mubr.bf16.gmra.mxu0 %v3373
      %v3496 = vpop.f32.mrf.mxu0
      %v3497 = vadd.f32 %v3351, %v3496
      %v3498 = vpop.f32.mrf.mxu0
      %v3499 = vpop.f32.mrf.mxu0
      %v3500 = vadd.f32 %v3351, %v3499
      %v3501 = vpop.f32.mrf.mxu0
      %3502 = vmatprep.mubr.bf16.mxu0 0
      %3503 = vmatmul.mubr.bf16.gmra.mxu0 %v3376
      %v3504 = vpop.f32.mrf.mxu0
      %v3505 = vadd.f32 %v3351, %v3504
      %v3506 = vpop.f32.mrf.mxu0
      %v3507 = vpop.f32.mrf.mxu0
      %v3508 = vadd.f32 %v3351, %v3507
      %v3509 = vpop.f32.mrf.mxu0
      %3510 = vmatprep.mubr.bf16.mxu0 0
      %3511 = vmatmul.mubr.bf16.gmra.mxu0 %v3379
      %v3512 = vpop.f32.mrf.mxu0
      %v3513 = vadd.f32 %v3351, %v3512
      %v3514 = vpop.f32.mrf.mxu0
      %v3515 = vpop.f32.mrf.mxu0
      %v3516 = vadd.f32 %v3351, %v3515
      %v3517 = vpop.f32.mrf.mxu0
      %3518 = vmatprep.mubr.bf16.mxu0 0
      %3519 = vmatmul.mubr.bf16.gmra.mxu0 %v3382
      %v3520 = vpop.f32.mrf.mxu0
      %v3521 = vadd.f32 %v3351, %v3520
      %v3522 = vpop.f32.mrf.mxu0
      %v3523 = vpop.f32.mrf.mxu0
      %v3524 = vadd.f32 %v3351, %v3523
      %v3525 = vpop.f32.mrf.mxu0
      %3526 = vmatprep.mubr.bf16.mxu0 0
      %3527 = vmatmul.mubr.bf16.gmra.mxu0 %v3385
      %v3528 = vpop.f32.mrf.mxu0
      %v3529 = vadd.f32 %v3351, %v3528
      %v3530 = vpop.f32.mrf.mxu0
      %v3531 = vpop.f32.mrf.mxu0
      %v3532 = vadd.f32 %v3351, %v3531
      %v3533 = vpop.f32.mrf.mxu0
      %3534 = vmatprep.mubr.bf16.mxu0 0
      %3535 = vmatmul.mubr.bf16.gmra.mxu0 %v3388
      %v3536 = vpop.f32.mrf.mxu0
      %v3537 = vadd.f32 %v3351, %v3536
      %v3538 = vpop.f32.mrf.mxu0
      %v3539 = vpop.f32.mrf.mxu0
      %v3540 = vadd.f32 %v3351, %v3539
      %v3541 = vpop.f32.mrf.mxu0
      %3542 = vmatprep.mubr.bf16.mxu0 0
      %3543 = vmatmul.mubr.bf16.gmra.mxu0 %v3391
      %v3544 = vpop.f32.mrf.mxu0
      %v3545 = vadd.f32 %v3351, %v3544
      %v3546 = vpop.f32.mrf.mxu0
      %v3547 = vpop.f32.mrf.mxu0
      %v3548 = vadd.f32 %v3351, %v3547
      %v3549 = vpop.f32.mrf.mxu0
      %3550 = vmatprep.mubr.bf16.mxu0 0
      %3551 = vmatmul.mubr.bf16.gmra.mxu0 %v3394
      %v3552 = vpop.f32.mrf.mxu0
      %v3553 = vadd.f32 %v3351, %v3552
      %v3554 = vpop.f32.mrf.mxu0
      %v3555 = vpop.f32.mrf.mxu0
      %v3556 = vadd.f32 %v3351, %v3555
      %v3557 = vpop.f32.mrf.mxu0
      %3558 = vmatprep.mubr.bf16.mxu0 0
      %3559 = vmatmul.mubr.bf16.gmra.mxu0 %v3397
      %v3560 = vpop.f32.mrf.mxu0
      %v3561 = vadd.f32 %v3351, %v3560
      %v3562 = vpop.f32.mrf.mxu0
      %v3563 = vpop.f32.mrf.mxu0
      %v3564 = vadd.f32 %v3351, %v3563
      %v3565 = vpop.f32.mrf.mxu0
      %3566 = vmatprep.mubr.bf16.mxu0 0
      %3567 = vmatmul.mubr.bf16.gmra.mxu0 %v3400
      %v3568 = vpop.f32.mrf.mxu0
      %v3569 = vadd.f32 %v3351, %v3568
      %v3570 = vpop.f32.mrf.mxu0
      %v3571 = vpop.f32.mrf.mxu0
      %v3572 = vadd.f32 %v3351, %v3571
      %v3573 = vpop.f32.mrf.mxu0
      %3574 = vmatprep.mubr.bf16.mxu0 0
      %3575 = vmatmul.mubr.bf16.gmra.mxu0 %v3403
      %v3576 = vpop.f32.mrf.mxu0
      %v3577 = vadd.f32 %v3351, %v3576
      %v3578 = vpop.f32.mrf.mxu0
      %v3579 = vpop.f32.mrf.mxu0
      %v3580 = vadd.f32 %v3351, %v3579
      %v3581 = vpop.f32.mrf.mxu0
      %3582 = vmatprep.mubr.bf16.mxu0 0
      %3583 = vmatmul.mubr.bf16.gmra.mxu0 %v3406
      %v3584 = vpop.f32.mrf.mxu0
      %v3585 = vadd.f32 %v3351, %v3584
      %v3586 = vpop.f32.mrf.mxu0
      %v3587 = vpop.f32.mrf.mxu0
      %v3588 = vadd.f32 %v3351, %v3587
      %v3589 = vpop.f32.mrf.mxu0
      %3590 = vmatprep.mubr.bf16.mxu0 0
      %3591 = vmatmul.mubr.bf16.gmra.mxu0 %v3409
      %v3592 = vpop.f32.mrf.mxu0
      %v3593 = vadd.f32 %v3351, %v3592
      %v3594 = vpop.f32.mrf.mxu0
      %v3595 = vpop.f32.mrf.mxu0
      %v3596 = vadd.f32 %v3351, %v3595
      %v3597 = vpop.f32.mrf.mxu0
      %3598 = vmatprep.mubr.bf16.mxu0 0
      %3599 = vmatmul.mubr.bf16.gmra.mxu0 %v3412
      %v3600 = vpop.f32.mrf.mxu0
      %v3601 = vadd.f32 %v3351, %v3600
      %v3602 = vpop.f32.mrf.mxu0
      %v3603 = vpop.f32.mrf.mxu0
      %v3604 = vadd.f32 %v3351, %v3603
      %v3605 = vpop.f32.mrf.mxu0
      %3606 = vmatprep.mubr.bf16.mxu0 0
      %3607 = vmatmul.mubr.bf16.gmra.mxu0 %v3415
      %v3608 = vpop.f32.mrf.mxu0
      %v3609 = vadd.f32 %v3351, %v3608
      %v3610 = vpop.f32.mrf.mxu0
      %v3611 = vpop.f32.mrf.mxu0
      %v3612 = vadd.f32 %v3351, %v3611
      %v3613 = vpop.f32.mrf.mxu0
      %3614 = vmatprep.mubr.bf16.mxu0 0
      %3615 = vmatmul.mubr.bf16.gmra.mxu0 %v3418
      %v3616 = vpop.f32.mrf.mxu0
      %v3617 = vadd.f32 %v3351, %v3616
      %v3618 = vpop.f32.mrf.mxu0
      %v3619 = vpop.f32.mrf.mxu0
      %v3620 = vadd.f32 %v3351, %v3619
      %v3621 = vpop.f32.mrf.mxu0
      %3622 = vmatprep.mubr.bf16.mxu0 0
      %3623 = vmatmul.mubr.bf16.gmra.mxu0 %v3421
      %v3624 = vpop.f32.mrf.mxu0
      %v3625 = vadd.f32 %v3351, %v3624
      %v3626 = vpop.f32.mrf.mxu0
      %v3627 = vpop.f32.mrf.mxu0
      %v3628 = vadd.f32 %v3351, %v3627
      %v3629 = vpop.f32.mrf.mxu0
      %3630 = vmatprep.mubr.bf16.mxu0 0
      %3631 = vmatmul.mubr.bf16.gmra.mxu0 %v3424
      %v3632 = vpop.f32.mrf.mxu0
      %v3633 = vadd.f32 %v3351, %v3632
      %v3634 = vpop.f32.mrf.mxu0
      %v3635 = vpop.f32.mrf.mxu0
      %v3636 = vadd.f32 %v3351, %v3635
      %v3637 = vpop.f32.mrf.mxu0
      %3638 = vmatprep.mubr.bf16.mxu0 0
      %3639 = vmatmul.mubr.bf16.gmra.mxu0 %v3427
      %v3640 = vpop.f32.mrf.mxu0
      %v3641 = vadd.f32 %v3351, %v3640
      %v3642 = vpop.f32.mrf.mxu0
      %v3643 = vpop.f32.mrf.mxu0
      %v3644 = vadd.f32 %v3351, %v3643
      %v3645 = vpop.f32.mrf.mxu0
      %3646 = vmatprep.mubr.bf16.mxu0 0
      %3647 = vmatmul.mubr.bf16.gmra.mxu0 %v3430
      %v3648 = vpop.f32.mrf.mxu0
      %v3649 = vadd.f32 %v3351, %v3648
      %v3650 = vpop.f32.mrf.mxu0
      %v3651 = vpop.f32.mrf.mxu0
      %v3652 = vadd.f32 %v3351, %v3651
      %v3653 = vpop.f32.mrf.mxu0
      %3654 = vmatprep.mubr.bf16.mxu0 0
      %3655 = vmatmul.mubr.bf16.gmra.mxu0 %v3433
      %v3656 = vpop.f32.mrf.mxu0
      %v3657 = vadd.f32 %v3351, %v3656
      %v3658 = vpop.f32.mrf.mxu0
      %v3659 = vpop.f32.mrf.mxu0
      %v3660 = vadd.f32 %v3351, %v3659
      %v3661 = vpop.f32.mrf.mxu0
      %3662 = vmatprep.mubr.bf16.mxu0 0
      %3663 = vmatmul.mubr.bf16.gmra.mxu0 %v3436
      %v3664 = vpop.f32.mrf.mxu0
      %v3665 = vadd.f32 %v3351, %v3664
      %v3666 = vpop.f32.mrf.mxu0
      %v3667 = vpop.f32.mrf.mxu0
      %v3668 = vadd.f32 %v3351, %v3667
      %v3669 = vpop.f32.mrf.mxu0
      %3670 = vmatprep.mubr.bf16.mxu0 0
      %3671 = vmatmul.mubr.bf16.gmra.mxu0 %v3439
      %v3672 = vpop.f32.mrf.mxu0
      %v3673 = vadd.f32 %v3351, %v3672
      %v3674 = vpop.f32.mrf.mxu0
      %v3675 = vpop.f32.mrf.mxu0
      %v3676 = vadd.f32 %v3351, %v3675
      %v3677 = vpop.f32.mrf.mxu0
      %3678 = vmatprep.mubr.bf16.mxu0 0
      %3679 = vmatmul.mubr.bf16.gmra.mxu0 %v3442
      %v3680 = vpop.f32.mrf.mxu0
      %v3681 = vadd.f32 %v3351, %v3680
      %v3682 = vpop.f32.mrf.mxu0
      %v3683 = vpop.f32.mrf.mxu0
      %v3684 = vadd.f32 %v3351, %v3683
      %v3685 = vpop.f32.mrf.mxu0
      %3686 = vmatprep.mubr.bf16.mxu0 0
      %3687 = vmatmul.mubr.bf16.gmra.mxu0 %v3445
      %v3688 = vpop.f32.mrf.mxu0
      %v3689 = vadd.f32 %v3351, %v3688
      %v3690 = vpop.f32.mrf.mxu0
      %v3691 = vpop.f32.mrf.mxu0
      %v3692 = vadd.f32 %v3351, %v3691
      %v3693 = vpop.f32.mrf.mxu0
      %3694 = vmatprep.mubr.bf16.mxu0 0
      %3695 = vmatmul.mubr.bf16.gmra.mxu0 %v3448
      %v3696 = vpop.f32.mrf.mxu0
      %v3697 = vadd.f32 %v3351, %v3696
      %v3698 = vpop.f32.mrf.mxu0
      %v3699 = vpop.f32.mrf.mxu0
      %v3700 = vadd.f32 %v3351, %v3699
      %v3701 = vpop.f32.mrf.mxu0
      %3702 = vdwg.mxu0
      %v3704 = vlaneseq
      %v3705 = vshrl.u32 %v3704, 7
      %v3706 = vsub.s32 0, %v3705
      %v3707 = vrot.slane %v336, %v3706
      %v3709 = vmul.f32 %v3489, %v3707
      %v3710 = vmul.f32 %v3492, %v3707
      %v3711 = vmul.f32 %v3497, %v3707
      %v3712 = vmul.f32 %v3500, %v3707
      %v3713 = vmul.f32 %v3505, %v3707
      %v3714 = vmul.f32 %v3508, %v3707
      %v3715 = vmul.f32 %v3513, %v3707
      %v3716 = vmul.f32 %v3516, %v3707
      %v3717 = vmul.f32 %v3521, %v3707
      %v3718 = vmul.f32 %v3524, %v3707
      %v3719 = vmul.f32 %v3529, %v3707
      %v3720 = vmul.f32 %v3532, %v3707
      %v3721 = vmul.f32 %v3537, %v3707
      %v3722 = vmul.f32 %v3540, %v3707
      %v3723 = vmul.f32 %v3545, %v3707
      %v3724 = vmul.f32 %v3548, %v3707
      %v3725 = vmul.f32 %v3553, %v3707
      %v3726 = vmul.f32 %v3556, %v3707
      %v3727 = vmul.f32 %v3561, %v3707
      %v3728 = vmul.f32 %v3564, %v3707
      %v3729 = vmul.f32 %v3569, %v3707
      %v3730 = vmul.f32 %v3572, %v3707
      %v3731 = vmul.f32 %v3577, %v3707
      %v3732 = vmul.f32 %v3580, %v3707
      %v3733 = vmul.f32 %v3585, %v3707
      %v3734 = vmul.f32 %v3588, %v3707
      %v3735 = vmul.f32 %v3593, %v3707
      %v3736 = vmul.f32 %v3596, %v3707
      %v3737 = vmul.f32 %v3601, %v3707
      %v3738 = vmul.f32 %v3604, %v3707
      %v3739 = vmul.f32 %v3609, %v3707
      %v3740 = vmul.f32 %v3612, %v3707
      %v3741 = vmul.f32 %v3617, %v3707
      %v3742 = vmul.f32 %v3620, %v3707
      %v3743 = vmul.f32 %v3625, %v3707
      %v3744 = vmul.f32 %v3628, %v3707
      %v3745 = vmul.f32 %v3633, %v3707
      %v3746 = vmul.f32 %v3636, %v3707
      %v3747 = vmul.f32 %v3641, %v3707
      %v3748 = vmul.f32 %v3644, %v3707
      %v3749 = vmul.f32 %v3649, %v3707
      %v3750 = vmul.f32 %v3652, %v3707
      %v3751 = vmul.f32 %v3657, %v3707
      %v3752 = vmul.f32 %v3660, %v3707
      %v3753 = vmul.f32 %v3665, %v3707
      %v3754 = vmul.f32 %v3668, %v3707
      %v3755 = vmul.f32 %v3673, %v3707
      %v3756 = vmul.f32 %v3676, %v3707
      %v3757 = vmul.f32 %v3681, %v3707
      %v3758 = vmul.f32 %v3684, %v3707
      %v3759 = vmul.f32 %v3689, %v3707
      %v3760 = vmul.f32 %v3692, %v3707
      %v3761 = vmul.f32 %v3697, %v3707
      %v3762 = vmul.f32 %v3700, %v3707
      %v3764 = vlaneseq
      %v3765 = vshrl.u32 %v3764, 7
      %v3766 = vsub.s32 0, %v3765
      %v3767 = vrot.slane %v337, %v3766
      %v3769 = vadd.f32 %v3709, %v3767
      %v3770 = vadd.f32 %v3710, %v3767
      %v3771 = vadd.f32 %v3711, %v3767
      %v3772 = vadd.f32 %v3712, %v3767
      %v3773 = vadd.f32 %v3713, %v3767
      %v3774 = vadd.f32 %v3714, %v3767
      %v3775 = vadd.f32 %v3715, %v3767
      %v3776 = vadd.f32 %v3716, %v3767
      %v3777 = vadd.f32 %v3717, %v3767
      %v3778 = vadd.f32 %v3718, %v3767
      %v3779 = vadd.f32 %v3719, %v3767
      %v3780 = vadd.f32 %v3720, %v3767
      %v3781 = vadd.f32 %v3721, %v3767
      %v3782 = vadd.f32 %v3722, %v3767
      %v3783 = vadd.f32 %v3723, %v3767
      %v3784 = vadd.f32 %v3724, %v3767
      %v3785 = vadd.f32 %v3725, %v3767
      %v3786 = vadd.f32 %v3726, %v3767
      %v3787 = vadd.f32 %v3727, %v3767
      %v3788 = vadd.f32 %v3728, %v3767
      %v3789 = vadd.f32 %v3729, %v3767
      %v3790 = vadd.f32 %v3730, %v3767
      %v3791 = vadd.f32 %v3731, %v3767
      %v3792 = vadd.f32 %v3732, %v3767
      %v3793 = vadd.f32 %v3733, %v3767
      %v3794 = vadd.f32 %v3734, %v3767
      %v3795 = vadd.f32 %v3735, %v3767
      %v3796 = vadd.f32 %v3736, %v3767
      %v3797 = vadd.f32 %v3737, %v3767
      %v3798 = vadd.f32 %v3738, %v3767
      %v3799 = vadd.f32 %v3739, %v3767
      %v3800 = vadd.f32 %v3740, %v3767
      %v3801 = vadd.f32 %v3741, %v3767
      %v3802 = vadd.f32 %v3742, %v3767
      %v3803 = vadd.f32 %v3743, %v3767
      %v3804 = vadd.f32 %v3744, %v3767
      %v3805 = vadd.f32 %v3745, %v3767
      %v3806 = vadd.f32 %v3746, %v3767
      %v3807 = vadd.f32 %v3747, %v3767
      %v3808 = vadd.f32 %v3748, %v3767
      %v3809 = vadd.f32 %v3749, %v3767
      %v3810 = vadd.f32 %v3750, %v3767
      %v3811 = vadd.f32 %v3751, %v3767
      %v3812 = vadd.f32 %v3752, %v3767
      %v3813 = vadd.f32 %v3753, %v3767
      %v3814 = vadd.f32 %v3754, %v3767
      %v3815 = vadd.f32 %v3755, %v3767
      %v3816 = vadd.f32 %v3756, %v3767
      %v3817 = vadd.f32 %v3757, %v3767
      %v3818 = vadd.f32 %v3758, %v3767
      %v3819 = vadd.f32 %v3759, %v3767
      %v3820 = vadd.f32 %v3760, %v3767
      %v3821 = vadd.f32 %v3761, %v3767
      %v3822 = vadd.f32 %v3762, %v3767
      %vm3823 = vcmp.ge.f32.partialorder %v3769, 0.0
      %vm3824 = vcmp.ge.f32.partialorder %v3770, 0.0
      %vm3825 = vcmp.ge.f32.partialorder %v3771, 0.0
      %vm3826 = vcmp.ge.f32.partialorder %v3772, 0.0
      %vm3827 = vcmp.ge.f32.partialorder %v3773, 0.0
      %vm3828 = vcmp.ge.f32.partialorder %v3774, 0.0
      %vm3829 = vcmp.ge.f32.partialorder %v3775, 0.0
      %vm3830 = vcmp.ge.f32.partialorder %v3776, 0.0
      %vm3831 = vcmp.ge.f32.partialorder %v3777, 0.0
      %vm3832 = vcmp.ge.f32.partialorder %v3778, 0.0
      %vm3833 = vcmp.ge.f32.partialorder %v3779, 0.0
      %vm3834 = vcmp.ge.f32.partialorder %v3780, 0.0
      %vm3835 = vcmp.ge.f32.partialorder %v3781, 0.0
      %vm3836 = vcmp.ge.f32.partialorder %v3782, 0.0
      %vm3837 = vcmp.ge.f32.partialorder %v3783, 0.0
      %vm3838 = vcmp.ge.f32.partialorder %v3784, 0.0
      %vm3839 = vcmp.ge.f32.partialorder %v3785, 0.0
      %vm3840 = vcmp.ge.f32.partialorder %v3786, 0.0
      %vm3841 = vcmp.ge.f32.partialorder %v3787, 0.0
      %vm3842 = vcmp.ge.f32.partialorder %v3788, 0.0
      %vm3843 = vcmp.ge.f32.partialorder %v3789, 0.0
      %vm3844 = vcmp.ge.f32.partialorder %v3790, 0.0
      %vm3845 = vcmp.ge.f32.partialorder %v3791, 0.0
      %vm3846 = vcmp.ge.f32.partialorder %v3792, 0.0
      %vm3847 = vcmp.ge.f32.partialorder %v3793, 0.0
      %vm3848 = vcmp.ge.f32.partialorder %v3794, 0.0
      %vm3849 = vcmp.ge.f32.partialorder %v3795, 0.0
      %vm3850 = vcmp.ge.f32.partialorder %v3796, 0.0
      %vm3851 = vcmp.ge.f32.partialorder %v3797, 0.0
      %vm3852 = vcmp.ge.f32.partialorder %v3798, 0.0
      %vm3853 = vcmp.ge.f32.partialorder %v3799, 0.0
      %vm3854 = vcmp.ge.f32.partialorder %v3800, 0.0
      %vm3855 = vcmp.ge.f32.partialorder %v3801, 0.0
      %vm3856 = vcmp.ge.f32.partialorder %v3802, 0.0
      %vm3857 = vcmp.ge.f32.partialorder %v3803, 0.0
      %vm3858 = vcmp.ge.f32.partialorder %v3804, 0.0
      %vm3859 = vcmp.ge.f32.partialorder %v3805, 0.0
      %vm3860 = vcmp.ge.f32.partialorder %v3806, 0.0
      %vm3861 = vcmp.ge.f32.partialorder %v3807, 0.0
      %vm3862 = vcmp.ge.f32.partialorder %v3808, 0.0
      %vm3863 = vcmp.ge.f32.partialorder %v3809, 0.0
      %vm3864 = vcmp.ge.f32.partialorder %v3810, 0.0
      %vm3865 = vcmp.ge.f32.partialorder %v3811, 0.0
      %vm3866 = vcmp.ge.f32.partialorder %v3812, 0.0
      %vm3867 = vcmp.ge.f32.partialorder %v3813, 0.0
      %vm3868 = vcmp.ge.f32.partialorder %v3814, 0.0
      %vm3869 = vcmp.ge.f32.partialorder %v3815, 0.0
      %vm3870 = vcmp.ge.f32.partialorder %v3816, 0.0
      %vm3871 = vcmp.ge.f32.partialorder %v3817, 0.0
      %vm3872 = vcmp.ge.f32.partialorder %v3818, 0.0
      %vm3873 = vcmp.ge.f32.partialorder %v3819, 0.0
      %vm3874 = vcmp.ge.f32.partialorder %v3820, 0.0
      %vm3875 = vcmp.ge.f32.partialorder %v3821, 0.0
      %vm3876 = vcmp.ge.f32.partialorder %v3822, 0.0
      %v3877 = vmul.f32 %v3769, 0.01
      %v3878 = vmul.f32 %v3770, 0.01
      %v3879 = vmul.f32 %v3771, 0.01
      %v3880 = vmul.f32 %v3772, 0.01
      %v3881 = vmul.f32 %v3773, 0.01
      %v3882 = vmul.f32 %v3774, 0.01
      %v3883 = vmul.f32 %v3775, 0.01
      %v3884 = vmul.f32 %v3776, 0.01
      %v3885 = vmul.f32 %v3777, 0.01
      %v3886 = vmul.f32 %v3778, 0.01
      %v3887 = vmul.f32 %v3779, 0.01
      %v3888 = vmul.f32 %v3780, 0.01
      %v3889 = vmul.f32 %v3781, 0.01
      %v3890 = vmul.f32 %v3782, 0.01
      %v3891 = vmul.f32 %v3783, 0.01
      %v3892 = vmul.f32 %v3784, 0.01
      %v3893 = vmul.f32 %v3785, 0.01
      %v3894 = vmul.f32 %v3786, 0.01
      %v3895 = vmul.f32 %v3787, 0.01
      %v3896 = vmul.f32 %v3788, 0.01
      %v3897 = vmul.f32 %v3789, 0.01
      %v3898 = vmul.f32 %v3790, 0.01
      %v3899 = vmul.f32 %v3791, 0.01
      %v3900 = vmul.f32 %v3792, 0.01
      %v3901 = vmul.f32 %v3793, 0.01
      %v3902 = vmul.f32 %v3794, 0.01
      %v3903 = vmul.f32 %v3795, 0.01
      %v3904 = vmul.f32 %v3796, 0.01
      %v3905 = vmul.f32 %v3797, 0.01
      %v3906 = vmul.f32 %v3798, 0.01
      %v3907 = vmul.f32 %v3799, 0.01
      %v3908 = vmul.f32 %v3800, 0.01
      %v3909 = vmul.f32 %v3801, 0.01
      %v3910 = vmul.f32 %v3802, 0.01
      %v3911 = vmul.f32 %v3803, 0.01
      %v3912 = vmul.f32 %v3804, 0.01
      %v3913 = vmul.f32 %v3805, 0.01
      %v3914 = vmul.f32 %v3806, 0.01
      %v3915 = vmul.f32 %v3807, 0.01
      %v3916 = vmul.f32 %v3808, 0.01
      %v3917 = vmul.f32 %v3809, 0.01
      %v3918 = vmul.f32 %v3810, 0.01
      %v3919 = vmul.f32 %v3811, 0.01
      %v3920 = vmul.f32 %v3812, 0.01
      %v3921 = vmul.f32 %v3813, 0.01
      %v3922 = vmul.f32 %v3814, 0.01
      %v3923 = vmul.f32 %v3815, 0.01
      %v3924 = vmul.f32 %v3816, 0.01
      %v3925 = vmul.f32 %v3817, 0.01
      %v3926 = vmul.f32 %v3818, 0.01
      %v3927 = vmul.f32 %v3819, 0.01
      %v3928 = vmul.f32 %v3820, 0.01
      %v3929 = vmul.f32 %v3821, 0.01
      %v3930 = vmul.f32 %v3822, 0.01
      %v3931 = vsel %vm3823, %v3769, %v3877
      %v3932 = vsel %vm3824, %v3770, %v3878
      %v3933 = vsel %vm3825, %v3771, %v3879
      %v3934 = vsel %vm3826, %v3772, %v3880
      %v3935 = vsel %vm3827, %v3773, %v3881
      %v3936 = vsel %vm3828, %v3774, %v3882
      %v3937 = vsel %vm3829, %v3775, %v3883
      %v3938 = vsel %vm3830, %v3776, %v3884
      %v3939 = vsel %vm3831, %v3777, %v3885
      %v3940 = vsel %vm3832, %v3778, %v3886
      %v3941 = vsel %vm3833, %v3779, %v3887
      %v3942 = vsel %vm3834, %v3780, %v3888
      %v3943 = vsel %vm3835, %v3781, %v3889
      %v3944 = vsel %vm3836, %v3782, %v3890
      %v3945 = vsel %vm3837, %v3783, %v3891
      %v3946 = vsel %vm3838, %v3784, %v3892
      %v3947 = vsel %vm3839, %v3785, %v3893
      %v3948 = vsel %vm3840, %v3786, %v3894
      %v3949 = vsel %vm3841, %v3787, %v3895
      %v3950 = vsel %vm3842, %v3788, %v3896
      %v3951 = vsel %vm3843, %v3789, %v3897
      %v3952 = vsel %vm3844, %v3790, %v3898
      %v3953 = vsel %vm3845, %v3791, %v3899
      %v3954 = vsel %vm3846, %v3792, %v3900
      %v3955 = vsel %vm3847, %v3793, %v3901
      %v3956 = vsel %vm3848, %v3794, %v3902
      %v3957 = vsel %vm3849, %v3795, %v3903
      %v3958 = vsel %vm3850, %v3796, %v3904
      %v3959 = vsel %vm3851, %v3797, %v3905
      %v3960 = vsel %vm3852, %v3798, %v3906
      %v3961 = vsel %vm3853, %v3799, %v3907
      %v3962 = vsel %vm3854, %v3800, %v3908
      %v3963 = vsel %vm3855, %v3801, %v3909
      %v3964 = vsel %vm3856, %v3802, %v3910
      %v3965 = vsel %vm3857, %v3803, %v3911
      %v3966 = vsel %vm3858, %v3804, %v3912
      %v3967 = vsel %vm3859, %v3805, %v3913
      %v3968 = vsel %vm3860, %v3806, %v3914
      %v3969 = vsel %vm3861, %v3807, %v3915
      %v3970 = vsel %vm3862, %v3808, %v3916
      %v3971 = vsel %vm3863, %v3809, %v3917
      %v3972 = vsel %vm3864, %v3810, %v3918
      %v3973 = vsel %vm3865, %v3811, %v3919
      %v3974 = vsel %vm3866, %v3812, %v3920
      %v3975 = vsel %vm3867, %v3813, %v3921
      %v3976 = vsel %vm3868, %v3814, %v3922
      %v3977 = vsel %vm3869, %v3815, %v3923
      %v3978 = vsel %vm3870, %v3816, %v3924
      %v3979 = vsel %vm3871, %v3817, %v3925
      %v3980 = vsel %vm3872, %v3818, %v3926
      %v3981 = vsel %vm3873, %v3819, %v3927
      %v3982 = vsel %vm3874, %v3820, %v3928
      %v3983 = vsel %vm3875, %v3821, %v3929
      %v3984 = vsel %vm3876, %v3822, %v3930
      %vm3985 = vcmp.ge.s32.totalorder %v843, 1
      %vm3986 = vcmp.ge.s32.totalorder %v844, 1
      %vm3987 = vcmp.ge.s32.totalorder %v845, 1
      %vm3988 = vmand 0, %vm3985
      %vm3989 = vmand 0, %vm3986
      %vm3990 = vmand 0, %vm3987
      %vm3991 = vmand 1, %vm3985
      %vm3992 = vmand 1, %vm3986
      %vm3993 = vmand 1, %vm3987
      %vm3994 = vcmp.lt.s32.totalorder %v843, 17
      %vm3995 = vcmp.lt.s32.totalorder %v844, 17
      %vm3996 = vcmp.lt.s32.totalorder %v845, 17
      %vm3997 = vmand %vm3988, %vm3994
      %vm3998 = vmand %vm3989, %vm3995
      %vm3999 = vmand %vm3990, %vm3996
      %vm4000 = vmand %vm3991, %vm3994
      %vm4001 = vmand %vm3992, %vm3995
      %vm4002 = vmand %vm3993, %vm3996
      %v4003 = vsel %vm3997, %v3931, 0.0
      %v4004 = vsel %vm3998, %v3932, 0.0
      %v4005 = vsel %vm3999, %v3933, 0.0
      %v4006 = vsel %vm4000, %v3934, 0.0
      %v4007 = vsel %vm4001, %v3935, 0.0
      %v4008 = vsel %vm4002, %v3936, 0.0
      %v4009 = vsel %vm4000, %v3937, 0.0
      %v4010 = vsel %vm4001, %v3938, 0.0
      %v4011 = vsel %vm4002, %v3939, 0.0
      %v4012 = vsel %vm4000, %v3940, 0.0
      %v4013 = vsel %vm4001, %v3941, 0.0
      %v4014 = vsel %vm4002, %v3942, 0.0
      %v4015 = vsel %vm4000, %v3943, 0.0
      %v4016 = vsel %vm4001, %v3944, 0.0
      %v4017 = vsel %vm4002, %v3945, 0.0
      %v4018 = vsel %vm4000, %v3946, 0.0
      %v4019 = vsel %vm4001, %v3947, 0.0
      %v4020 = vsel %vm4002, %v3948, 0.0
      %v4021 = vsel %vm4000, %v3949, 0.0
      %v4022 = vsel %vm4001, %v3950, 0.0
      %v4023 = vsel %vm4002, %v3951, 0.0
      %v4024 = vsel %vm4000, %v3952, 0.0
      %v4025 = vsel %vm4001, %v3953, 0.0
      %v4026 = vsel %vm4002, %v3954, 0.0
      %v4027 = vsel %vm4000, %v3955, 0.0
      %v4028 = vsel %vm4001, %v3956, 0.0
      %v4029 = vsel %vm4002, %v3957, 0.0
      %v4030 = vsel %vm4000, %v3958, 0.0
      %v4031 = vsel %vm4001, %v3959, 0.0
      %v4032 = vsel %vm4002, %v3960, 0.0
      %v4033 = vsel %vm4000, %v3961, 0.0
      %v4034 = vsel %vm4001, %v3962, 0.0
      %v4035 = vsel %vm4002, %v3963, 0.0
      %v4036 = vsel %vm4000, %v3964, 0.0
      %v4037 = vsel %vm4001, %v3965, 0.0
      %v4038 = vsel %vm4002, %v3966, 0.0
      %v4039 = vsel %vm4000, %v3967, 0.0
      %v4040 = vsel %vm4001, %v3968, 0.0
      %v4041 = vsel %vm4002, %v3969, 0.0
      %v4042 = vsel %vm4000, %v3970, 0.0
      %v4043 = vsel %vm4001, %v3971, 0.0
      %v4044 = vsel %vm4002, %v3972, 0.0
      %v4045 = vsel %vm4000, %v3973, 0.0
      %v4046 = vsel %vm4001, %v3974, 0.0
      %v4047 = vsel %vm4002, %v3975, 0.0
      %v4048 = vsel %vm4000, %v3976, 0.0
      %v4049 = vsel %vm4001, %v3977, 0.0
      %v4050 = vsel %vm4002, %v3978, 0.0
      %v4051 = vsel %vm4000, %v3979, 0.0
      %v4052 = vsel %vm4001, %v3980, 0.0
      %v4053 = vsel %vm4002, %v3981, 0.0
      %v4054 = vsel %vm3997, %v3982, 0.0
      %v4055 = vsel %vm3998, %v3983, 0.0
      %v4056 = vsel %vm3999, %v3984, 0.0
      %4057 = vst.msk [vmem:[#allocation3] sm:$0xff] %vm951, %v4003
      %4058 = vst.msk [vmem:[#allocation3 + $0x8] sm:$0xff] %vm951, %v4004
      %4059 = vst.msk [vmem:[#allocation3 + $0x10] sm:$0xff] %vm951, %v4006
      %4060 = vst.msk [vmem:[#allocation3 + $0x18] sm:$0xff] %vm951, %v4007
      %4061 = vst.msk [vmem:[#allocation3 + $0x20] sm:$0xff] %vm951, %v4009
      %4062 = vst.msk [vmem:[#allocation3 + $0x28] sm:$0xff] %vm951, %v4010
      %4063 = vst.msk [vmem:[#allocation3 + $0x30] sm:$0xff] %vm951, %v4012
      %4064 = vst.msk [vmem:[#allocation3 + $0x38] sm:$0xff] %vm951, %v4013
      %4065 = vst.msk [vmem:[#allocation3 + $0x40] sm:$0xff] %vm951, %v4015
      %4066 = vst.msk [vmem:[#allocation3 + $0x48] sm:$0xff] %vm951, %v4016
      %4067 = vst.msk [vmem:[#allocation3 + $0x50] sm:$0xff] %vm951, %v4018
      %4068 = vst.msk [vmem:[#allocation3 + $0x58] sm:$0xff] %vm951, %v4019
      %4069 = vst.msk [vmem:[#allocation3 + $0x60] sm:$0xff] %vm951, %v4021
      %4070 = vst.msk [vmem:[#allocation3 + $0x68] sm:$0xff] %vm951, %v4022
      %4071 = vst.msk [vmem:[#allocation3 + $0x70] sm:$0xff] %vm951, %v4024
      %4072 = vst.msk [vmem:[#allocation3 + $0x78] sm:$0xff] %vm951, %v4025
      %4073 = vst.msk [vmem:[#allocation3 + $0x80] sm:$0xff] %vm951, %v4027
      %4074 = vst.msk [vmem:[#allocation3 + $0x88] sm:$0xff] %vm951, %v4028
      %4075 = vst.msk [vmem:[#allocation3 + $0x90] sm:$0xff] %vm951, %v4030
      %4076 = vst.msk [vmem:[#allocation3 + $0x98] sm:$0xff] %vm951, %v4031
      %4077 = vst.msk [vmem:[#allocation3 + $0xa0] sm:$0xff] %vm951, %v4033
      %4078 = vst.msk [vmem:[#allocation3 + $0xa8] sm:$0xff] %vm951, %v4034
      %4079 = vst.msk [vmem:[#allocation3 + $0xb0] sm:$0xff] %vm951, %v4036
      %4080 = vst.msk [vmem:[#allocation3 + $0xb8] sm:$0xff] %vm951, %v4037
      %4081 = vst.msk [vmem:[#allocation3 + $0xc0] sm:$0xff] %vm951, %v4039
      %4082 = vst.msk [vmem:[#allocation3 + $0xc8] sm:$0xff] %vm951, %v4040
      %4083 = vst.msk [vmem:[#allocation3 + $0xd0] sm:$0xff] %vm951, %v4042
      %4084 = vst.msk [vmem:[#allocation3 + $0xd8] sm:$0xff] %vm951, %v4043
      %4085 = vst.msk [vmem:[#allocation3 + $0xe0] sm:$0xff] %vm951, %v4045
      %4086 = vst.msk [vmem:[#allocation3 + $0xe8] sm:$0xff] %vm951, %v4046
      %4087 = vst.msk [vmem:[#allocation3 + $0xf0] sm:$0xff] %vm951, %v4048
      %4088 = vst.msk [vmem:[#allocation3 + $0xf8] sm:$0xff] %vm951, %v4049
      %4137 = vrot.lane.b32.xlu0 %v4003, 4
      %v4138 = vpop.permute.xlu0 %4137
      %4139 = vrot.lane.b32.xlu0 %v4004, 4
      %v4140 = vpop.permute.xlu0 %4139
      %4141 = vrot.lane.b32.xlu0 %v4005, 4
      %v4142 = vpop.permute.xlu0 %4141
      %4143 = vrot.lane.b32.xlu0 %v4006, 4
      %v4144 = vpop.permute.xlu0 %4143
      %4145 = vrot.lane.b32.xlu0 %v4007, 4
      %v4146 = vpop.permute.xlu0 %4145
      %4147 = vrot.lane.b32.xlu0 %v4008, 4
      %v4148 = vpop.permute.xlu0 %4147
      %4149 = vrot.lane.b32.xlu0 %v4009, 4
      %v4150 = vpop.permute.xlu0 %4149
      %4151 = vrot.lane.b32.xlu0 %v4010, 4
      %v4152 = vpop.permute.xlu0 %4151
      %4153 = vrot.lane.b32.xlu0 %v4011, 4
      %v4154 = vpop.permute.xlu0 %4153
      %4155 = vrot.lane.b32.xlu0 %v4012, 4
      %v4156 = vpop.permute.xlu0 %4155
      %4157 = vrot.lane.b32.xlu0 %v4013, 4
      %v4158 = vpop.permute.xlu0 %4157
      %4159 = vrot.lane.b32.xlu0 %v4014, 4
      %v4160 = vpop.permute.xlu0 %4159
      %4161 = vrot.lane.b32.xlu0 %v4015, 4
      %v4162 = vpop.permute.xlu0 %4161
      %4163 = vrot.lane.b32.xlu0 %v4016, 4
      %v4164 = vpop.permute.xlu0 %4163
      %4165 = vrot.lane.b32.xlu0 %v4017, 4
      %v4166 = vpop.permute.xlu0 %4165
      %4167 = vrot.lane.b32.xlu0 %v4018, 4
      %v4168 = vpop.permute.xlu0 %4167
      %4169 = vrot.lane.b32.xlu0 %v4019, 4
      %v4170 = vpop.permute.xlu0 %4169
      %4171 = vrot.lane.b32.xlu0 %v4020, 4
      %v4172 = vpop.permute.xlu0 %4171
      %4173 = vrot.lane.b32.xlu0 %v4021, 4
      %v4174 = vpop.permute.xlu0 %4173
      %4175 = vrot.lane.b32.xlu0 %v4022, 4
      %v4176 = vpop.permute.xlu0 %4175
      %4177 = vrot.lane.b32.xlu0 %v4023, 4
      %v4178 = vpop.permute.xlu0 %4177
      %4179 = vrot.lane.b32.xlu0 %v4024, 4
      %v4180 = vpop.permute.xlu0 %4179
      %4181 = vrot.lane.b32.xlu0 %v4025, 4
      %v4182 = vpop.permute.xlu0 %4181
      %4183 = vrot.lane.b32.xlu0 %v4026, 4
      %v4184 = vpop.permute.xlu0 %4183
      %4185 = vrot.lane.b32.xlu0 %v4027, 4
      %v4186 = vpop.permute.xlu0 %4185
      %4187 = vrot.lane.b32.xlu0 %v4028, 4
      %v4188 = vpop.permute.xlu0 %4187
      %4189 = vrot.lane.b32.xlu0 %v4029, 4
      %v4190 = vpop.permute.xlu0 %4189
      %4191 = vrot.lane.b32.xlu0 %v4030, 4
      %v4192 = vpop.permute.xlu0 %4191
      %4193 = vrot.lane.b32.xlu0 %v4031, 4
      %v4194 = vpop.permute.xlu0 %4193
      %4195 = vrot.lane.b32.xlu0 %v4032, 4
      %v4196 = vpop.permute.xlu0 %4195
      %4197 = vrot.lane.b32.xlu0 %v4033, 4
      %v4198 = vpop.permute.xlu0 %4197
      %4199 = vrot.lane.b32.xlu0 %v4034, 4
      %v4200 = vpop.permute.xlu0 %4199
      %4201 = vrot.lane.b32.xlu0 %v4035, 4
      %v4202 = vpop.permute.xlu0 %4201
      %4203 = vrot.lane.b32.xlu0 %v4036, 4
      %v4204 = vpop.permute.xlu0 %4203
      %4205 = vrot.lane.b32.xlu0 %v4037, 4
      %v4206 = vpop.permute.xlu0 %4205
      %4207 = vrot.lane.b32.xlu0 %v4038, 4
      %v4208 = vpop.permute.xlu0 %4207
      %4209 = vrot.lane.b32.xlu0 %v4039, 4
      %v4210 = vpop.permute.xlu0 %4209
      %4211 = vrot.lane.b32.xlu0 %v4040, 4
      %v4212 = vpop.permute.xlu0 %4211
      %4213 = vrot.lane.b32.xlu0 %v4041, 4
      %v4214 = vpop.permute.xlu0 %4213
      %4215 = vrot.lane.b32.xlu0 %v4042, 4
      %v4216 = vpop.permute.xlu0 %4215
      %4217 = vrot.lane.b32.xlu0 %v4043, 4
      %v4218 = vpop.permute.xlu0 %4217
      %4219 = vrot.lane.b32.xlu0 %v4044, 4
      %v4220 = vpop.permute.xlu0 %4219
      %4221 = vrot.lane.b32.xlu0 %v4045, 4
      %v4222 = vpop.permute.xlu0 %4221
      %4223 = vrot.lane.b32.xlu0 %v4046, 4
      %v4224 = vpop.permute.xlu0 %4223
      %4225 = vrot.lane.b32.xlu0 %v4047, 4
      %v4226 = vpop.permute.xlu0 %4225
      %4227 = vrot.lane.b32.xlu0 %v4048, 4
      %v4228 = vpop.permute.xlu0 %4227
      %4229 = vrot.lane.b32.xlu0 %v4049, 4
      %v4230 = vpop.permute.xlu0 %4229
      %4231 = vrot.lane.b32.xlu0 %v4050, 4
      %v4232 = vpop.permute.xlu0 %4231
      %4281 = vst.msk [vmem:[#allocation3 - $0x1] sm:$0xfe] %vm1294, %v4138
      %4282 = vst.msk [vmem:[#allocation3 + $0x7] sm:$0xff] %vm1296, %v4140
      %4283 = vst.msk [vmem:[#allocation3 + $0xf] sm:$0x1] %vm1299, %v4142
      %4284 = vst.msk [vmem:[#allocation3 + $0xf] sm:$0xfe] %vm1294, %v4144
      %4285 = vst.msk [vmem:[#allocation3 + $0x17] sm:$0xff] %vm1296, %v4146
      %4286 = vst.msk [vmem:[#allocation3 + $0x1f] sm:$0x1] %vm1299, %v4148
      %4287 = vst.msk [vmem:[#allocation3 + $0x1f] sm:$0xfe] %vm1294, %v4150
      %4288 = vst.msk [vmem:[#allocation3 + $0x27] sm:$0xff] %vm1296, %v4152
      %4289 = vst.msk [vmem:[#allocation3 + $0x2f] sm:$0x1] %vm1299, %v4154
      %4290 = vst.msk [vmem:[#allocation3 + $0x2f] sm:$0xfe] %vm1294, %v4156
      %4291 = vst.msk [vmem:[#allocation3 + $0x37] sm:$0xff] %vm1296, %v4158
      %4292 = vst.msk [vmem:[#allocation3 + $0x3f] sm:$0x1] %vm1299, %v4160
      %4293 = vst.msk [vmem:[#allocation3 + $0x3f] sm:$0xfe] %vm1294, %v4162
      %4294 = vst.msk [vmem:[#allocation3 + $0x47] sm:$0xff] %vm1296, %v4164
      %4295 = vst.msk [vmem:[#allocation3 + $0x4f] sm:$0x1] %vm1299, %v4166
      %4296 = vst.msk [vmem:[#allocation3 + $0x4f] sm:$0xfe] %vm1294, %v4168
      %4297 = vst.msk [vmem:[#allocation3 + $0x57] sm:$0xff] %vm1296, %v4170
      %4298 = vst.msk [vmem:[#allocation3 + $0x5f] sm:$0x1] %vm1299, %v4172
      %4299 = vst.msk [vmem:[#allocation3 + $0x5f] sm:$0xfe] %vm1294, %v4174
      %4300 = vst.msk [vmem:[#allocation3 + $0x67] sm:$0xff] %vm1296, %v4176
      %4301 = vst.msk [vmem:[#allocation3 + $0x6f] sm:$0x1] %vm1299, %v4178
      %4302 = vst.msk [vmem:[#allocation3 + $0x6f] sm:$0xfe] %vm1294, %v4180
      %4303 = vst.msk [vmem:[#allocation3 + $0x77] sm:$0xff] %vm1296, %v4182
      %4304 = vst.msk [vmem:[#allocation3 + $0x7f] sm:$0x1] %vm1299, %v4184
      %4305 = vst.msk [vmem:[#allocation3 + $0x7f] sm:$0xfe] %vm1294, %v4186
      %4306 = vst.msk [vmem:[#allocation3 + $0x87] sm:$0xff] %vm1296, %v4188
      %4307 = vst.msk [vmem:[#allocation3 + $0x8f] sm:$0x1] %vm1299, %v4190
      %4308 = vst.msk [vmem:[#allocation3 + $0x8f] sm:$0xfe] %vm1294, %v4192
      %4309 = vst.msk [vmem:[#allocation3 + $0x97] sm:$0xff] %vm1296, %v4194
      %4310 = vst.msk [vmem:[#allocation3 + $0x9f] sm:$0x1] %vm1299, %v4196
      %4311 = vst.msk [vmem:[#allocation3 + $0x9f] sm:$0xfe] %vm1294, %v4198
      %4312 = vst.msk [vmem:[#allocation3 + $0xa7] sm:$0xff] %vm1296, %v4200
      %4313 = vst.msk [vmem:[#allocation3 + $0xaf] sm:$0x1] %vm1299, %v4202
      %4314 = vst.msk [vmem:[#allocation3 + $0xaf] sm:$0xfe] %vm1294, %v4204
      %4315 = vst.msk [vmem:[#allocation3 + $0xb7] sm:$0xff] %vm1296, %v4206
      %4316 = vst.msk [vmem:[#allocation3 + $0xbf] sm:$0x1] %vm1299, %v4208
      %4317 = vst.msk [vmem:[#allocation3 + $0xbf] sm:$0xfe] %vm1294, %v4210
      %4318 = vst.msk [vmem:[#allocation3 + $0xc7] sm:$0xff] %vm1296, %v4212
      %4319 = vst.msk [vmem:[#allocation3 + $0xcf] sm:$0x1] %vm1299, %v4214
      %4320 = vst.msk [vmem:[#allocation3 + $0xcf] sm:$0xfe] %vm1294, %v4216
      %4321 = vst.msk [vmem:[#allocation3 + $0xd7] sm:$0xff] %vm1296, %v4218
      %4322 = vst.msk [vmem:[#allocation3 + $0xdf] sm:$0x1] %vm1299, %v4220
      %4323 = vst.msk [vmem:[#allocation3 + $0xdf] sm:$0xfe] %vm1294, %v4222
      %4324 = vst.msk [vmem:[#allocation3 + $0xe7] sm:$0xff] %vm1296, %v4224
      %4325 = vst.msk [vmem:[#allocation3 + $0xef] sm:$0x1] %vm1299, %v4226
      %4326 = vst.msk [vmem:[#allocation3 + $0xef] sm:$0xfe] %vm1294, %v4228
      %4327 = vst.msk [vmem:[#allocation3 + $0xf7] sm:$0xff] %vm1296, %v4230
      %4328 = vst.msk [vmem:[#allocation3 + $0xff] sm:$0x1] %vm1299, %v4232
      %4329 = vrot.lane.b32.xlu0 %v4003, 8
      %v4330 = vpop.permute.xlu0 %4329
      %4331 = vrot.lane.b32.xlu0 %v4004, 8
      %v4332 = vpop.permute.xlu0 %4331
      %4333 = vrot.lane.b32.xlu0 %v4005, 8
      %v4334 = vpop.permute.xlu0 %4333
      %4335 = vrot.lane.b32.xlu0 %v4006, 8
      %v4336 = vpop.permute.xlu0 %4335
      %4337 = vrot.lane.b32.xlu0 %v4007, 8
      %v4338 = vpop.permute.xlu0 %4337
      %4339 = vrot.lane.b32.xlu0 %v4008, 8
      %v4340 = vpop.permute.xlu0 %4339
      %4341 = vrot.lane.b32.xlu0 %v4009, 8
      %v4342 = vpop.permute.xlu0 %4341
      %4343 = vrot.lane.b32.xlu0 %v4010, 8
      %v4344 = vpop.permute.xlu0 %4343
      %4345 = vrot.lane.b32.xlu0 %v4011, 8
      %v4346 = vpop.permute.xlu0 %4345
      %4347 = vrot.lane.b32.xlu0 %v4012, 8
      %v4348 = vpop.permute.xlu0 %4347
      %4349 = vrot.lane.b32.xlu0 %v4013, 8
      %v4350 = vpop.permute.xlu0 %4349
      %4351 = vrot.lane.b32.xlu0 %v4014, 8
      %v4352 = vpop.permute.xlu0 %4351
      %4353 = vrot.lane.b32.xlu0 %v4015, 8
      %v4354 = vpop.permute.xlu0 %4353
      %4355 = vrot.lane.b32.xlu0 %v4016, 8
      %v4356 = vpop.permute.xlu0 %4355
      %4357 = vrot.lane.b32.xlu0 %v4017, 8
      %v4358 = vpop.permute.xlu0 %4357
      %4359 = vrot.lane.b32.xlu0 %v4018, 8
      %v4360 = vpop.permute.xlu0 %4359
      %4361 = vrot.lane.b32.xlu0 %v4019, 8
      %v4362 = vpop.permute.xlu0 %4361
      %4363 = vrot.lane.b32.xlu0 %v4020, 8
      %v4364 = vpop.permute.xlu0 %4363
      %4365 = vrot.lane.b32.xlu0 %v4021, 8
      %v4366 = vpop.permute.xlu0 %4365
      %4367 = vrot.lane.b32.xlu0 %v4022, 8
      %v4368 = vpop.permute.xlu0 %4367
      %4369 = vrot.lane.b32.xlu0 %v4023, 8
      %v4370 = vpop.permute.xlu0 %4369
      %4371 = vrot.lane.b32.xlu0 %v4024, 8
      %v4372 = vpop.permute.xlu0 %4371
      %4373 = vrot.lane.b32.xlu0 %v4025, 8
      %v4374 = vpop.permute.xlu0 %4373
      %4375 = vrot.lane.b32.xlu0 %v4026, 8
      %v4376 = vpop.permute.xlu0 %4375
      %4377 = vrot.lane.b32.xlu0 %v4027, 8
      %v4378 = vpop.permute.xlu0 %4377
      %4379 = vrot.lane.b32.xlu0 %v4028, 8
      %v4380 = vpop.permute.xlu0 %4379
      %4381 = vrot.lane.b32.xlu0 %v4029, 8
      %v4382 = vpop.permute.xlu0 %4381
      %4383 = vrot.lane.b32.xlu0 %v4030, 8
      %v4384 = vpop.permute.xlu0 %4383
      %4385 = vrot.lane.b32.xlu0 %v4031, 8
      %v4386 = vpop.permute.xlu0 %4385
      %4387 = vrot.lane.b32.xlu0 %v4032, 8
      %v4388 = vpop.permute.xlu0 %4387
      %4389 = vrot.lane.b32.xlu0 %v4033, 8
      %v4390 = vpop.permute.xlu0 %4389
      %4391 = vrot.lane.b32.xlu0 %v4034, 8
      %v4392 = vpop.permute.xlu0 %4391
      %4393 = vrot.lane.b32.xlu0 %v4035, 8
      %v4394 = vpop.permute.xlu0 %4393
      %4395 = vrot.lane.b32.xlu0 %v4036, 8
      %v4396 = vpop.permute.xlu0 %4395
      %4397 = vrot.lane.b32.xlu0 %v4037, 8
      %v4398 = vpop.permute.xlu0 %4397
      %4399 = vrot.lane.b32.xlu0 %v4038, 8
      %v4400 = vpop.permute.xlu0 %4399
      %4401 = vrot.lane.b32.xlu0 %v4039, 8
      %v4402 = vpop.permute.xlu0 %4401
      %4403 = vrot.lane.b32.xlu0 %v4040, 8
      %v4404 = vpop.permute.xlu0 %4403
      %4405 = vrot.lane.b32.xlu0 %v4041, 8
      %v4406 = vpop.permute.xlu0 %4405
      %4407 = vrot.lane.b32.xlu0 %v4042, 8
      %v4408 = vpop.permute.xlu0 %4407
      %4409 = vrot.lane.b32.xlu0 %v4043, 8
      %v4410 = vpop.permute.xlu0 %4409
      %4411 = vrot.lane.b32.xlu0 %v4044, 8
      %v4412 = vpop.permute.xlu0 %4411
      %4413 = vrot.lane.b32.xlu0 %v4045, 8
      %v4414 = vpop.permute.xlu0 %4413
      %4415 = vrot.lane.b32.xlu0 %v4046, 8
      %v4416 = vpop.permute.xlu0 %4415
      %4417 = vrot.lane.b32.xlu0 %v4047, 8
      %v4418 = vpop.permute.xlu0 %4417
      %4419 = vrot.lane.b32.xlu0 %v4048, 8
      %v4420 = vpop.permute.xlu0 %4419
      %4421 = vrot.lane.b32.xlu0 %v4049, 8
      %v4422 = vpop.permute.xlu0 %4421
      %4423 = vrot.lane.b32.xlu0 %v4050, 8
      %v4424 = vpop.permute.xlu0 %4423
      %4473 = vst.msk [vmem:[#allocation3 - $0x2] sm:$0xfc] %vm1585, %v4330
      %4474 = vst.msk [vmem:[#allocation3 + $0x6] sm:$0xff] %vm1587, %v4332
      %4475 = vst.msk [vmem:[#allocation3 + $0xe] sm:$0x3] %vm1590, %v4334
      %4476 = vst.msk [vmem:[#allocation3 + $0xe] sm:$0xfc] %vm1585, %v4336
      %4477 = vst.msk [vmem:[#allocation3 + $0x16] sm:$0xff] %vm1587, %v4338
      %4478 = vst.msk [vmem:[#allocation3 + $0x1e] sm:$0x3] %vm1590, %v4340
      %4479 = vst.msk [vmem:[#allocation3 + $0x1e] sm:$0xfc] %vm1585, %v4342
      %4480 = vst.msk [vmem:[#allocation3 + $0x26] sm:$0xff] %vm1587, %v4344
      %4481 = vst.msk [vmem:[#allocation3 + $0x2e] sm:$0x3] %vm1590, %v4346
      %4482 = vst.msk [vmem:[#allocation3 + $0x2e] sm:$0xfc] %vm1585, %v4348
      %4483 = vst.msk [vmem:[#allocation3 + $0x36] sm:$0xff] %vm1587, %v4350
      %4484 = vst.msk [vmem:[#allocation3 + $0x3e] sm:$0x3] %vm1590, %v4352
      %4485 = vst.msk [vmem:[#allocation3 + $0x3e] sm:$0xfc] %vm1585, %v4354
      %4486 = vst.msk [vmem:[#allocation3 + $0x46] sm:$0xff] %vm1587, %v4356
      %4487 = vst.msk [vmem:[#allocation3 + $0x4e] sm:$0x3] %vm1590, %v4358
      %4488 = vst.msk [vmem:[#allocation3 + $0x4e] sm:$0xfc] %vm1585, %v4360
      %4489 = vst.msk [vmem:[#allocation3 + $0x56] sm:$0xff] %vm1587, %v4362
      %4490 = vst.msk [vmem:[#allocation3 + $0x5e] sm:$0x3] %vm1590, %v4364
      %4491 = vst.msk [vmem:[#allocation3 + $0x5e] sm:$0xfc] %vm1585, %v4366
      %4492 = vst.msk [vmem:[#allocation3 + $0x66] sm:$0xff] %vm1587, %v4368
      %4493 = vst.msk [vmem:[#allocation3 + $0x6e] sm:$0x3] %vm1590, %v4370
      %4494 = vst.msk [vmem:[#allocation3 + $0x6e] sm:$0xfc] %vm1585, %v4372
      %4495 = vst.msk [vmem:[#allocation3 + $0x76] sm:$0xff] %vm1587, %v4374
      %4496 = vst.msk [vmem:[#allocation3 + $0x7e] sm:$0x3] %vm1590, %v4376
      %4497 = vst.msk [vmem:[#allocation3 + $0x7e] sm:$0xfc] %vm1585, %v4378
      %4498 = vst.msk [vmem:[#allocation3 + $0x86] sm:$0xff] %vm1587, %v4380
      %4499 = vst.msk [vmem:[#allocation3 + $0x8e] sm:$0x3] %vm1590, %v4382
      %4500 = vst.msk [vmem:[#allocation3 + $0x8e] sm:$0xfc] %vm1585, %v4384
      %4501 = vst.msk [vmem:[#allocation3 + $0x96] sm:$0xff] %vm1587, %v4386
      %4502 = vst.msk [vmem:[#allocation3 + $0x9e] sm:$0x3] %vm1590, %v4388
      %4503 = vst.msk [vmem:[#allocation3 + $0x9e] sm:$0xfc] %vm1585, %v4390
      %4504 = vst.msk [vmem:[#allocation3 + $0xa6] sm:$0xff] %vm1587, %v4392
      %4505 = vst.msk [vmem:[#allocation3 + $0xae] sm:$0x3] %vm1590, %v4394
      %4506 = vst.msk [vmem:[#allocation3 + $0xae] sm:$0xfc] %vm1585, %v4396
      %4507 = vst.msk [vmem:[#allocation3 + $0xb6] sm:$0xff] %vm1587, %v4398
      %4508 = vst.msk [vmem:[#allocation3 + $0xbe] sm:$0x3] %vm1590, %v4400
      %4509 = vst.msk [vmem:[#allocation3 + $0xbe] sm:$0xfc] %vm1585, %v4402
      %4510 = vst.msk [vmem:[#allocation3 + $0xc6] sm:$0xff] %vm1587, %v4404
      %4511 = vst.msk [vmem:[#allocation3 + $0xce] sm:$0x3] %vm1590, %v4406
      %4512 = vst.msk [vmem:[#allocation3 + $0xce] sm:$0xfc] %vm1585, %v4408
      %4513 = vst.msk [vmem:[#allocation3 + $0xd6] sm:$0xff] %vm1587, %v4410
      %4514 = vst.msk [vmem:[#allocation3 + $0xde] sm:$0x3] %vm1590, %v4412
      %4515 = vst.msk [vmem:[#allocation3 + $0xde] sm:$0xfc] %vm1585, %v4414
      %4516 = vst.msk [vmem:[#allocation3 + $0xe6] sm:$0xff] %vm1587, %v4416
      %4517 = vst.msk [vmem:[#allocation3 + $0xee] sm:$0x3] %vm1590, %v4418
      %4518 = vst.msk [vmem:[#allocation3 + $0xee] sm:$0xfc] %vm1585, %v4420
      %4519 = vst.msk [vmem:[#allocation3 + $0xf6] sm:$0xff] %vm1587, %v4422
      %4520 = vst.msk [vmem:[#allocation3 + $0xfe] sm:$0x3] %vm1590, %v4424
      %4523 = vrot.lane.b32.xlu0 %v4006, 12
      %v4524 = vpop.permute.xlu0 %4523
      %4525 = vrot.lane.b32.xlu0 %v4007, 12
      %v4526 = vpop.permute.xlu0 %4525
      %4527 = vrot.lane.b32.xlu0 %v4009, 12
      %v4528 = vpop.permute.xlu0 %4527
      %4529 = vrot.lane.b32.xlu0 %v4010, 12
      %v4530 = vpop.permute.xlu0 %4529
      %4531 = vrot.lane.b32.xlu0 %v4012, 12
      %v4532 = vpop.permute.xlu0 %4531
      %4533 = vrot.lane.b32.xlu0 %v4013, 12
      %v4534 = vpop.permute.xlu0 %4533
      %4535 = vrot.lane.b32.xlu0 %v4015, 12
      %v4536 = vpop.permute.xlu0 %4535
      %4537 = vrot.lane.b32.xlu0 %v4016, 12
      %v4538 = vpop.permute.xlu0 %4537
      %4539 = vrot.lane.b32.xlu0 %v4018, 12
      %v4540 = vpop.permute.xlu0 %4539
      %4541 = vrot.lane.b32.xlu0 %v4019, 12
      %v4542 = vpop.permute.xlu0 %4541
      %4543 = vrot.lane.b32.xlu0 %v4021, 12
      %v4544 = vpop.permute.xlu0 %4543
      %4545 = vrot.lane.b32.xlu0 %v4022, 12
      %v4546 = vpop.permute.xlu0 %4545
      %4547 = vrot.lane.b32.xlu0 %v4024, 12
      %v4548 = vpop.permute.xlu0 %4547
      %4549 = vrot.lane.b32.xlu0 %v4025, 12
      %v4550 = vpop.permute.xlu0 %4549
      %4551 = vrot.lane.b32.xlu0 %v4027, 12
      %v4552 = vpop.permute.xlu0 %4551
      %4553 = vrot.lane.b32.xlu0 %v4028, 12
      %v4554 = vpop.permute.xlu0 %4553
      %4555 = vrot.lane.b32.xlu0 %v4030, 12
      %v4556 = vpop.permute.xlu0 %4555
      %4557 = vrot.lane.b32.xlu0 %v4031, 12
      %v4558 = vpop.permute.xlu0 %4557
      %4559 = vrot.lane.b32.xlu0 %v4033, 12
      %v4560 = vpop.permute.xlu0 %4559
      %4561 = vrot.lane.b32.xlu0 %v4034, 12
      %v4562 = vpop.permute.xlu0 %4561
      %4563 = vrot.lane.b32.xlu0 %v4036, 12
      %v4564 = vpop.permute.xlu0 %4563
      %4565 = vrot.lane.b32.xlu0 %v4037, 12
      %v4566 = vpop.permute.xlu0 %4565
      %4567 = vrot.lane.b32.xlu0 %v4039, 12
      %v4568 = vpop.permute.xlu0 %4567
      %4569 = vrot.lane.b32.xlu0 %v4040, 12
      %v4570 = vpop.permute.xlu0 %4569
      %4571 = vrot.lane.b32.xlu0 %v4042, 12
      %v4572 = vpop.permute.xlu0 %4571
      %4573 = vrot.lane.b32.xlu0 %v4043, 12
      %v4574 = vpop.permute.xlu0 %4573
      %4575 = vrot.lane.b32.xlu0 %v4045, 12
      %v4576 = vpop.permute.xlu0 %4575
      %4577 = vrot.lane.b32.xlu0 %v4046, 12
      %v4578 = vpop.permute.xlu0 %4577
      %4579 = vrot.lane.b32.xlu0 %v4048, 12
      %v4580 = vpop.permute.xlu0 %4579
      %4581 = vrot.lane.b32.xlu0 %v4049, 12
      %v4582 = vpop.permute.xlu0 %4581
      %4583 = vrot.lane.b32.xlu0 %v4051, 12
      %v4584 = vpop.permute.xlu0 %4583
      %4585 = vrot.lane.b32.xlu0 %v4052, 12
      %v4586 = vpop.permute.xlu0 %4585
      %4619 = vst.msk [vmem:[#allocation3] sm:$0xff] %vm1825, %v4524
      %4620 = vst.msk [vmem:[#allocation3 + $0x8] sm:$0xff] %vm1825, %v4526
      %4621 = vst.msk [vmem:[#allocation3 + $0x10] sm:$0xff] %vm1825, %v4528
      %4622 = vst.msk [vmem:[#allocation3 + $0x18] sm:$0xff] %vm1825, %v4530
      %4623 = vst.msk [vmem:[#allocation3 + $0x20] sm:$0xff] %vm1825, %v4532
      %4624 = vst.msk [vmem:[#allocation3 + $0x28] sm:$0xff] %vm1825, %v4534
      %4625 = vst.msk [vmem:[#allocation3 + $0x30] sm:$0xff] %vm1825, %v4536
      %4626 = vst.msk [vmem:[#allocation3 + $0x38] sm:$0xff] %vm1825, %v4538
      %4627 = vst.msk [vmem:[#allocation3 + $0x40] sm:$0xff] %vm1825, %v4540
      %4628 = vst.msk [vmem:[#allocation3 + $0x48] sm:$0xff] %vm1825, %v4542
      %4629 = vst.msk [vmem:[#allocation3 + $0x50] sm:$0xff] %vm1825, %v4544
      %4630 = vst.msk [vmem:[#allocation3 + $0x58] sm:$0xff] %vm1825, %v4546
      %4631 = vst.msk [vmem:[#allocation3 + $0x60] sm:$0xff] %vm1825, %v4548
      %4632 = vst.msk [vmem:[#allocation3 + $0x68] sm:$0xff] %vm1825, %v4550
      %4633 = vst.msk [vmem:[#allocation3 + $0x70] sm:$0xff] %vm1825, %v4552
      %4634 = vst.msk [vmem:[#allocation3 + $0x78] sm:$0xff] %vm1825, %v4554
      %4635 = vst.msk [vmem:[#allocation3 + $0x80] sm:$0xff] %vm1825, %v4556
      %4636 = vst.msk [vmem:[#allocation3 + $0x88] sm:$0xff] %vm1825, %v4558
      %4637 = vst.msk [vmem:[#allocation3 + $0x90] sm:$0xff] %vm1825, %v4560
      %4638 = vst.msk [vmem:[#allocation3 + $0x98] sm:$0xff] %vm1825, %v4562
      %4639 = vst.msk [vmem:[#allocation3 + $0xa0] sm:$0xff] %vm1825, %v4564
      %4640 = vst.msk [vmem:[#allocation3 + $0xa8] sm:$0xff] %vm1825, %v4566
      %4641 = vst.msk [vmem:[#allocation3 + $0xb0] sm:$0xff] %vm1825, %v4568
      %4642 = vst.msk [vmem:[#allocation3 + $0xb8] sm:$0xff] %vm1825, %v4570
      %4643 = vst.msk [vmem:[#allocation3 + $0xc0] sm:$0xff] %vm1825, %v4572
      %4644 = vst.msk [vmem:[#allocation3 + $0xc8] sm:$0xff] %vm1825, %v4574
      %4645 = vst.msk [vmem:[#allocation3 + $0xd0] sm:$0xff] %vm1825, %v4576
      %4646 = vst.msk [vmem:[#allocation3 + $0xd8] sm:$0xff] %vm1825, %v4578
      %4647 = vst.msk [vmem:[#allocation3 + $0xe0] sm:$0xff] %vm1825, %v4580
      %4648 = vst.msk [vmem:[#allocation3 + $0xe8] sm:$0xff] %vm1825, %v4582
      %4649 = vst.msk [vmem:[#allocation3 + $0xf0] sm:$0xff] %vm1825, %v4584
      %4650 = vst.msk [vmem:[#allocation3 + $0xf8] sm:$0xff] %vm1825, %v4586
      %4652 = vrot.lane.b32.xlu0 %v4006, 16
      %v4653 = vpop.permute.xlu0 %4652
      %4654 = vrot.lane.b32.xlu0 %v4007, 16
      %v4655 = vpop.permute.xlu0 %4654
      %4656 = vrot.lane.b32.xlu0 %v4008, 16
      %v4657 = vpop.permute.xlu0 %4656
      %4658 = vrot.lane.b32.xlu0 %v4009, 16
      %v4659 = vpop.permute.xlu0 %4658
      %4660 = vrot.lane.b32.xlu0 %v4010, 16
      %v4661 = vpop.permute.xlu0 %4660
      %4662 = vrot.lane.b32.xlu0 %v4011, 16
      %v4663 = vpop.permute.xlu0 %4662
      %4664 = vrot.lane.b32.xlu0 %v4012, 16
      %v4665 = vpop.permute.xlu0 %4664
      %4666 = vrot.lane.b32.xlu0 %v4013, 16
      %v4667 = vpop.permute.xlu0 %4666
      %4668 = vrot.lane.b32.xlu0 %v4014, 16
      %v4669 = vpop.permute.xlu0 %4668
      %4670 = vrot.lane.b32.xlu0 %v4015, 16
      %v4671 = vpop.permute.xlu0 %4670
      %4672 = vrot.lane.b32.xlu0 %v4016, 16
      %v4673 = vpop.permute.xlu0 %4672
      %4674 = vrot.lane.b32.xlu0 %v4017, 16
      %v4675 = vpop.permute.xlu0 %4674
      %4676 = vrot.lane.b32.xlu0 %v4018, 16
      %v4677 = vpop.permute.xlu0 %4676
      %4678 = vrot.lane.b32.xlu0 %v4019, 16
      %v4679 = vpop.permute.xlu0 %4678
      %4680 = vrot.lane.b32.xlu0 %v4020, 16
      %v4681 = vpop.permute.xlu0 %4680
      %4682 = vrot.lane.b32.xlu0 %v4021, 16
      %v4683 = vpop.permute.xlu0 %4682
      %4684 = vrot.lane.b32.xlu0 %v4022, 16
      %v4685 = vpop.permute.xlu0 %4684
      %4686 = vrot.lane.b32.xlu0 %v4023, 16
      %v4687 = vpop.permute.xlu0 %4686
      %4688 = vrot.lane.b32.xlu0 %v4024, 16
      %v4689 = vpop.permute.xlu0 %4688
      %4690 = vrot.lane.b32.xlu0 %v4025, 16
      %v4691 = vpop.permute.xlu0 %4690
      %4692 = vrot.lane.b32.xlu0 %v4026, 16
      %v4693 = vpop.permute.xlu0 %4692
      %4694 = vrot.lane.b32.xlu0 %v4027, 16
      %v4695 = vpop.permute.xlu0 %4694
      %4696 = vrot.lane.b32.xlu0 %v4028, 16
      %v4697 = vpop.permute.xlu0 %4696
      %4698 = vrot.lane.b32.xlu0 %v4029, 16
      %v4699 = vpop.permute.xlu0 %4698
      %4700 = vrot.lane.b32.xlu0 %v4030, 16
      %v4701 = vpop.permute.xlu0 %4700
      %4702 = vrot.lane.b32.xlu0 %v4031, 16
      %v4703 = vpop.permute.xlu0 %4702
      %4704 = vrot.lane.b32.xlu0 %v4032, 16
      %v4705 = vpop.permute.xlu0 %4704
      %4706 = vrot.lane.b32.xlu0 %v4033, 16
      %v4707 = vpop.permute.xlu0 %4706
      %4708 = vrot.lane.b32.xlu0 %v4034, 16
      %v4709 = vpop.permute.xlu0 %4708
      %4710 = vrot.lane.b32.xlu0 %v4035, 16
      %v4711 = vpop.permute.xlu0 %4710
      %4712 = vrot.lane.b32.xlu0 %v4036, 16
      %v4713 = vpop.permute.xlu0 %4712
      %4714 = vrot.lane.b32.xlu0 %v4037, 16
      %v4715 = vpop.permute.xlu0 %4714
      %4716 = vrot.lane.b32.xlu0 %v4038, 16
      %v4717 = vpop.permute.xlu0 %4716
      %4718 = vrot.lane.b32.xlu0 %v4039, 16
      %v4719 = vpop.permute.xlu0 %4718
      %4720 = vrot.lane.b32.xlu0 %v4040, 16
      %v4721 = vpop.permute.xlu0 %4720
      %4722 = vrot.lane.b32.xlu0 %v4041, 16
      %v4723 = vpop.permute.xlu0 %4722
      %4724 = vrot.lane.b32.xlu0 %v4042, 16
      %v4725 = vpop.permute.xlu0 %4724
      %4726 = vrot.lane.b32.xlu0 %v4043, 16
      %v4727 = vpop.permute.xlu0 %4726
      %4728 = vrot.lane.b32.xlu0 %v4044, 16
      %v4729 = vpop.permute.xlu0 %4728
      %4730 = vrot.lane.b32.xlu0 %v4045, 16
      %v4731 = vpop.permute.xlu0 %4730
      %4732 = vrot.lane.b32.xlu0 %v4046, 16
      %v4733 = vpop.permute.xlu0 %4732
      %4734 = vrot.lane.b32.xlu0 %v4047, 16
      %v4735 = vpop.permute.xlu0 %4734
      %4736 = vrot.lane.b32.xlu0 %v4048, 16
      %v4737 = vpop.permute.xlu0 %4736
      %4738 = vrot.lane.b32.xlu0 %v4049, 16
      %v4739 = vpop.permute.xlu0 %4738
      %4740 = vrot.lane.b32.xlu0 %v4050, 16
      %v4741 = vpop.permute.xlu0 %4740
      %4742 = vrot.lane.b32.xlu0 %v4051, 16
      %v4743 = vpop.permute.xlu0 %4742
      %4744 = vrot.lane.b32.xlu0 %v4052, 16
      %v4745 = vpop.permute.xlu0 %4744
      %4746 = vrot.lane.b32.xlu0 %v4053, 16
      %v4747 = vpop.permute.xlu0 %4746
      %4796 = vst.msk [vmem:[#allocation3 - $0x1] sm:$0xfe] %vm2097, %v4653
      %4797 = vst.msk [vmem:[#allocation3 + $0x7] sm:$0xff] %vm2099, %v4655
      %4798 = vst.msk [vmem:[#allocation3 + $0xf] sm:$0x1] %vm2102, %v4657
      %4799 = vst.msk [vmem:[#allocation3 + $0xf] sm:$0xfe] %vm2097, %v4659
      %4800 = vst.msk [vmem:[#allocation3 + $0x17] sm:$0xff] %vm2099, %v4661
      %4801 = vst.msk [vmem:[#allocation3 + $0x1f] sm:$0x1] %vm2102, %v4663
      %4802 = vst.msk [vmem:[#allocation3 + $0x1f] sm:$0xfe] %vm2097, %v4665
      %4803 = vst.msk [vmem:[#allocation3 + $0x27] sm:$0xff] %vm2099, %v4667
      %4804 = vst.msk [vmem:[#allocation3 + $0x2f] sm:$0x1] %vm2102, %v4669
      %4805 = vst.msk [vmem:[#allocation3 + $0x2f] sm:$0xfe] %vm2097, %v4671
      %4806 = vst.msk [vmem:[#allocation3 + $0x37] sm:$0xff] %vm2099, %v4673
      %4807 = vst.msk [vmem:[#allocation3 + $0x3f] sm:$0x1] %vm2102, %v4675
      %4808 = vst.msk [vmem:[#allocation3 + $0x3f] sm:$0xfe] %vm2097, %v4677
      %4809 = vst.msk [vmem:[#allocation3 + $0x47] sm:$0xff] %vm2099, %v4679
      %4810 = vst.msk [vmem:[#allocation3 + $0x4f] sm:$0x1] %vm2102, %v4681
      %4811 = vst.msk [vmem:[#allocation3 + $0x4f] sm:$0xfe] %vm2097, %v4683
      %4812 = vst.msk [vmem:[#allocation3 + $0x57] sm:$0xff] %vm2099, %v4685
      %4813 = vst.msk [vmem:[#allocation3 + $0x5f] sm:$0x1] %vm2102, %v4687
      %4814 = vst.msk [vmem:[#allocation3 + $0x5f] sm:$0xfe] %vm2097, %v4689
      %4815 = vst.msk [vmem:[#allocation3 + $0x67] sm:$0xff] %vm2099, %v4691
      %4816 = vst.msk [vmem:[#allocation3 + $0x6f] sm:$0x1] %vm2102, %v4693
      %4817 = vst.msk [vmem:[#allocation3 + $0x6f] sm:$0xfe] %vm2097, %v4695
      %4818 = vst.msk [vmem:[#allocation3 + $0x77] sm:$0xff] %vm2099, %v4697
      %4819 = vst.msk [vmem:[#allocation3 + $0x7f] sm:$0x1] %vm2102, %v4699
      %4820 = vst.msk [vmem:[#allocation3 + $0x7f] sm:$0xfe] %vm2097, %v4701
      %4821 = vst.msk [vmem:[#allocation3 + $0x87] sm:$0xff] %vm2099, %v4703
      %4822 = vst.msk [vmem:[#allocation3 + $0x8f] sm:$0x1] %vm2102, %v4705
      %4823 = vst.msk [vmem:[#allocation3 + $0x8f] sm:$0xfe] %vm2097, %v4707
      %4824 = vst.msk [vmem:[#allocation3 + $0x97] sm:$0xff] %vm2099, %v4709
      %4825 = vst.msk [vmem:[#allocation3 + $0x9f] sm:$0x1] %vm2102, %v4711
      %4826 = vst.msk [vmem:[#allocation3 + $0x9f] sm:$0xfe] %vm2097, %v4713
      %4827 = vst.msk [vmem:[#allocation3 + $0xa7] sm:$0xff] %vm2099, %v4715
      %4828 = vst.msk [vmem:[#allocation3 + $0xaf] sm:$0x1] %vm2102, %v4717
      %4829 = vst.msk [vmem:[#allocation3 + $0xaf] sm:$0xfe] %vm2097, %v4719
      %4830 = vst.msk [vmem:[#allocation3 + $0xb7] sm:$0xff] %vm2099, %v4721
      %4831 = vst.msk [vmem:[#allocation3 + $0xbf] sm:$0x1] %vm2102, %v4723
      %4832 = vst.msk [vmem:[#allocation3 + $0xbf] sm:$0xfe] %vm2097, %v4725
      %4833 = vst.msk [vmem:[#allocation3 + $0xc7] sm:$0xff] %vm2099, %v4727
      %4834 = vst.msk [vmem:[#allocation3 + $0xcf] sm:$0x1] %vm2102, %v4729
      %4835 = vst.msk [vmem:[#allocation3 + $0xcf] sm:$0xfe] %vm2097, %v4731
      %4836 = vst.msk [vmem:[#allocation3 + $0xd7] sm:$0xff] %vm2099, %v4733
      %4837 = vst.msk [vmem:[#allocation3 + $0xdf] sm:$0x1] %vm2102, %v4735
      %4838 = vst.msk [vmem:[#allocation3 + $0xdf] sm:$0xfe] %vm2097, %v4737
      %4839 = vst.msk [vmem:[#allocation3 + $0xe7] sm:$0xff] %vm2099, %v4739
      %4840 = vst.msk [vmem:[#allocation3 + $0xef] sm:$0x1] %vm2102, %v4741
      %4841 = vst.msk [vmem:[#allocation3 + $0xef] sm:$0xfe] %vm2097, %v4743
      %4842 = vst.msk [vmem:[#allocation3 + $0xf7] sm:$0xff] %vm2099, %v4745
      %4843 = vst.msk [vmem:[#allocation3 + $0xff] sm:$0x1] %vm2102, %v4747
      %4844 = vrot.lane.b32.xlu0 %v4006, 20
      %v4845 = vpop.permute.xlu0 %4844
      %4846 = vrot.lane.b32.xlu0 %v4007, 20
      %v4847 = vpop.permute.xlu0 %4846
      %4848 = vrot.lane.b32.xlu0 %v4008, 20
      %v4849 = vpop.permute.xlu0 %4848
      %4850 = vrot.lane.b32.xlu0 %v4009, 20
      %v4851 = vpop.permute.xlu0 %4850
      %4852 = vrot.lane.b32.xlu0 %v4010, 20
      %v4853 = vpop.permute.xlu0 %4852
      %4854 = vrot.lane.b32.xlu0 %v4011, 20
      %v4855 = vpop.permute.xlu0 %4854
      %4856 = vrot.lane.b32.xlu0 %v4012, 20
      %v4857 = vpop.permute.xlu0 %4856
      %4858 = vrot.lane.b32.xlu0 %v4013, 20
      %v4859 = vpop.permute.xlu0 %4858
      %4860 = vrot.lane.b32.xlu0 %v4014, 20
      %v4861 = vpop.permute.xlu0 %4860
      %4862 = vrot.lane.b32.xlu0 %v4015, 20
      %v4863 = vpop.permute.xlu0 %4862
      %4864 = vrot.lane.b32.xlu0 %v4016, 20
      %v4865 = vpop.permute.xlu0 %4864
      %4866 = vrot.lane.b32.xlu0 %v4017, 20
      %v4867 = vpop.permute.xlu0 %4866
      %4868 = vrot.lane.b32.xlu0 %v4018, 20
      %v4869 = vpop.permute.xlu0 %4868
      %4870 = vrot.lane.b32.xlu0 %v4019, 20
      %v4871 = vpop.permute.xlu0 %4870
      %4872 = vrot.lane.b32.xlu0 %v4020, 20
      %v4873 = vpop.permute.xlu0 %4872
      %4874 = vrot.lane.b32.xlu0 %v4021, 20
      %v4875 = vpop.permute.xlu0 %4874
      %4876 = vrot.lane.b32.xlu0 %v4022, 20
      %v4877 = vpop.permute.xlu0 %4876
      %4878 = vrot.lane.b32.xlu0 %v4023, 20
      %v4879 = vpop.permute.xlu0 %4878
      %4880 = vrot.lane.b32.xlu0 %v4024, 20
      %v4881 = vpop.permute.xlu0 %4880
      %4882 = vrot.lane.b32.xlu0 %v4025, 20
      %v4883 = vpop.permute.xlu0 %4882
      %4884 = vrot.lane.b32.xlu0 %v4026, 20
      %v4885 = vpop.permute.xlu0 %4884
      %4886 = vrot.lane.b32.xlu0 %v4027, 20
      %v4887 = vpop.permute.xlu0 %4886
      %4888 = vrot.lane.b32.xlu0 %v4028, 20
      %v4889 = vpop.permute.xlu0 %4888
      %4890 = vrot.lane.b32.xlu0 %v4029, 20
      %v4891 = vpop.permute.xlu0 %4890
      %4892 = vrot.lane.b32.xlu0 %v4030, 20
      %v4893 = vpop.permute.xlu0 %4892
      %4894 = vrot.lane.b32.xlu0 %v4031, 20
      %v4895 = vpop.permute.xlu0 %4894
      %4896 = vrot.lane.b32.xlu0 %v4032, 20
      %v4897 = vpop.permute.xlu0 %4896
      %4898 = vrot.lane.b32.xlu0 %v4033, 20
      %v4899 = vpop.permute.xlu0 %4898
      %4900 = vrot.lane.b32.xlu0 %v4034, 20
      %v4901 = vpop.permute.xlu0 %4900
      %4902 = vrot.lane.b32.xlu0 %v4035, 20
      %v4903 = vpop.permute.xlu0 %4902
      %4904 = vrot.lane.b32.xlu0 %v4036, 20
      %v4905 = vpop.permute.xlu0 %4904
      %4906 = vrot.lane.b32.xlu0 %v4037, 20
      %v4907 = vpop.permute.xlu0 %4906
      %4908 = vrot.lane.b32.xlu0 %v4038, 20
      %v4909 = vpop.permute.xlu0 %4908
      %4910 = vrot.lane.b32.xlu0 %v4039, 20
      %v4911 = vpop.permute.xlu0 %4910
      %4912 = vrot.lane.b32.xlu0 %v4040, 20
      %v4913 = vpop.permute.xlu0 %4912
      %4914 = vrot.lane.b32.xlu0 %v4041, 20
      %v4915 = vpop.permute.xlu0 %4914
      %4916 = vrot.lane.b32.xlu0 %v4042, 20
      %v4917 = vpop.permute.xlu0 %4916
      %4918 = vrot.lane.b32.xlu0 %v4043, 20
      %v4919 = vpop.permute.xlu0 %4918
      %4920 = vrot.lane.b32.xlu0 %v4044, 20
      %v4921 = vpop.permute.xlu0 %4920
      %4922 = vrot.lane.b32.xlu0 %v4045, 20
      %v4923 = vpop.permute.xlu0 %4922
      %4924 = vrot.lane.b32.xlu0 %v4046, 20
      %v4925 = vpop.permute.xlu0 %4924
      %4926 = vrot.lane.b32.xlu0 %v4047, 20
      %v4927 = vpop.permute.xlu0 %4926
      %4928 = vrot.lane.b32.xlu0 %v4048, 20
      %v4929 = vpop.permute.xlu0 %4928
      %4930 = vrot.lane.b32.xlu0 %v4049, 20
      %v4931 = vpop.permute.xlu0 %4930
      %4932 = vrot.lane.b32.xlu0 %v4050, 20
      %v4933 = vpop.permute.xlu0 %4932
      %4934 = vrot.lane.b32.xlu0 %v4051, 20
      %v4935 = vpop.permute.xlu0 %4934
      %4936 = vrot.lane.b32.xlu0 %v4052, 20
      %v4937 = vpop.permute.xlu0 %4936
      %4938 = vrot.lane.b32.xlu0 %v4053, 20
      %v4939 = vpop.permute.xlu0 %4938
      %4988 = vst.msk [vmem:[#allocation3 - $0x2] sm:$0xfc] %vm2388, %v4845
      %4989 = vst.msk [vmem:[#allocation3 + $0x6] sm:$0xff] %vm2390, %v4847
      %4990 = vst.msk [vmem:[#allocation3 + $0xe] sm:$0x3] %vm2393, %v4849
      %4991 = vst.msk [vmem:[#allocation3 + $0xe] sm:$0xfc] %vm2388, %v4851
      %4992 = vst.msk [vmem:[#allocation3 + $0x16] sm:$0xff] %vm2390, %v4853
      %4993 = vst.msk [vmem:[#allocation3 + $0x1e] sm:$0x3] %vm2393, %v4855
      %4994 = vst.msk [vmem:[#allocation3 + $0x1e] sm:$0xfc] %vm2388, %v4857
      %4995 = vst.msk [vmem:[#allocation3 + $0x26] sm:$0xff] %vm2390, %v4859
      %4996 = vst.msk [vmem:[#allocation3 + $0x2e] sm:$0x3] %vm2393, %v4861
      %4997 = vst.msk [vmem:[#allocation3 + $0x2e] sm:$0xfc] %vm2388, %v4863
      %4998 = vst.msk [vmem:[#allocation3 + $0x36] sm:$0xff] %vm2390, %v4865
      %4999 = vst.msk [vmem:[#allocation3 + $0x3e] sm:$0x3] %vm2393, %v4867
      %5000 = vst.msk [vmem:[#allocation3 + $0x3e] sm:$0xfc] %vm2388, %v4869
      %5001 = vst.msk [vmem:[#allocation3 + $0x46] sm:$0xff] %vm2390, %v4871
      %5002 = vst.msk [vmem:[#allocation3 + $0x4e] sm:$0x3] %vm2393, %v4873
      %5003 = vst.msk [vmem:[#allocation3 + $0x4e] sm:$0xfc] %vm2388, %v4875
      %5004 = vst.msk [vmem:[#allocation3 + $0x56] sm:$0xff] %vm2390, %v4877
      %5005 = vst.msk [vmem:[#allocation3 + $0x5e] sm:$0x3] %vm2393, %v4879
      %5006 = vst.msk [vmem:[#allocation3 + $0x5e] sm:$0xfc] %vm2388, %v4881
      %5007 = vst.msk [vmem:[#allocation3 + $0x66] sm:$0xff] %vm2390, %v4883
      %5008 = vst.msk [vmem:[#allocation3 + $0x6e] sm:$0x3] %vm2393, %v4885
      %5009 = vst.msk [vmem:[#allocation3 + $0x6e] sm:$0xfc] %vm2388, %v4887
      %5010 = vst.msk [vmem:[#allocation3 + $0x76] sm:$0xff] %vm2390, %v4889
      %5011 = vst.msk [vmem:[#allocation3 + $0x7e] sm:$0x3] %vm2393, %v4891
      %5012 = vst.msk [vmem:[#allocation3 + $0x7e] sm:$0xfc] %vm2388, %v4893
      %5013 = vst.msk [vmem:[#allocation3 + $0x86] sm:$0xff] %vm2390, %v4895
      %5014 = vst.msk [vmem:[#allocation3 + $0x8e] sm:$0x3] %vm2393, %v4897
      %5015 = vst.msk [vmem:[#allocation3 + $0x8e] sm:$0xfc] %vm2388, %v4899
      %5016 = vst.msk [vmem:[#allocation3 + $0x96] sm:$0xff] %vm2390, %v4901
      %5017 = vst.msk [vmem:[#allocation3 + $0x9e] sm:$0x3] %vm2393, %v4903
      %5018 = vst.msk [vmem:[#allocation3 + $0x9e] sm:$0xfc] %vm2388, %v4905
      %5019 = vst.msk [vmem:[#allocation3 + $0xa6] sm:$0xff] %vm2390, %v4907
      %5020 = vst.msk [vmem:[#allocation3 + $0xae] sm:$0x3] %vm2393, %v4909
      %5021 = vst.msk [vmem:[#allocation3 + $0xae] sm:$0xfc] %vm2388, %v4911
      %5022 = vst.msk [vmem:[#allocation3 + $0xb6] sm:$0xff] %vm2390, %v4913
      %5023 = vst.msk [vmem:[#allocation3 + $0xbe] sm:$0x3] %vm2393, %v4915
      %5024 = vst.msk [vmem:[#allocation3 + $0xbe] sm:$0xfc] %vm2388, %v4917
      %5025 = vst.msk [vmem:[#allocation3 + $0xc6] sm:$0xff] %vm2390, %v4919
      %5026 = vst.msk [vmem:[#allocation3 + $0xce] sm:$0x3] %vm2393, %v4921
      %5027 = vst.msk [vmem:[#allocation3 + $0xce] sm:$0xfc] %vm2388, %v4923
      %5028 = vst.msk [vmem:[#allocation3 + $0xd6] sm:$0xff] %vm2390, %v4925
      %5029 = vst.msk [vmem:[#allocation3 + $0xde] sm:$0x3] %vm2393, %v4927
      %5030 = vst.msk [vmem:[#allocation3 + $0xde] sm:$0xfc] %vm2388, %v4929
      %5031 = vst.msk [vmem:[#allocation3 + $0xe6] sm:$0xff] %vm2390, %v4931
      %5032 = vst.msk [vmem:[#allocation3 + $0xee] sm:$0x3] %vm2393, %v4933
      %5033 = vst.msk [vmem:[#allocation3 + $0xee] sm:$0xfc] %vm2388, %v4935
      %5034 = vst.msk [vmem:[#allocation3 + $0xf6] sm:$0xff] %vm2390, %v4937
      %5035 = vst.msk [vmem:[#allocation3 + $0xfe] sm:$0x3] %vm2393, %v4939
      %5038 = vrot.lane.b32.xlu0 %v4009, 24
      %v5039 = vpop.permute.xlu0 %5038
      %5040 = vrot.lane.b32.xlu0 %v4010, 24
      %v5041 = vpop.permute.xlu0 %5040
      %5042 = vrot.lane.b32.xlu0 %v4012, 24
      %v5043 = vpop.permute.xlu0 %5042
      %5044 = vrot.lane.b32.xlu0 %v4013, 24
      %v5045 = vpop.permute.xlu0 %5044
      %5046 = vrot.lane.b32.xlu0 %v4015, 24
      %v5047 = vpop.permute.xlu0 %5046
      %5048 = vrot.lane.b32.xlu0 %v4016, 24
      %v5049 = vpop.permute.xlu0 %5048
      %5050 = vrot.lane.b32.xlu0 %v4018, 24
      %v5051 = vpop.permute.xlu0 %5050
      %5052 = vrot.lane.b32.xlu0 %v4019, 24
      %v5053 = vpop.permute.xlu0 %5052
      %5054 = vrot.lane.b32.xlu0 %v4021, 24
      %v5055 = vpop.permute.xlu0 %5054
      %5056 = vrot.lane.b32.xlu0 %v4022, 24
      %v5057 = vpop.permute.xlu0 %5056
      %5058 = vrot.lane.b32.xlu0 %v4024, 24
      %v5059 = vpop.permute.xlu0 %5058
      %5060 = vrot.lane.b32.xlu0 %v4025, 24
      %v5061 = vpop.permute.xlu0 %5060
      %5062 = vrot.lane.b32.xlu0 %v4027, 24
      %v5063 = vpop.permute.xlu0 %5062
      %5064 = vrot.lane.b32.xlu0 %v4028, 24
      %v5065 = vpop.permute.xlu0 %5064
      %5066 = vrot.lane.b32.xlu0 %v4030, 24
      %v5067 = vpop.permute.xlu0 %5066
      %5068 = vrot.lane.b32.xlu0 %v4031, 24
      %v5069 = vpop.permute.xlu0 %5068
      %5070 = vrot.lane.b32.xlu0 %v4033, 24
      %v5071 = vpop.permute.xlu0 %5070
      %5072 = vrot.lane.b32.xlu0 %v4034, 24
      %v5073 = vpop.permute.xlu0 %5072
      %5074 = vrot.lane.b32.xlu0 %v4036, 24
      %v5075 = vpop.permute.xlu0 %5074
      %5076 = vrot.lane.b32.xlu0 %v4037, 24
      %v5077 = vpop.permute.xlu0 %5076
      %5078 = vrot.lane.b32.xlu0 %v4039, 24
      %v5079 = vpop.permute.xlu0 %5078
      %5080 = vrot.lane.b32.xlu0 %v4040, 24
      %v5081 = vpop.permute.xlu0 %5080
      %5082 = vrot.lane.b32.xlu0 %v4042, 24
      %v5083 = vpop.permute.xlu0 %5082
      %5084 = vrot.lane.b32.xlu0 %v4043, 24
      %v5085 = vpop.permute.xlu0 %5084
      %5086 = vrot.lane.b32.xlu0 %v4045, 24
      %v5087 = vpop.permute.xlu0 %5086
      %5088 = vrot.lane.b32.xlu0 %v4046, 24
      %v5089 = vpop.permute.xlu0 %5088
      %5090 = vrot.lane.b32.xlu0 %v4048, 24
      %v5091 = vpop.permute.xlu0 %5090
      %5092 = vrot.lane.b32.xlu0 %v4049, 24
      %v5093 = vpop.permute.xlu0 %5092
      %5094 = vrot.lane.b32.xlu0 %v4051, 24
      %v5095 = vpop.permute.xlu0 %5094
      %5096 = vrot.lane.b32.xlu0 %v4052, 24
      %v5097 = vpop.permute.xlu0 %5096
      %5098 = vrot.lane.b32.xlu0 %v4054, 24
      %v5099 = vpop.permute.xlu0 %5098
      %5100 = vrot.lane.b32.xlu0 %v4055, 24
      %v5101 = vpop.permute.xlu0 %5100
      %5134 = vst.msk [vmem:[#allocation3] sm:$0xff] %vm2628, %v5039
      %5135 = vst.msk [vmem:[#allocation3 + $0x8] sm:$0xff] %vm2628, %v5041
      %5136 = vst.msk [vmem:[#allocation3 + $0x10] sm:$0xff] %vm2628, %v5043
      %5137 = vst.msk [vmem:[#allocation3 + $0x18] sm:$0xff] %vm2628, %v5045
      %5138 = vst.msk [vmem:[#allocation3 + $0x20] sm:$0xff] %vm2628, %v5047
      %5139 = vst.msk [vmem:[#allocation3 + $0x28] sm:$0xff] %vm2628, %v5049
      %5140 = vst.msk [vmem:[#allocation3 + $0x30] sm:$0xff] %vm2628, %v5051
      %5141 = vst.msk [vmem:[#allocation3 + $0x38] sm:$0xff] %vm2628, %v5053
      %5142 = vst.msk [vmem:[#allocation3 + $0x40] sm:$0xff] %vm2628, %v5055
      %5143 = vst.msk [vmem:[#allocation3 + $0x48] sm:$0xff] %vm2628, %v5057
      %5144 = vst.msk [vmem:[#allocation3 + $0x50] sm:$0xff] %vm2628, %v5059
      %5145 = vst.msk [vmem:[#allocation3 + $0x58] sm:$0xff] %vm2628, %v5061
      %5146 = vst.msk [vmem:[#allocation3 + $0x60] sm:$0xff] %vm2628, %v5063
      %5147 = vst.msk [vmem:[#allocation3 + $0x68] sm:$0xff] %vm2628, %v5065
      %5148 = vst.msk [vmem:[#allocation3 + $0x70] sm:$0xff] %vm2628, %v5067
      %5149 = vst.msk [vmem:[#allocation3 + $0x78] sm:$0xff] %vm2628, %v5069
      %5150 = vst.msk [vmem:[#allocation3 + $0x80] sm:$0xff] %vm2628, %v5071
      %5151 = vst.msk [vmem:[#allocation3 + $0x88] sm:$0xff] %vm2628, %v5073
      %5152 = vst.msk [vmem:[#allocation3 + $0x90] sm:$0xff] %vm2628, %v5075
      %5153 = vst.msk [vmem:[#allocation3 + $0x98] sm:$0xff] %vm2628, %v5077
      %5154 = vst.msk [vmem:[#allocation3 + $0xa0] sm:$0xff] %vm2628, %v5079
      %5155 = vst.msk [vmem:[#allocation3 + $0xa8] sm:$0xff] %vm2628, %v5081
      %5156 = vst.msk [vmem:[#allocation3 + $0xb0] sm:$0xff] %vm2628, %v5083
      %5157 = vst.msk [vmem:[#allocation3 + $0xb8] sm:$0xff] %vm2628, %v5085
      %5158 = vst.msk [vmem:[#allocation3 + $0xc0] sm:$0xff] %vm2628, %v5087
      %5159 = vst.msk [vmem:[#allocation3 + $0xc8] sm:$0xff] %vm2628, %v5089
      %5160 = vst.msk [vmem:[#allocation3 + $0xd0] sm:$0xff] %vm2628, %v5091
      %5161 = vst.msk [vmem:[#allocation3 + $0xd8] sm:$0xff] %vm2628, %v5093
      %5162 = vst.msk [vmem:[#allocation3 + $0xe0] sm:$0xff] %vm2628, %v5095
      %5163 = vst.msk [vmem:[#allocation3 + $0xe8] sm:$0xff] %vm2628, %v5097
      %5164 = vst.msk [vmem:[#allocation3 + $0xf0] sm:$0xff] %vm2628, %v5099
      %5165 = vst.msk [vmem:[#allocation3 + $0xf8] sm:$0xff] %vm2628, %v5101
      %5167 = vrot.lane.b32.xlu0 %v4009, 28
      %v5168 = vpop.permute.xlu0 %5167
      %5169 = vrot.lane.b32.xlu0 %v4010, 28
      %v5170 = vpop.permute.xlu0 %5169
      %5171 = vrot.lane.b32.xlu0 %v4011, 28
      %v5172 = vpop.permute.xlu0 %5171
      %5173 = vrot.lane.b32.xlu0 %v4012, 28
      %v5174 = vpop.permute.xlu0 %5173
      %5175 = vrot.lane.b32.xlu0 %v4013, 28
      %v5176 = vpop.permute.xlu0 %5175
      %5177 = vrot.lane.b32.xlu0 %v4014, 28
      %v5178 = vpop.permute.xlu0 %5177
      %5179 = vrot.lane.b32.xlu0 %v4015, 28
      %v5180 = vpop.permute.xlu0 %5179
      %5181 = vrot.lane.b32.xlu0 %v4016, 28
      %v5182 = vpop.permute.xlu0 %5181
      %5183 = vrot.lane.b32.xlu0 %v4017, 28
      %v5184 = vpop.permute.xlu0 %5183
      %5185 = vrot.lane.b32.xlu0 %v4018, 28
      %v5186 = vpop.permute.xlu0 %5185
      %5187 = vrot.lane.b32.xlu0 %v4019, 28
      %v5188 = vpop.permute.xlu0 %5187
      %5189 = vrot.lane.b32.xlu0 %v4020, 28
      %v5190 = vpop.permute.xlu0 %5189
      %5191 = vrot.lane.b32.xlu0 %v4021, 28
      %v5192 = vpop.permute.xlu0 %5191
      %5193 = vrot.lane.b32.xlu0 %v4022, 28
      %v5194 = vpop.permute.xlu0 %5193
      %5195 = vrot.lane.b32.xlu0 %v4023, 28
      %v5196 = vpop.permute.xlu0 %5195
      %5197 = vrot.lane.b32.xlu0 %v4024, 28
      %v5198 = vpop.permute.xlu0 %5197
      %5199 = vrot.lane.b32.xlu0 %v4025, 28
      %v5200 = vpop.permute.xlu0 %5199
      %5201 = vrot.lane.b32.xlu0 %v4026, 28
      %v5202 = vpop.permute.xlu0 %5201
      %5203 = vrot.lane.b32.xlu0 %v4027, 28
      %v5204 = vpop.permute.xlu0 %5203
      %5205 = vrot.lane.b32.xlu0 %v4028, 28
      %v5206 = vpop.permute.xlu0 %5205
      %5207 = vrot.lane.b32.xlu0 %v4029, 28
      %v5208 = vpop.permute.xlu0 %5207
      %5209 = vrot.lane.b32.xlu0 %v4030, 28
      %v5210 = vpop.permute.xlu0 %5209
      %5211 = vrot.lane.b32.xlu0 %v4031, 28
      %v5212 = vpop.permute.xlu0 %5211
      %5213 = vrot.lane.b32.xlu0 %v4032, 28
      %v5214 = vpop.permute.xlu0 %5213
      %5215 = vrot.lane.b32.xlu0 %v4033, 28
      %v5216 = vpop.permute.xlu0 %5215
      %5217 = vrot.lane.b32.xlu0 %v4034, 28
      %v5218 = vpop.permute.xlu0 %5217
      %5219 = vrot.lane.b32.xlu0 %v4035, 28
      %v5220 = vpop.permute.xlu0 %5219
      %5221 = vrot.lane.b32.xlu0 %v4036, 28
      %v5222 = vpop.permute.xlu0 %5221
      %5223 = vrot.lane.b32.xlu0 %v4037, 28
      %v5224 = vpop.permute.xlu0 %5223
      %5225 = vrot.lane.b32.xlu0 %v4038, 28
      %v5226 = vpop.permute.xlu0 %5225
      %5227 = vrot.lane.b32.xlu0 %v4039, 28
      %v5228 = vpop.permute.xlu0 %5227
      %5229 = vrot.lane.b32.xlu0 %v4040, 28
      %v5230 = vpop.permute.xlu0 %5229
      %5231 = vrot.lane.b32.xlu0 %v4041, 28
      %v5232 = vpop.permute.xlu0 %5231
      %5233 = vrot.lane.b32.xlu0 %v4042, 28
      %v5234 = vpop.permute.xlu0 %5233
      %5235 = vrot.lane.b32.xlu0 %v4043, 28
      %v5236 = vpop.permute.xlu0 %5235
      %5237 = vrot.lane.b32.xlu0 %v4044, 28
      %v5238 = vpop.permute.xlu0 %5237
      %5239 = vrot.lane.b32.xlu0 %v4045, 28
      %v5240 = vpop.permute.xlu0 %5239
      %5241 = vrot.lane.b32.xlu0 %v4046, 28
      %v5242 = vpop.permute.xlu0 %5241
      %5243 = vrot.lane.b32.xlu0 %v4047, 28
      %v5244 = vpop.permute.xlu0 %5243
      %5245 = vrot.lane.b32.xlu0 %v4048, 28
      %v5246 = vpop.permute.xlu0 %5245
      %5247 = vrot.lane.b32.xlu0 %v4049, 28
      %v5248 = vpop.permute.xlu0 %5247
      %5249 = vrot.lane.b32.xlu0 %v4050, 28
      %v5250 = vpop.permute.xlu0 %5249
      %5251 = vrot.lane.b32.xlu0 %v4051, 28
      %v5252 = vpop.permute.xlu0 %5251
      %5253 = vrot.lane.b32.xlu0 %v4052, 28
      %v5254 = vpop.permute.xlu0 %5253
      %5255 = vrot.lane.b32.xlu0 %v4053, 28
      %v5256 = vpop.permute.xlu0 %5255
      %5257 = vrot.lane.b32.xlu0 %v4054, 28
      %v5258 = vpop.permute.xlu0 %5257
      %5259 = vrot.lane.b32.xlu0 %v4055, 28
      %v5260 = vpop.permute.xlu0 %5259
      %5261 = vrot.lane.b32.xlu0 %v4056, 28
      %v5262 = vpop.permute.xlu0 %5261
      %5311 = vst.msk [vmem:[#allocation3 - $0x1] sm:$0xfe] %vm2900, %v5168
      %5312 = vst.msk [vmem:[#allocation3 + $0x7] sm:$0xff] %vm2902, %v5170
      %5313 = vst.msk [vmem:[#allocation3 + $0xf] sm:$0x1] %vm2905, %v5172
      %5314 = vst.msk [vmem:[#allocation3 + $0xf] sm:$0xfe] %vm2900, %v5174
      %5315 = vst.msk [vmem:[#allocation3 + $0x17] sm:$0xff] %vm2902, %v5176
      %5316 = vst.msk [vmem:[#allocation3 + $0x1f] sm:$0x1] %vm2905, %v5178
      %5317 = vst.msk [vmem:[#allocation3 + $0x1f] sm:$0xfe] %vm2900, %v5180
      %5318 = vst.msk [vmem:[#allocation3 + $0x27] sm:$0xff] %vm2902, %v5182
      %5319 = vst.msk [vmem:[#allocation3 + $0x2f] sm:$0x1] %vm2905, %v5184
      %5320 = vst.msk [vmem:[#allocation3 + $0x2f] sm:$0xfe] %vm2900, %v5186
      %5321 = vst.msk [vmem:[#allocation3 + $0x37] sm:$0xff] %vm2902, %v5188
      %5322 = vst.msk [vmem:[#allocation3 + $0x3f] sm:$0x1] %vm2905, %v5190
      %5323 = vst.msk [vmem:[#allocation3 + $0x3f] sm:$0xfe] %vm2900, %v5192
      %5324 = vst.msk [vmem:[#allocation3 + $0x47] sm:$0xff] %vm2902, %v5194
      %5325 = vst.msk [vmem:[#allocation3 + $0x4f] sm:$0x1] %vm2905, %v5196
      %5326 = vst.msk [vmem:[#allocation3 + $0x4f] sm:$0xfe] %vm2900, %v5198
      %5327 = vst.msk [vmem:[#allocation3 + $0x57] sm:$0xff] %vm2902, %v5200
      %5328 = vst.msk [vmem:[#allocation3 + $0x5f] sm:$0x1] %vm2905, %v5202
      %5329 = vst.msk [vmem:[#allocation3 + $0x5f] sm:$0xfe] %vm2900, %v5204
      %5330 = vst.msk [vmem:[#allocation3 + $0x67] sm:$0xff] %vm2902, %v5206
      %5331 = vst.msk [vmem:[#allocation3 + $0x6f] sm:$0x1] %vm2905, %v5208
      %5332 = vst.msk [vmem:[#allocation3 + $0x6f] sm:$0xfe] %vm2900, %v5210
      %5333 = vst.msk [vmem:[#allocation3 + $0x77] sm:$0xff] %vm2902, %v5212
      %5334 = vst.msk [vmem:[#allocation3 + $0x7f] sm:$0x1] %vm2905, %v5214
      %5335 = vst.msk [vmem:[#allocation3 + $0x7f] sm:$0xfe] %vm2900, %v5216
      %5336 = vst.msk [vmem:[#allocation3 + $0x87] sm:$0xff] %vm2902, %v5218
      %5337 = vst.msk [vmem:[#allocation3 + $0x8f] sm:$0x1] %vm2905, %v5220
      %5338 = vst.msk [vmem:[#allocation3 + $0x8f] sm:$0xfe] %vm2900, %v5222
      %5339 = vst.msk [vmem:[#allocation3 + $0x97] sm:$0xff] %vm2902, %v5224
      %5340 = vst.msk [vmem:[#allocation3 + $0x9f] sm:$0x1] %vm2905, %v5226
      %5341 = vst.msk [vmem:[#allocation3 + $0x9f] sm:$0xfe] %vm2900, %v5228
      %5342 = vst.msk [vmem:[#allocation3 + $0xa7] sm:$0xff] %vm2902, %v5230
      %5343 = vst.msk [vmem:[#allocation3 + $0xaf] sm:$0x1] %vm2905, %v5232
      %5344 = vst.msk [vmem:[#allocation3 + $0xaf] sm:$0xfe] %vm2900, %v5234
      %5345 = vst.msk [vmem:[#allocation3 + $0xb7] sm:$0xff] %vm2902, %v5236
      %5346 = vst.msk [vmem:[#allocation3 + $0xbf] sm:$0x1] %vm2905, %v5238
      %5347 = vst.msk [vmem:[#allocation3 + $0xbf] sm:$0xfe] %vm2900, %v5240
      %5348 = vst.msk [vmem:[#allocation3 + $0xc7] sm:$0xff] %vm2902, %v5242
      %5349 = vst.msk [vmem:[#allocation3 + $0xcf] sm:$0x1] %vm2905, %v5244
      %5350 = vst.msk [vmem:[#allocation3 + $0xcf] sm:$0xfe] %vm2900, %v5246
      %5351 = vst.msk [vmem:[#allocation3 + $0xd7] sm:$0xff] %vm2902, %v5248
      %5352 = vst.msk [vmem:[#allocation3 + $0xdf] sm:$0x1] %vm2905, %v5250
      %5353 = vst.msk [vmem:[#allocation3 + $0xdf] sm:$0xfe] %vm2900, %v5252
      %5354 = vst.msk [vmem:[#allocation3 + $0xe7] sm:$0xff] %vm2902, %v5254
      %5355 = vst.msk [vmem:[#allocation3 + $0xef] sm:$0x1] %vm2905, %v5256
      %5356 = vst.msk [vmem:[#allocation3 + $0xef] sm:$0xfe] %vm2900, %v5258
      %5357 = vst.msk [vmem:[#allocation3 + $0xf7] sm:$0xff] %vm2902, %v5260
      %5358 = vst.msk [vmem:[#allocation3 + $0xff] sm:$0x1] %vm2905, %v5262
      %5359 = vrot.lane.b32.xlu0 %v4009, 32
      %v5360 = vpop.permute.xlu0 %5359
      %5361 = vrot.lane.b32.xlu0 %v4010, 32
      %v5362 = vpop.permute.xlu0 %5361
      %5363 = vrot.lane.b32.xlu0 %v4011, 32
      %v5364 = vpop.permute.xlu0 %5363
      %5365 = vrot.lane.b32.xlu0 %v4012, 32
      %v5366 = vpop.permute.xlu0 %5365
      %5367 = vrot.lane.b32.xlu0 %v4013, 32
      %v5368 = vpop.permute.xlu0 %5367
      %5369 = vrot.lane.b32.xlu0 %v4014, 32
      %v5370 = vpop.permute.xlu0 %5369
      %5371 = vrot.lane.b32.xlu0 %v4015, 32
      %v5372 = vpop.permute.xlu0 %5371
      %5373 = vrot.lane.b32.xlu0 %v4016, 32
      %v5374 = vpop.permute.xlu0 %5373
      %5375 = vrot.lane.b32.xlu0 %v4017, 32
      %v5376 = vpop.permute.xlu0 %5375
      %5377 = vrot.lane.b32.xlu0 %v4018, 32
      %v5378 = vpop.permute.xlu0 %5377
      %5379 = vrot.lane.b32.xlu0 %v4019, 32
      %v5380 = vpop.permute.xlu0 %5379
      %5381 = vrot.lane.b32.xlu0 %v4020, 32
      %v5382 = vpop.permute.xlu0 %5381
      %5383 = vrot.lane.b32.xlu0 %v4021, 32
      %v5384 = vpop.permute.xlu0 %5383
      %5385 = vrot.lane.b32.xlu0 %v4022, 32
      %v5386 = vpop.permute.xlu0 %5385
      %5387 = vrot.lane.b32.xlu0 %v4023, 32
      %v5388 = vpop.permute.xlu0 %5387
      %5389 = vrot.lane.b32.xlu0 %v4024, 32
      %v5390 = vpop.permute.xlu0 %5389
      %5391 = vrot.lane.b32.xlu0 %v4025, 32
      %v5392 = vpop.permute.xlu0 %5391
      %5393 = vrot.lane.b32.xlu0 %v4026, 32
      %v5394 = vpop.permute.xlu0 %5393
      %5395 = vrot.lane.b32.xlu0 %v4027, 32
      %v5396 = vpop.permute.xlu0 %5395
      %5397 = vrot.lane.b32.xlu0 %v4028, 32
      %v5398 = vpop.permute.xlu0 %5397
      %5399 = vrot.lane.b32.xlu0 %v4029, 32
      %v5400 = vpop.permute.xlu0 %5399
      %5401 = vrot.lane.b32.xlu0 %v4030, 32
      %v5402 = vpop.permute.xlu0 %5401
      %5403 = vrot.lane.b32.xlu0 %v4031, 32
      %v5404 = vpop.permute.xlu0 %5403
      %5405 = vrot.lane.b32.xlu0 %v4032, 32
      %v5406 = vpop.permute.xlu0 %5405
      %5407 = vrot.lane.b32.xlu0 %v4033, 32
      %v5408 = vpop.permute.xlu0 %5407
      %5409 = vrot.lane.b32.xlu0 %v4034, 32
      %v5410 = vpop.permute.xlu0 %5409
      %5411 = vrot.lane.b32.xlu0 %v4035, 32
      %v5412 = vpop.permute.xlu0 %5411
      %5413 = vrot.lane.b32.xlu0 %v4036, 32
      %v5414 = vpop.permute.xlu0 %5413
      %5415 = vrot.lane.b32.xlu0 %v4037, 32
      %v5416 = vpop.permute.xlu0 %5415
      %5417 = vrot.lane.b32.xlu0 %v4038, 32
      %v5418 = vpop.permute.xlu0 %5417
      %5419 = vrot.lane.b32.xlu0 %v4039, 32
      %v5420 = vpop.permute.xlu0 %5419
      %5421 = vrot.lane.b32.xlu0 %v4040, 32
      %v5422 = vpop.permute.xlu0 %5421
      %5423 = vrot.lane.b32.xlu0 %v4041, 32
      %v5424 = vpop.permute.xlu0 %5423
      %5425 = vrot.lane.b32.xlu0 %v4042, 32
      %v5426 = vpop.permute.xlu0 %5425
      %5427 = vrot.lane.b32.xlu0 %v4043, 32
      %v5428 = vpop.permute.xlu0 %5427
      %5429 = vrot.lane.b32.xlu0 %v4044, 32
      %v5430 = vpop.permute.xlu0 %5429
      %5431 = vrot.lane.b32.xlu0 %v4045, 32
      %v5432 = vpop.permute.xlu0 %5431
      %5433 = vrot.lane.b32.xlu0 %v4046, 32
      %v5434 = vpop.permute.xlu0 %5433
      %5435 = vrot.lane.b32.xlu0 %v4047, 32
      %v5436 = vpop.permute.xlu0 %5435
      %5437 = vrot.lane.b32.xlu0 %v4048, 32
      %v5438 = vpop.permute.xlu0 %5437
      %5439 = vrot.lane.b32.xlu0 %v4049, 32
      %v5440 = vpop.permute.xlu0 %5439
      %5441 = vrot.lane.b32.xlu0 %v4050, 32
      %v5442 = vpop.permute.xlu0 %5441
      %5443 = vrot.lane.b32.xlu0 %v4051, 32
      %v5444 = vpop.permute.xlu0 %5443
      %5445 = vrot.lane.b32.xlu0 %v4052, 32
      %v5446 = vpop.permute.xlu0 %5445
      %5447 = vrot.lane.b32.xlu0 %v4053, 32
      %v5448 = vpop.permute.xlu0 %5447
      %5449 = vrot.lane.b32.xlu0 %v4054, 32
      %v5450 = vpop.permute.xlu0 %5449
      %5451 = vrot.lane.b32.xlu0 %v4055, 32
      %v5452 = vpop.permute.xlu0 %5451
      %5453 = vrot.lane.b32.xlu0 %v4056, 32
      %v5454 = vpop.permute.xlu0 %5453
      %5503 = vst.msk [vmem:[#allocation3 - $0x2] sm:$0xfc] %vm3191, %v5360
      %5504 = vst.msk [vmem:[#allocation3 + $0x6] sm:$0xff] %vm3193, %v5362
      %5505 = vst.msk [vmem:[#allocation3 + $0xe] sm:$0x3] %vm3196, %v5364
      %5506 = vst.msk [vmem:[#allocation3 + $0xe] sm:$0xfc] %vm3191, %v5366
      %5507 = vst.msk [vmem:[#allocation3 + $0x16] sm:$0xff] %vm3193, %v5368
      %5508 = vst.msk [vmem:[#allocation3 + $0x1e] sm:$0x3] %vm3196, %v5370
      %5509 = vst.msk [vmem:[#allocation3 + $0x1e] sm:$0xfc] %vm3191, %v5372
      %5510 = vst.msk [vmem:[#allocation3 + $0x26] sm:$0xff] %vm3193, %v5374
      %5511 = vst.msk [vmem:[#allocation3 + $0x2e] sm:$0x3] %vm3196, %v5376
      %5512 = vst.msk [vmem:[#allocation3 + $0x2e] sm:$0xfc] %vm3191, %v5378
      %5513 = vst.msk [vmem:[#allocation3 + $0x36] sm:$0xff] %vm3193, %v5380
      %5514 = vst.msk [vmem:[#allocation3 + $0x3e] sm:$0x3] %vm3196, %v5382
      %5515 = vst.msk [vmem:[#allocation3 + $0x3e] sm:$0xfc] %vm3191, %v5384
      %5516 = vst.msk [vmem:[#allocation3 + $0x46] sm:$0xff] %vm3193, %v5386
      %5517 = vst.msk [vmem:[#allocation3 + $0x4e] sm:$0x3] %vm3196, %v5388
      %5518 = vst.msk [vmem:[#allocation3 + $0x4e] sm:$0xfc] %vm3191, %v5390
      %5519 = vst.msk [vmem:[#allocation3 + $0x56] sm:$0xff] %vm3193, %v5392
      %5520 = vst.msk [vmem:[#allocation3 + $0x5e] sm:$0x3] %vm3196, %v5394
      %5521 = vst.msk [vmem:[#allocation3 + $0x5e] sm:$0xfc] %vm3191, %v5396
      %5522 = vst.msk [vmem:[#allocation3 + $0x66] sm:$0xff] %vm3193, %v5398
      %5523 = vst.msk [vmem:[#allocation3 + $0x6e] sm:$0x3] %vm3196, %v5400
      %5524 = vst.msk [vmem:[#allocation3 + $0x6e] sm:$0xfc] %vm3191, %v5402
      %5525 = vst.msk [vmem:[#allocation3 + $0x76] sm:$0xff] %vm3193, %v5404
      %5526 = vst.msk [vmem:[#allocation3 + $0x7e] sm:$0x3] %vm3196, %v5406
      %5527 = vst.msk [vmem:[#allocation3 + $0x7e] sm:$0xfc] %vm3191, %v5408
      %5528 = vst.msk [vmem:[#allocation3 + $0x86] sm:$0xff] %vm3193, %v5410
      %5529 = vst.msk [vmem:[#allocation3 + $0x8e] sm:$0x3] %vm3196, %v5412
      %5530 = vst.msk [vmem:[#allocation3 + $0x8e] sm:$0xfc] %vm3191, %v5414
      %5531 = vst.msk [vmem:[#allocation3 + $0x96] sm:$0xff] %vm3193, %v5416
      %5532 = vst.msk [vmem:[#allocation3 + $0x9e] sm:$0x3] %vm3196, %v5418
      %5533 = vst.msk [vmem:[#allocation3 + $0x9e] sm:$0xfc] %vm3191, %v5420
      %5534 = vst.msk [vmem:[#allocation3 + $0xa6] sm:$0xff] %vm3193, %v5422
      %5535 = vst.msk [vmem:[#allocation3 + $0xae] sm:$0x3] %vm3196, %v5424
      %5536 = vst.msk [vmem:[#allocation3 + $0xae] sm:$0xfc] %vm3191, %v5426
      %5537 = vst.msk [vmem:[#allocation3 + $0xb6] sm:$0xff] %vm3193, %v5428
      %5538 = vst.msk [vmem:[#allocation3 + $0xbe] sm:$0x3] %vm3196, %v5430
      %5539 = vst.msk [vmem:[#allocation3 + $0xbe] sm:$0xfc] %vm3191, %v5432
      %5540 = vst.msk [vmem:[#allocation3 + $0xc6] sm:$0xff] %vm3193, %v5434
      %5541 = vst.msk [vmem:[#allocation3 + $0xce] sm:$0x3] %vm3196, %v5436
      %5542 = vst.msk [vmem:[#allocation3 + $0xce] sm:$0xfc] %vm3191, %v5438
      %5543 = vst.msk [vmem:[#allocation3 + $0xd6] sm:$0xff] %vm3193, %v5440
      %5544 = vst.msk [vmem:[#allocation3 + $0xde] sm:$0x3] %vm3196, %v5442
      %5545 = vst.msk [vmem:[#allocation3 + $0xde] sm:$0xfc] %vm3191, %v5444
      %5546 = vst.msk [vmem:[#allocation3 + $0xe6] sm:$0xff] %vm3193, %v5446
      %5547 = vst.msk [vmem:[#allocation3 + $0xee] sm:$0x3] %vm3196, %v5448
      %5548 = vst.msk [vmem:[#allocation3 + $0xee] sm:$0xfc] %vm3191, %v5450
      %5549 = vst.msk [vmem:[#allocation3 + $0xf6] sm:$0xff] %vm3193, %v5452
      %5550 = vst.msk [vmem:[#allocation3 + $0xfe] sm:$0x3] %vm3196, %v5454
      %v5551 = vld [vmem:[#allocation3] sm:$0xff]
      %v5552 = vld [vmem:[#allocation3 + $0x8] sm:$0xff]
      %v5553 = vld [vmem:[#allocation3 + $0x10] sm:$0xff]
      %v5554 = vld [vmem:[#allocation3 + $0x18] sm:$0xff]
      %v5555 = vld [vmem:[#allocation3 + $0x20] sm:$0xff]
      %v5556 = vld [vmem:[#allocation3 + $0x28] sm:$0xff]
      %v5557 = vld [vmem:[#allocation3 + $0x30] sm:$0xff]
      %v5558 = vld [vmem:[#allocation3 + $0x38] sm:$0xff]
      %v5559 = vld [vmem:[#allocation3 + $0x40] sm:$0xff]
      %v5560 = vld [vmem:[#allocation3 + $0x48] sm:$0xff]
      %v5561 = vld [vmem:[#allocation3 + $0x50] sm:$0xff]
      %v5562 = vld [vmem:[#allocation3 + $0x58] sm:$0xff]
      %v5563 = vld [vmem:[#allocation3 + $0x60] sm:$0xff]
      %v5564 = vld [vmem:[#allocation3 + $0x68] sm:$0xff]
      %v5565 = vld [vmem:[#allocation3 + $0x70] sm:$0xff]
      %v5566 = vld [vmem:[#allocation3 + $0x78] sm:$0xff]
      %v5567 = vld [vmem:[#allocation3 + $0x80] sm:$0xff]
      %v5568 = vld [vmem:[#allocation3 + $0x88] sm:$0xff]
      %v5569 = vld [vmem:[#allocation3 + $0x90] sm:$0xff]
      %v5570 = vld [vmem:[#allocation3 + $0x98] sm:$0xff]
      %v5571 = vld [vmem:[#allocation3 + $0xa0] sm:$0xff]
      %v5572 = vld [vmem:[#allocation3 + $0xa8] sm:$0xff]
      %v5573 = vld [vmem:[#allocation3 + $0xb0] sm:$0xff]
      %v5574 = vld [vmem:[#allocation3 + $0xb8] sm:$0xff]
      %v5575 = vld [vmem:[#allocation3 + $0xc0] sm:$0xff]
      %v5576 = vld [vmem:[#allocation3 + $0xc8] sm:$0xff]
      %v5577 = vld [vmem:[#allocation3 + $0xd0] sm:$0xff]
      %v5578 = vld [vmem:[#allocation3 + $0xd8] sm:$0xff]
      %v5579 = vld [vmem:[#allocation3 + $0xe0] sm:$0xff]
      %v5580 = vld [vmem:[#allocation3 + $0xe8] sm:$0xff]
      %v5581 = vld [vmem:[#allocation3 + $0xf0] sm:$0xff]
      %v5582 = vld [vmem:[#allocation3 + $0xf8] sm:$0xff]
      %v5583 = vpack.c.bf16 %v5552, %v5551
      %v5584 = vpack.c.bf16 %v5554, %v5553
      %v5585 = vpack.c.bf16 %v5556, %v5555
      %v5586 = vpack.c.bf16 %v5558, %v5557
      %v5587 = vpack.c.bf16 %v5560, %v5559
      %v5588 = vpack.c.bf16 %v5562, %v5561
      %v5589 = vpack.c.bf16 %v5564, %v5563
      %v5590 = vpack.c.bf16 %v5566, %v5565
      %v5591 = vpack.c.bf16 %v5568, %v5567
      %v5592 = vpack.c.bf16 %v5570, %v5569
      %v5593 = vpack.c.bf16 %v5572, %v5571
      %v5594 = vpack.c.bf16 %v5574, %v5573
      %v5595 = vpack.c.bf16 %v5576, %v5575
      %v5596 = vpack.c.bf16 %v5578, %v5577
      %v5597 = vpack.c.bf16 %v5580, %v5579
      %v5598 = vpack.c.bf16 %v5582, %v5581
      %v5600 = vlaneseq
      %v5601 = vshrl.u32 %v5600, 7
      %v5602 = vsub.s32 0, %v5601
      %v5603 = vrot.slane %v349, %v5602
      %v5610 = vunpack.c.l.b16 %v344
      %v5611 = vunpack.c.l.b16 %v345
      %v5612 = vunpack.c.l.b16 %v346
      %v5613 = vunpack.c.l.b16 %v347
      %v5614 = vunpack.c.l.b16 %v348
      %v5615 = vpack.c.b16 %v5611, %v5610
      %v5616 = vpack.c.b16 %v5613, %v5612
      %v5617 = vpack.c.b16 %v5614, %v5614
      %v5621 = vsel %vm3368, %v5583, 0
      %v5624 = vsel %vm3368, %v5584, 0
      %v5627 = vsel %vm3368, %v5585, 0
      %v5630 = vsel %vm3368, %v5586, 0
      %v5633 = vsel %vm3368, %v5587, 0
      %v5636 = vsel %vm3368, %v5588, 0
      %v5639 = vsel %vm3368, %v5589, 0
      %v5642 = vsel %vm3368, %v5590, 0
      %v5645 = vsel %vm3368, %v5591, 0
      %v5648 = vsel %vm3368, %v5592, 0
      %v5651 = vsel %vm3368, %v5593, 0
      %v5654 = vsel %vm3368, %v5594, 0
      %v5657 = vsel %vm3368, %v5595, 0
      %v5660 = vsel %vm3368, %v5596, 0
      %v5663 = vsel %vm3368, %v5597, 0
      %v5666 = vsel %vm3368, %v5598, 0
      %v5669 = vsel %vm3450, %v5617, 0
      %5671 = vmatprep.subr.bf16.mxu0 0
      %5672 = vmatpush1.bf16.msra.mxu0 0
      %5673 = vmatprep.subr.bf16.mxu0 0
      %5674 = vmatpush1.bf16.msra.mxu0 0
      %5675 = vmatprep.subr.bf16.mxu0 0
      %5676 = vmatpush1.bf16.msra.mxu0 0
      %5677 = vmatprep.subr.bf16.mxu0 0
      %5678 = vmatpush1.bf16.msra.mxu0 0
      %5679 = vmatprep.subr.bf16.mxu0 0
      %5680 = vmatpush1.bf16.msra.mxu0 0
      %5681 = vmatprep.subr.bf16.mxu0 0
      %5682 = vmatpush1.bf16.msra.mxu0 %v5669
      %5683 = vmatprep.subr.bf16.mxu0 0
      %5684 = vmatpush1.bf16.msra.mxu0 %v5616
      %5685 = vmatprep.subr.bf16.mxu0 0
      %5686 = vmatpush1.bf16.msra.mxu0 %v5615
      %5687 = vmatprep.subr.bf16.mxu0 0
      %5688 = vmatpush2.bf16.msra.mxu0 0
      %5689 = vmatprep.subr.bf16.mxu0 0
      %5690 = vmatpush2.bf16.msra.mxu0 0
      %5691 = vmatprep.subr.bf16.mxu0 0
      %5692 = vmatpush2.bf16.msra.mxu0 0
      %5693 = vmatprep.subr.bf16.mxu0 0
      %5694 = vmatpush2.bf16.msra.mxu0 0
      %5695 = vmatprep.subr.bf16.mxu0 0
      %5696 = vmatpush2.bf16.msra.mxu0 0
      %5697 = vmatprep.subr.bf16.mxu0 0
      %5698 = vmatpush2.bf16.msra.mxu0 0
      %5699 = vmatprep.subr.bf16.mxu0 0
      %5700 = vmatpush2.bf16.msra.mxu0 0
      %5701 = vmatprep.subr.bf16.mxu0 0
      %5702 = vmatpush2.bf16.msra.mxu0 0
      %5703 = vmatprep.mubr.bf16.mxu0 0
      %5704 = vmatmul.mubr.bf16.gmra.mxu0 %v5621
      %v5705 = vpop.f32.mrf.mxu0
      %v5706 = vadd.f32 %v5603, %v5705
      %v5707 = vpop.f32.mrf.mxu0
      %v5708 = vpop.f32.mrf.mxu0
      %v5709 = vadd.f32 %v5603, %v5708
      %v5710 = vpop.f32.mrf.mxu0
      %5711 = vmatprep.mubr.bf16.mxu0 0
      %5712 = vmatmul.mubr.bf16.gmra.mxu0 %v5624
      %v5713 = vpop.f32.mrf.mxu0
      %v5714 = vadd.f32 %v5603, %v5713
      %v5715 = vpop.f32.mrf.mxu0
      %v5716 = vpop.f32.mrf.mxu0
      %v5717 = vadd.f32 %v5603, %v5716
      %v5718 = vpop.f32.mrf.mxu0
      %5719 = vmatprep.mubr.bf16.mxu0 0
      %5720 = vmatmul.mubr.bf16.gmra.mxu0 %v5627
      %v5721 = vpop.f32.mrf.mxu0
      %v5722 = vadd.f32 %v5603, %v5721
      %v5723 = vpop.f32.mrf.mxu0
      %v5724 = vpop.f32.mrf.mxu0
      %v5725 = vadd.f32 %v5603, %v5724
      %v5726 = vpop.f32.mrf.mxu0
      %5727 = vmatprep.mubr.bf16.mxu0 0
      %5728 = vmatmul.mubr.bf16.gmra.mxu0 %v5630
      %v5729 = vpop.f32.mrf.mxu0
      %v5730 = vadd.f32 %v5603, %v5729
      %v5731 = vpop.f32.mrf.mxu0
      %v5732 = vpop.f32.mrf.mxu0
      %v5733 = vadd.f32 %v5603, %v5732
      %v5734 = vpop.f32.mrf.mxu0
      %5735 = vmatprep.mubr.bf16.mxu0 0
      %5736 = vmatmul.mubr.bf16.gmra.mxu0 %v5633
      %v5737 = vpop.f32.mrf.mxu0
      %v5738 = vadd.f32 %v5603, %v5737
      %v5739 = vpop.f32.mrf.mxu0
      %v5740 = vpop.f32.mrf.mxu0
      %v5741 = vadd.f32 %v5603, %v5740
      %v5742 = vpop.f32.mrf.mxu0
      %5743 = vmatprep.mubr.bf16.mxu0 0
      %5744 = vmatmul.mubr.bf16.gmra.mxu0 %v5636
      %v5745 = vpop.f32.mrf.mxu0
      %v5746 = vadd.f32 %v5603, %v5745
      %v5747 = vpop.f32.mrf.mxu0
      %v5748 = vpop.f32.mrf.mxu0
      %v5749 = vadd.f32 %v5603, %v5748
      %v5750 = vpop.f32.mrf.mxu0
      %5751 = vmatprep.mubr.bf16.mxu0 0
      %5752 = vmatmul.mubr.bf16.gmra.mxu0 %v5639
      %v5753 = vpop.f32.mrf.mxu0
      %v5754 = vadd.f32 %v5603, %v5753
      %v5755 = vpop.f32.mrf.mxu0
      %v5756 = vpop.f32.mrf.mxu0
      %v5757 = vadd.f32 %v5603, %v5756
      %v5758 = vpop.f32.mrf.mxu0
      %5759 = vmatprep.mubr.bf16.mxu0 0
      %5760 = vmatmul.mubr.bf16.gmra.mxu0 %v5642
      %v5761 = vpop.f32.mrf.mxu0
      %v5762 = vadd.f32 %v5603, %v5761
      %v5763 = vpop.f32.mrf.mxu0
      %v5764 = vpop.f32.mrf.mxu0
      %v5765 = vadd.f32 %v5603, %v5764
      %v5766 = vpop.f32.mrf.mxu0
      %5767 = vmatprep.mubr.bf16.mxu0 0
      %5768 = vmatmul.mubr.bf16.gmra.mxu0 %v5645
      %v5769 = vpop.f32.mrf.mxu0
      %v5770 = vadd.f32 %v5603, %v5769
      %v5771 = vpop.f32.mrf.mxu0
      %v5772 = vpop.f32.mrf.mxu0
      %v5773 = vadd.f32 %v5603, %v5772
      %v5774 = vpop.f32.mrf.mxu0
      %5775 = vmatprep.mubr.bf16.mxu0 0
      %5776 = vmatmul.mubr.bf16.gmra.mxu0 %v5648
      %v5777 = vpop.f32.mrf.mxu0
      %v5778 = vadd.f32 %v5603, %v5777
      %v5779 = vpop.f32.mrf.mxu0
      %v5780 = vpop.f32.mrf.mxu0
      %v5781 = vadd.f32 %v5603, %v5780
      %v5782 = vpop.f32.mrf.mxu0
      %5783 = vmatprep.mubr.bf16.mxu0 0
      %5784 = vmatmul.mubr.bf16.gmra.mxu0 %v5651
      %v5785 = vpop.f32.mrf.mxu0
      %v5786 = vadd.f32 %v5603, %v5785
      %v5787 = vpop.f32.mrf.mxu0
      %v5788 = vpop.f32.mrf.mxu0
      %v5789 = vadd.f32 %v5603, %v5788
      %v5790 = vpop.f32.mrf.mxu0
      %5791 = vmatprep.mubr.bf16.mxu0 0
      %5792 = vmatmul.mubr.bf16.gmra.mxu0 %v5654
      %v5793 = vpop.f32.mrf.mxu0
      %v5794 = vadd.f32 %v5603, %v5793
      %v5795 = vpop.f32.mrf.mxu0
      %v5796 = vpop.f32.mrf.mxu0
      %v5797 = vadd.f32 %v5603, %v5796
      %v5798 = vpop.f32.mrf.mxu0
      %5799 = vmatprep.mubr.bf16.mxu0 0
      %5800 = vmatmul.mubr.bf16.gmra.mxu0 %v5657
      %v5801 = vpop.f32.mrf.mxu0
      %v5802 = vadd.f32 %v5603, %v5801
      %v5803 = vpop.f32.mrf.mxu0
      %v5804 = vpop.f32.mrf.mxu0
      %v5805 = vadd.f32 %v5603, %v5804
      %v5806 = vpop.f32.mrf.mxu0
      %5807 = vmatprep.mubr.bf16.mxu0 0
      %5808 = vmatmul.mubr.bf16.gmra.mxu0 %v5660
      %v5809 = vpop.f32.mrf.mxu0
      %v5810 = vadd.f32 %v5603, %v5809
      %v5811 = vpop.f32.mrf.mxu0
      %v5812 = vpop.f32.mrf.mxu0
      %v5813 = vadd.f32 %v5603, %v5812
      %v5814 = vpop.f32.mrf.mxu0
      %5815 = vmatprep.mubr.bf16.mxu0 0
      %5816 = vmatmul.mubr.bf16.gmra.mxu0 %v5663
      %v5817 = vpop.f32.mrf.mxu0
      %v5818 = vadd.f32 %v5603, %v5817
      %v5819 = vpop.f32.mrf.mxu0
      %v5820 = vpop.f32.mrf.mxu0
      %v5821 = vadd.f32 %v5603, %v5820
      %v5822 = vpop.f32.mrf.mxu0
      %5823 = vmatprep.mubr.bf16.mxu0 0
      %5824 = vmatmul.mubr.bf16.gmra.mxu0 %v5666
      %v5825 = vpop.f32.mrf.mxu0
      %v5826 = vadd.f32 %v5603, %v5825
      %v5827 = vpop.f32.mrf.mxu0
      %v5828 = vpop.f32.mrf.mxu0
      %v5829 = vadd.f32 %v5603, %v5828
      %v5830 = vpop.f32.mrf.mxu0
      %5831 = vdwg.mxu0
      %v5832 = vld [vmem:[%s327 + $0x40] sm:$0xff]
      %v5833 = vld [vmem:[%s327 + $0x48] sm:$0xff]
      %v5834 = vld [vmem:[%s327 + $0x50] sm:$0xff]
      %v5835 = vld [vmem:[%s327 + $0x60] sm:$0xff]
      %v5836 = vld [vmem:[%s327 + $0x68] sm:$0xff]
      %v5837 = vld [vmem:[%s327 + $0x70] sm:$0xff]
      %v5838 = vld [vmem:[%s327 + $0x80] sm:$0xff]
      %v5839 = vld [vmem:[%s327 + $0x88] sm:$0xff]
      %v5840 = vld [vmem:[%s327 + $0x90] sm:$0xff]
      %v5841 = vld [vmem:[%s327 + $0xa0] sm:$0xff]
      %v5842 = vld [vmem:[%s327 + $0xa8] sm:$0xff]
      %v5843 = vld [vmem:[%s327 + $0xb0] sm:$0xff]
      %v5844 = vld [vmem:[%s327 + $0xc0] sm:$0xff]
      %v5845 = vld [vmem:[%s327 + $0xc8] sm:$0xff]
      %v5846 = vld [vmem:[%s327 + $0xd0] sm:$0xff]
      %v5847 = vld [vmem:[%s327 + $0xe0] sm:$0xff]
      %v5848 = vld [vmem:[%s327 + $0xe8] sm:$0xff]
      %v5849 = vld [vmem:[%s327 + $0xf0] sm:$0xff]
      %v5850 = vld [vmem:[%s327 + $0x100] sm:$0xff]
      %v5851 = vld [vmem:[%s327 + $0x108] sm:$0xff]
      %v5852 = vld [vmem:[%s327 + $0x110] sm:$0xff]
      %v5853 = vld [vmem:[%s327 + $0x120] sm:$0xff]
      %v5854 = vld [vmem:[%s327 + $0x128] sm:$0xff]
      %v5855 = vld [vmem:[%s327 + $0x130] sm:$0xff]
      %v5856 = vld [vmem:[%s327 + $0x140] sm:$0xff]
      %v5857 = vld [vmem:[%s327 + $0x148] sm:$0xff]
      %v5858 = vld [vmem:[%s327 + $0x150] sm:$0xff]
      %v5859 = vld [vmem:[%s327 + $0x160] sm:$0xff]
      %v5860 = vld [vmem:[%s327 + $0x168] sm:$0xff]
      %v5861 = vld [vmem:[%s327 + $0x170] sm:$0xff]
      %v5862 = vld [vmem:[%s327 + $0x180] sm:$0xff]
      %v5863 = vld [vmem:[%s327 + $0x188] sm:$0xff]
      %v5864 = vld [vmem:[%s327 + $0x190] sm:$0xff]
      %v5865 = vld [vmem:[%s327 + $0x1a0] sm:$0xff]
      %v5866 = vld [vmem:[%s327 + $0x1a8] sm:$0xff]
      %v5867 = vld [vmem:[%s327 + $0x1b0] sm:$0xff]
      %v5868 = vld [vmem:[%s327 + $0x1c0] sm:$0xff]
      %v5869 = vld [vmem:[%s327 + $0x1c8] sm:$0xff]
      %v5870 = vld [vmem:[%s327 + $0x1d0] sm:$0xff]
      %v5871 = vld [vmem:[%s327 + $0x1e0] sm:$0xff]
      %v5872 = vld [vmem:[%s327 + $0x1e8] sm:$0xff]
      %v5873 = vld [vmem:[%s327 + $0x1f0] sm:$0xff]
      %v5874 = vld [vmem:[%s327 + $0x200] sm:$0xff]
      %v5875 = vld [vmem:[%s327 + $0x208] sm:$0xff]
      %v5876 = vld [vmem:[%s327 + $0x210] sm:$0xff]
      %v5877 = vld [vmem:[%s327 + $0x220] sm:$0xff]
      %v5878 = vld [vmem:[%s327 + $0x228] sm:$0xff]
      %v5879 = vld [vmem:[%s327 + $0x230] sm:$0xff]
      %vm5928 = vcmask 1045504
      %v5929 = vrot.slane %v5832, 2
      %v5930 = vrot.slane %v5833, 2
      %v5931 = vsel %vm5928, %v5929, %v5930
      %v5932 = vrot.slane %v5834, 2
      %v5933 = vsel %vm5928, %v5930, %v5932
      %v5934 = vrot.slane %v5835, 2
      %v5935 = vrot.slane %v5836, 2
      %v5936 = vsel %vm5928, %v5934, %v5935
      %v5937 = vrot.slane %v5837, 2
      %v5938 = vsel %vm5928, %v5935, %v5937
      %v5939 = vrot.slane %v5838, 2
      %v5940 = vrot.slane %v5839, 2
      %v5941 = vsel %vm5928, %v5939, %v5940
      %v5942 = vrot.slane %v5840, 2
      %v5943 = vsel %vm5928, %v5940, %v5942
      %v5944 = vrot.slane %v5841, 2
      %v5945 = vrot.slane %v5842, 2
      %v5946 = vsel %vm5928, %v5944, %v5945
      %v5947 = vrot.slane %v5843, 2
      %v5948 = vsel %vm5928, %v5945, %v5947
      %v5949 = vrot.slane %v5844, 2
      %v5950 = vrot.slane %v5845, 2
      %v5951 = vsel %vm5928, %v5949, %v5950
      %v5952 = vrot.slane %v5846, 2
      %v5953 = vsel %vm5928, %v5950, %v5952
      %v5954 = vrot.slane %v5847, 2
      %v5955 = vrot.slane %v5848, 2
      %v5956 = vsel %vm5928, %v5954, %v5955
      %v5957 = vrot.slane %v5849, 2
      %v5958 = vsel %vm5928, %v5955, %v5957
      %v5959 = vrot.slane %v5850, 2
      %v5960 = vrot.slane %v5851, 2
      %v5961 = vsel %vm5928, %v5959, %v5960
      %v5962 = vrot.slane %v5852, 2
      %v5963 = vsel %vm5928, %v5960, %v5962
      %v5964 = vrot.slane %v5853, 2
      %v5965 = vrot.slane %v5854, 2
      %v5966 = vsel %vm5928, %v5964, %v5965
      %v5967 = vrot.slane %v5855, 2
      %v5968 = vsel %vm5928, %v5965, %v5967
      %v5969 = vrot.slane %v5856, 2
      %v5970 = vrot.slane %v5857, 2
      %v5971 = vsel %vm5928, %v5969, %v5970
      %v5972 = vrot.slane %v5858, 2
      %v5973 = vsel %vm5928, %v5970, %v5972
      %v5974 = vrot.slane %v5859, 2
      %v5975 = vrot.slane %v5860, 2
      %v5976 = vsel %vm5928, %v5974, %v5975
      %v5977 = vrot.slane %v5861, 2
      %v5978 = vsel %vm5928, %v5975, %v5977
      %v5979 = vrot.slane %v5862, 2
      %v5980 = vrot.slane %v5863, 2
      %v5981 = vsel %vm5928, %v5979, %v5980
      %v5982 = vrot.slane %v5864, 2
      %v5983 = vsel %vm5928, %v5980, %v5982
      %v5984 = vrot.slane %v5865, 2
      %v5985 = vrot.slane %v5866, 2
      %v5986 = vsel %vm5928, %v5984, %v5985
      %v5987 = vrot.slane %v5867, 2
      %v5988 = vsel %vm5928, %v5985, %v5987
      %v5989 = vrot.slane %v5868, 2
      %v5990 = vrot.slane %v5869, 2
      %v5991 = vsel %vm5928, %v5989, %v5990
      %v5992 = vrot.slane %v5870, 2
      %v5993 = vsel %vm5928, %v5990, %v5992
      %v5994 = vrot.slane %v5871, 2
      %v5995 = vrot.slane %v5872, 2
      %v5996 = vsel %vm5928, %v5994, %v5995
      %v5997 = vrot.slane %v5873, 2
      %v5998 = vsel %vm5928, %v5995, %v5997
      %v5999 = vrot.slane %v5874, 2
      %v6000 = vrot.slane %v5875, 2
      %v6001 = vsel %vm5928, %v5999, %v6000
      %v6002 = vrot.slane %v5876, 2
      %v6003 = vsel %vm5928, %v6000, %v6002
      %v6004 = vrot.slane %v5877, 2
      %v6005 = vrot.slane %v5878, 2
      %v6006 = vsel %vm5928, %v6004, %v6005
      %v6007 = vrot.slane %v5879, 2
      %v6008 = vsel %vm5928, %v6005, %v6007
      %v6041 = vadd.f32 %v5706, %v5931
      %v6042 = vadd.f32 %v5709, %v5933
      %v6043 = vadd.f32 %v5714, %v5936
      %v6044 = vadd.f32 %v5717, %v5938
      %v6045 = vadd.f32 %v5722, %v5941
      %v6046 = vadd.f32 %v5725, %v5943
      %v6047 = vadd.f32 %v5730, %v5946
      %v6048 = vadd.f32 %v5733, %v5948
      %v6049 = vadd.f32 %v5738, %v5951
      %v6050 = vadd.f32 %v5741, %v5953
      %v6051 = vadd.f32 %v5746, %v5956
      %v6052 = vadd.f32 %v5749, %v5958
      %v6053 = vadd.f32 %v5754, %v5961
      %v6054 = vadd.f32 %v5757, %v5963
      %v6055 = vadd.f32 %v5762, %v5966
      %v6056 = vadd.f32 %v5765, %v5968
      %v6057 = vadd.f32 %v5770, %v5971
      %v6058 = vadd.f32 %v5773, %v5973
      %v6059 = vadd.f32 %v5778, %v5976
      %v6060 = vadd.f32 %v5781, %v5978
      %v6061 = vadd.f32 %v5786, %v5981
      %v6062 = vadd.f32 %v5789, %v5983
      %v6063 = vadd.f32 %v5794, %v5986
      %v6064 = vadd.f32 %v5797, %v5988
      %v6065 = vadd.f32 %v5802, %v5991
      %v6066 = vadd.f32 %v5805, %v5993
      %v6067 = vadd.f32 %v5810, %v5996
      %v6068 = vadd.f32 %v5813, %v5998
      %v6069 = vadd.f32 %v5818, %v6001
      %v6070 = vadd.f32 %v5821, %v6003
      %v6071 = vadd.f32 %v5826, %v6006
      %v6072 = vadd.f32 %v5829, %v6008
      %6073 = vst.msk [vmem:[%s332] sm:$0xff] %vm951, %v6041
      %6074 = vst.msk [vmem:[%s332 + $0x8] sm:$0xff] %vm951, %v6042
      %6075 = vst.msk [vmem:[%s332 + $0x10] sm:$0xff] %vm951, %v6043
      %6076 = vst.msk [vmem:[%s332 + $0x18] sm:$0xff] %vm951, %v6044
      %6077 = vst.msk [vmem:[%s332 + $0x20] sm:$0xff] %vm951, %v6045
      %6078 = vst.msk [vmem:[%s332 + $0x28] sm:$0xff] %vm951, %v6046
      %6079 = vst.msk [vmem:[%s332 + $0x30] sm:$0xff] %vm951, %v6047
      %6080 = vst.msk [vmem:[%s332 + $0x38] sm:$0xff] %vm951, %v6048
      %6081 = vst.msk [vmem:[%s332 + $0x40] sm:$0xff] %vm951, %v6049
      %6082 = vst.msk [vmem:[%s332 + $0x48] sm:$0xff] %vm951, %v6050
      %6083 = vst.msk [vmem:[%s332 + $0x50] sm:$0xff] %vm951, %v6051
      %6084 = vst.msk [vmem:[%s332 + $0x58] sm:$0xff] %vm951, %v6052
      %6085 = vst.msk [vmem:[%s332 + $0x60] sm:$0xff] %vm951, %v6053
      %6086 = vst.msk [vmem:[%s332 + $0x68] sm:$0xff] %vm951, %v6054
      %6087 = vst.msk [vmem:[%s332 + $0x70] sm:$0xff] %vm951, %v6055
      %6088 = vst.msk [vmem:[%s332 + $0x78] sm:$0xff] %vm951, %v6056
      %6089 = vst.msk [vmem:[%s332 + $0x80] sm:$0xff] %vm951, %v6057
      %6090 = vst.msk [vmem:[%s332 + $0x88] sm:$0xff] %vm951, %v6058
      %6091 = vst.msk [vmem:[%s332 + $0x90] sm:$0xff] %vm951, %v6059
      %6092 = vst.msk [vmem:[%s332 + $0x98] sm:$0xff] %vm951, %v6060
      %6093 = vst.msk [vmem:[%s332 + $0xa0] sm:$0xff] %vm951, %v6061
      %6094 = vst.msk [vmem:[%s332 + $0xa8] sm:$0xff] %vm951, %v6062
      %6095 = vst.msk [vmem:[%s332 + $0xb0] sm:$0xff] %vm951, %v6063
      %6096 = vst.msk [vmem:[%s332 + $0xb8] sm:$0xff] %vm951, %v6064
      %6097 = vst.msk [vmem:[%s332 + $0xc0] sm:$0xff] %vm951, %v6065
      %6098 = vst.msk [vmem:[%s332 + $0xc8] sm:$0xff] %vm951, %v6066
      %6099 = vst.msk [vmem:[%s332 + $0xd0] sm:$0xff] %vm951, %v6067
      %6100 = vst.msk [vmem:[%s332 + $0xd8] sm:$0xff] %vm951, %v6068
      %6101 = vst.msk [vmem:[%s332 + $0xe0] sm:$0xff] %vm951, %v6069
      %6102 = vst.msk [vmem:[%s332 + $0xe8] sm:$0xff] %vm951, %v6070
      %6103 = vst.msk [vmem:[%s332 + $0xf0] sm:$0xff] %vm951, %v6071
      %6104 = vst.msk [vmem:[%s332 + $0xf8] sm:$0xff] %vm951, %v6072
      %p6105 = scmp.lt.s32.totalorder %s20, 1
      %s6106 = scalar_select %p6105, %s20, 1
      %s6107 = smul.addr %s6106, 32
      %s6108 = smul.addr %s6107, 8
      %s6109 = scalar_lea.vmem %s9, %s6108
      // Predicated region
      $region57: #{tpu_custom_call.1} parent=55 // pred_check
        %p6110 = pneg %p232
      $region58: #{tpu_custom_call.1} parent=55 // pred_check_branch
        %6112 = sbr.rel (%p6110) target = $region60
      $region59: #{tpu_custom_call.1} parent=55 // pred_region
        _
      $region60: #{tpu_custom_call.1} parent=55 // pred_fallthru
        _
    $region56: #{tpu_custom_call.1} parent=5 // pred_fallthru
      _
    %p6113 = scmp.le.s32.totalorder 2, %s15
    // Predicated region
    $region61: #{tpu_custom_call.1} parent=5 // pred_check
      %p6114 = pneg %p6113
    $region62: #{tpu_custom_call.1} parent=5 // pred_check_branch
      %6116 = sbr.rel (%p6114) target = $region64
    $region63: #{tpu_custom_call.1} parent=5 // pred_region
      %s6117 = ssub.s32 %s15, 2
      // Predicated region
      $region65: #{tpu_custom_call.1} parent=63 // pred_check
        %p6118 = pneg %p238
      $region66: #{tpu_custom_call.1} parent=63 // pred_check_branch
        %6120 = sbr.rel (%p6118) target = $region68
      $region67: #{tpu_custom_call.1} parent=63 // pred_region
        %p6121 = scmp.lt.s32.totalorder %s21, 1
        %s6122 = scalar_select %p6121, %s21, 1
        %s6123 = smul.addr %s6122, 32
        %s6124 = smul.addr %s6123, 8
        %s6125 = scalar_lea.vmem %s9, %s6124
      $region68: #{tpu_custom_call.1} parent=63 // pred_fallthru
        _
    $region64: #{tpu_custom_call.1} parent=5 // pred_fallthru
      _
  $region6: #{tpu_custom_call.1} parent=0 // loop_footer
    %s19 = sadd.s32 1, %s15
  $region7: #{tpu_custom_call.1} parent=0 // loop_footer_branch
    %14 = sbr.rel target = $region3
  $region8: #{tpu_custom_call.1} parent=0 // loop_exit
    _

</llo_original>
